<compile_context>
chip_gen: v6e
topology: v6e:2x2x1
jax: 0.10.0
libtpu: 0.0.40
codegen_flags: <defaults>
</compile_context>

<pallas_src>
import functools

import numpy as np
import jax
import jax.numpy as jnp
from jax import lax
from jax.experimental import pallas as pl
from jax.experimental.pallas import tpu as pltpu


# ----------------------------------------------------------------------------
# Configuration (small shapes consistent with the module: spatial 2 -> 64).
# ----------------------------------------------------------------------------
LATENT_DIM = 8
NUM_DENSE_NEURONS = [32, 64]
NUM_CHANNELS = [32, 16, 8, 4]
BATCH = 2

ACT_PAD = 8  # spare scratch rows above/below the live activation region


def _conv_path_cfgs(num_channels):
    """Static per-layer config: 4 upsample-convs, final_res, final_conv."""
    cfgs = []
    h = w = 2
    cin = num_channels[0]
    for cout in num_channels:                                  # upsample_conv_layers
        cfgs.append(dict(h=h, w=w, cin=cin, cout=cout, upsample=True))
        h, w, cin = 2 * h, 2 * w, cout
    cfgs.append(dict(h=h, w=w, cin=cin, cout=2, upsample=True))   # final_res_layer
    h, w = 2 * h, 2 * w
    cfgs.append(dict(h=h, w=w, cin=2, cout=2, upsample=False))    # final_conv_layer
    return cfgs


# ----------------------------------------------------------------------------
# Synthetic parameters (deterministic).
# ----------------------------------------------------------------------------
def init_params(key, latent_dim, num_dense_neurons, num_channels):
    """Linear weights generated as (in, out); conv weights as HWIO (3,3,Cin,Cout).
    final_dense output columns follow PyTorch's view(-1, C0, 2, 2) (NCHW) order;
    pack_params permutes them into the kernel layout."""
    def lin(k, fin, fout):
        kw, kb = jax.random.split(k)
        w = jax.random.normal(kw, (fin, fout), jnp.float32) / jnp.sqrt(float(fin))
        b = 0.01 * jax.random.normal(kb, (fout,), jnp.float32)
        return w, b

    def conv(k, cin, cout):
        kw, kb = jax.random.split(k)
        w = jax.random.normal(kw, (3, 3, cin, cout), jnp.float32) / jnp.sqrt(9.0 * cin)
        b = 0.01 * jax.random.normal(kb, (cout,), jnp.float32)
        return w, b

    n_keys = len(num_dense_neurons) + 1 + len(num_channels) + 1 + 1
    keys = jax.random.split(key, n_keys)
    ki = iter(range(n_keys))

    params = {}
    dense = []
    fin = latent_dim
    for n in num_dense_neurons:
        dense.append(lin(keys[next(ki)], fin, n))
        fin = n
    params["dense"] = dense
    params["final_dense"] = lin(keys[next(ki)], num_dense_neurons[-1],
                                num_channels[0] * 2 * 2)

    ups = []
    cin = num_channels[0]
    for cout in num_channels:
        ups.append(conv(keys[next(ki)], cin, cout))
        cin = cout
    params["upsample_convs"] = ups
    params["final_res"] = conv(keys[next(ki)], num_channels[-1], 2)
    params["final_conv_w"] = (jax.random.normal(keys[next(ki)], (3, 3, 2, 2), jnp.float32)
                              / jnp.sqrt(18.0))
    return params


# ----------------------------------------------------------------------------
# Host-side (one-time) weight packing into the kernel's resident layout.
# ----------------------------------------------------------------------------
def _build_upsample_conv_G(w_hwio, w_in):
    """Dense packed weights for (2x nearest upsample + 3x3 conv, pad=1).

    Returns G of shape (4*K, N) with K = w_in*Cin, N = 2*w_in*Cout.
    Row blocks (a, t) in order [(0,0),(0,1),(1,0),(1,1)]: block (a, t) maps the
    input row-slab (rows=(b,i), lanes=(x,ci)) shifted by row offset p = a+t-1 to
    the output row-parity-a slab (lanes=(x',co)); all x-direction taps, the
    nearest-upsample index math and the zero padding in x are folded in.
    """
    W = np.asarray(w_hwio, np.float32)
    cin, cout = W.shape[2], W.shape[3]
    K = w_in * cin
    N = 2 * w_in * cout
    G = np.zeros((2, 2, K, N), np.float32)
    for a in range(2):
        for ky in range(3):
            p = (a + ky - 1) // 2           # input row offset contributed by ky
            t = p - a + 1                   # tap slot (0 or 1) for this parity
            for kx in range(3):
                for xo in range(2 * w_in):
                    v = xo + kx - 1         # high-res column read by the conv
                    if v < 0 or v >= 2 * w_in:
                        continue            # zero padding in x
                    j = v // 2              # nearest-upsample source column
                    G[a, t, j * cin:(j + 1) * cin,
                      xo * cout:(xo + 1) * cout] += W[ky, kx]
    return G.reshape(4 * K, N)


def _build_conv_G(w_hwio, w_in):
    """Dense packed weights for a plain 3x3 conv (pad=1): one (K, N) matrix per
    row tap p = ky - 1, stacked as (3*K, N)."""
    W = np.asarray(w_hwio, np.float32)
    cin, cout = W.shape[2], W.shape[3]
    K = w_in * cin
    N = w_in * cout
    G = np.zeros((3, K, N), np.float32)
    for ky in range(3):
        for kx in range(3):
            for xo in range(w_in):
                xs = xo + kx - 1
                if xs < 0 or xs >= w_in:
                    continue
                G[ky, xs * cin:(xs + 1) * cin,
                  xo * cout:(xo + 1) * cout] += W[ky, kx]
    return G.reshape(3 * K, N)


def pack_params(params, num_channels, cfgs):
    packed = []
    # dense stack: bf16 weights for the MXU, (1, n) f32 biases for lane broadcast
    for w, b in params["dense"]:
        packed += [w.astype(jnp.bfloat16), b.reshape(1, -1).astype(jnp.float32)]
    # final dense: permute output columns from NCHW view order (c*4 + y*2 + x)
    # to the kernel's (y, x, c) layout.
    c0 = num_channels[0]
    wfd, bfd = params["final_dense"]
    perm = np.zeros(4 * c0, np.int32)
    for y in range(2):
        for x in range(2):
            for c in range(c0):
                perm[y * 2 * c0 + x * c0 + c] = c * 4 + y * 2 + x
    packed += [wfd[:, perm].astype(jnp.bfloat16),
               bfd[perm].reshape(1, -1).astype(jnp.float32)]
    # upsample conv layers + final_res
    conv_params = list(params["upsample_convs"]) + [params["final_res"]]
    for cfg, (w, b) in zip(cfgs[:-1], conv_params):
        G = _build_upsample_conv_G(w, cfg["w"])
        bias = np.tile(np.asarray(b, np.float32), 2 * cfg["w"]).reshape(1, -1)
        packed += [jnp.asarray(G, jnp.bfloat16), jnp.asarray(bias, jnp.float32)]
    # final conv (no bias, no activation)
    Gfc = _build_conv_G(params["final_conv_w"], cfgs[-1]["w"])
    packed += [jnp.asarray(Gfc, jnp.bfloat16)]
    return packed


# ----------------------------------------------------------------------------
# The fused kernel.
# ----------------------------------------------------------------------------
def _gelu(x):
    # tanh-approximate GELU (EUP-friendly).
    # TODO(synk): PyTorch nn.GELU() defaults to the exact erf form.
    c = 0.7978845608028654  # sqrt(2/pi)
    return 0.5 * x * (1.0 + jnp.tanh(c * (x + 0.044715 * x * x * x)))


def _row_valid(n_rows, n_cols, h, p):
    """Mask of rows (b, y) for which the row-shifted read (y + p) stays in-image."""
    y = lax.broadcasted_iota(jnp.int32, (n_rows, n_cols), 0) % h
    return (y + p >= 0) & (y + p < h)


def _generator_kernel(batch, n_dense, cfgs, *refs):
    it = iter(refs)
    latent_ref = next(it)
    dense_refs = [(next(it), next(it)) for _ in range(n_dense + 1)]
    conv_refs = []
    for cfg in cfgs:
        if cfg["upsample"]:
            conv_refs.append((next(it), next(it)))
        else:
            conv_refs.append((next(it), None))
    out_ref = next(it)
    act_ref = next(it)   # resident (B*H, W*C) activation slab (f32)
    t0_ref = next(it)    # even-output-row parity slab
    t1_ref = next(it)    # odd-output-row parity slab

    f32, bf16 = jnp.float32, jnp.bfloat16

    # ---- dense stack (incl. final dense), fully fused -----------------------
    z = latent_ref[...].astype(f32)
    for w_ref, b_ref in dense_refs:
        z = jnp.dot(z.astype(bf16), w_ref[...], preferred_element_type=f32)
        z = _gelu(z + b_ref[...])

    # ---- scatter dense output into the conv-path layout ----------------------
    # act rows = (b, y), lanes = (x, ci); z row b is already ordered (y, x, c).
    h0, w0, c0 = cfgs[0]["h"], cfgs[0]["w"], cfgs[0]["cin"]
    for b in range(batch):
        for y in range(h0):
            r = ACT_PAD + b * h0 + y
            act_ref[r:r + 1, 0:w0 * c0] = z[b:b + 1, y * w0 * c0:(y + 1) * w0 * c0]

    # ---- conv path: sub-pixel (upsample+conv) layers, all in VMEM -------------
    for cfg, (g_ref, bias_ref) in zip(cfgs, conv_refs):
        h, w, cin, cout = cfg["h"], cfg["w"], cfg["cin"], cfg["cout"]
        R = batch * h      # live input rows (b, y)
        K = w * cin        # input lane width (x, ci)

        # Row-shifted views of the input slab; out-of-image rows masked to zero
        # (the mask also kills cross-batch contamination and scratch garbage).
        x0 = act_ref[ACT_PAD:ACT_PAD + R, 0:K]
        xm = jnp.where(_row_valid(R, K, h, -1),
                       act_ref[ACT_PAD - 1:ACT_PAD - 1 + R, 0:K], 0.0)
        xp = jnp.where(_row_valid(R, K, h, +1),
                       act_ref[ACT_PAD + 1:ACT_PAD + 1 + R, 0:K], 0.0)
        x0b, xmb, xpb = x0.astype(bf16), xm.astype(bf16), xp.astype(bf16)

        if cfg["upsample"]:
            N = 2 * w * cout                       # 128 lanes for every layer
            g00 = g_ref[0 * K:1 * K, :]            # (a=0, p=-1)
            g01 = g_ref[1 * K:2 * K, :]            # (a=0, p= 0)
            g10 = g_ref[2 * K:3 * K, :]            # (a=1, p= 0)
            g11 = g_ref[3 * K:4 * K, :]            # (a=1, p=+1)
            bias = bias_ref[...]
            # even output rows (y' = 2i):   taps p = -1, 0
            o0 = (jnp.dot(xmb, g00, preferred_element_type=f32) +
                  jnp.dot(x0b, g01, preferred_element_type=f32))
            # odd output rows (y' = 2i+1):  taps p = 0, +1
            o1 = (jnp.dot(x0b, g10, preferred_element_type=f32) +
                  jnp.dot(xpb, g11, preferred_element_type=f32))
            o0 = _gelu(o0 + bias)
            o1 = _gelu(o1 + bias)
            t0_ref[0:R, 0:N] = o0
            t1_ref[0:R, 0:N] = o1
            # Interleave the two row-parity slabs back into (b, y') order.
            # Fully static, unrolled single-row VMEM copies (<= 64 per layer).
            for m in range(R):
                d = ACT_PAD + 2 * m
                act_ref[d:d + 1, 0:N] = t0_ref[m:m + 1, 0:N]
                act_ref[d + 1:d + 2, 0:N] = t1_ref[m:m + 1, 0:N]
        else:
            # final 3x3 conv: no upsample, no bias, no activation.
            gm = g_ref[0 * K:1 * K, :]             # p = -1
            g0 = g_ref[1 * K:2 * K, :]             # p =  0
            gp = g_ref[2 * K:3 * K, :]             # p = +1
            o = (jnp.dot(xmb, gm, preferred_element_type=f32) +
                 jnp.dot(x0b, g0, preferred_element_type=f32) +
                 jnp.dot(xpb, gp, preferred_element_type=f32))
            out_ref[...] = o.astype(out_ref.dtype)


# ----------------------------------------------------------------------------
# Wrapper: single pallas_call (no grid: every operand whole-array in VMEM).
# ----------------------------------------------------------------------------
def make_forward(latent_dim, num_dense_neurons, num_channels, batch):
    cfgs = _conv_path_cfgs(num_channels)
    h_out, w_out, c_out = cfgs[-1]["h"], cfgs[-1]["w"], cfgs[-1]["cout"]
    assert h_out == 64 and w_out == 64, "config must reach 64x64 before the crop"

    lanes = max(max(c["w"] * c["cin"],
                    (2 if c["upsample"] else 1) * c["w"] * c["cout"]) for c in cfgs)
    act_rows = 2 * ACT_PAD + batch * h_out
    tmp_rows = max(batch * c["h"] for c in cfgs if c["upsample"])

    kernel = functools.partial(_generator_kernel, batch, len(num_dense_neurons), cfgs)

    fused_call = pl.pallas_call(
        kernel,
        out_shape=jax.ShapeDtypeStruct((batch * h_out, w_out * c_out), jnp.float32),
        scratch_shapes=[
            pltpu.VMEM((act_rows, lanes), jnp.float32),   # resident activation slab
            pltpu.VMEM((tmp_rows, lanes), jnp.float32),   # even-row parity slab
            pltpu.VMEM((tmp_rows, lanes), jnp.float32),   # odd-row parity slab
        ],
    )

    @jax.jit
    def forward(latent, packed):
        out2d = fused_call(latent, *packed)               # (B*64, 64*2), lane-dense
        out = out2d.reshape(batch, h_out, w_out, c_out)   # metadata-only reshape
        out = jnp.transpose(out, (0, 3, 1, 2))            # NHWC -> NCHW
        return out[:, :, 0:64, 0:64]                      # matches z[:, :, 0:64, 0:64]

    return forward, cfgs


# ----------------------------------------------------------------------------
if __name__ == "__main__":
    key = jax.random.PRNGKey(0)
    k_params, k_latent = jax.random.split(key)

    params = init_params(k_params, LATENT_DIM, NUM_DENSE_NEURONS, NUM_CHANNELS)
    forward, cfgs = make_forward(LATENT_DIM, NUM_DENSE_NEURONS, NUM_CHANNELS, BATCH)
    packed = pack_params(params, NUM_CHANNELS, cfgs)

    latent = jax.random.normal(k_latent, (BATCH, LATENT_DIM), jnp.float32)

    out = forward(latent, packed)
    out = jax.block_until_ready(out)

    assert out.shape == (BATCH, 2, 64, 64), out.shape
    assert bool(jnp.all(jnp.isfinite(out)))
    print("KERNEL_OK")
</pallas_src>

<mosaic_0001>
module attributes {stable_mosaic.version = 11 : i64} {
  func.func @_generator_kernel(%arg0: memref<2x8xf32, #tpu.memory_space<vmem>>, %arg1: memref<8x32xbf16, #tpu.memory_space<vmem>>, %arg2: memref<1x32xf32, #tpu.memory_space<vmem>>, %arg3: memref<32x64xbf16, #tpu.memory_space<vmem>>, %arg4: memref<1x64xf32, #tpu.memory_space<vmem>>, %arg5: memref<64x128xbf16, #tpu.memory_space<vmem>>, %arg6: memref<1x128xf32, #tpu.memory_space<vmem>>, %arg7: memref<256x128xbf16, #tpu.memory_space<vmem>>, %arg8: memref<1x128xf32, #tpu.memory_space<vmem>>, %arg9: memref<512x128xbf16, #tpu.memory_space<vmem>>, %arg10: memref<1x128xf32, #tpu.memory_space<vmem>>, %arg11: memref<512x128xbf16, #tpu.memory_space<vmem>>, %arg12: memref<1x128xf32, #tpu.memory_space<vmem>>, %arg13: memref<512x128xbf16, #tpu.memory_space<vmem>>, %arg14: memref<1x128xf32, #tpu.memory_space<vmem>>, %arg15: memref<512x128xbf16, #tpu.memory_space<vmem>>, %arg16: memref<1x128xf32, #tpu.memory_space<vmem>>, %arg17: memref<384x128xbf16, #tpu.memory_space<vmem>>, %arg18: memref<128x128xf32, #tpu.memory_space<vmem>>, %arg19: memref<144x128xf32, #tpu.memory_space<vmem>>, %arg20: memref<64x128xf32, #tpu.memory_space<vmem>>, %arg21: memref<64x128xf32, #tpu.memory_space<vmem>>) attributes {dimension_semantics = [], scalar_prefetch = 0 : i64, scratch_operands = 3 : i64, tpu.core_type = #tpu.core_type<tc>} {
    %c0 = arith.constant 0 : index
    %c0_0 = arith.constant 0 : index
    %0 = vector.load %arg0[%c0, %c0_0] : memref<2x8xf32, #tpu.memory_space<vmem>>, vector<2x8xf32>
    %1 = arith.truncf %0 : vector<2x8xf32> to vector<2x8xbf16>
    %c0_1 = arith.constant 0 : index
    %c0_2 = arith.constant 0 : index
    %2 = vector.load %arg1[%c0_1, %c0_2] : memref<8x32xbf16, #tpu.memory_space<vmem>>, vector<8x32xbf16>
    %cst = arith.constant dense<0.000000e+00> : vector<2x32xf32>
    %3 = tpu.matmul %1, %2, %cst {dimension_numbers = #tpu.dot_dimension_numbers<[1], [0], [0], [1], [0, 0, 1, 1], [], []>} : vector<2x8xbf16>, vector<8x32xbf16>, vector<2x32xf32> -> vector<2x32xf32>
    %c0_3 = arith.constant 0 : index
    %c0_4 = arith.constant 0 : index
    %4 = vector.load %arg2[%c0_3, %c0_4] : memref<1x32xf32, #tpu.memory_space<vmem>>, vector<1x32xf32>
    %5 = vector.broadcast %4 : vector<1x32xf32> to vector<2x32xf32>
    %6 = arith.addf %3, %5 : vector<2x32xf32>
    %cst_5 = arith.constant 5.000000e-01 : f32
    %7 = vector.broadcast %cst_5 : f32 to vector<2x32xf32>
    %8 = arith.mulf %7, %6 : vector<2x32xf32>
    %cst_6 = arith.constant 4.471500e-02 : f32
    %9 = vector.broadcast %cst_6 : f32 to vector<2x32xf32>
    %10 = arith.mulf %9, %6 : vector<2x32xf32>
    %11 = arith.mulf %10, %6 : vector<2x32xf32>
    %12 = arith.mulf %11, %6 : vector<2x32xf32>
    %13 = arith.addf %6, %12 : vector<2x32xf32>
    %cst_7 = arith.constant 0.797884583 : f32
    %14 = vector.broadcast %cst_7 : f32 to vector<2x32xf32>
    %15 = arith.mulf %14, %13 : vector<2x32xf32>
    %16 = math.tanh %15 : vector<2x32xf32>
    %cst_8 = arith.constant 1.000000e+00 : f32
    %17 = vector.broadcast %cst_8 : f32 to vector<2x32xf32>
    %18 = arith.addf %17, %16 : vector<2x32xf32>
    %19 = arith.mulf %8, %18 : vector<2x32xf32>
    %20 = arith.truncf %19 : vector<2x32xf32> to vector<2x32xbf16>
    %c0_9 = arith.constant 0 : index
    %c0_10 = arith.constant 0 : index
    %21 = vector.load %arg3[%c0_9, %c0_10] : memref<32x64xbf16, #tpu.memory_space<vmem>>, vector<32x64xbf16>
    %cst_11 = arith.constant dense<0.000000e+00> : vector<2x64xf32>
    %22 = tpu.matmul %20, %21, %cst_11 {dimension_numbers = #tpu.dot_dimension_numbers<[1], [0], [0], [1], [0, 0, 1, 1], [], []>} : vector<2x32xbf16>, vector<32x64xbf16>, vector<2x64xf32> -> vector<2x64xf32>
    %c0_12 = arith.constant 0 : index
    %c0_13 = arith.constant 0 : index
    %23 = vector.load %arg4[%c0_12, %c0_13] : memref<1x64xf32, #tpu.memory_space<vmem>>, vector<1x64xf32>
    %24 = vector.broadcast %23 : vector<1x64xf32> to vector<2x64xf32>
    %25 = arith.addf %22, %24 : vector<2x64xf32>
    %cst_14 = arith.constant 5.000000e-01 : f32
    %26 = vector.broadcast %cst_14 : f32 to vector<2x64xf32>
    %27 = arith.mulf %26, %25 : vector<2x64xf32>
    %cst_15 = arith.constant 4.471500e-02 : f32
    %28 = vector.broadcast %cst_15 : f32 to vector<2x64xf32>
    %29 = arith.mulf %28, %25 : vector<2x64xf32>
    %30 = arith.mulf %29, %25 : vector<2x64xf32>
    %31 = arith.mulf %30, %25 : vector<2x64xf32>
    %32 = arith.addf %25, %31 : vector<2x64xf32>
    %cst_16 = arith.constant 0.797884583 : f32
    %33 = vector.broadcast %cst_16 : f32 to vector<2x64xf32>
    %34 = arith.mulf %33, %32 : vector<2x64xf32>
    %35 = math.tanh %34 : vector<2x64xf32>
    %cst_17 = arith.constant 1.000000e+00 : f32
    %36 = vector.broadcast %cst_17 : f32 to vector<2x64xf32>
    %37 = arith.addf %36, %35 : vector<2x64xf32>
    %38 = arith.mulf %27, %37 : vector<2x64xf32>
    %39 = arith.truncf %38 : vector<2x64xf32> to vector<2x64xbf16>
    %c0_18 = arith.constant 0 : index
    %c0_19 = arith.constant 0 : index
    %40 = vector.load %arg5[%c0_18, %c0_19] : memref<64x128xbf16, #tpu.memory_space<vmem>>, vector<64x128xbf16>
    %cst_20 = arith.constant dense<0.000000e+00> : vector<2x128xf32>
    %41 = tpu.matmul %39, %40, %cst_20 {dimension_numbers = #tpu.dot_dimension_numbers<[1], [0], [0], [1], [0, 0, 1, 1], [], []>} : vector<2x64xbf16>, vector<64x128xbf16>, vector<2x128xf32> -> vector<2x128xf32>
    %c0_21 = arith.constant 0 : index
    %c0_22 = arith.constant 0 : index
    %42 = vector.load %arg6[%c0_21, %c0_22] : memref<1x128xf32, #tpu.memory_space<vmem>>, vector<1x128xf32>
    %43 = vector.broadcast %42 : vector<1x128xf32> to vector<2x128xf32>
    %44 = arith.addf %41, %43 : vector<2x128xf32>
    %cst_23 = arith.constant 5.000000e-01 : f32
    %45 = vector.broadcast %cst_23 : f32 to vector<2x128xf32>
    %46 = arith.mulf %45, %44 : vector<2x128xf32>
    %cst_24 = arith.constant 4.471500e-02 : f32
    %47 = vector.broadcast %cst_24 : f32 to vector<2x128xf32>
    %48 = arith.mulf %47, %44 : vector<2x128xf32>
    %49 = arith.mulf %48, %44 : vector<2x128xf32>
    %50 = arith.mulf %49, %44 : vector<2x128xf32>
    %51 = arith.addf %44, %50 : vector<2x128xf32>
    %cst_25 = arith.constant 0.797884583 : f32
    %52 = vector.broadcast %cst_25 : f32 to vector<2x128xf32>
    %53 = arith.mulf %52, %51 : vector<2x128xf32>
    %54 = math.tanh %53 : vector<2x128xf32>
    %cst_26 = arith.constant 1.000000e+00 : f32
    %55 = vector.broadcast %cst_26 : f32 to vector<2x128xf32>
    %56 = arith.addf %55, %54 : vector<2x128xf32>
    %57 = arith.mulf %46, %56 : vector<2x128xf32>
    %58 = vector.extract_strided_slice %57 {offsets = [0, 0], sizes = [1, 64], strides = [1, 1]} : vector<2x128xf32> to vector<1x64xf32>
    %c8 = arith.constant 8 : index
    %c0_27 = arith.constant 0 : index
    %59 = vector.load %arg19[%c8, %c0_27] : memref<144x128xf32, #tpu.memory_space<vmem>>, vector<1x64xf32>
    tpu.vector_store %arg19[%c8, %c0_27], %58 {strides = array<i32>} : memref<144x128xf32, #tpu.memory_space<vmem>>, vector<1x64xf32>,
    %60 = vector.extract_strided_slice %57 {offsets = [0, 64], sizes = [1, 64], strides = [1, 1]} : vector<2x128xf32> to vector<1x64xf32>
    %c9 = arith.constant 9 : index
    %c0_28 = arith.constant 0 : index
    %61 = vector.load %arg19[%c9, %c0_28] : memref<144x128xf32, #tpu.memory_space<vmem>>, vector<1x64xf32>
    tpu.vector_store %arg19[%c9, %c0_28], %60 {strides = array<i32>} : memref<144x128xf32, #tpu.memory_space<vmem>>, vector<1x64xf32>,
    %62 = vector.extract_strided_slice %57 {offsets = [1, 0], sizes = [1, 64], strides = [1, 1]} : vector<2x128xf32> to vector<1x64xf32>
    %c10 = arith.constant 10 : index
    %c0_29 = arith.constant 0 : index
    %63 = vector.load %arg19[%c10, %c0_29] : memref<144x128xf32, #tpu.memory_space<vmem>>, vector<1x64xf32>
    tpu.vector_store %arg19[%c10, %c0_29], %62 {strides = array<i32>} : memref<144x128xf32, #tpu.memory_space<vmem>>, vector<1x64xf32>,
    %64 = vector.extract_strided_slice %57 {offsets = [1, 64], sizes = [1, 64], strides = [1, 1]} : vector<2x128xf32> to vector<1x64xf32>
    %c11 = arith.constant 11 : index
    %c0_30 = arith.constant 0 : index
    %65 = vector.load %arg19[%c11, %c0_30] : memref<144x128xf32, #tpu.memory_space<vmem>>, vector<1x64xf32>
    tpu.vector_store %arg19[%c11, %c0_30], %64 {strides = array<i32>} : memref<144x128xf32, #tpu.memory_space<vmem>>, vector<1x64xf32>,
    %c8_31 = arith.constant 8 : index
    %c0_32 = arith.constant 0 : index
    %66 = vector.load %arg19[%c8_31, %c0_32] : memref<144x128xf32, #tpu.memory_space<vmem>>, vector<4x64xf32>
    %67 = tpu.iota {dimensions = array<i32: 0>} : vector<4x64xi32>
    %c2_i32 = arith.constant 2 : i32
    %c0_i32 = arith.constant 0 : i32
    %68 = arith.cmpi eq, %c2_i32, %c0_i32 : i32
    %c1_i32 = arith.constant 1 : i32
    %69 = arith.select %68, %c1_i32, %c2_i32 : i32
    %70 = vector.broadcast %69 : i32 to vector<4x64xi32>
    %71 = arith.remsi %67, %70 : vector<4x64xi32>
    %c0_i32_33 = arith.constant 0 : i32
    %72 = vector.broadcast %c0_i32_33 : i32 to vector<4x64xi32>
    %73 = arith.cmpi ne, %71, %72 : vector<4x64xi32>
    %c0_i32_34 = arith.constant 0 : i32
    %74 = vector.broadcast %c0_i32_34 : i32 to vector<4x64xi32>
    %75 = arith.cmpi slt, %71, %74 : vector<4x64xi32>
    %c0_i32_35 = arith.constant 0 : i32
    %76 = arith.cmpi slt, %69, %c0_i32_35 : i32
    %77 = vector.broadcast %76 : i1 to vector<4x64xi1>
    %78 = vector.broadcast %77 : vector<4x64xi1> to vector<4x64xi1>
    %79 = arith.xori %75, %78 : vector<4x64xi1>
    %80 = arith.andi %79, %73 : vector<4x64xi1>
    %81 = vector.broadcast %69 : i32 to vector<4x64xi32>
    %82 = arith.addi %71, %81 : vector<4x64xi32>
    %83 = arith.select %80, %82, %71 : vector<4x64xi1>, vector<4x64xi32>
    %c-1_i32 = arith.constant -1 : i32
    %84 = vector.broadcast %c-1_i32 : i32 to vector<4x64xi32>
    %85 = arith.addi %83, %84 : vector<4x64xi32>
    %c0_i32_36 = arith.constant 0 : i32
    %86 = vector.broadcast %c0_i32_36 : i32 to vector<4x64xi32>
    %87 = arith.cmpi sge, %85, %86 : vector<4x64xi32>
    %c-1_i32_37 = arith.constant -1 : i32
    %88 = vector.broadcast %c-1_i32_37 : i32 to vector<4x64xi32>
    %89 = arith.addi %83, %88 : vector<4x64xi32>
    %c2_i32_38 = arith.constant 2 : i32
    %90 = vector.broadcast %c2_i32_38 : i32 to vector<4x64xi32>
    %91 = arith.cmpi slt, %89, %90 : vector<4x64xi32>
    %92 = arith.andi %87, %91 : vector<4x64xi1>
    %c7 = arith.constant 7 : index
    %c0_39 = arith.constant 0 : index
    %93 = vector.load %arg19[%c7, %c0_39] : memref<144x128xf32, #tpu.memory_space<vmem>>, vector<4x64xf32>
    %cst_40 = arith.constant 0.000000e+00 : f32
    %94 = vector.broadcast %cst_40 : f32 to vector<4x64xf32>
    %95 = arith.select %92, %93, %94 : vector<4x64xi1>, vector<4x64xf32>
    %96 = tpu.iota {dimensions = array<i32: 0>} : vector<4x64xi32>
    %c2_i32_41 = arith.constant 2 : i32
    %c0_i32_42 = arith.constant 0 : i32
    %97 = arith.cmpi eq, %c2_i32_41, %c0_i32_42 : i32
    %c1_i32_43 = arith.constant 1 : i32
    %98 = arith.select %97, %c1_i32_43, %c2_i32_41 : i32
    %99 = vector.broadcast %98 : i32 to vector<4x64xi32>
    %100 = arith.remsi %96, %99 : vector<4x64xi32>
    %c0_i32_44 = arith.constant 0 : i32
    %101 = vector.broadcast %c0_i32_44 : i32 to vector<4x64xi32>
    %102 = arith.cmpi ne, %100, %101 : vector<4x64xi32>
    %c0_i32_45 = arith.constant 0 : i32
    %103 = vector.broadcast %c0_i32_45 : i32 to vector<4x64xi32>
    %104 = arith.cmpi slt, %100, %103 : vector<4x64xi32>
    %c0_i32_46 = arith.constant 0 : i32
    %105 = arith.cmpi slt, %98, %c0_i32_46 : i32
    %106 = vector.broadcast %105 : i1 to vector<4x64xi1>
    %107 = vector.broadcast %106 : vector<4x64xi1> to vector<4x64xi1>
    %108 = arith.xori %104, %107 : vector<4x64xi1>
    %109 = arith.andi %108, %102 : vector<4x64xi1>
    %110 = vector.broadcast %98 : i32 to vector<4x64xi32>
    %111 = arith.addi %100, %110 : vector<4x64xi32>
    %112 = arith.select %109, %111, %100 : vector<4x64xi1>, vector<4x64xi32>
    %c1_i32_47 = arith.constant 1 : i32
    %113 = vector.broadcast %c1_i32_47 : i32 to vector<4x64xi32>
    %114 = arith.addi %112, %113 : vector<4x64xi32>
    %c0_i32_48 = arith.constant 0 : i32
    %115 = vector.broadcast %c0_i32_48 : i32 to vector<4x64xi32>
    %116 = arith.cmpi sge, %114, %115 : vector<4x64xi32>
    %c1_i32_49 = arith.constant 1 : i32
    %117 = vector.broadcast %c1_i32_49 : i32 to vector<4x64xi32>
    %118 = arith.addi %112, %117 : vector<4x64xi32>
    %c2_i32_50 = arith.constant 2 : i32
    %119 = vector.broadcast %c2_i32_50 : i32 to vector<4x64xi32>
    %120 = arith.cmpi slt, %118, %119 : vector<4x64xi32>
    %121 = arith.andi %116, %120 : vector<4x64xi1>
    %c9_51 = arith.constant 9 : index
    %c0_52 = arith.constant 0 : index
    %122 = vector.load %arg19[%c9_51, %c0_52] : memref<144x128xf32, #tpu.memory_space<vmem>>, vector<4x64xf32>
    %cst_53 = arith.constant 0.000000e+00 : f32
    %123 = vector.broadcast %cst_53 : f32 to vector<4x64xf32>
    %124 = arith.select %121, %122, %123 : vector<4x64xi1>, vector<4x64xf32>
    %125 = arith.truncf %66 : vector<4x64xf32> to vector<4x64xbf16>
    %126 = arith.truncf %95 : vector<4x64xf32> to vector<4x64xbf16>
    %127 = arith.truncf %124 : vector<4x64xf32> to vector<4x64xbf16>
    %c0_54 = arith.constant 0 : index
    %c0_55 = arith.constant 0 : index
    %128 = vector.load %arg7[%c0_54, %c0_55] : memref<256x128xbf16, #tpu.memory_space<vmem>>, vector<64x128xbf16>
    %c64 = arith.constant 64 : index
    %c0_56 = arith.constant 0 : index
    %129 = vector.load %arg7[%c64, %c0_56] : memref<256x128xbf16, #tpu.memory_space<vmem>>, vector<64x128xbf16>
    %c128 = arith.constant 128 : index
    %c0_57 = arith.constant 0 : index
    %130 = vector.load %arg7[%c128, %c0_57] : memref<256x128xbf16, #tpu.memory_space<vmem>>, vector<64x128xbf16>
    %c192 = arith.constant 192 : index
    %c0_58 = arith.constant 0 : index
    %131 = vector.load %arg7[%c192, %c0_58] : memref<256x128xbf16, #tpu.memory_space<vmem>>, vector<64x128xbf16>
    %c0_59 = arith.constant 0 : index
    %c0_60 = arith.constant 0 : index
    %132 = vector.load %arg8[%c0_59, %c0_60] : memref<1x128xf32, #tpu.memory_space<vmem>>, vector<1x128xf32>
    %cst_61 = arith.constant dense<0.000000e+00> : vector<4x128xf32>
    %133 = tpu.matmul %126, %128, %cst_61 {dimension_numbers = #tpu.dot_dimension_numbers<[1], [0], [0], [1], [0, 0, 1, 1], [], []>} : vector<4x64xbf16>, vector<64x128xbf16>, vector<4x128xf32> -> vector<4x128xf32>
    %cst_62 = arith.constant dense<0.000000e+00> : vector<4x128xf32>
    %134 = tpu.matmul %125, %129, %cst_62 {dimension_numbers = #tpu.dot_dimension_numbers<[1], [0], [0], [1], [0, 0, 1, 1], [], []>} : vector<4x64xbf16>, vector<64x128xbf16>, vector<4x128xf32> -> vector<4x128xf32>
    %135 = arith.addf %133, %134 : vector<4x128xf32>
    %cst_63 = arith.constant dense<0.000000e+00> : vector<4x128xf32>
    %136 = tpu.matmul %125, %130, %cst_63 {dimension_numbers = #tpu.dot_dimension_numbers<[1], [0], [0], [1], [0, 0, 1, 1], [], []>} : vector<4x64xbf16>, vector<64x128xbf16>, vector<4x128xf32> -> vector<4x128xf32>
    %cst_64 = arith.constant dense<0.000000e+00> : vector<4x128xf32>
    %137 = tpu.matmul %127, %131, %cst_64 {dimension_numbers = #tpu.dot_dimension_numbers<[1], [0], [0], [1], [0, 0, 1, 1], [], []>} : vector<4x64xbf16>, vector<64x128xbf16>, vector<4x128xf32> -> vector<4x128xf32>
    %138 = arith.addf %136, %137 : vector<4x128xf32>
    %139 = vector.broadcast %132 : vector<1x128xf32> to vector<4x128xf32>
    %140 = arith.addf %135, %139 : vector<4x128xf32>
    %cst_65 = arith.constant 5.000000e-01 : f32
    %141 = vector.broadcast %cst_65 : f32 to vector<4x128xf32>
    %142 = arith.mulf %141, %140 : vector<4x128xf32>
    %cst_66 = arith.constant 4.471500e-02 : f32
    %143 = vector.broadcast %cst_66 : f32 to vector<4x128xf32>
    %144 = arith.mulf %143, %140 : vector<4x128xf32>
    %145 = arith.mulf %144, %140 : vector<4x128xf32>
    %146 = arith.mulf %145, %140 : vector<4x128xf32>
    %147 = arith.addf %140, %146 : vector<4x128xf32>
    %cst_67 = arith.constant 0.797884583 : f32
    %148 = vector.broadcast %cst_67 : f32 to vector<4x128xf32>
    %149 = arith.mulf %148, %147 : vector<4x128xf32>
    %150 = math.tanh %149 : vector<4x128xf32>
    %cst_68 = arith.constant 1.000000e+00 : f32
    %151 = vector.broadcast %cst_68 : f32 to vector<4x128xf32>
    %152 = arith.addf %151, %150 : vector<4x128xf32>
    %153 = arith.mulf %142, %152 : vector<4x128xf32>
    %154 = vector.broadcast %132 : vector<1x128xf32> to vector<4x128xf32>
    %155 = arith.addf %138, %154 : vector<4x128xf32>
    %cst_69 = arith.constant 5.000000e-01 : f32
    %156 = vector.broadcast %cst_69 : f32 to vector<4x128xf32>
    %157 = arith.mulf %156, %155 : vector<4x128xf32>
    %cst_70 = arith.constant 4.471500e-02 : f32
    %158 = vector.broadcast %cst_70 : f32 to vector<4x128xf32>
    %159 = arith.mulf %158, %155 : vector<4x128xf32>
    %160 = arith.mulf %159, %155 : vector<4x128xf32>
    %161 = arith.mulf %160, %155 : vector<4x128xf32>
    %162 = arith.addf %155, %161 : vector<4x128xf32>
    %cst_71 = arith.constant 0.797884583 : f32
    %163 = vector.broadcast %cst_71 : f32 to vector<4x128xf32>
    %164 = arith.mulf %163, %162 : vector<4x128xf32>
    %165 = math.tanh %164 : vector<4x128xf32>
    %cst_72 = arith.constant 1.000000e+00 : f32
    %166 = vector.broadcast %cst_72 : f32 to vector<4x128xf32>
    %167 = arith.addf %166, %165 : vector<4x128xf32>
    %168 = arith.mulf %157, %167 : vector<4x128xf32>
    %c0_73 = arith.constant 0 : index
    %c0_74 = arith.constant 0 : index
    %169 = vector.load %arg20[%c0_73, %c0_74] : memref<64x128xf32, #tpu.memory_space<vmem>>, vector<4x128xf32>
    tpu.vector_store %arg20[%c0_73, %c0_74], %153 {strides = array<i32>} : memref<64x128xf32, #tpu.memory_space<vmem>>, vector<4x128xf32>,
    %c0_75 = arith.constant 0 : index
    %c0_76 = arith.constant 0 : index
    %170 = vector.load %arg21[%c0_75, %c0_76] : memref<64x128xf32, #tpu.memory_space<vmem>>, vector<4x128xf32>
    tpu.vector_store %arg21[%c0_75, %c0_76], %168 {strides = array<i32>} : memref<64x128xf32, #tpu.memory_space<vmem>>, vector<4x128xf32>,
    %c0_77 = arith.constant 0 : index
    %c0_78 = arith.constant 0 : index
    %171 = vector.load %arg20[%c0_77, %c0_78] : memref<64x128xf32, #tpu.memory_space<vmem>>, vector<1x128xf32>
    %c8_79 = arith.constant 8 : index
    %c0_80 = arith.constant 0 : index
    %172 = vector.load %arg19[%c8_79, %c0_80] : memref<144x128xf32, #tpu.memory_space<vmem>>, vector<1x128xf32>
    tpu.vector_store %arg19[%c8_79, %c0_80], %171 {strides = array<i32>} : memref<144x128xf32, #tpu.memory_space<vmem>>, vector<1x128xf32>,
    %c0_81 = arith.constant 0 : index
    %c0_82 = arith.constant 0 : index
    %173 = vector.load %arg21[%c0_81, %c0_82] : memref<64x128xf32, #tpu.memory_space<vmem>>, vector<1x128xf32>
    %c9_83 = arith.constant 9 : index
    %c0_84 = arith.constant 0 : index
    %174 = vector.load %arg19[%c9_83, %c0_84] : memref<144x128xf32, #tpu.memory_space<vmem>>, vector<1x128xf32>
    tpu.vector_store %arg19[%c9_83, %c0_84], %173 {strides = array<i32>} : memref<144x128xf32, #tpu.memory_space<vmem>>, vector<1x128xf32>,
    %c1 = arith.constant 1 : index
    %c0_85 = arith.constant 0 : index
    %175 = vector.load %arg20[%c1, %c0_85] : memref<64x128xf32, #tpu.memory_space<vmem>>, vector<1x128xf32>
    %c10_86 = arith.constant 10 : index
    %c0_87 = arith.constant 0 : index
    %176 = vector.load %arg19[%c10_86, %c0_87] : memref<144x128xf32, #tpu.memory_space<vmem>>, vector<1x128xf32>
    tpu.vector_store %arg19[%c10_86, %c0_87], %175 {strides = array<i32>} : memref<144x128xf32, #tpu.memory_space<vmem>>, vector<1x128xf32>,
    %c1_88 = arith.constant 1 : index
    %c0_89 = arith.constant 0 : index
    %177 = vector.load %arg21[%c1_88, %c0_89] : memref<64x128xf32, #tpu.memory_space<vmem>>, vector<1x128xf32>
    %c11_90 = arith.constant 11 : index
    %c0_91 = arith.constant 0 : index
    %178 = vector.load %arg19[%c11_90, %c0_91] : memref<144x128xf32, #tpu.memory_space<vmem>>, vector<1x128xf32>
    tpu.vector_store %arg19[%c11_90, %c0_91], %177 {strides = array<i32>} : memref<144x128xf32, #tpu.memory_space<vmem>>, vector<1x128xf32>,
    %c2 = arith.constant 2 : index
    %c0_92 = arith.constant 0 : index
    %179 = vector.load %arg20[%c2, %c0_92] : memref<64x128xf32, #tpu.memory_space<vmem>>, vector<1x128xf32>
    %c12 = arith.constant 12 : index
    %c0_93 = arith.constant 0 : index
    %180 = vector.load %arg19[%c12, %c0_93] : memref<144x128xf32, #tpu.memory_space<vmem>>, vector<1x128xf32>
    tpu.vector_store %arg19[%c12, %c0_93], %179 {strides = array<i32>} : memref<144x128xf32, #tpu.memory_space<vmem>>, vector<1x128xf32>,
    %c2_94 = arith.constant 2 : index
    %c0_95 = arith.constant 0 : index
    %181 = vector.load %arg21[%c2_94, %c0_95] : memref<64x128xf32, #tpu.memory_space<vmem>>, vector<1x128xf32>
    %c13 = arith.constant 13 : index
    %c0_96 = arith.constant 0 : index
    %182 = vector.load %arg19[%c13, %c0_96] : memref<144x128xf32, #tpu.memory_space<vmem>>, vector<1x128xf32>
    tpu.vector_store %arg19[%c13, %c0_96], %181 {strides = array<i32>} : memref<144x128xf32, #tpu.memory_space<vmem>>, vector<1x128xf32>,
    %c3 = arith.constant 3 : index
    %c0_97 = arith.constant 0 : index
    %183 = vector.load %arg20[%c3, %c0_97] : memref<64x128xf32, #tpu.memory_space<vmem>>, vector<1x128xf32>
    %c14 = arith.constant 14 : index
    %c0_98 = arith.constant 0 : index
    %184 = vector.load %arg19[%c14, %c0_98] : memref<144x128xf32, #tpu.memory_space<vmem>>, vector<1x128xf32>
    tpu.vector_store %arg19[%c14, %c0_98], %183 {strides = array<i32>} : memref<144x128xf32, #tpu.memory_space<vmem>>, vector<1x128xf32>,
    %c3_99 = arith.constant 3 : index
    %c0_100 = arith.constant 0 : index
    %185 = vector.load %arg21[%c3_99, %c0_100] : memref<64x128xf32, #tpu.memory_space<vmem>>, vector<1x128xf32>
    %c15 = arith.constant 15 : index
    %c0_101 = arith.constant 0 : index
    %186 = vector.load %arg19[%c15, %c0_101] : memref<144x128xf32, #tpu.memory_space<vmem>>, vector<1x128xf32>
    tpu.vector_store %arg19[%c15, %c0_101], %185 {strides = array<i32>} : memref<144x128xf32, #tpu.memory_space<vmem>>, vector<1x128xf32>,
    %c8_102 = arith.constant 8 : index
    %c0_103 = arith.constant 0 : index
    %187 = vector.load %arg19[%c8_102, %c0_103] : memref<144x128xf32, #tpu.memory_space<vmem>>, vector<8x128xf32>
    %188 = tpu.iota {dimensions = array<i32: 0>} : vector<8x128xi32>
    %c4_i32 = arith.constant 4 : i32
    %c0_i32_104 = arith.constant 0 : i32
    %189 = arith.cmpi eq, %c4_i32, %c0_i32_104 : i32
    %c1_i32_105 = arith.constant 1 : i32
    %190 = arith.select %189, %c1_i32_105, %c4_i32 : i32
    %191 = vector.broadcast %190 : i32 to vector<8x128xi32>
    %192 = arith.remsi %188, %191 : vector<8x128xi32>
    %c0_i32_106 = arith.constant 0 : i32
    %193 = vector.broadcast %c0_i32_106 : i32 to vector<8x128xi32>
    %194 = arith.cmpi ne, %192, %193 : vector<8x128xi32>
    %c0_i32_107 = arith.constant 0 : i32
    %195 = vector.broadcast %c0_i32_107 : i32 to vector<8x128xi32>
    %196 = arith.cmpi slt, %192, %195 : vector<8x128xi32>
    %c0_i32_108 = arith.constant 0 : i32
    %197 = arith.cmpi slt, %190, %c0_i32_108 : i32
    %198 = vector.broadcast %197 : i1 to vector<8x128xi1>
    %199 = vector.broadcast %198 : vector<8x128xi1> to vector<8x128xi1>
    %200 = arith.xori %196, %199 : vector<8x128xi1>
    %201 = arith.andi %200, %194 : vector<8x128xi1>
    %202 = vector.broadcast %190 : i32 to vector<8x128xi32>
    %203 = arith.addi %192, %202 : vector<8x128xi32>
    %204 = arith.select %201, %203, %192 : vector<8x128xi1>, vector<8x128xi32>
    %c-1_i32_109 = arith.constant -1 : i32
    %205 = vector.broadcast %c-1_i32_109 : i32 to vector<8x128xi32>
    %206 = arith.addi %204, %205 : vector<8x128xi32>
    %c0_i32_110 = arith.constant 0 : i32
    %207 = vector.broadcast %c0_i32_110 : i32 to vector<8x128xi32>
    %208 = arith.cmpi sge, %206, %207 : vector<8x128xi32>
    %c-1_i32_111 = arith.constant -1 : i32
    %209 = vector.broadcast %c-1_i32_111 : i32 to vector<8x128xi32>
    %210 = arith.addi %204, %209 : vector<8x128xi32>
    %c4_i32_112 = arith.constant 4 : i32
    %211 = vector.broadcast %c4_i32_112 : i32 to vector<8x128xi32>
    %212 = arith.cmpi slt, %210, %211 : vector<8x128xi32>
    %213 = arith.andi %208, %212 : vector<8x128xi1>
    %c7_113 = arith.constant 7 : index
    %c0_114 = arith.constant 0 : index
    %214 = vector.load %arg19[%c7_113, %c0_114] : memref<144x128xf32, #tpu.memory_space<vmem>>, vector<8x128xf32>
    %cst_115 = arith.constant 0.000000e+00 : f32
    %215 = vector.broadcast %cst_115 : f32 to vector<8x128xf32>
    %216 = arith.select %213, %214, %215 : vector<8x128xi1>, vector<8x128xf32>
    %217 = tpu.iota {dimensions = array<i32: 0>} : vector<8x128xi32>
    %c4_i32_116 = arith.constant 4 : i32
    %c0_i32_117 = arith.constant 0 : i32
    %218 = arith.cmpi eq, %c4_i32_116, %c0_i32_117 : i32
    %c1_i32_118 = arith.constant 1 : i32
    %219 = arith.select %218, %c1_i32_118, %c4_i32_116 : i32
    %220 = vector.broadcast %219 : i32 to vector<8x128xi32>
    %221 = arith.remsi %217, %220 : vector<8x128xi32>
    %c0_i32_119 = arith.constant 0 : i32
    %222 = vector.broadcast %c0_i32_119 : i32 to vector<8x128xi32>
    %223 = arith.cmpi ne, %221, %222 : vector<8x128xi32>
    %c0_i32_120 = arith.constant 0 : i32
    %224 = vector.broadcast %c0_i32_120 : i32 to vector<8x128xi32>
    %225 = arith.cmpi slt, %221, %224 : vector<8x128xi32>
    %c0_i32_121 = arith.constant 0 : i32
    %226 = arith.cmpi slt, %219, %c0_i32_121 : i32
    %227 = vector.broadcast %226 : i1 to vector<8x128xi1>
    %228 = vector.broadcast %227 : vector<8x128xi1> to vector<8x128xi1>
    %229 = arith.xori %225, %228 : vector<8x128xi1>
    %230 = arith.andi %229, %223 : vector<8x128xi1>
    %231 = vector.broadcast %219 : i32 to vector<8x128xi32>
    %232 = arith.addi %221, %231 : vector<8x128xi32>
    %233 = arith.select %230, %232, %221 : vector<8x128xi1>, vector<8x128xi32>
    %c1_i32_122 = arith.constant 1 : i32
    %234 = vector.broadcast %c1_i32_122 : i32 to vector<8x128xi32>
    %235 = arith.addi %233, %234 : vector<8x128xi32>
    %c0_i32_123 = arith.constant 0 : i32
    %236 = vector.broadcast %c0_i32_123 : i32 to vector<8x128xi32>
    %237 = arith.cmpi sge, %235, %236 : vector<8x128xi32>
    %c1_i32_124 = arith.constant 1 : i32
    %238 = vector.broadcast %c1_i32_124 : i32 to vector<8x128xi32>
    %239 = arith.addi %233, %238 : vector<8x128xi32>
    %c4_i32_125 = arith.constant 4 : i32
    %240 = vector.broadcast %c4_i32_125 : i32 to vector<8x128xi32>
    %241 = arith.cmpi slt, %239, %240 : vector<8x128xi32>
    %242 = arith.andi %237, %241 : vector<8x128xi1>
    %c9_126 = arith.constant 9 : index
    %c0_127 = arith.constant 0 : index
    %243 = vector.load %arg19[%c9_126, %c0_127] : memref<144x128xf32, #tpu.memory_space<vmem>>, vector<8x128xf32>
    %cst_128 = arith.constant 0.000000e+00 : f32
    %244 = vector.broadcast %cst_128 : f32 to vector<8x128xf32>
    %245 = arith.select %242, %243, %244 : vector<8x128xi1>, vector<8x128xf32>
    %246 = arith.truncf %187 : vector<8x128xf32> to vector<8x128xbf16>
    %247 = arith.truncf %216 : vector<8x128xf32> to vector<8x128xbf16>
    %248 = arith.truncf %245 : vector<8x128xf32> to vector<8x128xbf16>
    %c0_129 = arith.constant 0 : index
    %c0_130 = arith.constant 0 : index
    %249 = vector.load %arg9[%c0_129, %c0_130] : memref<512x128xbf16, #tpu.memory_space<vmem>>, vector<128x128xbf16>
    %c128_131 = arith.constant 128 : index
    %c0_132 = arith.constant 0 : index
    %250 = vector.load %arg9[%c128_131, %c0_132] : memref<512x128xbf16, #tpu.memory_space<vmem>>, vector<128x128xbf16>
    %c256 = arith.constant 256 : index
    %c0_133 = arith.constant 0 : index
    %251 = vector.load %arg9[%c256, %c0_133] : memref<512x128xbf16, #tpu.memory_space<vmem>>, vector<128x128xbf16>
    %c384 = arith.constant 384 : index
    %c0_134 = arith.constant 0 : index
    %252 = vector.load %arg9[%c384, %c0_134] : memref<512x128xbf16, #tpu.memory_space<vmem>>, vector<128x128xbf16>
    %c0_135 = arith.constant 0 : index
    %c0_136 = arith.constant 0 : index
    %253 = vector.load %arg10[%c0_135, %c0_136] : memref<1x128xf32, #tpu.memory_space<vmem>>, vector<1x128xf32>
    %cst_137 = arith.constant dense<0.000000e+00> : vector<8x128xf32>
    %254 = tpu.matmul %247, %249, %cst_137 {dimension_numbers = #tpu.dot_dimension_numbers<[1], [0], [0], [1], [0, 0, 1, 1], [], []>} : vector<8x128xbf16>, vector<128x128xbf16>, vector<8x128xf32> -> vector<8x128xf32>
    %cst_138 = arith.constant dense<0.000000e+00> : vector<8x128xf32>
    %255 = tpu.matmul %246, %250, %cst_138 {dimension_numbers = #tpu.dot_dimension_numbers<[1], [0], [0], [1], [0, 0, 1, 1], [], []>} : vector<8x128xbf16>, vector<128x128xbf16>, vector<8x128xf32> -> vector<8x128xf32>
    %256 = arith.addf %254, %255 : vector<8x128xf32>
    %cst_139 = arith.constant dense<0.000000e+00> : vector<8x128xf32>
    %257 = tpu.matmul %246, %251, %cst_139 {dimension_numbers = #tpu.dot_dimension_numbers<[1], [0], [0], [1], [0, 0, 1, 1], [], []>} : vector<8x128xbf16>, vector<128x128xbf16>, vector<8x128xf32> -> vector<8x128xf32>
    %cst_140 = arith.constant dense<0.000000e+00> : vector<8x128xf32>
    %258 = tpu.matmul %248, %252, %cst_140 {dimension_numbers = #tpu.dot_dimension_numbers<[1], [0], [0], [1], [0, 0, 1, 1], [], []>} : vector<8x128xbf16>, vector<128x128xbf16>, vector<8x128xf32> -> vector<8x128xf32>
    %259 = arith.addf %257, %258 : vector<8x128xf32>
    %260 = vector.broadcast %253 : vector<1x128xf32> to vector<8x128xf32>
    %261 = arith.addf %256, %260 : vector<8x128xf32>
    %cst_141 = arith.constant 5.000000e-01 : f32
    %262 = vector.broadcast %cst_141 : f32 to vector<8x128xf32>
    %263 = arith.mulf %262, %261 : vector<8x128xf32>
    %cst_142 = arith.constant 4.471500e-02 : f32
    %264 = vector.broadcast %cst_142 : f32 to vector<8x128xf32>
    %265 = arith.mulf %264, %261 : vector<8x128xf32>
    %266 = arith.mulf %265, %261 : vector<8x128xf32>
    %267 = arith.mulf %266, %261 : vector<8x128xf32>
    %268 = arith.addf %261, %267 : vector<8x128xf32>
    %cst_143 = arith.constant 0.797884583 : f32
    %269 = vector.broadcast %cst_143 : f32 to vector<8x128xf32>
    %270 = arith.mulf %269, %268 : vector<8x128xf32>
    %271 = math.tanh %270 : vector<8x128xf32>
    %cst_144 = arith.constant 1.000000e+00 : f32
    %272 = vector.broadcast %cst_144 : f32 to vector<8x128xf32>
    %273 = arith.addf %272, %271 : vector<8x128xf32>
    %274 = arith.mulf %263, %273 : vector<8x128xf32>
    %275 = vector.broadcast %253 : vector<1x128xf32> to vector<8x128xf32>
    %276 = arith.addf %259, %275 : vector<8x128xf32>
    %cst_145 = arith.constant 5.000000e-01 : f32
    %277 = vector.broadcast %cst_145 : f32 to vector<8x128xf32>
    %278 = arith.mulf %277, %276 : vector<8x128xf32>
    %cst_146 = arith.constant 4.471500e-02 : f32
    %279 = vector.broadcast %cst_146 : f32 to vector<8x128xf32>
    %280 = arith.mulf %279, %276 : vector<8x128xf32>
    %281 = arith.mulf %280, %276 : vector<8x128xf32>
    %282 = arith.mulf %281, %276 : vector<8x128xf32>
    %283 = arith.addf %276, %282 : vector<8x128xf32>
    %cst_147 = arith.constant 0.797884583 : f32
    %284 = vector.broadcast %cst_147 : f32 to vector<8x128xf32>
    %285 = arith.mulf %284, %283 : vector<8x128xf32>
    %286 = math.tanh %285 : vector<8x128xf32>
    %cst_148 = arith.constant 1.000000e+00 : f32
    %287 = vector.broadcast %cst_148 : f32 to vector<8x128xf32>
    %288 = arith.addf %287, %286 : vector<8x128xf32>
    %289 = arith.mulf %278, %288 : vector<8x128xf32>
    %c0_149 = arith.constant 0 : index
    %c0_150 = arith.constant 0 : index
    %290 = vector.load %arg20[%c0_149, %c0_150] : memref<64x128xf32, #tpu.memory_space<vmem>>, vector<8x128xf32>
    tpu.vector_store %arg20[%c0_149, %c0_150], %274 {strides = array<i32>} : memref<64x128xf32, #tpu.memory_space<vmem>>, vector<8x128xf32>,
    %c0_151 = arith.constant 0 : index
    %c0_152 = arith.constant 0 : index
    %291 = vector.load %arg21[%c0_151, %c0_152] : memref<64x128xf32, #tpu.memory_space<vmem>>, vector<8x128xf32>
    tpu.vector_store %arg21[%c0_151, %c0_152], %289 {strides = array<i32>} : memref<64x128xf32, #tpu.memory_space<vmem>>, vector<8x128xf32>,
    %c0_153 = arith.constant 0 : index
    %c0_154 = arith.constant 0 : index
    %292 = vector.load %arg20[%c0_153, %c0_154] : memref<64x128xf32, #tpu.memory_space<vmem>>, vector<1x128xf32>
    %c8_155 = arith.constant 8 : index
    %c0_156 = arith.constant 0 : index
    %293 = vector.load %arg19[%c8_155, %c0_156] : memref<144x128xf32, #tpu.memory_space<vmem>>, vector<1x128xf32>
    tpu.vector_store %arg19[%c8_155, %c0_156], %292 {strides = array<i32>} : memref<144x128xf32, #tpu.memory_space<vmem>>, vector<1x128xf32>,
    %c0_157 = arith.constant 0 : index
    %c0_158 = arith.constant 0 : index
    %294 = vector.load %arg21[%c0_157, %c0_158] : memref<64x128xf32, #tpu.memory_space<vmem>>, vector<1x128xf32>
    %c9_159 = arith.constant 9 : index
    %c0_160 = arith.constant 0 : index
    %295 = vector.load %arg19[%c9_159, %c0_160] : memref<144x128xf32, #tpu.memory_space<vmem>>, vector<1x128xf32>
    tpu.vector_store %arg19[%c9_159, %c0_160], %294 {strides = array<i32>} : memref<144x128xf32, #tpu.memory_space<vmem>>, vector<1x128xf32>,
    %c1_161 = arith.constant 1 : index
    %c0_162 = arith.constant 0 : index
    %296 = vector.load %arg20[%c1_161, %c0_162] : memref<64x128xf32, #tpu.memory_space<vmem>>, vector<1x128xf32>
    %c10_163 = arith.constant 10 : index
    %c0_164 = arith.constant 0 : index
    %297 = vector.load %arg19[%c10_163, %c0_164] : memref<144x128xf32, #tpu.memory_space<vmem>>, vector<1x128xf32>
    tpu.vector_store %arg19[%c10_163, %c0_164], %296 {strides = array<i32>} : memref<144x128xf32, #tpu.memory_space<vmem>>, vector<1x128xf32>,
    %c1_165 = arith.constant 1 : index
    %c0_166 = arith.constant 0 : index
    %298 = vector.load %arg21[%c1_165, %c0_166] : memref<64x128xf32, #tpu.memory_space<vmem>>, vector<1x128xf32>
    %c11_167 = arith.constant 11 : index
    %c0_168 = arith.constant 0 : index
    %299 = vector.load %arg19[%c11_167, %c0_168] : memref<144x128xf32, #tpu.memory_space<vmem>>, vector<1x128xf32>
    tpu.vector_store %arg19[%c11_167, %c0_168], %298 {strides = array<i32>} : memref<144x128xf32, #tpu.memory_space<vmem>>, vector<1x128xf32>,
    %c2_169 = arith.constant 2 : index
    %c0_170 = arith.constant 0 : index
    %300 = vector.load %arg20[%c2_169, %c0_170] : memref<64x128xf32, #tpu.memory_space<vmem>>, vector<1x128xf32>
    %c12_171 = arith.constant 12 : index
    %c0_172 = arith.constant 0 : index
    %301 = vector.load %arg19[%c12_171, %c0_172] : memref<144x128xf32, #tpu.memory_space<vmem>>, vector<1x128xf32>
    tpu.vector_store %arg19[%c12_171, %c0_172], %300 {strides = array<i32>} : memref<144x128xf32, #tpu.memory_space<vmem>>, vector<1x128xf32>,
    %c2_173 = arith.constant 2 : index
    %c0_174 = arith.constant 0 : index
    %302 = vector.load %arg21[%c2_173, %c0_174] : memref<64x128xf32, #tpu.memory_space<vmem>>, vector<1x128xf32>
    %c13_175 = arith.constant 13 : index
    %c0_176 = arith.constant 0 : index
    %303 = vector.load %arg19[%c13_175, %c0_176] : memref<144x128xf32, #tpu.memory_space<vmem>>, vector<1x128xf32>
    tpu.vector_store %arg19[%c13_175, %c0_176], %302 {strides = array<i32>} : memref<144x128xf32, #tpu.memory_space<vmem>>, vector<1x128xf32>,
    %c3_177 = arith.constant 3 : index
    %c0_178 = arith.constant 0 : index
    %304 = vector.load %arg20[%c3_177, %c0_178] : memref<64x128xf32, #tpu.memory_space<vmem>>, vector<1x128xf32>
    %c14_179 = arith.constant 14 : index
    %c0_180 = arith.constant 0 : index
    %305 = vector.load %arg19[%c14_179, %c0_180] : memref<144x128xf32, #tpu.memory_space<vmem>>, vector<1x128xf32>
    tpu.vector_store %arg19[%c14_179, %c0_180], %304 {strides = array<i32>} : memref<144x128xf32, #tpu.memory_space<vmem>>, vector<1x128xf32>,
    %c3_181 = arith.constant 3 : index
    %c0_182 = arith.constant 0 : index
    %306 = vector.load %arg21[%c3_181, %c0_182] : memref<64x128xf32, #tpu.memory_space<vmem>>, vector<1x128xf32>
    %c15_183 = arith.constant 15 : index
    %c0_184 = arith.constant 0 : index
    %307 = vector.load %arg19[%c15_183, %c0_184] : memref<144x128xf32, #tpu.memory_space<vmem>>, vector<1x128xf32>
    tpu.vector_store %arg19[%c15_183, %c0_184], %306 {strides = array<i32>} : memref<144x128xf32, #tpu.memory_space<vmem>>, vector<1x128xf32>,
    %c4 = arith.constant 4 : index
    %c0_185 = arith.constant 0 : index
    %308 = vector.load %arg20[%c4, %c0_185] : memref<64x128xf32, #tpu.memory_space<vmem>>, vector<1x128xf32>
    %c16 = arith.constant 16 : index
    %c0_186 = arith.constant 0 : index
    %309 = vector.load %arg19[%c16, %c0_186] : memref<144x128xf32, #tpu.memory_space<vmem>>, vector<1x128xf32>
    tpu.vector_store %arg19[%c16, %c0_186], %308 {strides = array<i32>} : memref<144x128xf32, #tpu.memory_space<vmem>>, vector<1x128xf32>,
    %c4_187 = arith.constant 4 : index
    %c0_188 = arith.constant 0 : index
    %310 = vector.load %arg21[%c4_187, %c0_188] : memref<64x128xf32, #tpu.memory_space<vmem>>, vector<1x128xf32>
    %c17 = arith.constant 17 : index
    %c0_189 = arith.constant 0 : index
    %311 = vector.load %arg19[%c17, %c0_189] : memref<144x128xf32, #tpu.memory_space<vmem>>, vector<1x128xf32>
    tpu.vector_store %arg19[%c17, %c0_189], %310 {strides = array<i32>} : memref<144x128xf32, #tpu.memory_space<vmem>>, vector<1x128xf32>,
    %c5 = arith.constant 5 : index
    %c0_190 = arith.constant 0 : index
    %312 = vector.load %arg20[%c5, %c0_190] : memref<64x128xf32, #tpu.memory_space<vmem>>, vector<1x128xf32>
    %c18 = arith.constant 18 : index
    %c0_191 = arith.constant 0 : index
    %313 = vector.load %arg19[%c18, %c0_191] : memref<144x128xf32, #tpu.memory_space<vmem>>, vector<1x128xf32>
    tpu.vector_store %arg19[%c18, %c0_191], %312 {strides = array<i32>} : memref<144x128xf32, #tpu.memory_space<vmem>>, vector<1x128xf32>,
    %c5_192 = arith.constant 5 : index
    %c0_193 = arith.constant 0 : index
    %314 = vector.load %arg21[%c5_192, %c0_193] : memref<64x128xf32, #tpu.memory_space<vmem>>, vector<1x128xf32>
    %c19 = arith.constant 19 : index
    %c0_194 = arith.constant 0 : index
    %315 = vector.load %arg19[%c19, %c0_194] : memref<144x128xf32, #tpu.memory_space<vmem>>, vector<1x128xf32>
    tpu.vector_store %arg19[%c19, %c0_194], %314 {strides = array<i32>} : memref<144x128xf32, #tpu.memory_space<vmem>>, vector<1x128xf32>,
    %c6 = arith.constant 6 : index
    %c0_195 = arith.constant 0 : index
    %316 = vector.load %arg20[%c6, %c0_195] : memref<64x128xf32, #tpu.memory_space<vmem>>, vector<1x128xf32>
    %c20 = arith.constant 20 : index
    %c0_196 = arith.constant 0 : index
    %317 = vector.load %arg19[%c20, %c0_196] : memref<144x128xf32, #tpu.memory_space<vmem>>, vector<1x128xf32>
    tpu.vector_store %arg19[%c20, %c0_196], %316 {strides = array<i32>} : memref<144x128xf32, #tpu.memory_space<vmem>>, vector<1x128xf32>,
    %c6_197 = arith.constant 6 : index
    %c0_198 = arith.constant 0 : index
    %318 = vector.load %arg21[%c6_197, %c0_198] : memref<64x128xf32, #tpu.memory_space<vmem>>, vector<1x128xf32>
    %c21 = arith.constant 21 : index
    %c0_199 = arith.constant 0 : index
    %319 = vector.load %arg19[%c21, %c0_199] : memref<144x128xf32, #tpu.memory_space<vmem>>, vector<1x128xf32>
    tpu.vector_store %arg19[%c21, %c0_199], %318 {strides = array<i32>} : memref<144x128xf32, #tpu.memory_space<vmem>>, vector<1x128xf32>,
    %c7_200 = arith.constant 7 : index
    %c0_201 = arith.constant 0 : index
    %320 = vector.load %arg20[%c7_200, %c0_201] : memref<64x128xf32, #tpu.memory_space<vmem>>, vector<1x128xf32>
    %c22 = arith.constant 22 : index
    %c0_202 = arith.constant 0 : index
    %321 = vector.load %arg19[%c22, %c0_202] : memref<144x128xf32, #tpu.memory_space<vmem>>, vector<1x128xf32>
    tpu.vector_store %arg19[%c22, %c0_202], %320 {strides = array<i32>} : memref<144x128xf32, #tpu.memory_space<vmem>>, vector<1x128xf32>,
    %c7_203 = arith.constant 7 : index
    %c0_204 = arith.constant 0 : index
    %322 = vector.load %arg21[%c7_203, %c0_204] : memref<64x128xf32, #tpu.memory_space<vmem>>, vector<1x128xf32>
    %c23 = arith.constant 23 : index
    %c0_205 = arith.constant 0 : index
    %323 = vector.load %arg19[%c23, %c0_205] : memref<144x128xf32, #tpu.memory_space<vmem>>, vector<1x128xf32>
    tpu.vector_store %arg19[%c23, %c0_205], %322 {strides = array<i32>} : memref<144x128xf32, #tpu.memory_space<vmem>>, vector<1x128xf32>,
    %c8_206 = arith.constant 8 : index
    %c0_207 = arith.constant 0 : index
    %324 = vector.load %arg19[%c8_206, %c0_207] : memref<144x128xf32, #tpu.memory_space<vmem>>, vector<16x128xf32>
    %325 = tpu.iota {dimensions = array<i32: 0>} : vector<16x128xi32>
    %c8_i32 = arith.constant 8 : i32
    %c0_i32_208 = arith.constant 0 : i32
    %326 = arith.cmpi eq, %c8_i32, %c0_i32_208 : i32
    %c1_i32_209 = arith.constant 1 : i32
    %327 = arith.select %326, %c1_i32_209, %c8_i32 : i32
    %328 = vector.broadcast %327 : i32 to vector<16x128xi32>
    %329 = arith.remsi %325, %328 : vector<16x128xi32>
    %c0_i32_210 = arith.constant 0 : i32
    %330 = vector.broadcast %c0_i32_210 : i32 to vector<16x128xi32>
    %331 = arith.cmpi ne, %329, %330 : vector<16x128xi32>
    %c0_i32_211 = arith.constant 0 : i32
    %332 = vector.broadcast %c0_i32_211 : i32 to vector<16x128xi32>
    %333 = arith.cmpi slt, %329, %332 : vector<16x128xi32>
    %c0_i32_212 = arith.constant 0 : i32
    %334 = arith.cmpi slt, %327, %c0_i32_212 : i32
    %335 = vector.broadcast %334 : i1 to vector<16x128xi1>
    %336 = vector.broadcast %335 : vector<16x128xi1> to vector<16x128xi1>
    %337 = arith.xori %333, %336 : vector<16x128xi1>
    %338 = arith.andi %337, %331 : vector<16x128xi1>
    %339 = vector.broadcast %327 : i32 to vector<16x128xi32>
    %340 = arith.addi %329, %339 : vector<16x128xi32>
    %341 = arith.select %338, %340, %329 : vector<16x128xi1>, vector<16x128xi32>
    %c-1_i32_213 = arith.constant -1 : i32
    %342 = vector.broadcast %c-1_i32_213 : i32 to vector<16x128xi32>
    %343 = arith.addi %341, %342 : vector<16x128xi32>
    %c0_i32_214 = arith.constant 0 : i32
    %344 = vector.broadcast %c0_i32_214 : i32 to vector<16x128xi32>
    %345 = arith.cmpi sge, %343, %344 : vector<16x128xi32>
    %c-1_i32_215 = arith.constant -1 : i32
    %346 = vector.broadcast %c-1_i32_215 : i32 to vector<16x128xi32>
    %347 = arith.addi %341, %346 : vector<16x128xi32>
    %c8_i32_216 = arith.constant 8 : i32
    %348 = vector.broadcast %c8_i32_216 : i32 to vector<16x128xi32>
    %349 = arith.cmpi slt, %347, %348 : vector<16x128xi32>
    %350 = arith.andi %345, %349 : vector<16x128xi1>
    %c7_217 = arith.constant 7 : index
    %c0_218 = arith.constant 0 : index
    %351 = vector.load %arg19[%c7_217, %c0_218] : memref<144x128xf32, #tpu.memory_space<vmem>>, vector<16x128xf32>
    %cst_219 = arith.constant 0.000000e+00 : f32
    %352 = vector.broadcast %cst_219 : f32 to vector<16x128xf32>
    %353 = arith.select %350, %351, %352 : vector<16x128xi1>, vector<16x128xf32>
    %354 = tpu.iota {dimensions = array<i32: 0>} : vector<16x128xi32>
    %c8_i32_220 = arith.constant 8 : i32
    %c0_i32_221 = arith.constant 0 : i32
    %355 = arith.cmpi eq, %c8_i32_220, %c0_i32_221 : i32
    %c1_i32_222 = arith.constant 1 : i32
    %356 = arith.select %355, %c1_i32_222, %c8_i32_220 : i32
    %357 = vector.broadcast %356 : i32 to vector<16x128xi32>
    %358 = arith.remsi %354, %357 : vector<16x128xi32>
    %c0_i32_223 = arith.constant 0 : i32
    %359 = vector.broadcast %c0_i32_223 : i32 to vector<16x128xi32>
    %360 = arith.cmpi ne, %358, %359 : vector<16x128xi32>
    %c0_i32_224 = arith.constant 0 : i32
    %361 = vector.broadcast %c0_i32_224 : i32 to vector<16x128xi32>
    %362 = arith.cmpi slt, %358, %361 : vector<16x128xi32>
    %c0_i32_225 = arith.constant 0 : i32
    %363 = arith.cmpi slt, %356, %c0_i32_225 : i32
    %364 = vector.broadcast %363 : i1 to vector<16x128xi1>
    %365 = vector.broadcast %364 : vector<16x128xi1> to vector<16x128xi1>
    %366 = arith.xori %362, %365 : vector<16x128xi1>
    %367 = arith.andi %366, %360 : vector<16x128xi1>
    %368 = vector.broadcast %356 : i32 to vector<16x128xi32>
    %369 = arith.addi %358, %368 : vector<16x128xi32>
    %370 = arith.select %367, %369, %358 : vector<16x128xi1>, vector<16x128xi32>
    %c1_i32_226 = arith.constant 1 : i32
    %371 = vector.broadcast %c1_i32_226 : i32 to vector<16x128xi32>
    %372 = arith.addi %370, %371 : vector<16x128xi32>
    %c0_i32_227 = arith.constant 0 : i32
    %373 = vector.broadcast %c0_i32_227 : i32 to vector<16x128xi32>
    %374 = arith.cmpi sge, %372, %373 : vector<16x128xi32>
    %c1_i32_228 = arith.constant 1 : i32
    %375 = vector.broadcast %c1_i32_228 : i32 to vector<16x128xi32>
    %376 = arith.addi %370, %375 : vector<16x128xi32>
    %c8_i32_229 = arith.constant 8 : i32
    %377 = vector.broadcast %c8_i32_229 : i32 to vector<16x128xi32>
    %378 = arith.cmpi slt, %376, %377 : vector<16x128xi32>
    %379 = arith.andi %374, %378 : vector<16x128xi1>
    %c9_230 = arith.constant 9 : index
    %c0_231 = arith.constant 0 : index
    %380 = vector.load %arg19[%c9_230, %c0_231] : memref<144x128xf32, #tpu.memory_space<vmem>>, vector<16x128xf32>
    %cst_232 = arith.constant 0.000000e+00 : f32
    %381 = vector.broadcast %cst_232 : f32 to vector<16x128xf32>
    %382 = arith.select %379, %380, %381 : vector<16x128xi1>, vector<16x128xf32>
    %383 = arith.truncf %324 : vector<16x128xf32> to vector<16x128xbf16>
    %384 = arith.truncf %353 : vector<16x128xf32> to vector<16x128xbf16>
    %385 = arith.truncf %382 : vector<16x128xf32> to vector<16x128xbf16>
    %c0_233 = arith.constant 0 : index
    %c0_234 = arith.constant 0 : index
    %386 = vector.load %arg11[%c0_233, %c0_234] : memref<512x128xbf16, #tpu.memory_space<vmem>>, vector<128x128xbf16>
    %c128_235 = arith.constant 128 : index
    %c0_236 = arith.constant 0 : index
    %387 = vector.load %arg11[%c128_235, %c0_236] : memref<512x128xbf16, #tpu.memory_space<vmem>>, vector<128x128xbf16>
    %c256_237 = arith.constant 256 : index
    %c0_238 = arith.constant 0 : index
    %388 = vector.load %arg11[%c256_237, %c0_238] : memref<512x128xbf16, #tpu.memory_space<vmem>>, vector<128x128xbf16>
    %c384_239 = arith.constant 384 : index
    %c0_240 = arith.constant 0 : index
    %389 = vector.load %arg11[%c384_239, %c0_240] : memref<512x128xbf16, #tpu.memory_space<vmem>>, vector<128x128xbf16>
    %c0_241 = arith.constant 0 : index
    %c0_242 = arith.constant 0 : index
    %390 = vector.load %arg12[%c0_241, %c0_242] : memref<1x128xf32, #tpu.memory_space<vmem>>, vector<1x128xf32>
    %cst_243 = arith.constant dense<0.000000e+00> : vector<16x128xf32>
    %391 = tpu.matmul %384, %386, %cst_243 {dimension_numbers = #tpu.dot_dimension_numbers<[1], [0], [0], [1], [0, 0, 1, 1], [], []>} : vector<16x128xbf16>, vector<128x128xbf16>, vector<16x128xf32> -> vector<16x128xf32>
    %cst_244 = arith.constant dense<0.000000e+00> : vector<16x128xf32>
    %392 = tpu.matmul %383, %387, %cst_244 {dimension_numbers = #tpu.dot_dimension_numbers<[1], [0], [0], [1], [0, 0, 1, 1], [], []>} : vector<16x128xbf16>, vector<128x128xbf16>, vector<16x128xf32> -> vector<16x128xf32>
    %393 = arith.addf %391, %392 : vector<16x128xf32>
    %cst_245 = arith.constant dense<0.000000e+00> : vector<16x128xf32>
    %394 = tpu.matmul %383, %388, %cst_245 {dimension_numbers = #tpu.dot_dimension_numbers<[1], [0], [0], [1], [0, 0, 1, 1], [], []>} : vector<16x128xbf16>, vector<128x128xbf16>, vector<16x128xf32> -> vector<16x128xf32>
    %cst_246 = arith.constant dense<0.000000e+00> : vector<16x128xf32>
    %395 = tpu.matmul %385, %389, %cst_246 {dimension_numbers = #tpu.dot_dimension_numbers<[1], [0], [0], [1], [0, 0, 1, 1], [], []>} : vector<16x128xbf16>, vector<128x128xbf16>, vector<16x128xf32> -> vector<16x128xf32>
    %396 = arith.addf %394, %395 : vector<16x128xf32>
    %397 = vector.broadcast %390 : vector<1x128xf32> to vector<16x128xf32>
    %398 = arith.addf %393, %397 : vector<16x128xf32>
    %cst_247 = arith.constant 5.000000e-01 : f32
    %399 = vector.broadcast %cst_247 : f32 to vector<16x128xf32>
    %400 = arith.mulf %399, %398 : vector<16x128xf32>
    %cst_248 = arith.constant 4.471500e-02 : f32
    %401 = vector.broadcast %cst_248 : f32 to vector<16x128xf32>
    %402 = arith.mulf %401, %398 : vector<16x128xf32>
    %403 = arith.mulf %402, %398 : vector<16x128xf32>
    %404 = arith.mulf %403, %398 : vector<16x128xf32>
    %405 = arith.addf %398, %404 : vector<16x128xf32>
    %cst_249 = arith.constant 0.797884583 : f32
    %406 = vector.broadcast %cst_249 : f32 to vector<16x128xf32>
    %407 = arith.mulf %406, %405 : vector<16x128xf32>
    %408 = math.tanh %407 : vector<16x128xf32>
    %cst_250 = arith.constant 1.000000e+00 : f32
    %409 = vector.broadcast %cst_250 : f32 to vector<16x128xf32>
    %410 = arith.addf %409, %408 : vector<16x128xf32>
    %411 = arith.mulf %400, %410 : vector<16x128xf32>
    %412 = vector.broadcast %390 : vector<1x128xf32> to vector<16x128xf32>
    %413 = arith.addf %396, %412 : vector<16x128xf32>
    %cst_251 = arith.constant 5.000000e-01 : f32
    %414 = vector.broadcast %cst_251 : f32 to vector<16x128xf32>
    %415 = arith.mulf %414, %413 : vector<16x128xf32>
    %cst_252 = arith.constant 4.471500e-02 : f32
    %416 = vector.broadcast %cst_252 : f32 to vector<16x128xf32>
    %417 = arith.mulf %416, %413 : vector<16x128xf32>
    %418 = arith.mulf %417, %413 : vector<16x128xf32>
    %419 = arith.mulf %418, %413 : vector<16x128xf32>
    %420 = arith.addf %413, %419 : vector<16x128xf32>
    %cst_253 = arith.constant 0.797884583 : f32
    %421 = vector.broadcast %cst_253 : f32 to vector<16x128xf32>
    %422 = arith.mulf %421, %420 : vector<16x128xf32>
    %423 = math.tanh %422 : vector<16x128xf32>
    %cst_254 = arith.constant 1.000000e+00 : f32
    %424 = vector.broadcast %cst_254 : f32 to vector<16x128xf32>
    %425 = arith.addf %424, %423 : vector<16x128xf32>
    %426 = arith.mulf %415, %425 : vector<16x128xf32>
    %c0_255 = arith.constant 0 : index
    %c0_256 = arith.constant 0 : index
    %427 = vector.load %arg20[%c0_255, %c0_256] : memref<64x128xf32, #tpu.memory_space<vmem>>, vector<16x128xf32>
    tpu.vector_store %arg20[%c0_255, %c0_256], %411 {strides = array<i32>} : memref<64x128xf32, #tpu.memory_space<vmem>>, vector<16x128xf32>,
    %c0_257 = arith.constant 0 : index
    %c0_258 = arith.constant 0 : index
    %428 = vector.load %arg21[%c0_257, %c0_258] : memref<64x128xf32, #tpu.memory_space<vmem>>, vector<16x128xf32>
    tpu.vector_store %arg21[%c0_257, %c0_258], %426 {strides = array<i32>} : memref<64x128xf32, #tpu.memory_space<vmem>>, vector<16x128xf32>,
    %c0_259 = arith.constant 0 : index
    %c0_260 = arith.constant 0 : index
    %429 = vector.load %arg20[%c0_259, %c0_260] : memref<64x128xf32, #tpu.memory_space<vmem>>, vector<1x128xf32>
    %c8_261 = arith.constant 8 : index
    %c0_262 = arith.constant 0 : index
    %430 = vector.load %arg19[%c8_261, %c0_262] : memref<144x128xf32, #tpu.memory_space<vmem>>, vector<1x128xf32>
    tpu.vector_store %arg19[%c8_261, %c0_262], %429 {strides = array<i32>} : memref<144x128xf32, #tpu.memory_space<vmem>>, vector<1x128xf32>,
    %c0_263 = arith.constant 0 : index
    %c0_264 = arith.constant 0 : index
    %431 = vector.load %arg21[%c0_263, %c0_264] : memref<64x128xf32, #tpu.memory_space<vmem>>, vector<1x128xf32>
    %c9_265 = arith.constant 9 : index
    %c0_266 = arith.constant 0 : index
    %432 = vector.load %arg19[%c9_265, %c0_266] : memref<144x128xf32, #tpu.memory_space<vmem>>, vector<1x128xf32>
    tpu.vector_store %arg19[%c9_265, %c0_266], %431 {strides = array<i32>} : memref<144x128xf32, #tpu.memory_space<vmem>>, vector<1x128xf32>,
    %c1_267 = arith.constant 1 : index
    %c0_268 = arith.constant 0 : index
    %433 = vector.load %arg20[%c1_267, %c0_268] : memref<64x128xf32, #tpu.memory_space<vmem>>, vector<1x128xf32>
    %c10_269 = arith.constant 10 : index
    %c0_270 = arith.constant 0 : index
    %434 = vector.load %arg19[%c10_269, %c0_270] : memref<144x128xf32, #tpu.memory_space<vmem>>, vector<1x128xf32>
    tpu.vector_store %arg19[%c10_269, %c0_270], %433 {strides = array<i32>} : memref<144x128xf32, #tpu.memory_space<vmem>>, vector<1x128xf32>,
    %c1_271 = arith.constant 1 : index
    %c0_272 = arith.constant 0 : index
    %435 = vector.load %arg21[%c1_271, %c0_272] : memref<64x128xf32, #tpu.memory_space<vmem>>, vector<1x128xf32>
    %c11_273 = arith.constant 11 : index
    %c0_274 = arith.constant 0 : index
    %436 = vector.load %arg19[%c11_273, %c0_274] : memref<144x128xf32, #tpu.memory_space<vmem>>, vector<1x128xf32>
    tpu.vector_store %arg19[%c11_273, %c0_274], %435 {strides = array<i32>} : memref<144x128xf32, #tpu.memory_space<vmem>>, vector<1x128xf32>,
    %c2_275 = arith.constant 2 : index
    %c0_276 = arith.constant 0 : index
    %437 = vector.load %arg20[%c2_275, %c0_276] : memref<64x128xf32, #tpu.memory_space<vmem>>, vector<1x128xf32>
    %c12_277 = arith.constant 12 : index
    %c0_278 = arith.constant 0 : index
    %438 = vector.load %arg19[%c12_277, %c0_278] : memref<144x128xf32, #tpu.memory_space<vmem>>, vector<1x128xf32>
    tpu.vector_store %arg19[%c12_277, %c0_278], %437 {strides = array<i32>} : memref<144x128xf32, #tpu.memory_space<vmem>>, vector<1x128xf32>,
    %c2_279 = arith.constant 2 : index
    %c0_280 = arith.constant 0 : index
    %439 = vector.load %arg21[%c2_279, %c0_280] : memref<64x128xf32, #tpu.memory_space<vmem>>, vector<1x128xf32>
    %c13_281 = arith.constant 13 : index
    %c0_282 = arith.constant 0 : index
    %440 = vector.load %arg19[%c13_281, %c0_282] : memref<144x128xf32, #tpu.memory_space<vmem>>, vector<1x128xf32>
    tpu.vector_store %arg19[%c13_281, %c0_282], %439 {strides = array<i32>} : memref<144x128xf32, #tpu.memory_space<vmem>>, vector<1x128xf32>,
    %c3_283 = arith.constant 3 : index
    %c0_284 = arith.constant 0 : index
    %441 = vector.load %arg20[%c3_283, %c0_284] : memref<64x128xf32, #tpu.memory_space<vmem>>, vector<1x128xf32>
    %c14_285 = arith.constant 14 : index
    %c0_286 = arith.constant 0 : index
    %442 = vector.load %arg19[%c14_285, %c0_286] : memref<144x128xf32, #tpu.memory_space<vmem>>, vector<1x128xf32>
    tpu.vector_store %arg19[%c14_285, %c0_286], %441 {strides = array<i32>} : memref<144x128xf32, #tpu.memory_space<vmem>>, vector<1x128xf32>,
    %c3_287 = arith.constant 3 : index
    %c0_288 = arith.constant 0 : index
    %443 = vector.load %arg21[%c3_287, %c0_288] : memref<64x128xf32, #tpu.memory_space<vmem>>, vector<1x128xf32>
    %c15_289 = arith.constant 15 : index
    %c0_290 = arith.constant 0 : index
    %444 = vector.load %arg19[%c15_289, %c0_290] : memref<144x128xf32, #tpu.memory_space<vmem>>, vector<1x128xf32>
    tpu.vector_store %arg19[%c15_289, %c0_290], %443 {strides = array<i32>} : memref<144x128xf32, #tpu.memory_space<vmem>>, vector<1x128xf32>,
    %c4_291 = arith.constant 4 : index
    %c0_292 = arith.constant 0 : index
    %445 = vector.load %arg20[%c4_291, %c0_292] : memref<64x128xf32, #tpu.memory_space<vmem>>, vector<1x128xf32>
    %c16_293 = arith.constant 16 : index
    %c0_294 = arith.constant 0 : index
    %446 = vector.load %arg19[%c16_293, %c0_294] : memref<144x128xf32, #tpu.memory_space<vmem>>, vector<1x128xf32>
    tpu.vector_store %arg19[%c16_293, %c0_294], %445 {strides = array<i32>} : memref<144x128xf32, #tpu.memory_space<vmem>>, vector<1x128xf32>,
    %c4_295 = arith.constant 4 : index
    %c0_296 = arith.constant 0 : index
    %447 = vector.load %arg21[%c4_295, %c0_296] : memref<64x128xf32, #tpu.memory_space<vmem>>, vector<1x128xf32>
    %c17_297 = arith.constant 17 : index
    %c0_298 = arith.constant 0 : index
    %448 = vector.load %arg19[%c17_297, %c0_298] : memref<144x128xf32, #tpu.memory_space<vmem>>, vector<1x128xf32>
    tpu.vector_store %arg19[%c17_297, %c0_298], %447 {strides = array<i32>} : memref<144x128xf32, #tpu.memory_space<vmem>>, vector<1x128xf32>,
    %c5_299 = arith.constant 5 : index
    %c0_300 = arith.constant 0 : index
    %449 = vector.load %arg20[%c5_299, %c0_300] : memref<64x128xf32, #tpu.memory_space<vmem>>, vector<1x128xf32>
    %c18_301 = arith.constant 18 : index
    %c0_302 = arith.constant 0 : index
    %450 = vector.load %arg19[%c18_301, %c0_302] : memref<144x128xf32, #tpu.memory_space<vmem>>, vector<1x128xf32>
    tpu.vector_store %arg19[%c18_301, %c0_302], %449 {strides = array<i32>} : memref<144x128xf32, #tpu.memory_space<vmem>>, vector<1x128xf32>,
    %c5_303 = arith.constant 5 : index
    %c0_304 = arith.constant 0 : index
    %451 = vector.load %arg21[%c5_303, %c0_304] : memref<64x128xf32, #tpu.memory_space<vmem>>, vector<1x128xf32>
    %c19_305 = arith.constant 19 : index
    %c0_306 = arith.constant 0 : index
    %452 = vector.load %arg19[%c19_305, %c0_306] : memref<144x128xf32, #tpu.memory_space<vmem>>, vector<1x128xf32>
    tpu.vector_store %arg19[%c19_305, %c0_306], %451 {strides = array<i32>} : memref<144x128xf32, #tpu.memory_space<vmem>>, vector<1x128xf32>,
    %c6_307 = arith.constant 6 : index
    %c0_308 = arith.constant 0 : index
    %453 = vector.load %arg20[%c6_307, %c0_308] : memref<64x128xf32, #tpu.memory_space<vmem>>, vector<1x128xf32>
    %c20_309 = arith.constant 20 : index
    %c0_310 = arith.constant 0 : index
    %454 = vector.load %arg19[%c20_309, %c0_310] : memref<144x128xf32, #tpu.memory_space<vmem>>, vector<1x128xf32>
    tpu.vector_store %arg19[%c20_309, %c0_310], %453 {strides = array<i32>} : memref<144x128xf32, #tpu.memory_space<vmem>>, vector<1x128xf32>,
    %c6_311 = arith.constant 6 : index
    %c0_312 = arith.constant 0 : index
    %455 = vector.load %arg21[%c6_311, %c0_312] : memref<64x128xf32, #tpu.memory_space<vmem>>, vector<1x128xf32>
    %c21_313 = arith.constant 21 : index
    %c0_314 = arith.constant 0 : index
    %456 = vector.load %arg19[%c21_313, %c0_314] : memref<144x128xf32, #tpu.memory_space<vmem>>, vector<1x128xf32>
    tpu.vector_store %arg19[%c21_313, %c0_314], %455 {strides = array<i32>} : memref<144x128xf32, #tpu.memory_space<vmem>>, vector<1x128xf32>,
    %c7_315 = arith.constant 7 : index
    %c0_316 = arith.constant 0 : index
    %457 = vector.load %arg20[%c7_315, %c0_316] : memref<64x128xf32, #tpu.memory_space<vmem>>, vector<1x128xf32>
    %c22_317 = arith.constant 22 : index
    %c0_318 = arith.constant 0 : index
    %458 = vector.load %arg19[%c22_317, %c0_318] : memref<144x128xf32, #tpu.memory_space<vmem>>, vector<1x128xf32>
    tpu.vector_store %arg19[%c22_317, %c0_318], %457 {strides = array<i32>} : memref<144x128xf32, #tpu.memory_space<vmem>>, vector<1x128xf32>,
    %c7_319 = arith.constant 7 : index
    %c0_320 = arith.constant 0 : index
    %459 = vector.load %arg21[%c7_319, %c0_320] : memref<64x128xf32, #tpu.memory_space<vmem>>, vector<1x128xf32>
    %c23_321 = arith.constant 23 : index
    %c0_322 = arith.constant 0 : index
    %460 = vector.load %arg19[%c23_321, %c0_322] : memref<144x128xf32, #tpu.memory_space<vmem>>, vector<1x128xf32>
    tpu.vector_store %arg19[%c23_321, %c0_322], %459 {strides = array<i32>} : memref<144x128xf32, #tpu.memory_space<vmem>>, vector<1x128xf32>,
    %c8_323 = arith.constant 8 : index
    %c0_324 = arith.constant 0 : index
    %461 = vector.load %arg20[%c8_323, %c0_324] : memref<64x128xf32, #tpu.memory_space<vmem>>, vector<1x128xf32>
    %c24 = arith.constant 24 : index
    %c0_325 = arith.constant 0 : index
    %462 = vector.load %arg19[%c24, %c0_325] : memref<144x128xf32, #tpu.memory_space<vmem>>, vector<1x128xf32>
    tpu.vector_store %arg19[%c24, %c0_325], %461 {strides = array<i32>} : memref<144x128xf32, #tpu.memory_space<vmem>>, vector<1x128xf32>,
    %c8_326 = arith.constant 8 : index
    %c0_327 = arith.constant 0 : index
    %463 = vector.load %arg21[%c8_326, %c0_327] : memref<64x128xf32, #tpu.memory_space<vmem>>, vector<1x128xf32>
    %c25 = arith.constant 25 : index
    %c0_328 = arith.constant 0 : index
    %464 = vector.load %arg19[%c25, %c0_328] : memref<144x128xf32, #tpu.memory_space<vmem>>, vector<1x128xf32>
    tpu.vector_store %arg19[%c25, %c0_328], %463 {strides = array<i32>} : memref<144x128xf32, #tpu.memory_space<vmem>>, vector<1x128xf32>,
    %c9_329 = arith.constant 9 : index
    %c0_330 = arith.constant 0 : index
    %465 = vector.load %arg20[%c9_329, %c0_330] : memref<64x128xf32, #tpu.memory_space<vmem>>, vector<1x128xf32>
    %c26 = arith.constant 26 : index
    %c0_331 = arith.constant 0 : index
    %466 = vector.load %arg19[%c26, %c0_331] : memref<144x128xf32, #tpu.memory_space<vmem>>, vector<1x128xf32>
    tpu.vector_store %arg19[%c26, %c0_331], %465 {strides = array<i32>} : memref<144x128xf32, #tpu.memory_space<vmem>>, vector<1x128xf32>,
    %c9_332 = arith.constant 9 : index
    %c0_333 = arith.constant 0 : index
    %467 = vector.load %arg21[%c9_332, %c0_333] : memref<64x128xf32, #tpu.memory_space<vmem>>, vector<1x128xf32>
    %c27 = arith.constant 27 : index
    %c0_334 = arith.constant 0 : index
    %468 = vector.load %arg19[%c27, %c0_334] : memref<144x128xf32, #tpu.memory_space<vmem>>, vector<1x128xf32>
    tpu.vector_store %arg19[%c27, %c0_334], %467 {strides = array<i32>} : memref<144x128xf32, #tpu.memory_space<vmem>>, vector<1x128xf32>,
    %c10_335 = arith.constant 10 : index
    %c0_336 = arith.constant 0 : index
    %469 = vector.load %arg20[%c10_335, %c0_336] : memref<64x128xf32, #tpu.memory_space<vmem>>, vector<1x128xf32>
    %c28 = arith.constant 28 : index
    %c0_337 = arith.constant 0 : index
    %470 = vector.load %arg19[%c28, %c0_337] : memref<144x128xf32, #tpu.memory_space<vmem>>, vector<1x128xf32>
    tpu.vector_store %arg19[%c28, %c0_337], %469 {strides = array<i32>} : memref<144x128xf32, #tpu.memory_space<vmem>>, vector<1x128xf32>,
    %c10_338 = arith.constant 10 : index
    %c0_339 = arith.constant 0 : index
    %471 = vector.load %arg21[%c10_338, %c0_339] : memref<64x128xf32, #tpu.memory_space<vmem>>, vector<1x128xf32>
    %c29 = arith.constant 29 : index
    %c0_340 = arith.constant 0 : index
    %472 = vector.load %arg19[%c29, %c0_340] : memref<144x128xf32, #tpu.memory_space<vmem>>, vector<1x128xf32>
    tpu.vector_store %arg19[%c29, %c0_340], %471 {strides = array<i32>} : memref<144x128xf32, #tpu.memory_space<vmem>>, vector<1x128xf32>,
    %c11_341 = arith.constant 11 : index
    %c0_342 = arith.constant 0 : index
    %473 = vector.load %arg20[%c11_341, %c0_342] : memref<64x128xf32, #tpu.memory_space<vmem>>, vector<1x128xf32>
    %c30 = arith.constant 30 : index
    %c0_343 = arith.constant 0 : index
    %474 = vector.load %arg19[%c30, %c0_343] : memref<144x128xf32, #tpu.memory_space<vmem>>, vector<1x128xf32>
    tpu.vector_store %arg19[%c30, %c0_343], %473 {strides = array<i32>} : memref<144x128xf32, #tpu.memory_space<vmem>>, vector<1x128xf32>,
    %c11_344 = arith.constant 11 : index
    %c0_345 = arith.constant 0 : index
    %475 = vector.load %arg21[%c11_344, %c0_345] : memref<64x128xf32, #tpu.memory_space<vmem>>, vector<1x128xf32>
    %c31 = arith.constant 31 : index
    %c0_346 = arith.constant 0 : index
    %476 = vector.load %arg19[%c31, %c0_346] : memref<144x128xf32, #tpu.memory_space<vmem>>, vector<1x128xf32>
    tpu.vector_store %arg19[%c31, %c0_346], %475 {strides = array<i32>} : memref<144x128xf32, #tpu.memory_space<vmem>>, vector<1x128xf32>,
    %c12_347 = arith.constant 12 : index
    %c0_348 = arith.constant 0 : index
    %477 = vector.load %arg20[%c12_347, %c0_348] : memref<64x128xf32, #tpu.memory_space<vmem>>, vector<1x128xf32>
    %c32 = arith.constant 32 : index
    %c0_349 = arith.constant 0 : index
    %478 = vector.load %arg19[%c32, %c0_349] : memref<144x128xf32, #tpu.memory_space<vmem>>, vector<1x128xf32>
    tpu.vector_store %arg19[%c32, %c0_349], %477 {strides = array<i32>} : memref<144x128xf32, #tpu.memory_space<vmem>>, vector<1x128xf32>,
    %c12_350 = arith.constant 12 : index
    %c0_351 = arith.constant 0 : index
    %479 = vector.load %arg21[%c12_350, %c0_351] : memref<64x128xf32, #tpu.memory_space<vmem>>, vector<1x128xf32>
    %c33 = arith.constant 33 : index
    %c0_352 = arith.constant 0 : index
    %480 = vector.load %arg19[%c33, %c0_352] : memref<144x128xf32, #tpu.memory_space<vmem>>, vector<1x128xf32>
    tpu.vector_store %arg19[%c33, %c0_352], %479 {strides = array<i32>} : memref<144x128xf32, #tpu.memory_space<vmem>>, vector<1x128xf32>,
    %c13_353 = arith.constant 13 : index
    %c0_354 = arith.constant 0 : index
    %481 = vector.load %arg20[%c13_353, %c0_354] : memref<64x128xf32, #tpu.memory_space<vmem>>, vector<1x128xf32>
    %c34 = arith.constant 34 : index
    %c0_355 = arith.constant 0 : index
    %482 = vector.load %arg19[%c34, %c0_355] : memref<144x128xf32, #tpu.memory_space<vmem>>, vector<1x128xf32>
    tpu.vector_store %arg19[%c34, %c0_355], %481 {strides = array<i32>} : memref<144x128xf32, #tpu.memory_space<vmem>>, vector<1x128xf32>,
    %c13_356 = arith.constant 13 : index
    %c0_357 = arith.constant 0 : index
    %483 = vector.load %arg21[%c13_356, %c0_357] : memref<64x128xf32, #tpu.memory_space<vmem>>, vector<1x128xf32>
    %c35 = arith.constant 35 : index
    %c0_358 = arith.constant 0 : index
    %484 = vector.load %arg19[%c35, %c0_358] : memref<144x128xf32, #tpu.memory_space<vmem>>, vector<1x128xf32>
    tpu.vector_store %arg19[%c35, %c0_358], %483 {strides = array<i32>} : memref<144x128xf32, #tpu.memory_space<vmem>>, vector<1x128xf32>,
    %c14_359 = arith.constant 14 : index
    %c0_360 = arith.constant 0 : index
    %485 = vector.load %arg20[%c14_359, %c0_360] : memref<64x128xf32, #tpu.memory_space<vmem>>, vector<1x128xf32>
    %c36 = arith.constant 36 : index
    %c0_361 = arith.constant 0 : index
    %486 = vector.load %arg19[%c36, %c0_361] : memref<144x128xf32, #tpu.memory_space<vmem>>, vector<1x128xf32>
    tpu.vector_store %arg19[%c36, %c0_361], %485 {strides = array<i32>} : memref<144x128xf32, #tpu.memory_space<vmem>>, vector<1x128xf32>,
    %c14_362 = arith.constant 14 : index
    %c0_363 = arith.constant 0 : index
    %487 = vector.load %arg21[%c14_362, %c0_363] : memref<64x128xf32, #tpu.memory_space<vmem>>, vector<1x128xf32>
    %c37 = arith.constant 37 : index
    %c0_364 = arith.constant 0 : index
    %488 = vector.load %arg19[%c37, %c0_364] : memref<144x128xf32, #tpu.memory_space<vmem>>, vector<1x128xf32>
    tpu.vector_store %arg19[%c37, %c0_364], %487 {strides = array<i32>} : memref<144x128xf32, #tpu.memory_space<vmem>>, vector<1x128xf32>,
    %c15_365 = arith.constant 15 : index
    %c0_366 = arith.constant 0 : index
    %489 = vector.load %arg20[%c15_365, %c0_366] : memref<64x128xf32, #tpu.memory_space<vmem>>, vector<1x128xf32>
    %c38 = arith.constant 38 : index
    %c0_367 = arith.constant 0 : index
    %490 = vector.load %arg19[%c38, %c0_367] : memref<144x128xf32, #tpu.memory_space<vmem>>, vector<1x128xf32>
    tpu.vector_store %arg19[%c38, %c0_367], %489 {strides = array<i32>} : memref<144x128xf32, #tpu.memory_space<vmem>>, vector<1x128xf32>,
    %c15_368 = arith.constant 15 : index
    %c0_369 = arith.constant 0 : index
    %491 = vector.load %arg21[%c15_368, %c0_369] : memref<64x128xf32, #tpu.memory_space<vmem>>, vector<1x128xf32>
    %c39 = arith.constant 39 : index
    %c0_370 = arith.constant 0 : index
    %492 = vector.load %arg19[%c39, %c0_370] : memref<144x128xf32, #tpu.memory_space<vmem>>, vector<1x128xf32>
    tpu.vector_store %arg19[%c39, %c0_370], %491 {strides = array<i32>} : memref<144x128xf32, #tpu.memory_space<vmem>>, vector<1x128xf32>,
    %c8_371 = arith.constant 8 : index
    %c0_372 = arith.constant 0 : index
    %493 = vector.load %arg19[%c8_371, %c0_372] : memref<144x128xf32, #tpu.memory_space<vmem>>, vector<32x128xf32>
    %494 = tpu.iota {dimensions = array<i32: 0>} : vector<32x128xi32>
    %c16_i32 = arith.constant 16 : i32
    %c0_i32_373 = arith.constant 0 : i32
    %495 = arith.cmpi eq, %c16_i32, %c0_i32_373 : i32
    %c1_i32_374 = arith.constant 1 : i32
    %496 = arith.select %495, %c1_i32_374, %c16_i32 : i32
    %497 = vector.broadcast %496 : i32 to vector<32x128xi32>
    %498 = arith.remsi %494, %497 : vector<32x128xi32>
    %c0_i32_375 = arith.constant 0 : i32
    %499 = vector.broadcast %c0_i32_375 : i32 to vector<32x128xi32>
    %500 = arith.cmpi ne, %498, %499 : vector<32x128xi32>
    %c0_i32_376 = arith.constant 0 : i32
    %501 = vector.broadcast %c0_i32_376 : i32 to vector<32x128xi32>
    %502 = arith.cmpi slt, %498, %501 : vector<32x128xi32>
    %c0_i32_377 = arith.constant 0 : i32
    %503 = arith.cmpi slt, %496, %c0_i32_377 : i32
    %504 = vector.broadcast %503 : i1 to vector<32x128xi1>
    %505 = vector.broadcast %504 : vector<32x128xi1> to vector<32x128xi1>
    %506 = arith.xori %502, %505 : vector<32x128xi1>
    %507 = arith.andi %506, %500 : vector<32x128xi1>
    %508 = vector.broadcast %496 : i32 to vector<32x128xi32>
    %509 = arith.addi %498, %508 : vector<32x128xi32>
    %510 = arith.select %507, %509, %498 : vector<32x128xi1>, vector<32x128xi32>
    %c-1_i32_378 = arith.constant -1 : i32
    %511 = vector.broadcast %c-1_i32_378 : i32 to vector<32x128xi32>
    %512 = arith.addi %510, %511 : vector<32x128xi32>
    %c0_i32_379 = arith.constant 0 : i32
    %513 = vector.broadcast %c0_i32_379 : i32 to vector<32x128xi32>
    %514 = arith.cmpi sge, %512, %513 : vector<32x128xi32>
    %c-1_i32_380 = arith.constant -1 : i32
    %515 = vector.broadcast %c-1_i32_380 : i32 to vector<32x128xi32>
    %516 = arith.addi %510, %515 : vector<32x128xi32>
    %c16_i32_381 = arith.constant 16 : i32
    %517 = vector.broadcast %c16_i32_381 : i32 to vector<32x128xi32>
    %518 = arith.cmpi slt, %516, %517 : vector<32x128xi32>
    %519 = arith.andi %514, %518 : vector<32x128xi1>
    %c7_382 = arith.constant 7 : index
    %c0_383 = arith.constant 0 : index
    %520 = vector.load %arg19[%c7_382, %c0_383] : memref<144x128xf32, #tpu.memory_space<vmem>>, vector<32x128xf32>
    %cst_384 = arith.constant 0.000000e+00 : f32
    %521 = vector.broadcast %cst_384 : f32 to vector<32x128xf32>
    %522 = arith.select %519, %520, %521 : vector<32x128xi1>, vector<32x128xf32>
    %523 = tpu.iota {dimensions = array<i32: 0>} : vector<32x128xi32>
    %c16_i32_385 = arith.constant 16 : i32
    %c0_i32_386 = arith.constant 0 : i32
    %524 = arith.cmpi eq, %c16_i32_385, %c0_i32_386 : i32
    %c1_i32_387 = arith.constant 1 : i32
    %525 = arith.select %524, %c1_i32_387, %c16_i32_385 : i32
    %526 = vector.broadcast %525 : i32 to vector<32x128xi32>
    %527 = arith.remsi %523, %526 : vector<32x128xi32>
    %c0_i32_388 = arith.constant 0 : i32
    %528 = vector.broadcast %c0_i32_388 : i32 to vector<32x128xi32>
    %529 = arith.cmpi ne, %527, %528 : vector<32x128xi32>
    %c0_i32_389 = arith.constant 0 : i32
    %530 = vector.broadcast %c0_i32_389 : i32 to vector<32x128xi32>
    %531 = arith.cmpi slt, %527, %530 : vector<32x128xi32>
    %c0_i32_390 = arith.constant 0 : i32
    %532 = arith.cmpi slt, %525, %c0_i32_390 : i32
    %533 = vector.broadcast %532 : i1 to vector<32x128xi1>
    %534 = vector.broadcast %533 : vector<32x128xi1> to vector<32x128xi1>
    %535 = arith.xori %531, %534 : vector<32x128xi1>
    %536 = arith.andi %535, %529 : vector<32x128xi1>
    %537 = vector.broadcast %525 : i32 to vector<32x128xi32>
    %538 = arith.addi %527, %537 : vector<32x128xi32>
    %539 = arith.select %536, %538, %527 : vector<32x128xi1>, vector<32x128xi32>
    %c1_i32_391 = arith.constant 1 : i32
    %540 = vector.broadcast %c1_i32_391 : i32 to vector<32x128xi32>
    %541 = arith.addi %539, %540 : vector<32x128xi32>
    %c0_i32_392 = arith.constant 0 : i32
    %542 = vector.broadcast %c0_i32_392 : i32 to vector<32x128xi32>
    %543 = arith.cmpi sge, %541, %542 : vector<32x128xi32>
    %c1_i32_393 = arith.constant 1 : i32
    %544 = vector.broadcast %c1_i32_393 : i32 to vector<32x128xi32>
    %545 = arith.addi %539, %544 : vector<32x128xi32>
    %c16_i32_394 = arith.constant 16 : i32
    %546 = vector.broadcast %c16_i32_394 : i32 to vector<32x128xi32>
    %547 = arith.cmpi slt, %545, %546 : vector<32x128xi32>
    %548 = arith.andi %543, %547 : vector<32x128xi1>
    %c9_395 = arith.constant 9 : index
    %c0_396 = arith.constant 0 : index
    %549 = vector.load %arg19[%c9_395, %c0_396] : memref<144x128xf32, #tpu.memory_space<vmem>>, vector<32x128xf32>
    %cst_397 = arith.constant 0.000000e+00 : f32
    %550 = vector.broadcast %cst_397 : f32 to vector<32x128xf32>
    %551 = arith.select %548, %549, %550 : vector<32x128xi1>, vector<32x128xf32>
    %552 = arith.truncf %493 : vector<32x128xf32> to vector<32x128xbf16>
    %553 = arith.truncf %522 : vector<32x128xf32> to vector<32x128xbf16>
    %554 = arith.truncf %551 : vector<32x128xf32> to vector<32x128xbf16>
    %c0_398 = arith.constant 0 : index
    %c0_399 = arith.constant 0 : index
    %555 = vector.load %arg13[%c0_398, %c0_399] : memref<512x128xbf16, #tpu.memory_space<vmem>>, vector<128x128xbf16>
    %c128_400 = arith.constant 128 : index
    %c0_401 = arith.constant 0 : index
    %556 = vector.load %arg13[%c128_400, %c0_401] : memref<512x128xbf16, #tpu.memory_space<vmem>>, vector<128x128xbf16>
    %c256_402 = arith.constant 256 : index
    %c0_403 = arith.constant 0 : index
    %557 = vector.load %arg13[%c256_402, %c0_403] : memref<512x128xbf16, #tpu.memory_space<vmem>>, vector<128x128xbf16>
    %c384_404 = arith.constant 384 : index
    %c0_405 = arith.constant 0 : index
    %558 = vector.load %arg13[%c384_404, %c0_405] : memref<512x128xbf16, #tpu.memory_space<vmem>>, vector<128x128xbf16>
    %c0_406 = arith.constant 0 : index
    %c0_407 = arith.constant 0 : index
    %559 = vector.load %arg14[%c0_406, %c0_407] : memref<1x128xf32, #tpu.memory_space<vmem>>, vector<1x128xf32>
    %cst_408 = arith.constant dense<0.000000e+00> : vector<32x128xf32>
    %560 = tpu.matmul %553, %555, %cst_408 {dimension_numbers = #tpu.dot_dimension_numbers<[1], [0], [0], [1], [0, 0, 1, 1], [], []>} : vector<32x128xbf16>, vector<128x128xbf16>, vector<32x128xf32> -> vector<32x128xf32>
    %cst_409 = arith.constant dense<0.000000e+00> : vector<32x128xf32>
    %561 = tpu.matmul %552, %556, %cst_409 {dimension_numbers = #tpu.dot_dimension_numbers<[1], [0], [0], [1], [0, 0, 1, 1], [], []>} : vector<32x128xbf16>, vector<128x128xbf16>, vector<32x128xf32> -> vector<32x128xf32>
    %562 = arith.addf %560, %561 : vector<32x128xf32>
    %cst_410 = arith.constant dense<0.000000e+00> : vector<32x128xf32>
    %563 = tpu.matmul %552, %557, %cst_410 {dimension_numbers = #tpu.dot_dimension_numbers<[1], [0], [0], [1], [0, 0, 1, 1], [], []>} : vector<32x128xbf16>, vector<128x128xbf16>, vector<32x128xf32> -> vector<32x128xf32>
    %cst_411 = arith.constant dense<0.000000e+00> : vector<32x128xf32>
    %564 = tpu.matmul %554, %558, %cst_411 {dimension_numbers = #tpu.dot_dimension_numbers<[1], [0], [0], [1], [0, 0, 1, 1], [], []>} : vector<32x128xbf16>, vector<128x128xbf16>, vector<32x128xf32> -> vector<32x128xf32>
    %565 = arith.addf %563, %564 : vector<32x128xf32>
    %566 = vector.broadcast %559 : vector<1x128xf32> to vector<32x128xf32>
    %567 = arith.addf %562, %566 : vector<32x128xf32>
    %cst_412 = arith.constant 5.000000e-01 : f32
    %568 = vector.broadcast %cst_412 : f32 to vector<32x128xf32>
    %569 = arith.mulf %568, %567 : vector<32x128xf32>
    %cst_413 = arith.constant 4.471500e-02 : f32
    %570 = vector.broadcast %cst_413 : f32 to vector<32x128xf32>
    %571 = arith.mulf %570, %567 : vector<32x128xf32>
    %572 = arith.mulf %571, %567 : vector<32x128xf32>
    %573 = arith.mulf %572, %567 : vector<32x128xf32>
    %574 = arith.addf %567, %573 : vector<32x128xf32>
    %cst_414 = arith.constant 0.797884583 : f32
    %575 = vector.broadcast %cst_414 : f32 to vector<32x128xf32>
    %576 = arith.mulf %575, %574 : vector<32x128xf32>
    %577 = math.tanh %576 : vector<32x128xf32>
    %cst_415 = arith.constant 1.000000e+00 : f32
    %578 = vector.broadcast %cst_415 : f32 to vector<32x128xf32>
    %579 = arith.addf %578, %577 : vector<32x128xf32>
    %580 = arith.mulf %569, %579 : vector<32x128xf32>
    %581 = vector.broadcast %559 : vector<1x128xf32> to vector<32x128xf32>
    %582 = arith.addf %565, %581 : vector<32x128xf32>
    %cst_416 = arith.constant 5.000000e-01 : f32
    %583 = vector.broadcast %cst_416 : f32 to vector<32x128xf32>
    %584 = arith.mulf %583, %582 : vector<32x128xf32>
    %cst_417 = arith.constant 4.471500e-02 : f32
    %585 = vector.broadcast %cst_417 : f32 to vector<32x128xf32>
    %586 = arith.mulf %585, %582 : vector<32x128xf32>
    %587 = arith.mulf %586, %582 : vector<32x128xf32>
    %588 = arith.mulf %587, %582 : vector<32x128xf32>
    %589 = arith.addf %582, %588 : vector<32x128xf32>
    %cst_418 = arith.constant 0.797884583 : f32
    %590 = vector.broadcast %cst_418 : f32 to vector<32x128xf32>
    %591 = arith.mulf %590, %589 : vector<32x128xf32>
    %592 = math.tanh %591 : vector<32x128xf32>
    %cst_419 = arith.constant 1.000000e+00 : f32
    %593 = vector.broadcast %cst_419 : f32 to vector<32x128xf32>
    %594 = arith.addf %593, %592 : vector<32x128xf32>
    %595 = arith.mulf %584, %594 : vector<32x128xf32>
    %c0_420 = arith.constant 0 : index
    %c0_421 = arith.constant 0 : index
    %596 = vector.load %arg20[%c0_420, %c0_421] : memref<64x128xf32, #tpu.memory_space<vmem>>, vector<32x128xf32>
    tpu.vector_store %arg20[%c0_420, %c0_421], %580 {strides = array<i32>} : memref<64x128xf32, #tpu.memory_space<vmem>>, vector<32x128xf32>,
    %c0_422 = arith.constant 0 : index
    %c0_423 = arith.constant 0 : index
    %597 = vector.load %arg21[%c0_422, %c0_423] : memref<64x128xf32, #tpu.memory_space<vmem>>, vector<32x128xf32>
    tpu.vector_store %arg21[%c0_422, %c0_423], %595 {strides = array<i32>} : memref<64x128xf32, #tpu.memory_space<vmem>>, vector<32x128xf32>,
    %c0_424 = arith.constant 0 : index
    %c0_425 = arith.constant 0 : index
    %598 = vector.load %arg20[%c0_424, %c0_425] : memref<64x128xf32, #tpu.memory_space<vmem>>, vector<1x128xf32>
    %c8_426 = arith.constant 8 : index
    %c0_427 = arith.constant 0 : index
    %599 = vector.load %arg19[%c8_426, %c0_427] : memref<144x128xf32, #tpu.memory_space<vmem>>, vector<1x128xf32>
    tpu.vector_store %arg19[%c8_426, %c0_427], %598 {strides = array<i32>} : memref<144x128xf32, #tpu.memory_space<vmem>>, vector<1x128xf32>,
    %c0_428 = arith.constant 0 : index
    %c0_429 = arith.constant 0 : index
    %600 = vector.load %arg21[%c0_428, %c0_429] : memref<64x128xf32, #tpu.memory_space<vmem>>, vector<1x128xf32>
    %c9_430 = arith.constant 9 : index
    %c0_431 = arith.constant 0 : index
    %601 = vector.load %arg19[%c9_430, %c0_431] : memref<144x128xf32, #tpu.memory_space<vmem>>, vector<1x128xf32>
    tpu.vector_store %arg19[%c9_430, %c0_431], %600 {strides = array<i32>} : memref<144x128xf32, #tpu.memory_space<vmem>>, vector<1x128xf32>,
    %c1_432 = arith.constant 1 : index
    %c0_433 = arith.constant 0 : index
    %602 = vector.load %arg20[%c1_432, %c0_433] : memref<64x128xf32, #tpu.memory_space<vmem>>, vector<1x128xf32>
    %c10_434 = arith.constant 10 : index
    %c0_435 = arith.constant 0 : index
    %603 = vector.load %arg19[%c10_434, %c0_435] : memref<144x128xf32, #tpu.memory_space<vmem>>, vector<1x128xf32>
    tpu.vector_store %arg19[%c10_434, %c0_435], %602 {strides = array<i32>} : memref<144x128xf32, #tpu.memory_space<vmem>>, vector<1x128xf32>,
    %c1_436 = arith.constant 1 : index
    %c0_437 = arith.constant 0 : index
    %604 = vector.load %arg21[%c1_436, %c0_437] : memref<64x128xf32, #tpu.memory_space<vmem>>, vector<1x128xf32>
    %c11_438 = arith.constant 11 : index
    %c0_439 = arith.constant 0 : index
    %605 = vector.load %arg19[%c11_438, %c0_439] : memref<144x128xf32, #tpu.memory_space<vmem>>, vector<1x128xf32>
    tpu.vector_store %arg19[%c11_438, %c0_439], %604 {strides = array<i32>} : memref<144x128xf32, #tpu.memory_space<vmem>>, vector<1x128xf32>,
    %c2_440 = arith.constant 2 : index
    %c0_441 = arith.constant 0 : index
    %606 = vector.load %arg20[%c2_440, %c0_441] : memref<64x128xf32, #tpu.memory_space<vmem>>, vector<1x128xf32>
    %c12_442 = arith.constant 12 : index
    %c0_443 = arith.constant 0 : index
    %607 = vector.load %arg19[%c12_442, %c0_443] : memref<144x128xf32, #tpu.memory_space<vmem>>, vector<1x128xf32>
    tpu.vector_store %arg19[%c12_442, %c0_443], %606 {strides = array<i32>} : memref<144x128xf32, #tpu.memory_space<vmem>>, vector<1x128xf32>,
    %c2_444 = arith.constant 2 : index
    %c0_445 = arith.constant 0 : index
    %608 = vector.load %arg21[%c2_444, %c0_445] : memref<64x128xf32, #tpu.memory_space<vmem>>, vector<1x128xf32>
    %c13_446 = arith.constant 13 : index
    %c0_447 = arith.constant 0 : index
    %609 = vector.load %arg19[%c13_446, %c0_447] : memref<144x128xf32, #tpu.memory_space<vmem>>, vector<1x128xf32>
    tpu.vector_store %arg19[%c13_446, %c0_447], %608 {strides = array<i32>} : memref<144x128xf32, #tpu.memory_space<vmem>>, vector<1x128xf32>,
    %c3_448 = arith.constant 3 : index
    %c0_449 = arith.constant 0 : index
    %610 = vector.load %arg20[%c3_448, %c0_449] : memref<64x128xf32, #tpu.memory_space<vmem>>, vector<1x128xf32>
    %c14_450 = arith.constant 14 : index
    %c0_451 = arith.constant 0 : index
    %611 = vector.load %arg19[%c14_450, %c0_451] : memref<144x128xf32, #tpu.memory_space<vmem>>, vector<1x128xf32>
    tpu.vector_store %arg19[%c14_450, %c0_451], %610 {strides = array<i32>} : memref<144x128xf32, #tpu.memory_space<vmem>>, vector<1x128xf32>,
    %c3_452 = arith.constant 3 : index
    %c0_453 = arith.constant 0 : index
    %612 = vector.load %arg21[%c3_452, %c0_453] : memref<64x128xf32, #tpu.memory_space<vmem>>, vector<1x128xf32>
    %c15_454 = arith.constant 15 : index
    %c0_455 = arith.constant 0 : index
    %613 = vector.load %arg19[%c15_454, %c0_455] : memref<144x128xf32, #tpu.memory_space<vmem>>, vector<1x128xf32>
    tpu.vector_store %arg19[%c15_454, %c0_455], %612 {strides = array<i32>} : memref<144x128xf32, #tpu.memory_space<vmem>>, vector<1x128xf32>,
    %c4_456 = arith.constant 4 : index
    %c0_457 = arith.constant 0 : index
    %614 = vector.load %arg20[%c4_456, %c0_457] : memref<64x128xf32, #tpu.memory_space<vmem>>, vector<1x128xf32>
    %c16_458 = arith.constant 16 : index
    %c0_459 = arith.constant 0 : index
    %615 = vector.load %arg19[%c16_458, %c0_459] : memref<144x128xf32, #tpu.memory_space<vmem>>, vector<1x128xf32>
    tpu.vector_store %arg19[%c16_458, %c0_459], %614 {strides = array<i32>} : memref<144x128xf32, #tpu.memory_space<vmem>>, vector<1x128xf32>,
    %c4_460 = arith.constant 4 : index
    %c0_461 = arith.constant 0 : index
    %616 = vector.load %arg21[%c4_460, %c0_461] : memref<64x128xf32, #tpu.memory_space<vmem>>, vector<1x128xf32>
    %c17_462 = arith.constant 17 : index
    %c0_463 = arith.constant 0 : index
    %617 = vector.load %arg19[%c17_462, %c0_463] : memref<144x128xf32, #tpu.memory_space<vmem>>, vector<1x128xf32>
    tpu.vector_store %arg19[%c17_462, %c0_463], %616 {strides = array<i32>} : memref<144x128xf32, #tpu.memory_space<vmem>>, vector<1x128xf32>,
    %c5_464 = arith.constant 5 : index
    %c0_465 = arith.constant 0 : index
    %618 = vector.load %arg20[%c5_464, %c0_465] : memref<64x128xf32, #tpu.memory_space<vmem>>, vector<1x128xf32>
    %c18_466 = arith.constant 18 : index
    %c0_467 = arith.constant 0 : index
    %619 = vector.load %arg19[%c18_466, %c0_467] : memref<144x128xf32, #tpu.memory_space<vmem>>, vector<1x128xf32>
    tpu.vector_store %arg19[%c18_466, %c0_467], %618 {strides = array<i32>} : memref<144x128xf32, #tpu.memory_space<vmem>>, vector<1x128xf32>,
    %c5_468 = arith.constant 5 : index
    %c0_469 = arith.constant 0 : index
    %620 = vector.load %arg21[%c5_468, %c0_469] : memref<64x128xf32, #tpu.memory_space<vmem>>, vector<1x128xf32>
    %c19_470 = arith.constant 19 : index
    %c0_471 = arith.constant 0 : index
    %621 = vector.load %arg19[%c19_470, %c0_471] : memref<144x128xf32, #tpu.memory_space<vmem>>, vector<1x128xf32>
    tpu.vector_store %arg19[%c19_470, %c0_471], %620 {strides = array<i32>} : memref<144x128xf32, #tpu.memory_space<vmem>>, vector<1x128xf32>,
    %c6_472 = arith.constant 6 : index
    %c0_473 = arith.constant 0 : index
    %622 = vector.load %arg20[%c6_472, %c0_473] : memref<64x128xf32, #tpu.memory_space<vmem>>, vector<1x128xf32>
    %c20_474 = arith.constant 20 : index
    %c0_475 = arith.constant 0 : index
    %623 = vector.load %arg19[%c20_474, %c0_475] : memref<144x128xf32, #tpu.memory_space<vmem>>, vector<1x128xf32>
    tpu.vector_store %arg19[%c20_474, %c0_475], %622 {strides = array<i32>} : memref<144x128xf32, #tpu.memory_space<vmem>>, vector<1x128xf32>,
    %c6_476 = arith.constant 6 : index
    %c0_477 = arith.constant 0 : index
    %624 = vector.load %arg21[%c6_476, %c0_477] : memref<64x128xf32, #tpu.memory_space<vmem>>, vector<1x128xf32>
    %c21_478 = arith.constant 21 : index
    %c0_479 = arith.constant 0 : index
    %625 = vector.load %arg19[%c21_478, %c0_479] : memref<144x128xf32, #tpu.memory_space<vmem>>, vector<1x128xf32>
    tpu.vector_store %arg19[%c21_478, %c0_479], %624 {strides = array<i32>} : memref<144x128xf32, #tpu.memory_space<vmem>>, vector<1x128xf32>,
    %c7_480 = arith.constant 7 : index
    %c0_481 = arith.constant 0 : index
    %626 = vector.load %arg20[%c7_480, %c0_481] : memref<64x128xf32, #tpu.memory_space<vmem>>, vector<1x128xf32>
    %c22_482 = arith.constant 22 : index
    %c0_483 = arith.constant 0 : index
    %627 = vector.load %arg19[%c22_482, %c0_483] : memref<144x128xf32, #tpu.memory_space<vmem>>, vector<1x128xf32>
    tpu.vector_store %arg19[%c22_482, %c0_483], %626 {strides = array<i32>} : memref<144x128xf32, #tpu.memory_space<vmem>>, vector<1x128xf32>,
    %c7_484 = arith.constant 7 : index
    %c0_485 = arith.constant 0 : index
    %628 = vector.load %arg21[%c7_484, %c0_485] : memref<64x128xf32, #tpu.memory_space<vmem>>, vector<1x128xf32>
    %c23_486 = arith.constant 23 : index
    %c0_487 = arith.constant 0 : index
    %629 = vector.load %arg19[%c23_486, %c0_487] : memref<144x128xf32, #tpu.memory_space<vmem>>, vector<1x128xf32>
    tpu.vector_store %arg19[%c23_486, %c0_487], %628 {strides = array<i32>} : memref<144x128xf32, #tpu.memory_space<vmem>>, vector<1x128xf32>,
    %c8_488 = arith.constant 8 : index
    %c0_489 = arith.constant 0 : index
    %630 = vector.load %arg20[%c8_488, %c0_489] : memref<64x128xf32, #tpu.memory_space<vmem>>, vector<1x128xf32>
    %c24_490 = arith.constant 24 : index
    %c0_491 = arith.constant 0 : index
    %631 = vector.load %arg19[%c24_490, %c0_491] : memref<144x128xf32, #tpu.memory_space<vmem>>, vector<1x128xf32>
    tpu.vector_store %arg19[%c24_490, %c0_491], %630 {strides = array<i32>} : memref<144x128xf32, #tpu.memory_space<vmem>>, vector<1x128xf32>,
    %c8_492 = arith.constant 8 : index
    %c0_493 = arith.constant 0 : index
    %632 = vector.load %arg21[%c8_492, %c0_493] : memref<64x128xf32, #tpu.memory_space<vmem>>, vector<1x128xf32>
    %c25_494 = arith.constant 25 : index
    %c0_495 = arith.constant 0 : index
    %633 = vector.load %arg19[%c25_494, %c0_495] : memref<144x128xf32, #tpu.memory_space<vmem>>, vector<1x128xf32>
    tpu.vector_store %arg19[%c25_494, %c0_495], %632 {strides = array<i32>} : memref<144x128xf32, #tpu.memory_space<vmem>>, vector<1x128xf32>,
    %c9_496 = arith.constant 9 : index
    %c0_497 = arith.constant 0 : index
    %634 = vector.load %arg20[%c9_496, %c0_497] : memref<64x128xf32, #tpu.memory_space<vmem>>, vector<1x128xf32>
    %c26_498 = arith.constant 26 : index
    %c0_499 = arith.constant 0 : index
    %635 = vector.load %arg19[%c26_498, %c0_499] : memref<144x128xf32, #tpu.memory_space<vmem>>, vector<1x128xf32>
    tpu.vector_store %arg19[%c26_498, %c0_499], %634 {strides = array<i32>} : memref<144x128xf32, #tpu.memory_space<vmem>>, vector<1x128xf32>,
    %c9_500 = arith.constant 9 : index
    %c0_501 = arith.constant 0 : index
    %636 = vector.load %arg21[%c9_500, %c0_501] : memref<64x128xf32, #tpu.memory_space<vmem>>, vector<1x128xf32>
    %c27_502 = arith.constant 27 : index
    %c0_503 = arith.constant 0 : index
    %637 = vector.load %arg19[%c27_502, %c0_503] : memref<144x128xf32, #tpu.memory_space<vmem>>, vector<1x128xf32>
    tpu.vector_store %arg19[%c27_502, %c0_503], %636 {strides = array<i32>} : memref<144x128xf32, #tpu.memory_space<vmem>>, vector<1x128xf32>,
    %c10_504 = arith.constant 10 : index
    %c0_505 = arith.constant 0 : index
    %638 = vector.load %arg20[%c10_504, %c0_505] : memref<64x128xf32, #tpu.memory_space<vmem>>, vector<1x128xf32>
    %c28_506 = arith.constant 28 : index
    %c0_507 = arith.constant 0 : index
    %639 = vector.load %arg19[%c28_506, %c0_507] : memref<144x128xf32, #tpu.memory_space<vmem>>, vector<1x128xf32>
    tpu.vector_store %arg19[%c28_506, %c0_507], %638 {strides = array<i32>} : memref<144x128xf32, #tpu.memory_space<vmem>>, vector<1x128xf32>,
    %c10_508 = arith.constant 10 : index
    %c0_509 = arith.constant 0 : index
    %640 = vector.load %arg21[%c10_508, %c0_509] : memref<64x128xf32, #tpu.memory_space<vmem>>, vector<1x128xf32>
    %c29_510 = arith.constant 29 : index
    %c0_511 = arith.constant 0 : index
    %641 = vector.load %arg19[%c29_510, %c0_511] : memref<144x128xf32, #tpu.memory_space<vmem>>, vector<1x128xf32>
    tpu.vector_store %arg19[%c29_510, %c0_511], %640 {strides = array<i32>} : memref<144x128xf32, #tpu.memory_space<vmem>>, vector<1x128xf32>,
    %c11_512 = arith.constant 11 : index
    %c0_513 = arith.constant 0 : index
    %642 = vector.load %arg20[%c11_512, %c0_513] : memref<64x128xf32, #tpu.memory_space<vmem>>, vector<1x128xf32>
    %c30_514 = arith.constant 30 : index
    %c0_515 = arith.constant 0 : index
    %643 = vector.load %arg19[%c30_514, %c0_515] : memref<144x128xf32, #tpu.memory_space<vmem>>, vector<1x128xf32>
    tpu.vector_store %arg19[%c30_514, %c0_515], %642 {strides = array<i32>} : memref<144x128xf32, #tpu.memory_space<vmem>>, vector<1x128xf32>,
    %c11_516 = arith.constant 11 : index
    %c0_517 = arith.constant 0 : index
    %644 = vector.load %arg21[%c11_516, %c0_517] : memref<64x128xf32, #tpu.memory_space<vmem>>, vector<1x128xf32>
    %c31_518 = arith.constant 31 : index
    %c0_519 = arith.constant 0 : index
    %645 = vector.load %arg19[%c31_518, %c0_519] : memref<144x128xf32, #tpu.memory_space<vmem>>, vector<1x128xf32>
    tpu.vector_store %arg19[%c31_518, %c0_519], %644 {strides = array<i32>} : memref<144x128xf32, #tpu.memory_space<vmem>>, vector<1x128xf32>,
    %c12_520 = arith.constant 12 : index
    %c0_521 = arith.constant 0 : index
    %646 = vector.load %arg20[%c12_520, %c0_521] : memref<64x128xf32, #tpu.memory_space<vmem>>, vector<1x128xf32>
    %c32_522 = arith.constant 32 : index
    %c0_523 = arith.constant 0 : index
    %647 = vector.load %arg19[%c32_522, %c0_523] : memref<144x128xf32, #tpu.memory_space<vmem>>, vector<1x128xf32>
    tpu.vector_store %arg19[%c32_522, %c0_523], %646 {strides = array<i32>} : memref<144x128xf32, #tpu.memory_space<vmem>>, vector<1x128xf32>,
    %c12_524 = arith.constant 12 : index
    %c0_525 = arith.constant 0 : index
    %648 = vector.load %arg21[%c12_524, %c0_525] : memref<64x128xf32, #tpu.memory_space<vmem>>, vector<1x128xf32>
    %c33_526 = arith.constant 33 : index
    %c0_527 = arith.constant 0 : index
    %649 = vector.load %arg19[%c33_526, %c0_527] : memref<144x128xf32, #tpu.memory_space<vmem>>, vector<1x128xf32>
    tpu.vector_store %arg19[%c33_526, %c0_527], %648 {strides = array<i32>} : memref<144x128xf32, #tpu.memory_space<vmem>>, vector<1x128xf32>,
    %c13_528 = arith.constant 13 : index
    %c0_529 = arith.constant 0 : index
    %650 = vector.load %arg20[%c13_528, %c0_529] : memref<64x128xf32, #tpu.memory_space<vmem>>, vector<1x128xf32>
    %c34_530 = arith.constant 34 : index
    %c0_531 = arith.constant 0 : index
    %651 = vector.load %arg19[%c34_530, %c0_531] : memref<144x128xf32, #tpu.memory_space<vmem>>, vector<1x128xf32>
    tpu.vector_store %arg19[%c34_530, %c0_531], %650 {strides = array<i32>} : memref<144x128xf32, #tpu.memory_space<vmem>>, vector<1x128xf32>,
    %c13_532 = arith.constant 13 : index
    %c0_533 = arith.constant 0 : index
    %652 = vector.load %arg21[%c13_532, %c0_533] : memref<64x128xf32, #tpu.memory_space<vmem>>, vector<1x128xf32>
    %c35_534 = arith.constant 35 : index
    %c0_535 = arith.constant 0 : index
    %653 = vector.load %arg19[%c35_534, %c0_535] : memref<144x128xf32, #tpu.memory_space<vmem>>, vector<1x128xf32>
    tpu.vector_store %arg19[%c35_534, %c0_535], %652 {strides = array<i32>} : memref<144x128xf32, #tpu.memory_space<vmem>>, vector<1x128xf32>,
    %c14_536 = arith.constant 14 : index
    %c0_537 = arith.constant 0 : index
    %654 = vector.load %arg20[%c14_536, %c0_537] : memref<64x128xf32, #tpu.memory_space<vmem>>, vector<1x128xf32>
    %c36_538 = arith.constant 36 : index
    %c0_539 = arith.constant 0 : index
    %655 = vector.load %arg19[%c36_538, %c0_539] : memref<144x128xf32, #tpu.memory_space<vmem>>, vector<1x128xf32>
    tpu.vector_store %arg19[%c36_538, %c0_539], %654 {strides = array<i32>} : memref<144x128xf32, #tpu.memory_space<vmem>>, vector<1x128xf32>,
    %c14_540 = arith.constant 14 : index
    %c0_541 = arith.constant 0 : index
    %656 = vector.load %arg21[%c14_540, %c0_541] : memref<64x128xf32, #tpu.memory_space<vmem>>, vector<1x128xf32>
    %c37_542 = arith.constant 37 : index
    %c0_543 = arith.constant 0 : index
    %657 = vector.load %arg19[%c37_542, %c0_543] : memref<144x128xf32, #tpu.memory_space<vmem>>, vector<1x128xf32>
    tpu.vector_store %arg19[%c37_542, %c0_543], %656 {strides = array<i32>} : memref<144x128xf32, #tpu.memory_space<vmem>>, vector<1x128xf32>,
    %c15_544 = arith.constant 15 : index
    %c0_545 = arith.constant 0 : index
    %658 = vector.load %arg20[%c15_544, %c0_545] : memref<64x128xf32, #tpu.memory_space<vmem>>, vector<1x128xf32>
    %c38_546 = arith.constant 38 : index
    %c0_547 = arith.constant 0 : index
    %659 = vector.load %arg19[%c38_546, %c0_547] : memref<144x128xf32, #tpu.memory_space<vmem>>, vector<1x128xf32>
    tpu.vector_store %arg19[%c38_546, %c0_547], %658 {strides = array<i32>} : memref<144x128xf32, #tpu.memory_space<vmem>>, vector<1x128xf32>,
    %c15_548 = arith.constant 15 : index
    %c0_549 = arith.constant 0 : index
    %660 = vector.load %arg21[%c15_548, %c0_549] : memref<64x128xf32, #tpu.memory_space<vmem>>, vector<1x128xf32>
    %c39_550 = arith.constant 39 : index
    %c0_551 = arith.constant 0 : index
    %661 = vector.load %arg19[%c39_550, %c0_551] : memref<144x128xf32, #tpu.memory_space<vmem>>, vector<1x128xf32>
    tpu.vector_store %arg19[%c39_550, %c0_551], %660 {strides = array<i32>} : memref<144x128xf32, #tpu.memory_space<vmem>>, vector<1x128xf32>,
    %c16_552 = arith.constant 16 : index
    %c0_553 = arith.constant 0 : index
    %662 = vector.load %arg20[%c16_552, %c0_553] : memref<64x128xf32, #tpu.memory_space<vmem>>, vector<1x128xf32>
    %c40 = arith.constant 40 : index
    %c0_554 = arith.constant 0 : index
    %663 = vector.load %arg19[%c40, %c0_554] : memref<144x128xf32, #tpu.memory_space<vmem>>, vector<1x128xf32>
    tpu.vector_store %arg19[%c40, %c0_554], %662 {strides = array<i32>} : memref<144x128xf32, #tpu.memory_space<vmem>>, vector<1x128xf32>,
    %c16_555 = arith.constant 16 : index
    %c0_556 = arith.constant 0 : index
    %664 = vector.load %arg21[%c16_555, %c0_556] : memref<64x128xf32, #tpu.memory_space<vmem>>, vector<1x128xf32>
    %c41 = arith.constant 41 : index
    %c0_557 = arith.constant 0 : index
    %665 = vector.load %arg19[%c41, %c0_557] : memref<144x128xf32, #tpu.memory_space<vmem>>, vector<1x128xf32>
    tpu.vector_store %arg19[%c41, %c0_557], %664 {strides = array<i32>} : memref<144x128xf32, #tpu.memory_space<vmem>>, vector<1x128xf32>,
    %c17_558 = arith.constant 17 : index
    %c0_559 = arith.constant 0 : index
    %666 = vector.load %arg20[%c17_558, %c0_559] : memref<64x128xf32, #tpu.memory_space<vmem>>, vector<1x128xf32>
    %c42 = arith.constant 42 : index
    %c0_560 = arith.constant 0 : index
    %667 = vector.load %arg19[%c42, %c0_560] : memref<144x128xf32, #tpu.memory_space<vmem>>, vector<1x128xf32>
    tpu.vector_store %arg19[%c42, %c0_560], %666 {strides = array<i32>} : memref<144x128xf32, #tpu.memory_space<vmem>>, vector<1x128xf32>,
    %c17_561 = arith.constant 17 : index
    %c0_562 = arith.constant 0 : index
    %668 = vector.load %arg21[%c17_561, %c0_562] : memref<64x128xf32, #tpu.memory_space<vmem>>, vector<1x128xf32>
    %c43 = arith.constant 43 : index
    %c0_563 = arith.constant 0 : index
    %669 = vector.load %arg19[%c43, %c0_563] : memref<144x128xf32, #tpu.memory_space<vmem>>, vector<1x128xf32>
    tpu.vector_store %arg19[%c43, %c0_563], %668 {strides = array<i32>} : memref<144x128xf32, #tpu.memory_space<vmem>>, vector<1x128xf32>,
    %c18_564 = arith.constant 18 : index
    %c0_565 = arith.constant 0 : index
    %670 = vector.load %arg20[%c18_564, %c0_565] : memref<64x128xf32, #tpu.memory_space<vmem>>, vector<1x128xf32>
    %c44 = arith.constant 44 : index
    %c0_566 = arith.constant 0 : index
    %671 = vector.load %arg19[%c44, %c0_566] : memref<144x128xf32, #tpu.memory_space<vmem>>, vector<1x128xf32>
    tpu.vector_store %arg19[%c44, %c0_566], %670 {strides = array<i32>} : memref<144x128xf32, #tpu.memory_space<vmem>>, vector<1x128xf32>,
    %c18_567 = arith.constant 18 : index
    %c0_568 = arith.constant 0 : index
    %672 = vector.load %arg21[%c18_567, %c0_568] : memref<64x128xf32, #tpu.memory_space<vmem>>, vector<1x128xf32>
    %c45 = arith.constant 45 : index
    %c0_569 = arith.constant 0 : index
    %673 = vector.load %arg19[%c45, %c0_569] : memref<144x128xf32, #tpu.memory_space<vmem>>, vector<1x128xf32>
    tpu.vector_store %arg19[%c45, %c0_569], %672 {strides = array<i32>} : memref<144x128xf32, #tpu.memory_space<vmem>>, vector<1x128xf32>,
    %c19_570 = arith.constant 19 : index
    %c0_571 = arith.constant 0 : index
    %674 = vector.load %arg20[%c19_570, %c0_571] : memref<64x128xf32, #tpu.memory_space<vmem>>, vector<1x128xf32>
    %c46 = arith.constant 46 : index
    %c0_572 = arith.constant 0 : index
    %675 = vector.load %arg19[%c46, %c0_572] : memref<144x128xf32, #tpu.memory_space<vmem>>, vector<1x128xf32>
    tpu.vector_store %arg19[%c46, %c0_572], %674 {strides = array<i32>} : memref<144x128xf32, #tpu.memory_space<vmem>>, vector<1x128xf32>,
    %c19_573 = arith.constant 19 : index
    %c0_574 = arith.constant 0 : index
    %676 = vector.load %arg21[%c19_573, %c0_574] : memref<64x128xf32, #tpu.memory_space<vmem>>, vector<1x128xf32>
    %c47 = arith.constant 47 : index
    %c0_575 = arith.constant 0 : index
    %677 = vector.load %arg19[%c47, %c0_575] : memref<144x128xf32, #tpu.memory_space<vmem>>, vector<1x128xf32>
    tpu.vector_store %arg19[%c47, %c0_575], %676 {strides = array<i32>} : memref<144x128xf32, #tpu.memory_space<vmem>>, vector<1x128xf32>,
    %c20_576 = arith.constant 20 : index
    %c0_577 = arith.constant 0 : index
    %678 = vector.load %arg20[%c20_576, %c0_577] : memref<64x128xf32, #tpu.memory_space<vmem>>, vector<1x128xf32>
    %c48 = arith.constant 48 : index
    %c0_578 = arith.constant 0 : index
    %679 = vector.load %arg19[%c48, %c0_578] : memref<144x128xf32, #tpu.memory_space<vmem>>, vector<1x128xf32>
    tpu.vector_store %arg19[%c48, %c0_578], %678 {strides = array<i32>} : memref<144x128xf32, #tpu.memory_space<vmem>>, vector<1x128xf32>,
    %c20_579 = arith.constant 20 : index
    %c0_580 = arith.constant 0 : index
    %680 = vector.load %arg21[%c20_579, %c0_580] : memref<64x128xf32, #tpu.memory_space<vmem>>, vector<1x128xf32>
    %c49 = arith.constant 49 : index
    %c0_581 = arith.constant 0 : index
    %681 = vector.load %arg19[%c49, %c0_581] : memref<144x128xf32, #tpu.memory_space<vmem>>, vector<1x128xf32>
    tpu.vector_store %arg19[%c49, %c0_581], %680 {strides = array<i32>} : memref<144x128xf32, #tpu.memory_space<vmem>>, vector<1x128xf32>,
    %c21_582 = arith.constant 21 : index
    %c0_583 = arith.constant 0 : index
    %682 = vector.load %arg20[%c21_582, %c0_583] : memref<64x128xf32, #tpu.memory_space<vmem>>, vector<1x128xf32>
    %c50 = arith.constant 50 : index
    %c0_584 = arith.constant 0 : index
    %683 = vector.load %arg19[%c50, %c0_584] : memref<144x128xf32, #tpu.memory_space<vmem>>, vector<1x128xf32>
    tpu.vector_store %arg19[%c50, %c0_584], %682 {strides = array<i32>} : memref<144x128xf32, #tpu.memory_space<vmem>>, vector<1x128xf32>,
    %c21_585 = arith.constant 21 : index
    %c0_586 = arith.constant 0 : index
    %684 = vector.load %arg21[%c21_585, %c0_586] : memref<64x128xf32, #tpu.memory_space<vmem>>, vector<1x128xf32>
    %c51 = arith.constant 51 : index
    %c0_587 = arith.constant 0 : index
    %685 = vector.load %arg19[%c51, %c0_587] : memref<144x128xf32, #tpu.memory_space<vmem>>, vector<1x128xf32>
    tpu.vector_store %arg19[%c51, %c0_587], %684 {strides = array<i32>} : memref<144x128xf32, #tpu.memory_space<vmem>>, vector<1x128xf32>,
    %c22_588 = arith.constant 22 : index
    %c0_589 = arith.constant 0 : index
    %686 = vector.load %arg20[%c22_588, %c0_589] : memref<64x128xf32, #tpu.memory_space<vmem>>, vector<1x128xf32>
    %c52 = arith.constant 52 : index
    %c0_590 = arith.constant 0 : index
    %687 = vector.load %arg19[%c52, %c0_590] : memref<144x128xf32, #tpu.memory_space<vmem>>, vector<1x128xf32>
    tpu.vector_store %arg19[%c52, %c0_590], %686 {strides = array<i32>} : memref<144x128xf32, #tpu.memory_space<vmem>>, vector<1x128xf32>,
    %c22_591 = arith.constant 22 : index
    %c0_592 = arith.constant 0 : index
    %688 = vector.load %arg21[%c22_591, %c0_592] : memref<64x128xf32, #tpu.memory_space<vmem>>, vector<1x128xf32>
    %c53 = arith.constant 53 : index
    %c0_593 = arith.constant 0 : index
    %689 = vector.load %arg19[%c53, %c0_593] : memref<144x128xf32, #tpu.memory_space<vmem>>, vector<1x128xf32>
    tpu.vector_store %arg19[%c53, %c0_593], %688 {strides = array<i32>} : memref<144x128xf32, #tpu.memory_space<vmem>>, vector<1x128xf32>,
    %c23_594 = arith.constant 23 : index
    %c0_595 = arith.constant 0 : index
    %690 = vector.load %arg20[%c23_594, %c0_595] : memref<64x128xf32, #tpu.memory_space<vmem>>, vector<1x128xf32>
    %c54 = arith.constant 54 : index
    %c0_596 = arith.constant 0 : index
    %691 = vector.load %arg19[%c54, %c0_596] : memref<144x128xf32, #tpu.memory_space<vmem>>, vector<1x128xf32>
    tpu.vector_store %arg19[%c54, %c0_596], %690 {strides = array<i32>} : memref<144x128xf32, #tpu.memory_space<vmem>>, vector<1x128xf32>,
    %c23_597 = arith.constant 23 : index
    %c0_598 = arith.constant 0 : index
    %692 = vector.load %arg21[%c23_597, %c0_598] : memref<64x128xf32, #tpu.memory_space<vmem>>, vector<1x128xf32>
    %c55 = arith.constant 55 : index
    %c0_599 = arith.constant 0 : index
    %693 = vector.load %arg19[%c55, %c0_599] : memref<144x128xf32, #tpu.memory_space<vmem>>, vector<1x128xf32>
    tpu.vector_store %arg19[%c55, %c0_599], %692 {strides = array<i32>} : memref<144x128xf32, #tpu.memory_space<vmem>>, vector<1x128xf32>,
    %c24_600 = arith.constant 24 : index
    %c0_601 = arith.constant 0 : index
    %694 = vector.load %arg20[%c24_600, %c0_601] : memref<64x128xf32, #tpu.memory_space<vmem>>, vector<1x128xf32>
    %c56 = arith.constant 56 : index
    %c0_602 = arith.constant 0 : index
    %695 = vector.load %arg19[%c56, %c0_602] : memref<144x128xf32, #tpu.memory_space<vmem>>, vector<1x128xf32>
    tpu.vector_store %arg19[%c56, %c0_602], %694 {strides = array<i32>} : memref<144x128xf32, #tpu.memory_space<vmem>>, vector<1x128xf32>,
    %c24_603 = arith.constant 24 : index
    %c0_604 = arith.constant 0 : index
    %696 = vector.load %arg21[%c24_603, %c0_604] : memref<64x128xf32, #tpu.memory_space<vmem>>, vector<1x128xf32>
    %c57 = arith.constant 57 : index
    %c0_605 = arith.constant 0 : index
    %697 = vector.load %arg19[%c57, %c0_605] : memref<144x128xf32, #tpu.memory_space<vmem>>, vector<1x128xf32>
    tpu.vector_store %arg19[%c57, %c0_605], %696 {strides = array<i32>} : memref<144x128xf32, #tpu.memory_space<vmem>>, vector<1x128xf32>,
    %c25_606 = arith.constant 25 : index
    %c0_607 = arith.constant 0 : index
    %698 = vector.load %arg20[%c25_606, %c0_607] : memref<64x128xf32, #tpu.memory_space<vmem>>, vector<1x128xf32>
    %c58 = arith.constant 58 : index
    %c0_608 = arith.constant 0 : index
    %699 = vector.load %arg19[%c58, %c0_608] : memref<144x128xf32, #tpu.memory_space<vmem>>, vector<1x128xf32>
    tpu.vector_store %arg19[%c58, %c0_608], %698 {strides = array<i32>} : memref<144x128xf32, #tpu.memory_space<vmem>>, vector<1x128xf32>,
    %c25_609 = arith.constant 25 : index
    %c0_610 = arith.constant 0 : index
    %700 = vector.load %arg21[%c25_609, %c0_610] : memref<64x128xf32, #tpu.memory_space<vmem>>, vector<1x128xf32>
    %c59 = arith.constant 59 : index
    %c0_611 = arith.constant 0 : index
    %701 = vector.load %arg19[%c59, %c0_611] : memref<144x128xf32, #tpu.memory_space<vmem>>, vector<1x128xf32>
    tpu.vector_store %arg19[%c59, %c0_611], %700 {strides = array<i32>} : memref<144x128xf32, #tpu.memory_space<vmem>>, vector<1x128xf32>,
    %c26_612 = arith.constant 26 : index
    %c0_613 = arith.constant 0 : index
    %702 = vector.load %arg20[%c26_612, %c0_613] : memref<64x128xf32, #tpu.memory_space<vmem>>, vector<1x128xf32>
    %c60 = arith.constant 60 : index
    %c0_614 = arith.constant 0 : index
    %703 = vector.load %arg19[%c60, %c0_614] : memref<144x128xf32, #tpu.memory_space<vmem>>, vector<1x128xf32>
    tpu.vector_store %arg19[%c60, %c0_614], %702 {strides = array<i32>} : memref<144x128xf32, #tpu.memory_space<vmem>>, vector<1x128xf32>,
    %c26_615 = arith.constant 26 : index
    %c0_616 = arith.constant 0 : index
    %704 = vector.load %arg21[%c26_615, %c0_616] : memref<64x128xf32, #tpu.memory_space<vmem>>, vector<1x128xf32>
    %c61 = arith.constant 61 : index
    %c0_617 = arith.constant 0 : index
    %705 = vector.load %arg19[%c61, %c0_617] : memref<144x128xf32, #tpu.memory_space<vmem>>, vector<1x128xf32>
    tpu.vector_store %arg19[%c61, %c0_617], %704 {strides = array<i32>} : memref<144x128xf32, #tpu.memory_space<vmem>>, vector<1x128xf32>,
    %c27_618 = arith.constant 27 : index
    %c0_619 = arith.constant 0 : index
    %706 = vector.load %arg20[%c27_618, %c0_619] : memref<64x128xf32, #tpu.memory_space<vmem>>, vector<1x128xf32>
    %c62 = arith.constant 62 : index
    %c0_620 = arith.constant 0 : index
    %707 = vector.load %arg19[%c62, %c0_620] : memref<144x128xf32, #tpu.memory_space<vmem>>, vector<1x128xf32>
    tpu.vector_store %arg19[%c62, %c0_620], %706 {strides = array<i32>} : memref<144x128xf32, #tpu.memory_space<vmem>>, vector<1x128xf32>,
    %c27_621 = arith.constant 27 : index
    %c0_622 = arith.constant 0 : index
    %708 = vector.load %arg21[%c27_621, %c0_622] : memref<64x128xf32, #tpu.memory_space<vmem>>, vector<1x128xf32>
    %c63 = arith.constant 63 : index
    %c0_623 = arith.constant 0 : index
    %709 = vector.load %arg19[%c63, %c0_623] : memref<144x128xf32, #tpu.memory_space<vmem>>, vector<1x128xf32>
    tpu.vector_store %arg19[%c63, %c0_623], %708 {strides = array<i32>} : memref<144x128xf32, #tpu.memory_space<vmem>>, vector<1x128xf32>,
    %c28_624 = arith.constant 28 : index
    %c0_625 = arith.constant 0 : index
    %710 = vector.load %arg20[%c28_624, %c0_625] : memref<64x128xf32, #tpu.memory_space<vmem>>, vector<1x128xf32>
    %c64_626 = arith.constant 64 : index
    %c0_627 = arith.constant 0 : index
    %711 = vector.load %arg19[%c64_626, %c0_627] : memref<144x128xf32, #tpu.memory_space<vmem>>, vector<1x128xf32>
    tpu.vector_store %arg19[%c64_626, %c0_627], %710 {strides = array<i32>} : memref<144x128xf32, #tpu.memory_space<vmem>>, vector<1x128xf32>,
    %c28_628 = arith.constant 28 : index
    %c0_629 = arith.constant 0 : index
    %712 = vector.load %arg21[%c28_628, %c0_629] : memref<64x128xf32, #tpu.memory_space<vmem>>, vector<1x128xf32>
    %c65 = arith.constant 65 : index
    %c0_630 = arith.constant 0 : index
    %713 = vector.load %arg19[%c65, %c0_630] : memref<144x128xf32, #tpu.memory_space<vmem>>, vector<1x128xf32>
    tpu.vector_store %arg19[%c65, %c0_630], %712 {strides = array<i32>} : memref<144x128xf32, #tpu.memory_space<vmem>>, vector<1x128xf32>,
    %c29_631 = arith.constant 29 : index
    %c0_632 = arith.constant 0 : index
    %714 = vector.load %arg20[%c29_631, %c0_632] : memref<64x128xf32, #tpu.memory_space<vmem>>, vector<1x128xf32>
    %c66 = arith.constant 66 : index
    %c0_633 = arith.constant 0 : index
    %715 = vector.load %arg19[%c66, %c0_633] : memref<144x128xf32, #tpu.memory_space<vmem>>, vector<1x128xf32>
    tpu.vector_store %arg19[%c66, %c0_633], %714 {strides = array<i32>} : memref<144x128xf32, #tpu.memory_space<vmem>>, vector<1x128xf32>,
    %c29_634 = arith.constant 29 : index
    %c0_635 = arith.constant 0 : index
    %716 = vector.load %arg21[%c29_634, %c0_635] : memref<64x128xf32, #tpu.memory_space<vmem>>, vector<1x128xf32>
    %c67 = arith.constant 67 : index
    %c0_636 = arith.constant 0 : index
    %717 = vector.load %arg19[%c67, %c0_636] : memref<144x128xf32, #tpu.memory_space<vmem>>, vector<1x128xf32>
    tpu.vector_store %arg19[%c67, %c0_636], %716 {strides = array<i32>} : memref<144x128xf32, #tpu.memory_space<vmem>>, vector<1x128xf32>,
    %c30_637 = arith.constant 30 : index
    %c0_638 = arith.constant 0 : index
    %718 = vector.load %arg20[%c30_637, %c0_638] : memref<64x128xf32, #tpu.memory_space<vmem>>, vector<1x128xf32>
    %c68 = arith.constant 68 : index
    %c0_639 = arith.constant 0 : index
    %719 = vector.load %arg19[%c68, %c0_639] : memref<144x128xf32, #tpu.memory_space<vmem>>, vector<1x128xf32>
    tpu.vector_store %arg19[%c68, %c0_639], %718 {strides = array<i32>} : memref<144x128xf32, #tpu.memory_space<vmem>>, vector<1x128xf32>,
    %c30_640 = arith.constant 30 : index
    %c0_641 = arith.constant 0 : index
    %720 = vector.load %arg21[%c30_640, %c0_641] : memref<64x128xf32, #tpu.memory_space<vmem>>, vector<1x128xf32>
    %c69 = arith.constant 69 : index
    %c0_642 = arith.constant 0 : index
    %721 = vector.load %arg19[%c69, %c0_642] : memref<144x128xf32, #tpu.memory_space<vmem>>, vector<1x128xf32>
    tpu.vector_store %arg19[%c69, %c0_642], %720 {strides = array<i32>} : memref<144x128xf32, #tpu.memory_space<vmem>>, vector<1x128xf32>,
    %c31_643 = arith.constant 31 : index
    %c0_644 = arith.constant 0 : index
    %722 = vector.load %arg20[%c31_643, %c0_644] : memref<64x128xf32, #tpu.memory_space<vmem>>, vector<1x128xf32>
    %c70 = arith.constant 70 : index
    %c0_645 = arith.constant 0 : index
    %723 = vector.load %arg19[%c70, %c0_645] : memref<144x128xf32, #tpu.memory_space<vmem>>, vector<1x128xf32>
    tpu.vector_store %arg19[%c70, %c0_645], %722 {strides = array<i32>} : memref<144x128xf32, #tpu.memory_space<vmem>>, vector<1x128xf32>,
    %c31_646 = arith.constant 31 : index
    %c0_647 = arith.constant 0 : index
    %724 = vector.load %arg21[%c31_646, %c0_647] : memref<64x128xf32, #tpu.memory_space<vmem>>, vector<1x128xf32>
    %c71 = arith.constant 71 : index
    %c0_648 = arith.constant 0 : index
    %725 = vector.load %arg19[%c71, %c0_648] : memref<144x128xf32, #tpu.memory_space<vmem>>, vector<1x128xf32>
    tpu.vector_store %arg19[%c71, %c0_648], %724 {strides = array<i32>} : memref<144x128xf32, #tpu.memory_space<vmem>>, vector<1x128xf32>,
    %c8_649 = arith.constant 8 : index
    %c0_650 = arith.constant 0 : index
    %726 = vector.load %arg19[%c8_649, %c0_650] : memref<144x128xf32, #tpu.memory_space<vmem>>, vector<64x128xf32>
    %727 = tpu.iota {dimensions = array<i32: 0>} : vector<64x128xi32>
    %c32_i32 = arith.constant 32 : i32
    %c0_i32_651 = arith.constant 0 : i32
    %728 = arith.cmpi eq, %c32_i32, %c0_i32_651 : i32
    %c1_i32_652 = arith.constant 1 : i32
    %729 = arith.select %728, %c1_i32_652, %c32_i32 : i32
    %730 = vector.broadcast %729 : i32 to vector<64x128xi32>
    %731 = arith.remsi %727, %730 : vector<64x128xi32>
    %c0_i32_653 = arith.constant 0 : i32
    %732 = vector.broadcast %c0_i32_653 : i32 to vector<64x128xi32>
    %733 = arith.cmpi ne, %731, %732 : vector<64x128xi32>
    %c0_i32_654 = arith.constant 0 : i32
    %734 = vector.broadcast %c0_i32_654 : i32 to vector<64x128xi32>
    %735 = arith.cmpi slt, %731, %734 : vector<64x128xi32>
    %c0_i32_655 = arith.constant 0 : i32
    %736 = arith.cmpi slt, %729, %c0_i32_655 : i32
    %737 = vector.broadcast %736 : i1 to vector<64x128xi1>
    %738 = vector.broadcast %737 : vector<64x128xi1> to vector<64x128xi1>
    %739 = arith.xori %735, %738 : vector<64x128xi1>
    %740 = arith.andi %739, %733 : vector<64x128xi1>
    %741 = vector.broadcast %729 : i32 to vector<64x128xi32>
    %742 = arith.addi %731, %741 : vector<64x128xi32>
    %743 = arith.select %740, %742, %731 : vector<64x128xi1>, vector<64x128xi32>
    %c-1_i32_656 = arith.constant -1 : i32
    %744 = vector.broadcast %c-1_i32_656 : i32 to vector<64x128xi32>
    %745 = arith.addi %743, %744 : vector<64x128xi32>
    %c0_i32_657 = arith.constant 0 : i32
    %746 = vector.broadcast %c0_i32_657 : i32 to vector<64x128xi32>
    %747 = arith.cmpi sge, %745, %746 : vector<64x128xi32>
    %c-1_i32_658 = arith.constant -1 : i32
    %748 = vector.broadcast %c-1_i32_658 : i32 to vector<64x128xi32>
    %749 = arith.addi %743, %748 : vector<64x128xi32>
    %c32_i32_659 = arith.constant 32 : i32
    %750 = vector.broadcast %c32_i32_659 : i32 to vector<64x128xi32>
    %751 = arith.cmpi slt, %749, %750 : vector<64x128xi32>
    %752 = arith.andi %747, %751 : vector<64x128xi1>
    %c7_660 = arith.constant 7 : index
    %c0_661 = arith.constant 0 : index
    %753 = vector.load %arg19[%c7_660, %c0_661] : memref<144x128xf32, #tpu.memory_space<vmem>>, vector<64x128xf32>
    %cst_662 = arith.constant 0.000000e+00 : f32
    %754 = vector.broadcast %cst_662 : f32 to vector<64x128xf32>
    %755 = arith.select %752, %753, %754 : vector<64x128xi1>, vector<64x128xf32>
    %756 = tpu.iota {dimensions = array<i32: 0>} : vector<64x128xi32>
    %c32_i32_663 = arith.constant 32 : i32
    %c0_i32_664 = arith.constant 0 : i32
    %757 = arith.cmpi eq, %c32_i32_663, %c0_i32_664 : i32
    %c1_i32_665 = arith.constant 1 : i32
    %758 = arith.select %757, %c1_i32_665, %c32_i32_663 : i32
    %759 = vector.broadcast %758 : i32 to vector<64x128xi32>
    %760 = arith.remsi %756, %759 : vector<64x128xi32>
    %c0_i32_666 = arith.constant 0 : i32
    %761 = vector.broadcast %c0_i32_666 : i32 to vector<64x128xi32>
    %762 = arith.cmpi ne, %760, %761 : vector<64x128xi32>
    %c0_i32_667 = arith.constant 0 : i32
    %763 = vector.broadcast %c0_i32_667 : i32 to vector<64x128xi32>
    %764 = arith.cmpi slt, %760, %763 : vector<64x128xi32>
    %c0_i32_668 = arith.constant 0 : i32
    %765 = arith.cmpi slt, %758, %c0_i32_668 : i32
    %766 = vector.broadcast %765 : i1 to vector<64x128xi1>
    %767 = vector.broadcast %766 : vector<64x128xi1> to vector<64x128xi1>
    %768 = arith.xori %764, %767 : vector<64x128xi1>
    %769 = arith.andi %768, %762 : vector<64x128xi1>
    %770 = vector.broadcast %758 : i32 to vector<64x128xi32>
    %771 = arith.addi %760, %770 : vector<64x128xi32>
    %772 = arith.select %769, %771, %760 : vector<64x128xi1>, vector<64x128xi32>
    %c1_i32_669 = arith.constant 1 : i32
    %773 = vector.broadcast %c1_i32_669 : i32 to vector<64x128xi32>
    %774 = arith.addi %772, %773 : vector<64x128xi32>
    %c0_i32_670 = arith.constant 0 : i32
    %775 = vector.broadcast %c0_i32_670 : i32 to vector<64x128xi32>
    %776 = arith.cmpi sge, %774, %775 : vector<64x128xi32>
    %c1_i32_671 = arith.constant 1 : i32
    %777 = vector.broadcast %c1_i32_671 : i32 to vector<64x128xi32>
    %778 = arith.addi %772, %777 : vector<64x128xi32>
    %c32_i32_672 = arith.constant 32 : i32
    %779 = vector.broadcast %c32_i32_672 : i32 to vector<64x128xi32>
    %780 = arith.cmpi slt, %778, %779 : vector<64x128xi32>
    %781 = arith.andi %776, %780 : vector<64x128xi1>
    %c9_673 = arith.constant 9 : index
    %c0_674 = arith.constant 0 : index
    %782 = vector.load %arg19[%c9_673, %c0_674] : memref<144x128xf32, #tpu.memory_space<vmem>>, vector<64x128xf32>
    %cst_675 = arith.constant 0.000000e+00 : f32
    %783 = vector.broadcast %cst_675 : f32 to vector<64x128xf32>
    %784 = arith.select %781, %782, %783 : vector<64x128xi1>, vector<64x128xf32>
    %785 = arith.truncf %726 : vector<64x128xf32> to vector<64x128xbf16>
    %786 = arith.truncf %755 : vector<64x128xf32> to vector<64x128xbf16>
    %787 = arith.truncf %784 : vector<64x128xf32> to vector<64x128xbf16>
    %c0_676 = arith.constant 0 : index
    %c0_677 = arith.constant 0 : index
    %788 = vector.load %arg15[%c0_676, %c0_677] : memref<512x128xbf16, #tpu.memory_space<vmem>>, vector<128x128xbf16>
    %c128_678 = arith.constant 128 : index
    %c0_679 = arith.constant 0 : index
    %789 = vector.load %arg15[%c128_678, %c0_679] : memref<512x128xbf16, #tpu.memory_space<vmem>>, vector<128x128xbf16>
    %c256_680 = arith.constant 256 : index
    %c0_681 = arith.constant 0 : index
    %790 = vector.load %arg15[%c256_680, %c0_681] : memref<512x128xbf16, #tpu.memory_space<vmem>>, vector<128x128xbf16>
    %c384_682 = arith.constant 384 : index
    %c0_683 = arith.constant 0 : index
    %791 = vector.load %arg15[%c384_682, %c0_683] : memref<512x128xbf16, #tpu.memory_space<vmem>>, vector<128x128xbf16>
    %c0_684 = arith.constant 0 : index
    %c0_685 = arith.constant 0 : index
    %792 = vector.load %arg16[%c0_684, %c0_685] : memref<1x128xf32, #tpu.memory_space<vmem>>, vector<1x128xf32>
    %cst_686 = arith.constant dense<0.000000e+00> : vector<64x128xf32>
    %793 = tpu.matmul %786, %788, %cst_686 {dimension_numbers = #tpu.dot_dimension_numbers<[1], [0], [0], [1], [0, 0, 1, 1], [], []>} : vector<64x128xbf16>, vector<128x128xbf16>, vector<64x128xf32> -> vector<64x128xf32>
    %cst_687 = arith.constant dense<0.000000e+00> : vector<64x128xf32>
    %794 = tpu.matmul %785, %789, %cst_687 {dimension_numbers = #tpu.dot_dimension_numbers<[1], [0], [0], [1], [0, 0, 1, 1], [], []>} : vector<64x128xbf16>, vector<128x128xbf16>, vector<64x128xf32> -> vector<64x128xf32>
    %795 = arith.addf %793, %794 : vector<64x128xf32>
    %cst_688 = arith.constant dense<0.000000e+00> : vector<64x128xf32>
    %796 = tpu.matmul %785, %790, %cst_688 {dimension_numbers = #tpu.dot_dimension_numbers<[1], [0], [0], [1], [0, 0, 1, 1], [], []>} : vector<64x128xbf16>, vector<128x128xbf16>, vector<64x128xf32> -> vector<64x128xf32>
    %cst_689 = arith.constant dense<0.000000e+00> : vector<64x128xf32>
    %797 = tpu.matmul %787, %791, %cst_689 {dimension_numbers = #tpu.dot_dimension_numbers<[1], [0], [0], [1], [0, 0, 1, 1], [], []>} : vector<64x128xbf16>, vector<128x128xbf16>, vector<64x128xf32> -> vector<64x128xf32>
    %798 = arith.addf %796, %797 : vector<64x128xf32>
    %799 = vector.broadcast %792 : vector<1x128xf32> to vector<64x128xf32>
    %800 = arith.addf %795, %799 : vector<64x128xf32>
    %cst_690 = arith.constant 5.000000e-01 : f32
    %801 = vector.broadcast %cst_690 : f32 to vector<64x128xf32>
    %802 = arith.mulf %801, %800 : vector<64x128xf32>
    %cst_691 = arith.constant 4.471500e-02 : f32
    %803 = vector.broadcast %cst_691 : f32 to vector<64x128xf32>
    %804 = arith.mulf %803, %800 : vector<64x128xf32>
    %805 = arith.mulf %804, %800 : vector<64x128xf32>
    %806 = arith.mulf %805, %800 : vector<64x128xf32>
    %807 = arith.addf %800, %806 : vector<64x128xf32>
    %cst_692 = arith.constant 0.797884583 : f32
    %808 = vector.broadcast %cst_692 : f32 to vector<64x128xf32>
    %809 = arith.mulf %808, %807 : vector<64x128xf32>
    %810 = math.tanh %809 : vector<64x128xf32>
    %cst_693 = arith.constant 1.000000e+00 : f32
    %811 = vector.broadcast %cst_693 : f32 to vector<64x128xf32>
    %812 = arith.addf %811, %810 : vector<64x128xf32>
    %813 = arith.mulf %802, %812 : vector<64x128xf32>
    %814 = vector.broadcast %792 : vector<1x128xf32> to vector<64x128xf32>
    %815 = arith.addf %798, %814 : vector<64x128xf32>
    %cst_694 = arith.constant 5.000000e-01 : f32
    %816 = vector.broadcast %cst_694 : f32 to vector<64x128xf32>
    %817 = arith.mulf %816, %815 : vector<64x128xf32>
    %cst_695 = arith.constant 4.471500e-02 : f32
    %818 = vector.broadcast %cst_695 : f32 to vector<64x128xf32>
    %819 = arith.mulf %818, %815 : vector<64x128xf32>
    %820 = arith.mulf %819, %815 : vector<64x128xf32>
    %821 = arith.mulf %820, %815 : vector<64x128xf32>
    %822 = arith.addf %815, %821 : vector<64x128xf32>
    %cst_696 = arith.constant 0.797884583 : f32
    %823 = vector.broadcast %cst_696 : f32 to vector<64x128xf32>
    %824 = arith.mulf %823, %822 : vector<64x128xf32>
    %825 = math.tanh %824 : vector<64x128xf32>
    %cst_697 = arith.constant 1.000000e+00 : f32
    %826 = vector.broadcast %cst_697 : f32 to vector<64x128xf32>
    %827 = arith.addf %826, %825 : vector<64x128xf32>
    %828 = arith.mulf %817, %827 : vector<64x128xf32>
    %c0_698 = arith.constant 0 : index
    %c0_699 = arith.constant 0 : index
    %829 = vector.load %arg20[%c0_698, %c0_699] : memref<64x128xf32, #tpu.memory_space<vmem>>, vector<64x128xf32>
    tpu.vector_store %arg20[%c0_698, %c0_699], %813 {strides = array<i32>} : memref<64x128xf32, #tpu.memory_space<vmem>>, vector<64x128xf32>,
    %c0_700 = arith.constant 0 : index
    %c0_701 = arith.constant 0 : index
    %830 = vector.load %arg21[%c0_700, %c0_701] : memref<64x128xf32, #tpu.memory_space<vmem>>, vector<64x128xf32>
    tpu.vector_store %arg21[%c0_700, %c0_701], %828 {strides = array<i32>} : memref<64x128xf32, #tpu.memory_space<vmem>>, vector<64x128xf32>,
    %c0_702 = arith.constant 0 : index
    %c0_703 = arith.constant 0 : index
    %831 = vector.load %arg20[%c0_702, %c0_703] : memref<64x128xf32, #tpu.memory_space<vmem>>, vector<1x128xf32>
    %c8_704 = arith.constant 8 : index
    %c0_705 = arith.constant 0 : index
    %832 = vector.load %arg19[%c8_704, %c0_705] : memref<144x128xf32, #tpu.memory_space<vmem>>, vector<1x128xf32>
    tpu.vector_store %arg19[%c8_704, %c0_705], %831 {strides = array<i32>} : memref<144x128xf32, #tpu.memory_space<vmem>>, vector<1x128xf32>,
    %c0_706 = arith.constant 0 : index
    %c0_707 = arith.constant 0 : index
    %833 = vector.load %arg21[%c0_706, %c0_707] : memref<64x128xf32, #tpu.memory_space<vmem>>, vector<1x128xf32>
    %c9_708 = arith.constant 9 : index
    %c0_709 = arith.constant 0 : index
    %834 = vector.load %arg19[%c9_708, %c0_709] : memref<144x128xf32, #tpu.memory_space<vmem>>, vector<1x128xf32>
    tpu.vector_store %arg19[%c9_708, %c0_709], %833 {strides = array<i32>} : memref<144x128xf32, #tpu.memory_space<vmem>>, vector<1x128xf32>,
    %c1_710 = arith.constant 1 : index
    %c0_711 = arith.constant 0 : index
    %835 = vector.load %arg20[%c1_710, %c0_711] : memref<64x128xf32, #tpu.memory_space<vmem>>, vector<1x128xf32>
    %c10_712 = arith.constant 10 : index
    %c0_713 = arith.constant 0 : index
    %836 = vector.load %arg19[%c10_712, %c0_713] : memref<144x128xf32, #tpu.memory_space<vmem>>, vector<1x128xf32>
    tpu.vector_store %arg19[%c10_712, %c0_713], %835 {strides = array<i32>} : memref<144x128xf32, #tpu.memory_space<vmem>>, vector<1x128xf32>,
    %c1_714 = arith.constant 1 : index
    %c0_715 = arith.constant 0 : index
    %837 = vector.load %arg21[%c1_714, %c0_715] : memref<64x128xf32, #tpu.memory_space<vmem>>, vector<1x128xf32>
    %c11_716 = arith.constant 11 : index
    %c0_717 = arith.constant 0 : index
    %838 = vector.load %arg19[%c11_716, %c0_717] : memref<144x128xf32, #tpu.memory_space<vmem>>, vector<1x128xf32>
    tpu.vector_store %arg19[%c11_716, %c0_717], %837 {strides = array<i32>} : memref<144x128xf32, #tpu.memory_space<vmem>>, vector<1x128xf32>,
    %c2_718 = arith.constant 2 : index
    %c0_719 = arith.constant 0 : index
    %839 = vector.load %arg20[%c2_718, %c0_719] : memref<64x128xf32, #tpu.memory_space<vmem>>, vector<1x128xf32>
    %c12_720 = arith.constant 12 : index
    %c0_721 = arith.constant 0 : index
    %840 = vector.load %arg19[%c12_720, %c0_721] : memref<144x128xf32, #tpu.memory_space<vmem>>, vector<1x128xf32>
    tpu.vector_store %arg19[%c12_720, %c0_721], %839 {strides = array<i32>} : memref<144x128xf32, #tpu.memory_space<vmem>>, vector<1x128xf32>,
    %c2_722 = arith.constant 2 : index
    %c0_723 = arith.constant 0 : index
    %841 = vector.load %arg21[%c2_722, %c0_723] : memref<64x128xf32, #tpu.memory_space<vmem>>, vector<1x128xf32>
    %c13_724 = arith.constant 13 : index
    %c0_725 = arith.constant 0 : index
    %842 = vector.load %arg19[%c13_724, %c0_725] : memref<144x128xf32, #tpu.memory_space<vmem>>, vector<1x128xf32>
    tpu.vector_store %arg19[%c13_724, %c0_725], %841 {strides = array<i32>} : memref<144x128xf32, #tpu.memory_space<vmem>>, vector<1x128xf32>,
    %c3_726 = arith.constant 3 : index
    %c0_727 = arith.constant 0 : index
    %843 = vector.load %arg20[%c3_726, %c0_727] : memref<64x128xf32, #tpu.memory_space<vmem>>, vector<1x128xf32>
    %c14_728 = arith.constant 14 : index
    %c0_729 = arith.constant 0 : index
    %844 = vector.load %arg19[%c14_728, %c0_729] : memref<144x128xf32, #tpu.memory_space<vmem>>, vector<1x128xf32>
    tpu.vector_store %arg19[%c14_728, %c0_729], %843 {strides = array<i32>} : memref<144x128xf32, #tpu.memory_space<vmem>>, vector<1x128xf32>,
    %c3_730 = arith.constant 3 : index
    %c0_731 = arith.constant 0 : index
    %845 = vector.load %arg21[%c3_730, %c0_731] : memref<64x128xf32, #tpu.memory_space<vmem>>, vector<1x128xf32>
    %c15_732 = arith.constant 15 : index
    %c0_733 = arith.constant 0 : index
    %846 = vector.load %arg19[%c15_732, %c0_733] : memref<144x128xf32, #tpu.memory_space<vmem>>, vector<1x128xf32>
    tpu.vector_store %arg19[%c15_732, %c0_733], %845 {strides = array<i32>} : memref<144x128xf32, #tpu.memory_space<vmem>>, vector<1x128xf32>,
    %c4_734 = arith.constant 4 : index
    %c0_735 = arith.constant 0 : index
    %847 = vector.load %arg20[%c4_734, %c0_735] : memref<64x128xf32, #tpu.memory_space<vmem>>, vector<1x128xf32>
    %c16_736 = arith.constant 16 : index
    %c0_737 = arith.constant 0 : index
    %848 = vector.load %arg19[%c16_736, %c0_737] : memref<144x128xf32, #tpu.memory_space<vmem>>, vector<1x128xf32>
    tpu.vector_store %arg19[%c16_736, %c0_737], %847 {strides = array<i32>} : memref<144x128xf32, #tpu.memory_space<vmem>>, vector<1x128xf32>,
    %c4_738 = arith.constant 4 : index
    %c0_739 = arith.constant 0 : index
    %849 = vector.load %arg21[%c4_738, %c0_739] : memref<64x128xf32, #tpu.memory_space<vmem>>, vector<1x128xf32>
    %c17_740 = arith.constant 17 : index
    %c0_741 = arith.constant 0 : index
    %850 = vector.load %arg19[%c17_740, %c0_741] : memref<144x128xf32, #tpu.memory_space<vmem>>, vector<1x128xf32>
    tpu.vector_store %arg19[%c17_740, %c0_741], %849 {strides = array<i32>} : memref<144x128xf32, #tpu.memory_space<vmem>>, vector<1x128xf32>,
    %c5_742 = arith.constant 5 : index
    %c0_743 = arith.constant 0 : index
    %851 = vector.load %arg20[%c5_742, %c0_743] : memref<64x128xf32, #tpu.memory_space<vmem>>, vector<1x128xf32>
    %c18_744 = arith.constant 18 : index
    %c0_745 = arith.constant 0 : index
    %852 = vector.load %arg19[%c18_744, %c0_745] : memref<144x128xf32, #tpu.memory_space<vmem>>, vector<1x128xf32>
    tpu.vector_store %arg19[%c18_744, %c0_745], %851 {strides = array<i32>} : memref<144x128xf32, #tpu.memory_space<vmem>>, vector<1x128xf32>,
    %c5_746 = arith.constant 5 : index
    %c0_747 = arith.constant 0 : index
    %853 = vector.load %arg21[%c5_746, %c0_747] : memref<64x128xf32, #tpu.memory_space<vmem>>, vector<1x128xf32>
    %c19_748 = arith.constant 19 : index
    %c0_749 = arith.constant 0 : index
    %854 = vector.load %arg19[%c19_748, %c0_749] : memref<144x128xf32, #tpu.memory_space<vmem>>, vector<1x128xf32>
    tpu.vector_store %arg19[%c19_748, %c0_749], %853 {strides = array<i32>} : memref<144x128xf32, #tpu.memory_space<vmem>>, vector<1x128xf32>,
    %c6_750 = arith.constant 6 : index
    %c0_751 = arith.constant 0 : index
    %855 = vector.load %arg20[%c6_750, %c0_751] : memref<64x128xf32, #tpu.memory_space<vmem>>, vector<1x128xf32>
    %c20_752 = arith.constant 20 : index
    %c0_753 = arith.constant 0 : index
    %856 = vector.load %arg19[%c20_752, %c0_753] : memref<144x128xf32, #tpu.memory_space<vmem>>, vector<1x128xf32>
    tpu.vector_store %arg19[%c20_752, %c0_753], %855 {strides = array<i32>} : memref<144x128xf32, #tpu.memory_space<vmem>>, vector<1x128xf32>,
    %c6_754 = arith.constant 6 : index
    %c0_755 = arith.constant 0 : index
    %857 = vector.load %arg21[%c6_754, %c0_755] : memref<64x128xf32, #tpu.memory_space<vmem>>, vector<1x128xf32>
    %c21_756 = arith.constant 21 : index
    %c0_757 = arith.constant 0 : index
    %858 = vector.load %arg19[%c21_756, %c0_757] : memref<144x128xf32, #tpu.memory_space<vmem>>, vector<1x128xf32>
    tpu.vector_store %arg19[%c21_756, %c0_757], %857 {strides = array<i32>} : memref<144x128xf32, #tpu.memory_space<vmem>>, vector<1x128xf32>,
    %c7_758 = arith.constant 7 : index
    %c0_759 = arith.constant 0 : index
    %859 = vector.load %arg20[%c7_758, %c0_759] : memref<64x128xf32, #tpu.memory_space<vmem>>, vector<1x128xf32>
    %c22_760 = arith.constant 22 : index
    %c0_761 = arith.constant 0 : index
    %860 = vector.load %arg19[%c22_760, %c0_761] : memref<144x128xf32, #tpu.memory_space<vmem>>, vector<1x128xf32>
    tpu.vector_store %arg19[%c22_760, %c0_761], %859 {strides = array<i32>} : memref<144x128xf32, #tpu.memory_space<vmem>>, vector<1x128xf32>,
    %c7_762 = arith.constant 7 : index
    %c0_763 = arith.constant 0 : index
    %861 = vector.load %arg21[%c7_762, %c0_763] : memref<64x128xf32, #tpu.memory_space<vmem>>, vector<1x128xf32>
    %c23_764 = arith.constant 23 : index
    %c0_765 = arith.constant 0 : index
    %862 = vector.load %arg19[%c23_764, %c0_765] : memref<144x128xf32, #tpu.memory_space<vmem>>, vector<1x128xf32>
    tpu.vector_store %arg19[%c23_764, %c0_765], %861 {strides = array<i32>} : memref<144x128xf32, #tpu.memory_space<vmem>>, vector<1x128xf32>,
    %c8_766 = arith.constant 8 : index
    %c0_767 = arith.constant 0 : index
    %863 = vector.load %arg20[%c8_766, %c0_767] : memref<64x128xf32, #tpu.memory_space<vmem>>, vector<1x128xf32>
    %c24_768 = arith.constant 24 : index
    %c0_769 = arith.constant 0 : index
    %864 = vector.load %arg19[%c24_768, %c0_769] : memref<144x128xf32, #tpu.memory_space<vmem>>, vector<1x128xf32>
    tpu.vector_store %arg19[%c24_768, %c0_769], %863 {strides = array<i32>} : memref<144x128xf32, #tpu.memory_space<vmem>>, vector<1x128xf32>,
    %c8_770 = arith.constant 8 : index
    %c0_771 = arith.constant 0 : index
    %865 = vector.load %arg21[%c8_770, %c0_771] : memref<64x128xf32, #tpu.memory_space<vmem>>, vector<1x128xf32>
    %c25_772 = arith.constant 25 : index
    %c0_773 = arith.constant 0 : index
    %866 = vector.load %arg19[%c25_772, %c0_773] : memref<144x128xf32, #tpu.memory_space<vmem>>, vector<1x128xf32>
    tpu.vector_store %arg19[%c25_772, %c0_773], %865 {strides = array<i32>} : memref<144x128xf32, #tpu.memory_space<vmem>>, vector<1x128xf32>,
    %c9_774 = arith.constant 9 : index
    %c0_775 = arith.constant 0 : index
    %867 = vector.load %arg20[%c9_774, %c0_775] : memref<64x128xf32, #tpu.memory_space<vmem>>, vector<1x128xf32>
    %c26_776 = arith.constant 26 : index
    %c0_777 = arith.constant 0 : index
    %868 = vector.load %arg19[%c26_776, %c0_777] : memref<144x128xf32, #tpu.memory_space<vmem>>, vector<1x128xf32>
    tpu.vector_store %arg19[%c26_776, %c0_777], %867 {strides = array<i32>} : memref<144x128xf32, #tpu.memory_space<vmem>>, vector<1x128xf32>,
    %c9_778 = arith.constant 9 : index
    %c0_779 = arith.constant 0 : index
    %869 = vector.load %arg21[%c9_778, %c0_779] : memref<64x128xf32, #tpu.memory_space<vmem>>, vector<1x128xf32>
    %c27_780 = arith.constant 27 : index
    %c0_781 = arith.constant 0 : index
    %870 = vector.load %arg19[%c27_780, %c0_781] : memref<144x128xf32, #tpu.memory_space<vmem>>, vector<1x128xf32>
    tpu.vector_store %arg19[%c27_780, %c0_781], %869 {strides = array<i32>} : memref<144x128xf32, #tpu.memory_space<vmem>>, vector<1x128xf32>,
    %c10_782 = arith.constant 10 : index
    %c0_783 = arith.constant 0 : index
    %871 = vector.load %arg20[%c10_782, %c0_783] : memref<64x128xf32, #tpu.memory_space<vmem>>, vector<1x128xf32>
    %c28_784 = arith.constant 28 : index
    %c0_785 = arith.constant 0 : index
    %872 = vector.load %arg19[%c28_784, %c0_785] : memref<144x128xf32, #tpu.memory_space<vmem>>, vector<1x128xf32>
    tpu.vector_store %arg19[%c28_784, %c0_785], %871 {strides = array<i32>} : memref<144x128xf32, #tpu.memory_space<vmem>>, vector<1x128xf32>,
    %c10_786 = arith.constant 10 : index
    %c0_787 = arith.constant 0 : index
    %873 = vector.load %arg21[%c10_786, %c0_787] : memref<64x128xf32, #tpu.memory_space<vmem>>, vector<1x128xf32>
    %c29_788 = arith.constant 29 : index
    %c0_789 = arith.constant 0 : index
    %874 = vector.load %arg19[%c29_788, %c0_789] : memref<144x128xf32, #tpu.memory_space<vmem>>, vector<1x128xf32>
    tpu.vector_store %arg19[%c29_788, %c0_789], %873 {strides = array<i32>} : memref<144x128xf32, #tpu.memory_space<vmem>>, vector<1x128xf32>,
    %c11_790 = arith.constant 11 : index
    %c0_791 = arith.constant 0 : index
    %875 = vector.load %arg20[%c11_790, %c0_791] : memref<64x128xf32, #tpu.memory_space<vmem>>, vector<1x128xf32>
    %c30_792 = arith.constant 30 : index
    %c0_793 = arith.constant 0 : index
    %876 = vector.load %arg19[%c30_792, %c0_793] : memref<144x128xf32, #tpu.memory_space<vmem>>, vector<1x128xf32>
    tpu.vector_store %arg19[%c30_792, %c0_793], %875 {strides = array<i32>} : memref<144x128xf32, #tpu.memory_space<vmem>>, vector<1x128xf32>,
    %c11_794 = arith.constant 11 : index
    %c0_795 = arith.constant 0 : index
    %877 = vector.load %arg21[%c11_794, %c0_795] : memref<64x128xf32, #tpu.memory_space<vmem>>, vector<1x128xf32>
    %c31_796 = arith.constant 31 : index
    %c0_797 = arith.constant 0 : index
    %878 = vector.load %arg19[%c31_796, %c0_797] : memref<144x128xf32, #tpu.memory_space<vmem>>, vector<1x128xf32>
    tpu.vector_store %arg19[%c31_796, %c0_797], %877 {strides = array<i32>} : memref<144x128xf32, #tpu.memory_space<vmem>>, vector<1x128xf32>,
    %c12_798 = arith.constant 12 : index
    %c0_799 = arith.constant 0 : index
    %879 = vector.load %arg20[%c12_798, %c0_799] : memref<64x128xf32, #tpu.memory_space<vmem>>, vector<1x128xf32>
    %c32_800 = arith.constant 32 : index
    %c0_801 = arith.constant 0 : index
    %880 = vector.load %arg19[%c32_800, %c0_801] : memref<144x128xf32, #tpu.memory_space<vmem>>, vector<1x128xf32>
    tpu.vector_store %arg19[%c32_800, %c0_801], %879 {strides = array<i32>} : memref<144x128xf32, #tpu.memory_space<vmem>>, vector<1x128xf32>,
    %c12_802 = arith.constant 12 : index
    %c0_803 = arith.constant 0 : index
    %881 = vector.load %arg21[%c12_802, %c0_803] : memref<64x128xf32, #tpu.memory_space<vmem>>, vector<1x128xf32>
    %c33_804 = arith.constant 33 : index
    %c0_805 = arith.constant 0 : index
    %882 = vector.load %arg19[%c33_804, %c0_805] : memref<144x128xf32, #tpu.memory_space<vmem>>, vector<1x128xf32>
    tpu.vector_store %arg19[%c33_804, %c0_805], %881 {strides = array<i32>} : memref<144x128xf32, #tpu.memory_space<vmem>>, vector<1x128xf32>,
    %c13_806 = arith.constant 13 : index
    %c0_807 = arith.constant 0 : index
    %883 = vector.load %arg20[%c13_806, %c0_807] : memref<64x128xf32, #tpu.memory_space<vmem>>, vector<1x128xf32>
    %c34_808 = arith.constant 34 : index
    %c0_809 = arith.constant 0 : index
    %884 = vector.load %arg19[%c34_808, %c0_809] : memref<144x128xf32, #tpu.memory_space<vmem>>, vector<1x128xf32>
    tpu.vector_store %arg19[%c34_808, %c0_809], %883 {strides = array<i32>} : memref<144x128xf32, #tpu.memory_space<vmem>>, vector<1x128xf32>,
    %c13_810 = arith.constant 13 : index
    %c0_811 = arith.constant 0 : index
    %885 = vector.load %arg21[%c13_810, %c0_811] : memref<64x128xf32, #tpu.memory_space<vmem>>, vector<1x128xf32>
    %c35_812 = arith.constant 35 : index
    %c0_813 = arith.constant 0 : index
    %886 = vector.load %arg19[%c35_812, %c0_813] : memref<144x128xf32, #tpu.memory_space<vmem>>, vector<1x128xf32>
    tpu.vector_store %arg19[%c35_812, %c0_813], %885 {strides = array<i32>} : memref<144x128xf32, #tpu.memory_space<vmem>>, vector<1x128xf32>,
    %c14_814 = arith.constant 14 : index
    %c0_815 = arith.constant 0 : index
    %887 = vector.load %arg20[%c14_814, %c0_815] : memref<64x128xf32, #tpu.memory_space<vmem>>, vector<1x128xf32>
    %c36_816 = arith.constant 36 : index
    %c0_817 = arith.constant 0 : index
    %888 = vector.load %arg19[%c36_816, %c0_817] : memref<144x128xf32, #tpu.memory_space<vmem>>, vector<1x128xf32>
    tpu.vector_store %arg19[%c36_816, %c0_817], %887 {strides = array<i32>} : memref<144x128xf32, #tpu.memory_space<vmem>>, vector<1x128xf32>,
    %c14_818 = arith.constant 14 : index
    %c0_819 = arith.constant 0 : index
    %889 = vector.load %arg21[%c14_818, %c0_819] : memref<64x128xf32, #tpu.memory_space<vmem>>, vector<1x128xf32>
    %c37_820 = arith.constant 37 : index
    %c0_821 = arith.constant 0 : index
    %890 = vector.load %arg19[%c37_820, %c0_821] : memref<144x128xf32, #tpu.memory_space<vmem>>, vector<1x128xf32>
    tpu.vector_store %arg19[%c37_820, %c0_821], %889 {strides = array<i32>} : memref<144x128xf32, #tpu.memory_space<vmem>>, vector<1x128xf32>,
    %c15_822 = arith.constant 15 : index
    %c0_823 = arith.constant 0 : index
    %891 = vector.load %arg20[%c15_822, %c0_823] : memref<64x128xf32, #tpu.memory_space<vmem>>, vector<1x128xf32>
    %c38_824 = arith.constant 38 : index
    %c0_825 = arith.constant 0 : index
    %892 = vector.load %arg19[%c38_824, %c0_825] : memref<144x128xf32, #tpu.memory_space<vmem>>, vector<1x128xf32>
    tpu.vector_store %arg19[%c38_824, %c0_825], %891 {strides = array<i32>} : memref<144x128xf32, #tpu.memory_space<vmem>>, vector<1x128xf32>,
    %c15_826 = arith.constant 15 : index
    %c0_827 = arith.constant 0 : index
    %893 = vector.load %arg21[%c15_826, %c0_827] : memref<64x128xf32, #tpu.memory_space<vmem>>, vector<1x128xf32>
    %c39_828 = arith.constant 39 : index
    %c0_829 = arith.constant 0 : index
    %894 = vector.load %arg19[%c39_828, %c0_829] : memref<144x128xf32, #tpu.memory_space<vmem>>, vector<1x128xf32>
    tpu.vector_store %arg19[%c39_828, %c0_829], %893 {strides = array<i32>} : memref<144x128xf32, #tpu.memory_space<vmem>>, vector<1x128xf32>,
    %c16_830 = arith.constant 16 : index
    %c0_831 = arith.constant 0 : index
    %895 = vector.load %arg20[%c16_830, %c0_831] : memref<64x128xf32, #tpu.memory_space<vmem>>, vector<1x128xf32>
    %c40_832 = arith.constant 40 : index
    %c0_833 = arith.constant 0 : index
    %896 = vector.load %arg19[%c40_832, %c0_833] : memref<144x128xf32, #tpu.memory_space<vmem>>, vector<1x128xf32>
    tpu.vector_store %arg19[%c40_832, %c0_833], %895 {strides = array<i32>} : memref<144x128xf32, #tpu.memory_space<vmem>>, vector<1x128xf32>,
    %c16_834 = arith.constant 16 : index
    %c0_835 = arith.constant 0 : index
    %897 = vector.load %arg21[%c16_834, %c0_835] : memref<64x128xf32, #tpu.memory_space<vmem>>, vector<1x128xf32>
    %c41_836 = arith.constant 41 : index
    %c0_837 = arith.constant 0 : index
    %898 = vector.load %arg19[%c41_836, %c0_837] : memref<144x128xf32, #tpu.memory_space<vmem>>, vector<1x128xf32>
    tpu.vector_store %arg19[%c41_836, %c0_837], %897 {strides = array<i32>} : memref<144x128xf32, #tpu.memory_space<vmem>>, vector<1x128xf32>,
    %c17_838 = arith.constant 17 : index
    %c0_839 = arith.constant 0 : index
    %899 = vector.load %arg20[%c17_838, %c0_839] : memref<64x128xf32, #tpu.memory_space<vmem>>, vector<1x128xf32>
    %c42_840 = arith.constant 42 : index
    %c0_841 = arith.constant 0 : index
    %900 = vector.load %arg19[%c42_840, %c0_841] : memref<144x128xf32, #tpu.memory_space<vmem>>, vector<1x128xf32>
    tpu.vector_store %arg19[%c42_840, %c0_841], %899 {strides = array<i32>} : memref<144x128xf32, #tpu.memory_space<vmem>>, vector<1x128xf32>,
    %c17_842 = arith.constant 17 : index
    %c0_843 = arith.constant 0 : index
    %901 = vector.load %arg21[%c17_842, %c0_843] : memref<64x128xf32, #tpu.memory_space<vmem>>, vector<1x128xf32>
    %c43_844 = arith.constant 43 : index
    %c0_845 = arith.constant 0 : index
    %902 = vector.load %arg19[%c43_844, %c0_845] : memref<144x128xf32, #tpu.memory_space<vmem>>, vector<1x128xf32>
    tpu.vector_store %arg19[%c43_844, %c0_845], %901 {strides = array<i32>} : memref<144x128xf32, #tpu.memory_space<vmem>>, vector<1x128xf32>,
    %c18_846 = arith.constant 18 : index
    %c0_847 = arith.constant 0 : index
    %903 = vector.load %arg20[%c18_846, %c0_847] : memref<64x128xf32, #tpu.memory_space<vmem>>, vector<1x128xf32>
    %c44_848 = arith.constant 44 : index
    %c0_849 = arith.constant 0 : index
    %904 = vector.load %arg19[%c44_848, %c0_849] : memref<144x128xf32, #tpu.memory_space<vmem>>, vector<1x128xf32>
    tpu.vector_store %arg19[%c44_848, %c0_849], %903 {strides = array<i32>} : memref<144x128xf32, #tpu.memory_space<vmem>>, vector<1x128xf32>,
    %c18_850 = arith.constant 18 : index
    %c0_851 = arith.constant 0 : index
    %905 = vector.load %arg21[%c18_850, %c0_851] : memref<64x128xf32, #tpu.memory_space<vmem>>, vector<1x128xf32>
    %c45_852 = arith.constant 45 : index
    %c0_853 = arith.constant 0 : index
    %906 = vector.load %arg19[%c45_852, %c0_853] : memref<144x128xf32, #tpu.memory_space<vmem>>, vector<1x128xf32>
    tpu.vector_store %arg19[%c45_852, %c0_853], %905 {strides = array<i32>} : memref<144x128xf32, #tpu.memory_space<vmem>>, vector<1x128xf32>,
    %c19_854 = arith.constant 19 : index
    %c0_855 = arith.constant 0 : index
    %907 = vector.load %arg20[%c19_854, %c0_855] : memref<64x128xf32, #tpu.memory_space<vmem>>, vector<1x128xf32>
    %c46_856 = arith.constant 46 : index
    %c0_857 = arith.constant 0 : index
    %908 = vector.load %arg19[%c46_856, %c0_857] : memref<144x128xf32, #tpu.memory_space<vmem>>, vector<1x128xf32>
    tpu.vector_store %arg19[%c46_856, %c0_857], %907 {strides = array<i32>} : memref<144x128xf32, #tpu.memory_space<vmem>>, vector<1x128xf32>,
    %c19_858 = arith.constant 19 : index
    %c0_859 = arith.constant 0 : index
    %909 = vector.load %arg21[%c19_858, %c0_859] : memref<64x128xf32, #tpu.memory_space<vmem>>, vector<1x128xf32>
    %c47_860 = arith.constant 47 : index
    %c0_861 = arith.constant 0 : index
    %910 = vector.load %arg19[%c47_860, %c0_861] : memref<144x128xf32, #tpu.memory_space<vmem>>, vector<1x128xf32>
    tpu.vector_store %arg19[%c47_860, %c0_861], %909 {strides = array<i32>} : memref<144x128xf32, #tpu.memory_space<vmem>>, vector<1x128xf32>,
    %c20_862 = arith.constant 20 : index
    %c0_863 = arith.constant 0 : index
    %911 = vector.load %arg20[%c20_862, %c0_863] : memref<64x128xf32, #tpu.memory_space<vmem>>, vector<1x128xf32>
    %c48_864 = arith.constant 48 : index
    %c0_865 = arith.constant 0 : index
    %912 = vector.load %arg19[%c48_864, %c0_865] : memref<144x128xf32, #tpu.memory_space<vmem>>, vector<1x128xf32>
    tpu.vector_store %arg19[%c48_864, %c0_865], %911 {strides = array<i32>} : memref<144x128xf32, #tpu.memory_space<vmem>>, vector<1x128xf32>,
    %c20_866 = arith.constant 20 : index
    %c0_867 = arith.constant 0 : index
    %913 = vector.load %arg21[%c20_866, %c0_867] : memref<64x128xf32, #tpu.memory_space<vmem>>, vector<1x128xf32>
    %c49_868 = arith.constant 49 : index
    %c0_869 = arith.constant 0 : index
    %914 = vector.load %arg19[%c49_868, %c0_869] : memref<144x128xf32, #tpu.memory_space<vmem>>, vector<1x128xf32>
    tpu.vector_store %arg19[%c49_868, %c0_869], %913 {strides = array<i32>} : memref<144x128xf32, #tpu.memory_space<vmem>>, vector<1x128xf32>,
    %c21_870 = arith.constant 21 : index
    %c0_871 = arith.constant 0 : index
    %915 = vector.load %arg20[%c21_870, %c0_871] : memref<64x128xf32, #tpu.memory_space<vmem>>, vector<1x128xf32>
    %c50_872 = arith.constant 50 : index
    %c0_873 = arith.constant 0 : index
    %916 = vector.load %arg19[%c50_872, %c0_873] : memref<144x128xf32, #tpu.memory_space<vmem>>, vector<1x128xf32>
    tpu.vector_store %arg19[%c50_872, %c0_873], %915 {strides = array<i32>} : memref<144x128xf32, #tpu.memory_space<vmem>>, vector<1x128xf32>,
    %c21_874 = arith.constant 21 : index
    %c0_875 = arith.constant 0 : index
    %917 = vector.load %arg21[%c21_874, %c0_875] : memref<64x128xf32, #tpu.memory_space<vmem>>, vector<1x128xf32>
    %c51_876 = arith.constant 51 : index
    %c0_877 = arith.constant 0 : index
    %918 = vector.load %arg19[%c51_876, %c0_877] : memref<144x128xf32, #tpu.memory_space<vmem>>, vector<1x128xf32>
    tpu.vector_store %arg19[%c51_876, %c0_877], %917 {strides = array<i32>} : memref<144x128xf32, #tpu.memory_space<vmem>>, vector<1x128xf32>,
    %c22_878 = arith.constant 22 : index
    %c0_879 = arith.constant 0 : index
    %919 = vector.load %arg20[%c22_878, %c0_879] : memref<64x128xf32, #tpu.memory_space<vmem>>, vector<1x128xf32>
    %c52_880 = arith.constant 52 : index
    %c0_881 = arith.constant 0 : index
    %920 = vector.load %arg19[%c52_880, %c0_881] : memref<144x128xf32, #tpu.memory_space<vmem>>, vector<1x128xf32>
    tpu.vector_store %arg19[%c52_880, %c0_881], %919 {strides = array<i32>} : memref<144x128xf32, #tpu.memory_space<vmem>>, vector<1x128xf32>,
    %c22_882 = arith.constant 22 : index
    %c0_883 = arith.constant 0 : index
    %921 = vector.load %arg21[%c22_882, %c0_883] : memref<64x128xf32, #tpu.memory_space<vmem>>, vector<1x128xf32>
    %c53_884 = arith.constant 53 : index
    %c0_885 = arith.constant 0 : index
    %922 = vector.load %arg19[%c53_884, %c0_885] : memref<144x128xf32, #tpu.memory_space<vmem>>, vector<1x128xf32>
    tpu.vector_store %arg19[%c53_884, %c0_885], %921 {strides = array<i32>} : memref<144x128xf32, #tpu.memory_space<vmem>>, vector<1x128xf32>,
    %c23_886 = arith.constant 23 : index
    %c0_887 = arith.constant 0 : index
    %923 = vector.load %arg20[%c23_886, %c0_887] : memref<64x128xf32, #tpu.memory_space<vmem>>, vector<1x128xf32>
    %c54_888 = arith.constant 54 : index
    %c0_889 = arith.constant 0 : index
    %924 = vector.load %arg19[%c54_888, %c0_889] : memref<144x128xf32, #tpu.memory_space<vmem>>, vector<1x128xf32>
    tpu.vector_store %arg19[%c54_888, %c0_889], %923 {strides = array<i32>} : memref<144x128xf32, #tpu.memory_space<vmem>>, vector<1x128xf32>,
    %c23_890 = arith.constant 23 : index
    %c0_891 = arith.constant 0 : index
    %925 = vector.load %arg21[%c23_890, %c0_891] : memref<64x128xf32, #tpu.memory_space<vmem>>, vector<1x128xf32>
    %c55_892 = arith.constant 55 : index
    %c0_893 = arith.constant 0 : index
    %926 = vector.load %arg19[%c55_892, %c0_893] : memref<144x128xf32, #tpu.memory_space<vmem>>, vector<1x128xf32>
    tpu.vector_store %arg19[%c55_892, %c0_893], %925 {strides = array<i32>} : memref<144x128xf32, #tpu.memory_space<vmem>>, vector<1x128xf32>,
    %c24_894 = arith.constant 24 : index
    %c0_895 = arith.constant 0 : index
    %927 = vector.load %arg20[%c24_894, %c0_895] : memref<64x128xf32, #tpu.memory_space<vmem>>, vector<1x128xf32>
    %c56_896 = arith.constant 56 : index
    %c0_897 = arith.constant 0 : index
    %928 = vector.load %arg19[%c56_896, %c0_897] : memref<144x128xf32, #tpu.memory_space<vmem>>, vector<1x128xf32>
    tpu.vector_store %arg19[%c56_896, %c0_897], %927 {strides = array<i32>} : memref<144x128xf32, #tpu.memory_space<vmem>>, vector<1x128xf32>,
    %c24_898 = arith.constant 24 : index
    %c0_899 = arith.constant 0 : index
    %929 = vector.load %arg21[%c24_898, %c0_899] : memref<64x128xf32, #tpu.memory_space<vmem>>, vector<1x128xf32>
    %c57_900 = arith.constant 57 : index
    %c0_901 = arith.constant 0 : index
    %930 = vector.load %arg19[%c57_900, %c0_901] : memref<144x128xf32, #tpu.memory_space<vmem>>, vector<1x128xf32>
    tpu.vector_store %arg19[%c57_900, %c0_901], %929 {strides = array<i32>} : memref<144x128xf32, #tpu.memory_space<vmem>>, vector<1x128xf32>,
    %c25_902 = arith.constant 25 : index
    %c0_903 = arith.constant 0 : index
    %931 = vector.load %arg20[%c25_902, %c0_903] : memref<64x128xf32, #tpu.memory_space<vmem>>, vector<1x128xf32>
    %c58_904 = arith.constant 58 : index
    %c0_905 = arith.constant 0 : index
    %932 = vector.load %arg19[%c58_904, %c0_905] : memref<144x128xf32, #tpu.memory_space<vmem>>, vector<1x128xf32>
    tpu.vector_store %arg19[%c58_904, %c0_905], %931 {strides = array<i32>} : memref<144x128xf32, #tpu.memory_space<vmem>>, vector<1x128xf32>,
    %c25_906 = arith.constant 25 : index
    %c0_907 = arith.constant 0 : index
    %933 = vector.load %arg21[%c25_906, %c0_907] : memref<64x128xf32, #tpu.memory_space<vmem>>, vector<1x128xf32>
    %c59_908 = arith.constant 59 : index
    %c0_909 = arith.constant 0 : index
    %934 = vector.load %arg19[%c59_908, %c0_909] : memref<144x128xf32, #tpu.memory_space<vmem>>, vector<1x128xf32>
    tpu.vector_store %arg19[%c59_908, %c0_909], %933 {strides = array<i32>} : memref<144x128xf32, #tpu.memory_space<vmem>>, vector<1x128xf32>,
    %c26_910 = arith.constant 26 : index
    %c0_911 = arith.constant 0 : index
    %935 = vector.load %arg20[%c26_910, %c0_911] : memref<64x128xf32, #tpu.memory_space<vmem>>, vector<1x128xf32>
    %c60_912 = arith.constant 60 : index
    %c0_913 = arith.constant 0 : index
    %936 = vector.load %arg19[%c60_912, %c0_913] : memref<144x128xf32, #tpu.memory_space<vmem>>, vector<1x128xf32>
    tpu.vector_store %arg19[%c60_912, %c0_913], %935 {strides = array<i32>} : memref<144x128xf32, #tpu.memory_space<vmem>>, vector<1x128xf32>,
    %c26_914 = arith.constant 26 : index
    %c0_915 = arith.constant 0 : index
    %937 = vector.load %arg21[%c26_914, %c0_915] : memref<64x128xf32, #tpu.memory_space<vmem>>, vector<1x128xf32>
    %c61_916 = arith.constant 61 : index
    %c0_917 = arith.constant 0 : index
    %938 = vector.load %arg19[%c61_916, %c0_917] : memref<144x128xf32, #tpu.memory_space<vmem>>, vector<1x128xf32>
    tpu.vector_store %arg19[%c61_916, %c0_917], %937 {strides = array<i32>} : memref<144x128xf32, #tpu.memory_space<vmem>>, vector<1x128xf32>,
    %c27_918 = arith.constant 27 : index
    %c0_919 = arith.constant 0 : index
    %939 = vector.load %arg20[%c27_918, %c0_919] : memref<64x128xf32, #tpu.memory_space<vmem>>, vector<1x128xf32>
    %c62_920 = arith.constant 62 : index
    %c0_921 = arith.constant 0 : index
    %940 = vector.load %arg19[%c62_920, %c0_921] : memref<144x128xf32, #tpu.memory_space<vmem>>, vector<1x128xf32>
    tpu.vector_store %arg19[%c62_920, %c0_921], %939 {strides = array<i32>} : memref<144x128xf32, #tpu.memory_space<vmem>>, vector<1x128xf32>,
    %c27_922 = arith.constant 27 : index
    %c0_923 = arith.constant 0 : index
    %941 = vector.load %arg21[%c27_922, %c0_923] : memref<64x128xf32, #tpu.memory_space<vmem>>, vector<1x128xf32>
    %c63_924 = arith.constant 63 : index
    %c0_925 = arith.constant 0 : index
    %942 = vector.load %arg19[%c63_924, %c0_925] : memref<144x128xf32, #tpu.memory_space<vmem>>, vector<1x128xf32>
    tpu.vector_store %arg19[%c63_924, %c0_925], %941 {strides = array<i32>} : memref<144x128xf32, #tpu.memory_space<vmem>>, vector<1x128xf32>,
    %c28_926 = arith.constant 28 : index
    %c0_927 = arith.constant 0 : index
    %943 = vector.load %arg20[%c28_926, %c0_927] : memref<64x128xf32, #tpu.memory_space<vmem>>, vector<1x128xf32>
    %c64_928 = arith.constant 64 : index
    %c0_929 = arith.constant 0 : index
    %944 = vector.load %arg19[%c64_928, %c0_929] : memref<144x128xf32, #tpu.memory_space<vmem>>, vector<1x128xf32>
    tpu.vector_store %arg19[%c64_928, %c0_929], %943 {strides = array<i32>} : memref<144x128xf32, #tpu.memory_space<vmem>>, vector<1x128xf32>,
    %c28_930 = arith.constant 28 : index
    %c0_931 = arith.constant 0 : index
    %945 = vector.load %arg21[%c28_930, %c0_931] : memref<64x128xf32, #tpu.memory_space<vmem>>, vector<1x128xf32>
    %c65_932 = arith.constant 65 : index
    %c0_933 = arith.constant 0 : index
    %946 = vector.load %arg19[%c65_932, %c0_933] : memref<144x128xf32, #tpu.memory_space<vmem>>, vector<1x128xf32>
    tpu.vector_store %arg19[%c65_932, %c0_933], %945 {strides = array<i32>} : memref<144x128xf32, #tpu.memory_space<vmem>>, vector<1x128xf32>,
    %c29_934 = arith.constant 29 : index
    %c0_935 = arith.constant 0 : index
    %947 = vector.load %arg20[%c29_934, %c0_935] : memref<64x128xf32, #tpu.memory_space<vmem>>, vector<1x128xf32>
    %c66_936 = arith.constant 66 : index
    %c0_937 = arith.constant 0 : index
    %948 = vector.load %arg19[%c66_936, %c0_937] : memref<144x128xf32, #tpu.memory_space<vmem>>, vector<1x128xf32>
    tpu.vector_store %arg19[%c66_936, %c0_937], %947 {strides = array<i32>} : memref<144x128xf32, #tpu.memory_space<vmem>>, vector<1x128xf32>,
    %c29_938 = arith.constant 29 : index
    %c0_939 = arith.constant 0 : index
    %949 = vector.load %arg21[%c29_938, %c0_939] : memref<64x128xf32, #tpu.memory_space<vmem>>, vector<1x128xf32>
    %c67_940 = arith.constant 67 : index
    %c0_941 = arith.constant 0 : index
    %950 = vector.load %arg19[%c67_940, %c0_941] : memref<144x128xf32, #tpu.memory_space<vmem>>, vector<1x128xf32>
    tpu.vector_store %arg19[%c67_940, %c0_941], %949 {strides = array<i32>} : memref<144x128xf32, #tpu.memory_space<vmem>>, vector<1x128xf32>,
    %c30_942 = arith.constant 30 : index
    %c0_943 = arith.constant 0 : index
    %951 = vector.load %arg20[%c30_942, %c0_943] : memref<64x128xf32, #tpu.memory_space<vmem>>, vector<1x128xf32>
    %c68_944 = arith.constant 68 : index
    %c0_945 = arith.constant 0 : index
    %952 = vector.load %arg19[%c68_944, %c0_945] : memref<144x128xf32, #tpu.memory_space<vmem>>, vector<1x128xf32>
    tpu.vector_store %arg19[%c68_944, %c0_945], %951 {strides = array<i32>} : memref<144x128xf32, #tpu.memory_space<vmem>>, vector<1x128xf32>,
    %c30_946 = arith.constant 30 : index
    %c0_947 = arith.constant 0 : index
    %953 = vector.load %arg21[%c30_946, %c0_947] : memref<64x128xf32, #tpu.memory_space<vmem>>, vector<1x128xf32>
    %c69_948 = arith.constant 69 : index
    %c0_949 = arith.constant 0 : index
    %954 = vector.load %arg19[%c69_948, %c0_949] : memref<144x128xf32, #tpu.memory_space<vmem>>, vector<1x128xf32>
    tpu.vector_store %arg19[%c69_948, %c0_949], %953 {strides = array<i32>} : memref<144x128xf32, #tpu.memory_space<vmem>>, vector<1x128xf32>,
    %c31_950 = arith.constant 31 : index
    %c0_951 = arith.constant 0 : index
    %955 = vector.load %arg20[%c31_950, %c0_951] : memref<64x128xf32, #tpu.memory_space<vmem>>, vector<1x128xf32>
    %c70_952 = arith.constant 70 : index
    %c0_953 = arith.constant 0 : index
    %956 = vector.load %arg19[%c70_952, %c0_953] : memref<144x128xf32, #tpu.memory_space<vmem>>, vector<1x128xf32>
    tpu.vector_store %arg19[%c70_952, %c0_953], %955 {strides = array<i32>} : memref<144x128xf32, #tpu.memory_space<vmem>>, vector<1x128xf32>,
    %c31_954 = arith.constant 31 : index
    %c0_955 = arith.constant 0 : index
    %957 = vector.load %arg21[%c31_954, %c0_955] : memref<64x128xf32, #tpu.memory_space<vmem>>, vector<1x128xf32>
    %c71_956 = arith.constant 71 : index
    %c0_957 = arith.constant 0 : index
    %958 = vector.load %arg19[%c71_956, %c0_957] : memref<144x128xf32, #tpu.memory_space<vmem>>, vector<1x128xf32>
    tpu.vector_store %arg19[%c71_956, %c0_957], %957 {strides = array<i32>} : memref<144x128xf32, #tpu.memory_space<vmem>>, vector<1x128xf32>,
    %c32_958 = arith.constant 32 : index
    %c0_959 = arith.constant 0 : index
    %959 = vector.load %arg20[%c32_958, %c0_959] : memref<64x128xf32, #tpu.memory_space<vmem>>, vector<1x128xf32>
    %c72 = arith.constant 72 : index
    %c0_960 = arith.constant 0 : index
    %960 = vector.load %arg19[%c72, %c0_960] : memref<144x128xf32, #tpu.memory_space<vmem>>, vector<1x128xf32>
    tpu.vector_store %arg19[%c72, %c0_960], %959 {strides = array<i32>} : memref<144x128xf32, #tpu.memory_space<vmem>>, vector<1x128xf32>,
    %c32_961 = arith.constant 32 : index
    %c0_962 = arith.constant 0 : index
    %961 = vector.load %arg21[%c32_961, %c0_962] : memref<64x128xf32, #tpu.memory_space<vmem>>, vector<1x128xf32>
    %c73 = arith.constant 73 : index
    %c0_963 = arith.constant 0 : index
    %962 = vector.load %arg19[%c73, %c0_963] : memref<144x128xf32, #tpu.memory_space<vmem>>, vector<1x128xf32>
    tpu.vector_store %arg19[%c73, %c0_963], %961 {strides = array<i32>} : memref<144x128xf32, #tpu.memory_space<vmem>>, vector<1x128xf32>,
    %c33_964 = arith.constant 33 : index
    %c0_965 = arith.constant 0 : index
    %963 = vector.load %arg20[%c33_964, %c0_965] : memref<64x128xf32, #tpu.memory_space<vmem>>, vector<1x128xf32>
    %c74 = arith.constant 74 : index
    %c0_966 = arith.constant 0 : index
    %964 = vector.load %arg19[%c74, %c0_966] : memref<144x128xf32, #tpu.memory_space<vmem>>, vector<1x128xf32>
    tpu.vector_store %arg19[%c74, %c0_966], %963 {strides = array<i32>} : memref<144x128xf32, #tpu.memory_space<vmem>>, vector<1x128xf32>,
    %c33_967 = arith.constant 33 : index
    %c0_968 = arith.constant 0 : index
    %965 = vector.load %arg21[%c33_967, %c0_968] : memref<64x128xf32, #tpu.memory_space<vmem>>, vector<1x128xf32>
    %c75 = arith.constant 75 : index
    %c0_969 = arith.constant 0 : index
    %966 = vector.load %arg19[%c75, %c0_969] : memref<144x128xf32, #tpu.memory_space<vmem>>, vector<1x128xf32>
    tpu.vector_store %arg19[%c75, %c0_969], %965 {strides = array<i32>} : memref<144x128xf32, #tpu.memory_space<vmem>>, vector<1x128xf32>,
    %c34_970 = arith.constant 34 : index
    %c0_971 = arith.constant 0 : index
    %967 = vector.load %arg20[%c34_970, %c0_971] : memref<64x128xf32, #tpu.memory_space<vmem>>, vector<1x128xf32>
    %c76 = arith.constant 76 : index
    %c0_972 = arith.constant 0 : index
    %968 = vector.load %arg19[%c76, %c0_972] : memref<144x128xf32, #tpu.memory_space<vmem>>, vector<1x128xf32>
    tpu.vector_store %arg19[%c76, %c0_972], %967 {strides = array<i32>} : memref<144x128xf32, #tpu.memory_space<vmem>>, vector<1x128xf32>,
    %c34_973 = arith.constant 34 : index
    %c0_974 = arith.constant 0 : index
    %969 = vector.load %arg21[%c34_973, %c0_974] : memref<64x128xf32, #tpu.memory_space<vmem>>, vector<1x128xf32>
    %c77 = arith.constant 77 : index
    %c0_975 = arith.constant 0 : index
    %970 = vector.load %arg19[%c77, %c0_975] : memref<144x128xf32, #tpu.memory_space<vmem>>, vector<1x128xf32>
    tpu.vector_store %arg19[%c77, %c0_975], %969 {strides = array<i32>} : memref<144x128xf32, #tpu.memory_space<vmem>>, vector<1x128xf32>,
    %c35_976 = arith.constant 35 : index
    %c0_977 = arith.constant 0 : index
    %971 = vector.load %arg20[%c35_976, %c0_977] : memref<64x128xf32, #tpu.memory_space<vmem>>, vector<1x128xf32>
    %c78 = arith.constant 78 : index
    %c0_978 = arith.constant 0 : index
    %972 = vector.load %arg19[%c78, %c0_978] : memref<144x128xf32, #tpu.memory_space<vmem>>, vector<1x128xf32>
    tpu.vector_store %arg19[%c78, %c0_978], %971 {strides = array<i32>} : memref<144x128xf32, #tpu.memory_space<vmem>>, vector<1x128xf32>,
    %c35_979 = arith.constant 35 : index
    %c0_980 = arith.constant 0 : index
    %973 = vector.load %arg21[%c35_979, %c0_980] : memref<64x128xf32, #tpu.memory_space<vmem>>, vector<1x128xf32>
    %c79 = arith.constant 79 : index
    %c0_981 = arith.constant 0 : index
    %974 = vector.load %arg19[%c79, %c0_981] : memref<144x128xf32, #tpu.memory_space<vmem>>, vector<1x128xf32>
    tpu.vector_store %arg19[%c79, %c0_981], %973 {strides = array<i32>} : memref<144x128xf32, #tpu.memory_space<vmem>>, vector<1x128xf32>,
    %c36_982 = arith.constant 36 : index
    %c0_983 = arith.constant 0 : index
    %975 = vector.load %arg20[%c36_982, %c0_983] : memref<64x128xf32, #tpu.memory_space<vmem>>, vector<1x128xf32>
    %c80 = arith.constant 80 : index
    %c0_984 = arith.constant 0 : index
    %976 = vector.load %arg19[%c80, %c0_984] : memref<144x128xf32, #tpu.memory_space<vmem>>, vector<1x128xf32>
    tpu.vector_store %arg19[%c80, %c0_984], %975 {strides = array<i32>} : memref<144x128xf32, #tpu.memory_space<vmem>>, vector<1x128xf32>,
    %c36_985 = arith.constant 36 : index
    %c0_986 = arith.constant 0 : index
    %977 = vector.load %arg21[%c36_985, %c0_986] : memref<64x128xf32, #tpu.memory_space<vmem>>, vector<1x128xf32>
    %c81 = arith.constant 81 : index
    %c0_987 = arith.constant 0 : index
    %978 = vector.load %arg19[%c81, %c0_987] : memref<144x128xf32, #tpu.memory_space<vmem>>, vector<1x128xf32>
    tpu.vector_store %arg19[%c81, %c0_987], %977 {strides = array<i32>} : memref<144x128xf32, #tpu.memory_space<vmem>>, vector<1x128xf32>,
    %c37_988 = arith.constant 37 : index
    %c0_989 = arith.constant 0 : index
    %979 = vector.load %arg20[%c37_988, %c0_989] : memref<64x128xf32, #tpu.memory_space<vmem>>, vector<1x128xf32>
    %c82 = arith.constant 82 : index
    %c0_990 = arith.constant 0 : index
    %980 = vector.load %arg19[%c82, %c0_990] : memref<144x128xf32, #tpu.memory_space<vmem>>, vector<1x128xf32>
    tpu.vector_store %arg19[%c82, %c0_990], %979 {strides = array<i32>} : memref<144x128xf32, #tpu.memory_space<vmem>>, vector<1x128xf32>,
    %c37_991 = arith.constant 37 : index
    %c0_992 = arith.constant 0 : index
    %981 = vector.load %arg21[%c37_991, %c0_992] : memref<64x128xf32, #tpu.memory_space<vmem>>, vector<1x128xf32>
    %c83 = arith.constant 83 : index
    %c0_993 = arith.constant 0 : index
    %982 = vector.load %arg19[%c83, %c0_993] : memref<144x128xf32, #tpu.memory_space<vmem>>, vector<1x128xf32>
    tpu.vector_store %arg19[%c83, %c0_993], %981 {strides = array<i32>} : memref<144x128xf32, #tpu.memory_space<vmem>>, vector<1x128xf32>,
    %c38_994 = arith.constant 38 : index
    %c0_995 = arith.constant 0 : index
    %983 = vector.load %arg20[%c38_994, %c0_995] : memref<64x128xf32, #tpu.memory_space<vmem>>, vector<1x128xf32>
    %c84 = arith.constant 84 : index
    %c0_996 = arith.constant 0 : index
    %984 = vector.load %arg19[%c84, %c0_996] : memref<144x128xf32, #tpu.memory_space<vmem>>, vector<1x128xf32>
    tpu.vector_store %arg19[%c84, %c0_996], %983 {strides = array<i32>} : memref<144x128xf32, #tpu.memory_space<vmem>>, vector<1x128xf32>,
    %c38_997 = arith.constant 38 : index
    %c0_998 = arith.constant 0 : index
    %985 = vector.load %arg21[%c38_997, %c0_998] : memref<64x128xf32, #tpu.memory_space<vmem>>, vector<1x128xf32>
    %c85 = arith.constant 85 : index
    %c0_999 = arith.constant 0 : index
    %986 = vector.load %arg19[%c85, %c0_999] : memref<144x128xf32, #tpu.memory_space<vmem>>, vector<1x128xf32>
    tpu.vector_store %arg19[%c85, %c0_999], %985 {strides = array<i32>} : memref<144x128xf32, #tpu.memory_space<vmem>>, vector<1x128xf32>,
    %c39_1000 = arith.constant 39 : index
    %c0_1001 = arith.constant 0 : index
    %987 = vector.load %arg20[%c39_1000, %c0_1001] : memref<64x128xf32, #tpu.memory_space<vmem>>, vector<1x128xf32>
    %c86 = arith.constant 86 : index
    %c0_1002 = arith.constant 0 : index
    %988 = vector.load %arg19[%c86, %c0_1002] : memref<144x128xf32, #tpu.memory_space<vmem>>, vector<1x128xf32>
    tpu.vector_store %arg19[%c86, %c0_1002], %987 {strides = array<i32>} : memref<144x128xf32, #tpu.memory_space<vmem>>, vector<1x128xf32>,
    %c39_1003 = arith.constant 39 : index
    %c0_1004 = arith.constant 0 : index
    %989 = vector.load %arg21[%c39_1003, %c0_1004] : memref<64x128xf32, #tpu.memory_space<vmem>>, vector<1x128xf32>
    %c87 = arith.constant 87 : index
    %c0_1005 = arith.constant 0 : index
    %990 = vector.load %arg19[%c87, %c0_1005] : memref<144x128xf32, #tpu.memory_space<vmem>>, vector<1x128xf32>
    tpu.vector_store %arg19[%c87, %c0_1005], %989 {strides = array<i32>} : memref<144x128xf32, #tpu.memory_space<vmem>>, vector<1x128xf32>,
    %c40_1006 = arith.constant 40 : index
    %c0_1007 = arith.constant 0 : index
    %991 = vector.load %arg20[%c40_1006, %c0_1007] : memref<64x128xf32, #tpu.memory_space<vmem>>, vector<1x128xf32>
    %c88 = arith.constant 88 : index
    %c0_1008 = arith.constant 0 : index
    %992 = vector.load %arg19[%c88, %c0_1008] : memref<144x128xf32, #tpu.memory_space<vmem>>, vector<1x128xf32>
    tpu.vector_store %arg19[%c88, %c0_1008], %991 {strides = array<i32>} : memref<144x128xf32, #tpu.memory_space<vmem>>, vector<1x128xf32>,
    %c40_1009 = arith.constant 40 : index
    %c0_1010 = arith.constant 0 : index
    %993 = vector.load %arg21[%c40_1009, %c0_1010] : memref<64x128xf32, #tpu.memory_space<vmem>>, vector<1x128xf32>
    %c89 = arith.constant 89 : index
    %c0_1011 = arith.constant 0 : index
    %994 = vector.load %arg19[%c89, %c0_1011] : memref<144x128xf32, #tpu.memory_space<vmem>>, vector<1x128xf32>
    tpu.vector_store %arg19[%c89, %c0_1011], %993 {strides = array<i32>} : memref<144x128xf32, #tpu.memory_space<vmem>>, vector<1x128xf32>,
    %c41_1012 = arith.constant 41 : index
    %c0_1013 = arith.constant 0 : index
    %995 = vector.load %arg20[%c41_1012, %c0_1013] : memref<64x128xf32, #tpu.memory_space<vmem>>, vector<1x128xf32>
    %c90 = arith.constant 90 : index
    %c0_1014 = arith.constant 0 : index
    %996 = vector.load %arg19[%c90, %c0_1014] : memref<144x128xf32, #tpu.memory_space<vmem>>, vector<1x128xf32>
    tpu.vector_store %arg19[%c90, %c0_1014], %995 {strides = array<i32>} : memref<144x128xf32, #tpu.memory_space<vmem>>, vector<1x128xf32>,
    %c41_1015 = arith.constant 41 : index
    %c0_1016 = arith.constant 0 : index
    %997 = vector.load %arg21[%c41_1015, %c0_1016] : memref<64x128xf32, #tpu.memory_space<vmem>>, vector<1x128xf32>
    %c91 = arith.constant 91 : index
    %c0_1017 = arith.constant 0 : index
    %998 = vector.load %arg19[%c91, %c0_1017] : memref<144x128xf32, #tpu.memory_space<vmem>>, vector<1x128xf32>
    tpu.vector_store %arg19[%c91, %c0_1017], %997 {strides = array<i32>} : memref<144x128xf32, #tpu.memory_space<vmem>>, vector<1x128xf32>,
    %c42_1018 = arith.constant 42 : index
    %c0_1019 = arith.constant 0 : index
    %999 = vector.load %arg20[%c42_1018, %c0_1019] : memref<64x128xf32, #tpu.memory_space<vmem>>, vector<1x128xf32>
    %c92 = arith.constant 92 : index
    %c0_1020 = arith.constant 0 : index
    %1000 = vector.load %arg19[%c92, %c0_1020] : memref<144x128xf32, #tpu.memory_space<vmem>>, vector<1x128xf32>
    tpu.vector_store %arg19[%c92, %c0_1020], %999 {strides = array<i32>} : memref<144x128xf32, #tpu.memory_space<vmem>>, vector<1x128xf32>,
    %c42_1021 = arith.constant 42 : index
    %c0_1022 = arith.constant 0 : index
    %1001 = vector.load %arg21[%c42_1021, %c0_1022] : memref<64x128xf32, #tpu.memory_space<vmem>>, vector<1x128xf32>
    %c93 = arith.constant 93 : index
    %c0_1023 = arith.constant 0 : index
    %1002 = vector.load %arg19[%c93, %c0_1023] : memref<144x128xf32, #tpu.memory_space<vmem>>, vector<1x128xf32>
    tpu.vector_store %arg19[%c93, %c0_1023], %1001 {strides = array<i32>} : memref<144x128xf32, #tpu.memory_space<vmem>>, vector<1x128xf32>,
    %c43_1024 = arith.constant 43 : index
    %c0_1025 = arith.constant 0 : index
    %1003 = vector.load %arg20[%c43_1024, %c0_1025] : memref<64x128xf32, #tpu.memory_space<vmem>>, vector<1x128xf32>
    %c94 = arith.constant 94 : index
    %c0_1026 = arith.constant 0 : index
    %1004 = vector.load %arg19[%c94, %c0_1026] : memref<144x128xf32, #tpu.memory_space<vmem>>, vector<1x128xf32>
    tpu.vector_store %arg19[%c94, %c0_1026], %1003 {strides = array<i32>} : memref<144x128xf32, #tpu.memory_space<vmem>>, vector<1x128xf32>,
    %c43_1027 = arith.constant 43 : index
    %c0_1028 = arith.constant 0 : index
    %1005 = vector.load %arg21[%c43_1027, %c0_1028] : memref<64x128xf32, #tpu.memory_space<vmem>>, vector<1x128xf32>
    %c95 = arith.constant 95 : index
    %c0_1029 = arith.constant 0 : index
    %1006 = vector.load %arg19[%c95, %c0_1029] : memref<144x128xf32, #tpu.memory_space<vmem>>, vector<1x128xf32>
    tpu.vector_store %arg19[%c95, %c0_1029], %1005 {strides = array<i32>} : memref<144x128xf32, #tpu.memory_space<vmem>>, vector<1x128xf32>,
    %c44_1030 = arith.constant 44 : index
    %c0_1031 = arith.constant 0 : index
    %1007 = vector.load %arg20[%c44_1030, %c0_1031] : memref<64x128xf32, #tpu.memory_space<vmem>>, vector<1x128xf32>
    %c96 = arith.constant 96 : index
    %c0_1032 = arith.constant 0 : index
    %1008 = vector.load %arg19[%c96, %c0_1032] : memref<144x128xf32, #tpu.memory_space<vmem>>, vector<1x128xf32>
    tpu.vector_store %arg19[%c96, %c0_1032], %1007 {strides = array<i32>} : memref<144x128xf32, #tpu.memory_space<vmem>>, vector<1x128xf32>,
    %c44_1033 = arith.constant 44 : index
    %c0_1034 = arith.constant 0 : index
    %1009 = vector.load %arg21[%c44_1033, %c0_1034] : memref<64x128xf32, #tpu.memory_space<vmem>>, vector<1x128xf32>
    %c97 = arith.constant 97 : index
    %c0_1035 = arith.constant 0 : index
    %1010 = vector.load %arg19[%c97, %c0_1035] : memref<144x128xf32, #tpu.memory_space<vmem>>, vector<1x128xf32>
    tpu.vector_store %arg19[%c97, %c0_1035], %1009 {strides = array<i32>} : memref<144x128xf32, #tpu.memory_space<vmem>>, vector<1x128xf32>,
    %c45_1036 = arith.constant 45 : index
    %c0_1037 = arith.constant 0 : index
    %1011 = vector.load %arg20[%c45_1036, %c0_1037] : memref<64x128xf32, #tpu.memory_space<vmem>>, vector<1x128xf32>
    %c98 = arith.constant 98 : index
    %c0_1038 = arith.constant 0 : index
    %1012 = vector.load %arg19[%c98, %c0_1038] : memref<144x128xf32, #tpu.memory_space<vmem>>, vector<1x128xf32>
    tpu.vector_store %arg19[%c98, %c0_1038], %1011 {strides = array<i32>} : memref<144x128xf32, #tpu.memory_space<vmem>>, vector<1x128xf32>,
    %c45_1039 = arith.constant 45 : index
    %c0_1040 = arith.constant 0 : index
    %1013 = vector.load %arg21[%c45_1039, %c0_1040] : memref<64x128xf32, #tpu.memory_space<vmem>>, vector<1x128xf32>
    %c99 = arith.constant 99 : index
    %c0_1041 = arith.constant 0 : index
    %1014 = vector.load %arg19[%c99, %c0_1041] : memref<144x128xf32, #tpu.memory_space<vmem>>, vector<1x128xf32>
    tpu.vector_store %arg19[%c99, %c0_1041], %1013 {strides = array<i32>} : memref<144x128xf32, #tpu.memory_space<vmem>>, vector<1x128xf32>,
    %c46_1042 = arith.constant 46 : index
    %c0_1043 = arith.constant 0 : index
    %1015 = vector.load %arg20[%c46_1042, %c0_1043] : memref<64x128xf32, #tpu.memory_space<vmem>>, vector<1x128xf32>
    %c100 = arith.constant 100 : index
    %c0_1044 = arith.constant 0 : index
    %1016 = vector.load %arg19[%c100, %c0_1044] : memref<144x128xf32, #tpu.memory_space<vmem>>, vector<1x128xf32>
    tpu.vector_store %arg19[%c100, %c0_1044], %1015 {strides = array<i32>} : memref<144x128xf32, #tpu.memory_space<vmem>>, vector<1x128xf32>,
    %c46_1045 = arith.constant 46 : index
    %c0_1046 = arith.constant 0 : index
    %1017 = vector.load %arg21[%c46_1045, %c0_1046] : memref<64x128xf32, #tpu.memory_space<vmem>>, vector<1x128xf32>
    %c101 = arith.constant 101 : index
    %c0_1047 = arith.constant 0 : index
    %1018 = vector.load %arg19[%c101, %c0_1047] : memref<144x128xf32, #tpu.memory_space<vmem>>, vector<1x128xf32>
    tpu.vector_store %arg19[%c101, %c0_1047], %1017 {strides = array<i32>} : memref<144x128xf32, #tpu.memory_space<vmem>>, vector<1x128xf32>,
    %c47_1048 = arith.constant 47 : index
    %c0_1049 = arith.constant 0 : index
    %1019 = vector.load %arg20[%c47_1048, %c0_1049] : memref<64x128xf32, #tpu.memory_space<vmem>>, vector<1x128xf32>
    %c102 = arith.constant 102 : index
    %c0_1050 = arith.constant 0 : index
    %1020 = vector.load %arg19[%c102, %c0_1050] : memref<144x128xf32, #tpu.memory_space<vmem>>, vector<1x128xf32>
    tpu.vector_store %arg19[%c102, %c0_1050], %1019 {strides = array<i32>} : memref<144x128xf32, #tpu.memory_space<vmem>>, vector<1x128xf32>,
    %c47_1051 = arith.constant 47 : index
    %c0_1052 = arith.constant 0 : index
    %1021 = vector.load %arg21[%c47_1051, %c0_1052] : memref<64x128xf32, #tpu.memory_space<vmem>>, vector<1x128xf32>
    %c103 = arith.constant 103 : index
    %c0_1053 = arith.constant 0 : index
    %1022 = vector.load %arg19[%c103, %c0_1053] : memref<144x128xf32, #tpu.memory_space<vmem>>, vector<1x128xf32>
    tpu.vector_store %arg19[%c103, %c0_1053], %1021 {strides = array<i32>} : memref<144x128xf32, #tpu.memory_space<vmem>>, vector<1x128xf32>,
    %c48_1054 = arith.constant 48 : index
    %c0_1055 = arith.constant 0 : index
    %1023 = vector.load %arg20[%c48_1054, %c0_1055] : memref<64x128xf32, #tpu.memory_space<vmem>>, vector<1x128xf32>
    %c104 = arith.constant 104 : index
    %c0_1056 = arith.constant 0 : index
    %1024 = vector.load %arg19[%c104, %c0_1056] : memref<144x128xf32, #tpu.memory_space<vmem>>, vector<1x128xf32>
    tpu.vector_store %arg19[%c104, %c0_1056], %1023 {strides = array<i32>} : memref<144x128xf32, #tpu.memory_space<vmem>>, vector<1x128xf32>,
    %c48_1057 = arith.constant 48 : index
    %c0_1058 = arith.constant 0 : index
    %1025 = vector.load %arg21[%c48_1057, %c0_1058] : memref<64x128xf32, #tpu.memory_space<vmem>>, vector<1x128xf32>
    %c105 = arith.constant 105 : index
    %c0_1059 = arith.constant 0 : index
    %1026 = vector.load %arg19[%c105, %c0_1059] : memref<144x128xf32, #tpu.memory_space<vmem>>, vector<1x128xf32>
    tpu.vector_store %arg19[%c105, %c0_1059], %1025 {strides = array<i32>} : memref<144x128xf32, #tpu.memory_space<vmem>>, vector<1x128xf32>,
    %c49_1060 = arith.constant 49 : index
    %c0_1061 = arith.constant 0 : index
    %1027 = vector.load %arg20[%c49_1060, %c0_1061] : memref<64x128xf32, #tpu.memory_space<vmem>>, vector<1x128xf32>
    %c106 = arith.constant 106 : index
    %c0_1062 = arith.constant 0 : index
    %1028 = vector.load %arg19[%c106, %c0_1062] : memref<144x128xf32, #tpu.memory_space<vmem>>, vector<1x128xf32>
    tpu.vector_store %arg19[%c106, %c0_1062], %1027 {strides = array<i32>} : memref<144x128xf32, #tpu.memory_space<vmem>>, vector<1x128xf32>,
    %c49_1063 = arith.constant 49 : index
    %c0_1064 = arith.constant 0 : index
    %1029 = vector.load %arg21[%c49_1063, %c0_1064] : memref<64x128xf32, #tpu.memory_space<vmem>>, vector<1x128xf32>
    %c107 = arith.constant 107 : index
    %c0_1065 = arith.constant 0 : index
    %1030 = vector.load %arg19[%c107, %c0_1065] : memref<144x128xf32, #tpu.memory_space<vmem>>, vector<1x128xf32>
    tpu.vector_store %arg19[%c107, %c0_1065], %1029 {strides = array<i32>} : memref<144x128xf32, #tpu.memory_space<vmem>>, vector<1x128xf32>,
    %c50_1066 = arith.constant 50 : index
    %c0_1067 = arith.constant 0 : index
    %1031 = vector.load %arg20[%c50_1066, %c0_1067] : memref<64x128xf32, #tpu.memory_space<vmem>>, vector<1x128xf32>
    %c108 = arith.constant 108 : index
    %c0_1068 = arith.constant 0 : index
    %1032 = vector.load %arg19[%c108, %c0_1068] : memref<144x128xf32, #tpu.memory_space<vmem>>, vector<1x128xf32>
    tpu.vector_store %arg19[%c108, %c0_1068], %1031 {strides = array<i32>} : memref<144x128xf32, #tpu.memory_space<vmem>>, vector<1x128xf32>,
    %c50_1069 = arith.constant 50 : index
    %c0_1070 = arith.constant 0 : index
    %1033 = vector.load %arg21[%c50_1069, %c0_1070] : memref<64x128xf32, #tpu.memory_space<vmem>>, vector<1x128xf32>
    %c109 = arith.constant 109 : index
    %c0_1071 = arith.constant 0 : index
    %1034 = vector.load %arg19[%c109, %c0_1071] : memref<144x128xf32, #tpu.memory_space<vmem>>, vector<1x128xf32>
    tpu.vector_store %arg19[%c109, %c0_1071], %1033 {strides = array<i32>} : memref<144x128xf32, #tpu.memory_space<vmem>>, vector<1x128xf32>,
    %c51_1072 = arith.constant 51 : index
    %c0_1073 = arith.constant 0 : index
    %1035 = vector.load %arg20[%c51_1072, %c0_1073] : memref<64x128xf32, #tpu.memory_space<vmem>>, vector<1x128xf32>
    %c110 = arith.constant 110 : index
    %c0_1074 = arith.constant 0 : index
    %1036 = vector.load %arg19[%c110, %c0_1074] : memref<144x128xf32, #tpu.memory_space<vmem>>, vector<1x128xf32>
    tpu.vector_store %arg19[%c110, %c0_1074], %1035 {strides = array<i32>} : memref<144x128xf32, #tpu.memory_space<vmem>>, vector<1x128xf32>,
    %c51_1075 = arith.constant 51 : index
    %c0_1076 = arith.constant 0 : index
    %1037 = vector.load %arg21[%c51_1075, %c0_1076] : memref<64x128xf32, #tpu.memory_space<vmem>>, vector<1x128xf32>
    %c111 = arith.constant 111 : index
    %c0_1077 = arith.constant 0 : index
    %1038 = vector.load %arg19[%c111, %c0_1077] : memref<144x128xf32, #tpu.memory_space<vmem>>, vector<1x128xf32>
    tpu.vector_store %arg19[%c111, %c0_1077], %1037 {strides = array<i32>} : memref<144x128xf32, #tpu.memory_space<vmem>>, vector<1x128xf32>,
    %c52_1078 = arith.constant 52 : index
    %c0_1079 = arith.constant 0 : index
    %1039 = vector.load %arg20[%c52_1078, %c0_1079] : memref<64x128xf32, #tpu.memory_space<vmem>>, vector<1x128xf32>
    %c112 = arith.constant 112 : index
    %c0_1080 = arith.constant 0 : index
    %1040 = vector.load %arg19[%c112, %c0_1080] : memref<144x128xf32, #tpu.memory_space<vmem>>, vector<1x128xf32>
    tpu.vector_store %arg19[%c112, %c0_1080], %1039 {strides = array<i32>} : memref<144x128xf32, #tpu.memory_space<vmem>>, vector<1x128xf32>,
    %c52_1081 = arith.constant 52 : index
    %c0_1082 = arith.constant 0 : index
    %1041 = vector.load %arg21[%c52_1081, %c0_1082] : memref<64x128xf32, #tpu.memory_space<vmem>>, vector<1x128xf32>
    %c113 = arith.constant 113 : index
    %c0_1083 = arith.constant 0 : index
    %1042 = vector.load %arg19[%c113, %c0_1083] : memref<144x128xf32, #tpu.memory_space<vmem>>, vector<1x128xf32>
    tpu.vector_store %arg19[%c113, %c0_1083], %1041 {strides = array<i32>} : memref<144x128xf32, #tpu.memory_space<vmem>>, vector<1x128xf32>,
    %c53_1084 = arith.constant 53 : index
    %c0_1085 = arith.constant 0 : index
    %1043 = vector.load %arg20[%c53_1084, %c0_1085] : memref<64x128xf32, #tpu.memory_space<vmem>>, vector<1x128xf32>
    %c114 = arith.constant 114 : index
    %c0_1086 = arith.constant 0 : index
    %1044 = vector.load %arg19[%c114, %c0_1086] : memref<144x128xf32, #tpu.memory_space<vmem>>, vector<1x128xf32>
    tpu.vector_store %arg19[%c114, %c0_1086], %1043 {strides = array<i32>} : memref<144x128xf32, #tpu.memory_space<vmem>>, vector<1x128xf32>,
    %c53_1087 = arith.constant 53 : index
    %c0_1088 = arith.constant 0 : index
    %1045 = vector.load %arg21[%c53_1087, %c0_1088] : memref<64x128xf32, #tpu.memory_space<vmem>>, vector<1x128xf32>
    %c115 = arith.constant 115 : index
    %c0_1089 = arith.constant 0 : index
    %1046 = vector.load %arg19[%c115, %c0_1089] : memref<144x128xf32, #tpu.memory_space<vmem>>, vector<1x128xf32>
    tpu.vector_store %arg19[%c115, %c0_1089], %1045 {strides = array<i32>} : memref<144x128xf32, #tpu.memory_space<vmem>>, vector<1x128xf32>,
    %c54_1090 = arith.constant 54 : index
    %c0_1091 = arith.constant 0 : index
    %1047 = vector.load %arg20[%c54_1090, %c0_1091] : memref<64x128xf32, #tpu.memory_space<vmem>>, vector<1x128xf32>
    %c116 = arith.constant 116 : index
    %c0_1092 = arith.constant 0 : index
    %1048 = vector.load %arg19[%c116, %c0_1092] : memref<144x128xf32, #tpu.memory_space<vmem>>, vector<1x128xf32>
    tpu.vector_store %arg19[%c116, %c0_1092], %1047 {strides = array<i32>} : memref<144x128xf32, #tpu.memory_space<vmem>>, vector<1x128xf32>,
    %c54_1093 = arith.constant 54 : index
    %c0_1094 = arith.constant 0 : index
    %1049 = vector.load %arg21[%c54_1093, %c0_1094] : memref<64x128xf32, #tpu.memory_space<vmem>>, vector<1x128xf32>
    %c117 = arith.constant 117 : index
    %c0_1095 = arith.constant 0 : index
    %1050 = vector.load %arg19[%c117, %c0_1095] : memref<144x128xf32, #tpu.memory_space<vmem>>, vector<1x128xf32>
    tpu.vector_store %arg19[%c117, %c0_1095], %1049 {strides = array<i32>} : memref<144x128xf32, #tpu.memory_space<vmem>>, vector<1x128xf32>,
    %c55_1096 = arith.constant 55 : index
    %c0_1097 = arith.constant 0 : index
    %1051 = vector.load %arg20[%c55_1096, %c0_1097] : memref<64x128xf32, #tpu.memory_space<vmem>>, vector<1x128xf32>
    %c118 = arith.constant 118 : index
    %c0_1098 = arith.constant 0 : index
    %1052 = vector.load %arg19[%c118, %c0_1098] : memref<144x128xf32, #tpu.memory_space<vmem>>, vector<1x128xf32>
    tpu.vector_store %arg19[%c118, %c0_1098], %1051 {strides = array<i32>} : memref<144x128xf32, #tpu.memory_space<vmem>>, vector<1x128xf32>,
    %c55_1099 = arith.constant 55 : index
    %c0_1100 = arith.constant 0 : index
    %1053 = vector.load %arg21[%c55_1099, %c0_1100] : memref<64x128xf32, #tpu.memory_space<vmem>>, vector<1x128xf32>
    %c119 = arith.constant 119 : index
    %c0_1101 = arith.constant 0 : index
    %1054 = vector.load %arg19[%c119, %c0_1101] : memref<144x128xf32, #tpu.memory_space<vmem>>, vector<1x128xf32>
    tpu.vector_store %arg19[%c119, %c0_1101], %1053 {strides = array<i32>} : memref<144x128xf32, #tpu.memory_space<vmem>>, vector<1x128xf32>,
    %c56_1102 = arith.constant 56 : index
    %c0_1103 = arith.constant 0 : index
    %1055 = vector.load %arg20[%c56_1102, %c0_1103] : memref<64x128xf32, #tpu.memory_space<vmem>>, vector<1x128xf32>
    %c120 = arith.constant 120 : index
    %c0_1104 = arith.constant 0 : index
    %1056 = vector.load %arg19[%c120, %c0_1104] : memref<144x128xf32, #tpu.memory_space<vmem>>, vector<1x128xf32>
    tpu.vector_store %arg19[%c120, %c0_1104], %1055 {strides = array<i32>} : memref<144x128xf32, #tpu.memory_space<vmem>>, vector<1x128xf32>,
    %c56_1105 = arith.constant 56 : index
    %c0_1106 = arith.constant 0 : index
    %1057 = vector.load %arg21[%c56_1105, %c0_1106] : memref<64x128xf32, #tpu.memory_space<vmem>>, vector<1x128xf32>
    %c121 = arith.constant 121 : index
    %c0_1107 = arith.constant 0 : index
    %1058 = vector.load %arg19[%c121, %c0_1107] : memref<144x128xf32, #tpu.memory_space<vmem>>, vector<1x128xf32>
    tpu.vector_store %arg19[%c121, %c0_1107], %1057 {strides = array<i32>} : memref<144x128xf32, #tpu.memory_space<vmem>>, vector<1x128xf32>,
    %c57_1108 = arith.constant 57 : index
    %c0_1109 = arith.constant 0 : index
    %1059 = vector.load %arg20[%c57_1108, %c0_1109] : memref<64x128xf32, #tpu.memory_space<vmem>>, vector<1x128xf32>
    %c122 = arith.constant 122 : index
    %c0_1110 = arith.constant 0 : index
    %1060 = vector.load %arg19[%c122, %c0_1110] : memref<144x128xf32, #tpu.memory_space<vmem>>, vector<1x128xf32>
    tpu.vector_store %arg19[%c122, %c0_1110], %1059 {strides = array<i32>} : memref<144x128xf32, #tpu.memory_space<vmem>>, vector<1x128xf32>,
    %c57_1111 = arith.constant 57 : index
    %c0_1112 = arith.constant 0 : index
    %1061 = vector.load %arg21[%c57_1111, %c0_1112] : memref<64x128xf32, #tpu.memory_space<vmem>>, vector<1x128xf32>
    %c123 = arith.constant 123 : index
    %c0_1113 = arith.constant 0 : index
    %1062 = vector.load %arg19[%c123, %c0_1113] : memref<144x128xf32, #tpu.memory_space<vmem>>, vector<1x128xf32>
    tpu.vector_store %arg19[%c123, %c0_1113], %1061 {strides = array<i32>} : memref<144x128xf32, #tpu.memory_space<vmem>>, vector<1x128xf32>,
    %c58_1114 = arith.constant 58 : index
    %c0_1115 = arith.constant 0 : index
    %1063 = vector.load %arg20[%c58_1114, %c0_1115] : memref<64x128xf32, #tpu.memory_space<vmem>>, vector<1x128xf32>
    %c124 = arith.constant 124 : index
    %c0_1116 = arith.constant 0 : index
    %1064 = vector.load %arg19[%c124, %c0_1116] : memref<144x128xf32, #tpu.memory_space<vmem>>, vector<1x128xf32>
    tpu.vector_store %arg19[%c124, %c0_1116], %1063 {strides = array<i32>} : memref<144x128xf32, #tpu.memory_space<vmem>>, vector<1x128xf32>,
    %c58_1117 = arith.constant 58 : index
    %c0_1118 = arith.constant 0 : index
    %1065 = vector.load %arg21[%c58_1117, %c0_1118] : memref<64x128xf32, #tpu.memory_space<vmem>>, vector<1x128xf32>
    %c125 = arith.constant 125 : index
    %c0_1119 = arith.constant 0 : index
    %1066 = vector.load %arg19[%c125, %c0_1119] : memref<144x128xf32, #tpu.memory_space<vmem>>, vector<1x128xf32>
    tpu.vector_store %arg19[%c125, %c0_1119], %1065 {strides = array<i32>} : memref<144x128xf32, #tpu.memory_space<vmem>>, vector<1x128xf32>,
    %c59_1120 = arith.constant 59 : index
    %c0_1121 = arith.constant 0 : index
    %1067 = vector.load %arg20[%c59_1120, %c0_1121] : memref<64x128xf32, #tpu.memory_space<vmem>>, vector<1x128xf32>
    %c126 = arith.constant 126 : index
    %c0_1122 = arith.constant 0 : index
    %1068 = vector.load %arg19[%c126, %c0_1122] : memref<144x128xf32, #tpu.memory_space<vmem>>, vector<1x128xf32>
    tpu.vector_store %arg19[%c126, %c0_1122], %1067 {strides = array<i32>} : memref<144x128xf32, #tpu.memory_space<vmem>>, vector<1x128xf32>,
    %c59_1123 = arith.constant 59 : index
    %c0_1124 = arith.constant 0 : index
    %1069 = vector.load %arg21[%c59_1123, %c0_1124] : memref<64x128xf32, #tpu.memory_space<vmem>>, vector<1x128xf32>
    %c127 = arith.constant 127 : index
    %c0_1125 = arith.constant 0 : index
    %1070 = vector.load %arg19[%c127, %c0_1125] : memref<144x128xf32, #tpu.memory_space<vmem>>, vector<1x128xf32>
    tpu.vector_store %arg19[%c127, %c0_1125], %1069 {strides = array<i32>} : memref<144x128xf32, #tpu.memory_space<vmem>>, vector<1x128xf32>,
    %c60_1126 = arith.constant 60 : index
    %c0_1127 = arith.constant 0 : index
    %1071 = vector.load %arg20[%c60_1126, %c0_1127] : memref<64x128xf32, #tpu.memory_space<vmem>>, vector<1x128xf32>
    %c128_1128 = arith.constant 128 : index
    %c0_1129 = arith.constant 0 : index
    %1072 = vector.load %arg19[%c128_1128, %c0_1129] : memref<144x128xf32, #tpu.memory_space<vmem>>, vector<1x128xf32>
    tpu.vector_store %arg19[%c128_1128, %c0_1129], %1071 {strides = array<i32>} : memref<144x128xf32, #tpu.memory_space<vmem>>, vector<1x128xf32>,
    %c60_1130 = arith.constant 60 : index
    %c0_1131 = arith.constant 0 : index
    %1073 = vector.load %arg21[%c60_1130, %c0_1131] : memref<64x128xf32, #tpu.memory_space<vmem>>, vector<1x128xf32>
    %c129 = arith.constant 129 : index
    %c0_1132 = arith.constant 0 : index
    %1074 = vector.load %arg19[%c129, %c0_1132] : memref<144x128xf32, #tpu.memory_space<vmem>>, vector<1x128xf32>
    tpu.vector_store %arg19[%c129, %c0_1132], %1073 {strides = array<i32>} : memref<144x128xf32, #tpu.memory_space<vmem>>, vector<1x128xf32>,
    %c61_1133 = arith.constant 61 : index
    %c0_1134 = arith.constant 0 : index
    %1075 = vector.load %arg20[%c61_1133, %c0_1134] : memref<64x128xf32, #tpu.memory_space<vmem>>, vector<1x128xf32>
    %c130 = arith.constant 130 : index
    %c0_1135 = arith.constant 0 : index
    %1076 = vector.load %arg19[%c130, %c0_1135] : memref<144x128xf32, #tpu.memory_space<vmem>>, vector<1x128xf32>
    tpu.vector_store %arg19[%c130, %c0_1135], %1075 {strides = array<i32>} : memref<144x128xf32, #tpu.memory_space<vmem>>, vector<1x128xf32>,
    %c61_1136 = arith.constant 61 : index
    %c0_1137 = arith.constant 0 : index
    %1077 = vector.load %arg21[%c61_1136, %c0_1137] : memref<64x128xf32, #tpu.memory_space<vmem>>, vector<1x128xf32>
    %c131 = arith.constant 131 : index
    %c0_1138 = arith.constant 0 : index
    %1078 = vector.load %arg19[%c131, %c0_1138] : memref<144x128xf32, #tpu.memory_space<vmem>>, vector<1x128xf32>
    tpu.vector_store %arg19[%c131, %c0_1138], %1077 {strides = array<i32>} : memref<144x128xf32, #tpu.memory_space<vmem>>, vector<1x128xf32>,
    %c62_1139 = arith.constant 62 : index
    %c0_1140 = arith.constant 0 : index
    %1079 = vector.load %arg20[%c62_1139, %c0_1140] : memref<64x128xf32, #tpu.memory_space<vmem>>, vector<1x128xf32>
    %c132 = arith.constant 132 : index
    %c0_1141 = arith.constant 0 : index
    %1080 = vector.load %arg19[%c132, %c0_1141] : memref<144x128xf32, #tpu.memory_space<vmem>>, vector<1x128xf32>
    tpu.vector_store %arg19[%c132, %c0_1141], %1079 {strides = array<i32>} : memref<144x128xf32, #tpu.memory_space<vmem>>, vector<1x128xf32>,
    %c62_1142 = arith.constant 62 : index
    %c0_1143 = arith.constant 0 : index
    %1081 = vector.load %arg21[%c62_1142, %c0_1143] : memref<64x128xf32, #tpu.memory_space<vmem>>, vector<1x128xf32>
    %c133 = arith.constant 133 : index
    %c0_1144 = arith.constant 0 : index
    %1082 = vector.load %arg19[%c133, %c0_1144] : memref<144x128xf32, #tpu.memory_space<vmem>>, vector<1x128xf32>
    tpu.vector_store %arg19[%c133, %c0_1144], %1081 {strides = array<i32>} : memref<144x128xf32, #tpu.memory_space<vmem>>, vector<1x128xf32>,
    %c63_1145 = arith.constant 63 : index
    %c0_1146 = arith.constant 0 : index
    %1083 = vector.load %arg20[%c63_1145, %c0_1146] : memref<64x128xf32, #tpu.memory_space<vmem>>, vector<1x128xf32>
    %c134 = arith.constant 134 : index
    %c0_1147 = arith.constant 0 : index
    %1084 = vector.load %arg19[%c134, %c0_1147] : memref<144x128xf32, #tpu.memory_space<vmem>>, vector<1x128xf32>
    tpu.vector_store %arg19[%c134, %c0_1147], %1083 {strides = array<i32>} : memref<144x128xf32, #tpu.memory_space<vmem>>, vector<1x128xf32>,
    %c63_1148 = arith.constant 63 : index
    %c0_1149 = arith.constant 0 : index
    %1085 = vector.load %arg21[%c63_1148, %c0_1149] : memref<64x128xf32, #tpu.memory_space<vmem>>, vector<1x128xf32>
    %c135 = arith.constant 135 : index
    %c0_1150 = arith.constant 0 : index
    %1086 = vector.load %arg19[%c135, %c0_1150] : memref<144x128xf32, #tpu.memory_space<vmem>>, vector<1x128xf32>
    tpu.vector_store %arg19[%c135, %c0_1150], %1085 {strides = array<i32>} : memref<144x128xf32, #tpu.memory_space<vmem>>, vector<1x128xf32>,
    %c8_1151 = arith.constant 8 : index
    %c0_1152 = arith.constant 0 : index
    %1087 = vector.load %arg19[%c8_1151, %c0_1152] : memref<144x128xf32, #tpu.memory_space<vmem>>, vector<128x128xf32>
    %1088 = tpu.iota {dimensions = array<i32: 0>} : vector<128x128xi32>
    %c64_i32 = arith.constant 64 : i32
    %c0_i32_1153 = arith.constant 0 : i32
    %1089 = arith.cmpi eq, %c64_i32, %c0_i32_1153 : i32
    %c1_i32_1154 = arith.constant 1 : i32
    %1090 = arith.select %1089, %c1_i32_1154, %c64_i32 : i32
    %1091 = vector.broadcast %1090 : i32 to vector<128x128xi32>
    %1092 = arith.remsi %1088, %1091 : vector<128x128xi32>
    %c0_i32_1155 = arith.constant 0 : i32
    %1093 = vector.broadcast %c0_i32_1155 : i32 to vector<128x128xi32>
    %1094 = arith.cmpi ne, %1092, %1093 : vector<128x128xi32>
    %c0_i32_1156 = arith.constant 0 : i32
    %1095 = vector.broadcast %c0_i32_1156 : i32 to vector<128x128xi32>
    %1096 = arith.cmpi slt, %1092, %1095 : vector<128x128xi32>
    %c0_i32_1157 = arith.constant 0 : i32
    %1097 = arith.cmpi slt, %1090, %c0_i32_1157 : i32
    %1098 = vector.broadcast %1097 : i1 to vector<128x128xi1>
    %1099 = vector.broadcast %1098 : vector<128x128xi1> to vector<128x128xi1>
    %1100 = arith.xori %1096, %1099 : vector<128x128xi1>
    %1101 = arith.andi %1100, %1094 : vector<128x128xi1>
    %1102 = vector.broadcast %1090 : i32 to vector<128x128xi32>
    %1103 = arith.addi %1092, %1102 : vector<128x128xi32>
    %1104 = arith.select %1101, %1103, %1092 : vector<128x128xi1>, vector<128x128xi32>
    %c-1_i32_1158 = arith.constant -1 : i32
    %1105 = vector.broadcast %c-1_i32_1158 : i32 to vector<128x128xi32>
    %1106 = arith.addi %1104, %1105 : vector<128x128xi32>
    %c0_i32_1159 = arith.constant 0 : i32
    %1107 = vector.broadcast %c0_i32_1159 : i32 to vector<128x128xi32>
    %1108 = arith.cmpi sge, %1106, %1107 : vector<128x128xi32>
    %c-1_i32_1160 = arith.constant -1 : i32
    %1109 = vector.broadcast %c-1_i32_1160 : i32 to vector<128x128xi32>
    %1110 = arith.addi %1104, %1109 : vector<128x128xi32>
    %c64_i32_1161 = arith.constant 64 : i32
    %1111 = vector.broadcast %c64_i32_1161 : i32 to vector<128x128xi32>
    %1112 = arith.cmpi slt, %1110, %1111 : vector<128x128xi32>
    %1113 = arith.andi %1108, %1112 : vector<128x128xi1>
    %c7_1162 = arith.constant 7 : index
    %c0_1163 = arith.constant 0 : index
    %1114 = vector.load %arg19[%c7_1162, %c0_1163] : memref<144x128xf32, #tpu.memory_space<vmem>>, vector<128x128xf32>
    %cst_1164 = arith.constant 0.000000e+00 : f32
    %1115 = vector.broadcast %cst_1164 : f32 to vector<128x128xf32>
    %1116 = arith.select %1113, %1114, %1115 : vector<128x128xi1>, vector<128x128xf32>
    %1117 = tpu.iota {dimensions = array<i32: 0>} : vector<128x128xi32>
    %c64_i32_1165 = arith.constant 64 : i32
    %c0_i32_1166 = arith.constant 0 : i32
    %1118 = arith.cmpi eq, %c64_i32_1165, %c0_i32_1166 : i32
    %c1_i32_1167 = arith.constant 1 : i32
    %1119 = arith.select %1118, %c1_i32_1167, %c64_i32_1165 : i32
    %1120 = vector.broadcast %1119 : i32 to vector<128x128xi32>
    %1121 = arith.remsi %1117, %1120 : vector<128x128xi32>
    %c0_i32_1168 = arith.constant 0 : i32
    %1122 = vector.broadcast %c0_i32_1168 : i32 to vector<128x128xi32>
    %1123 = arith.cmpi ne, %1121, %1122 : vector<128x128xi32>
    %c0_i32_1169 = arith.constant 0 : i32
    %1124 = vector.broadcast %c0_i32_1169 : i32 to vector<128x128xi32>
    %1125 = arith.cmpi slt, %1121, %1124 : vector<128x128xi32>
    %c0_i32_1170 = arith.constant 0 : i32
    %1126 = arith.cmpi slt, %1119, %c0_i32_1170 : i32
    %1127 = vector.broadcast %1126 : i1 to vector<128x128xi1>
    %1128 = vector.broadcast %1127 : vector<128x128xi1> to vector<128x128xi1>
    %1129 = arith.xori %1125, %1128 : vector<128x128xi1>
    %1130 = arith.andi %1129, %1123 : vector<128x128xi1>
    %1131 = vector.broadcast %1119 : i32 to vector<128x128xi32>
    %1132 = arith.addi %1121, %1131 : vector<128x128xi32>
    %1133 = arith.select %1130, %1132, %1121 : vector<128x128xi1>, vector<128x128xi32>
    %c1_i32_1171 = arith.constant 1 : i32
    %1134 = vector.broadcast %c1_i32_1171 : i32 to vector<128x128xi32>
    %1135 = arith.addi %1133, %1134 : vector<128x128xi32>
    %c0_i32_1172 = arith.constant 0 : i32
    %1136 = vector.broadcast %c0_i32_1172 : i32 to vector<128x128xi32>
    %1137 = arith.cmpi sge, %1135, %1136 : vector<128x128xi32>
    %c1_i32_1173 = arith.constant 1 : i32
    %1138 = vector.broadcast %c1_i32_1173 : i32 to vector<128x128xi32>
    %1139 = arith.addi %1133, %1138 : vector<128x128xi32>
    %c64_i32_1174 = arith.constant 64 : i32
    %1140 = vector.broadcast %c64_i32_1174 : i32 to vector<128x128xi32>
    %1141 = arith.cmpi slt, %1139, %1140 : vector<128x128xi32>
    %1142 = arith.andi %1137, %1141 : vector<128x128xi1>
    %c9_1175 = arith.constant 9 : index
    %c0_1176 = arith.constant 0 : index
    %1143 = vector.load %arg19[%c9_1175, %c0_1176] : memref<144x128xf32, #tpu.memory_space<vmem>>, vector<128x128xf32>
    %cst_1177 = arith.constant 0.000000e+00 : f32
    %1144 = vector.broadcast %cst_1177 : f32 to vector<128x128xf32>
    %1145 = arith.select %1142, %1143, %1144 : vector<128x128xi1>, vector<128x128xf32>
    %1146 = arith.truncf %1087 : vector<128x128xf32> to vector<128x128xbf16>
    %1147 = arith.truncf %1116 : vector<128x128xf32> to vector<128x128xbf16>
    %1148 = arith.truncf %1145 : vector<128x128xf32> to vector<128x128xbf16>
    %c0_1178 = arith.constant 0 : index
    %c0_1179 = arith.constant 0 : index
    %1149 = vector.load %arg17[%c0_1178, %c0_1179] : memref<384x128xbf16, #tpu.memory_space<vmem>>, vector<128x128xbf16>
    %c128_1180 = arith.constant 128 : index
    %c0_1181 = arith.constant 0 : index
    %1150 = vector.load %arg17[%c128_1180, %c0_1181] : memref<384x128xbf16, #tpu.memory_space<vmem>>, vector<128x128xbf16>
    %c256_1182 = arith.constant 256 : index
    %c0_1183 = arith.constant 0 : index
    %1151 = vector.load %arg17[%c256_1182, %c0_1183] : memref<384x128xbf16, #tpu.memory_space<vmem>>, vector<128x128xbf16>
    %cst_1184 = arith.constant dense<0.000000e+00> : vector<128x128xf32>
    %1152 = tpu.matmul %1147, %1149, %cst_1184 {dimension_numbers = #tpu.dot_dimension_numbers<[1], [0], [0], [1], [0, 0, 1, 1], [], []>} : vector<128x128xbf16>, vector<128x128xbf16>, vector<128x128xf32> -> vector<128x128xf32>
    %cst_1185 = arith.constant dense<0.000000e+00> : vector<128x128xf32>
    %1153 = tpu.matmul %1146, %1150, %cst_1185 {dimension_numbers = #tpu.dot_dimension_numbers<[1], [0], [0], [1], [0, 0, 1, 1], [], []>} : vector<128x128xbf16>, vector<128x128xbf16>, vector<128x128xf32> -> vector<128x128xf32>
    %1154 = arith.addf %1152, %1153 : vector<128x128xf32>
    %cst_1186 = arith.constant dense<0.000000e+00> : vector<128x128xf32>
    %1155 = tpu.matmul %1148, %1151, %cst_1186 {dimension_numbers = #tpu.dot_dimension_numbers<[1], [0], [0], [1], [0, 0, 1, 1], [], []>} : vector<128x128xbf16>, vector<128x128xbf16>, vector<128x128xf32> -> vector<128x128xf32>
    %1156 = arith.addf %1154, %1155 : vector<128x128xf32>
    %c0_1187 = arith.constant 0 : index
    %c0_1188 = arith.constant 0 : index
    %1157 = vector.load %arg18[%c0_1187, %c0_1188] : memref<128x128xf32, #tpu.memory_space<vmem>>, vector<128x128xf32>
    tpu.vector_store %arg18[%c0_1187, %c0_1188], %1156 {strides = array<i32>} : memref<128x128xf32, #tpu.memory_space<vmem>>, vector<128x128xf32>,
    return
  }
}

</mosaic_0001>

<llo_original>
// kernel: forward.1
$region0: #{forward.1}
  #allocation0 [shape = 'u32[]', space=smem, size = 0x4, offset = 0x4, fixed_abs, tag = 'smem constant byte address 0x4 - core index']
  #allocation1 [shape = 'u32[144,128]{1,0:T(1,128)}', space=vmem, size = 0x12000, scoped, tag = 'internal scratch']
  #allocation2 [shape = 'f32[144,128]{1,0:T(8,128)}', space=vmem, size = 0x12000, scoped, tag = 'scratch operand']
  #allocation3 [shape = 'f32[64,128]{1,0:T(8,128)}', space=vmem, size = 0x8000, scoped, tag = 'scratch operand']
  #allocation4 [shape = 'f32[64,128]{1,0:T(8,128)}', space=vmem, size = 0x8000, scoped, tag = 'scratch operand']
  %s0 = inlined_call_operand.hbm [shape: f32[2,8], index: 0, kind: input, shape index: {}]
  %s1 = inlined_call_operand.hbm [shape: bf16[8,32], index: 1, kind: input, shape index: {}]
  %s2 = inlined_call_operand.vmem [shape: f32[1,32], index: 2, kind: input, shape index: {}]
  %s3 = inlined_call_operand.hbm [shape: bf16[32,64], index: 3, kind: input, shape index: {}]
  %s4 = inlined_call_operand.vmem [shape: f32[1,64], index: 4, kind: input, shape index: {}]
  %s5 = inlined_call_operand.hbm [shape: bf16[64,128], index: 5, kind: input, shape index: {}]
  %s6 = inlined_call_operand.vmem [shape: f32[1,128], index: 6, kind: input, shape index: {}]
  %s7 = inlined_call_operand.hbm [shape: bf16[256,128], index: 7, kind: input, shape index: {}]
  %s8 = inlined_call_operand.vmem [shape: f32[1,128], index: 8, kind: input, shape index: {}]
  %s9 = inlined_call_operand.hbm [shape: bf16[512,128], index: 9, kind: input, shape index: {}]
  %s10 = inlined_call_operand.vmem [shape: f32[1,128], index: 10, kind: input, shape index: {}]
  %s11 = inlined_call_operand.hbm [shape: bf16[512,128], index: 11, kind: input, shape index: {}]
  %s12 = inlined_call_operand.vmem [shape: f32[1,128], index: 12, kind: input, shape index: {}]
  %s13 = inlined_call_operand.hbm [shape: bf16[512,128], index: 13, kind: input, shape index: {}]
  %s14 = inlined_call_operand.vmem [shape: f32[1,128], index: 14, kind: input, shape index: {}]
  %s15 = inlined_call_operand.hbm [shape: bf16[512,128], index: 15, kind: input, shape index: {}]
  %s16 = inlined_call_operand.vmem [shape: f32[1,128], index: 16, kind: input, shape index: {}]
  %s17 = inlined_call_operand.hbm [shape: bf16[384,128], index: 17, kind: input, shape index: {}]
  %s18 = inlined_call_operand.vmem [shape: f32[128,128], index: 18, kind: output, shape index: {}]
  %s19 = sld [smem:[#allocation0]]
  $region122: #{forward.1} parent=0
    _
  %s21 = ssub.s32 1, %s19
  %s22 = scalar_select 0, %s21, %s19
  $region1: #{forward.1} parent=0
    #allocation5 [shape = 'u8[1024]{0}', space=vmem, size = 0x400, scoped, tag = 'input window, operand 0, single buffered']
    #allocation6 [shape = 's32[1]{0}', space=sflag, size = 0x4, scoped, tag = 'scoped memory for forward.1']
    #allocation7 [shape = 'u8[2048]{0}', space=vmem, size = 0x800, scoped, tag = 'input window, operand 1, single buffered']
    #allocation8 [shape = 's32[1]{0}', space=sflag, size = 0x4, scoped, tag = 'scoped memory for forward.1']
    #allocation9 [shape = 'u8[8192]{0}', space=vmem, size = 0x2000, scoped, tag = 'input window, operand 3, single buffered']
    #allocation10 [shape = 'u8[16384]{0}', space=vmem, size = 0x4000, scoped, tag = 'input window, operand 5, single buffered']
    #allocation11 [shape = 's32[1]{0}', space=sflag, size = 0x4, scoped, tag = 'scoped memory for forward.1']
    #allocation12 [shape = 'u8[65536]{0}', space=vmem, size = 0x10000, scoped, tag = 'input window, operand 7, single buffered']
    #allocation13 [shape = 'u8[131072]{0}', space=vmem, size = 0x20000, scoped, tag = 'input window, operand 9, single buffered']
    #allocation14 [shape = 's32[1]{0}', space=sflag, size = 0x4, scoped, tag = 'scoped memory for forward.1']
    #allocation15 [shape = 'u8[131072]{0}', space=vmem, size = 0x20000, scoped, tag = 'input window, operand 11, single buffered']
    #allocation16 [shape = 'u8[131072]{0}', space=vmem, size = 0x20000, scoped, tag = 'input window, operand 13, single buffered']
    #allocation17 [shape = 's32[1]{0}', space=sflag, size = 0x4, scoped, tag = 'scoped memory for forward.1']
    #allocation18 [shape = 'u8[131072]{0}', space=vmem, size = 0x20000, scoped, tag = 'input window, operand 15, single buffered']
    #allocation19 [shape = 'u8[98304]{0}', space=vmem, size = 0x18000, scoped, tag = 'input window, operand 17, single buffered']
    #allocation20 [shape = 's32[1]{0}', space=sflag, size = 0x4, scoped, tag = 'scoped memory for forward.1']
    %23 = vsyncpa [#allocation6], 0
    %24 = vsyncpa [#allocation8], 0
    %25 = vsyncpa [#allocation11], 0
    %26 = vsyncpa [#allocation14], 0
    %27 = vsyncpa [#allocation17], 0
    %28 = vsyncpa [#allocation20], 0
    // Predicated region
    $region2: #{forward.1} parent=1 // pred_check
      _
    $region3: #{forward.1} parent=1 // pred_check_branch
      %30 = sbr.rel (0) target = $region5
    $region4: #{forward.1} parent=1 // pred_region
      %s32 = ssub.s32 32, 32
      %33 = vsyncadd [#allocation6], %s32
      %s35 = sshll.u32 [#allocation5], 4
      %s36 = int_to_ptr.vmem [resolvable:$true] %s35
      %38 = dma.hbm_to_vmem [thread:$0]  %s0, 32, %s36, [#allocation6]
    $region5: #{forward.1} parent=1 // pred_fallthru
      _
    // Predicated region
    $region6: #{forward.1} parent=1 // pred_check
      _
    $region7: #{forward.1} parent=1 // pred_check_branch
      %40 = sbr.rel (0) target = $region9
    $region8: #{forward.1} parent=1 // pred_region
      %s42 = ssub.s32 64, 64
      %43 = vsyncadd [#allocation8], %s42
      %s45 = sshll.u32 [#allocation7], 4
      %s46 = int_to_ptr.vmem [resolvable:$true] %s45
      %48 = dma.hbm_to_vmem [thread:$0]  %s1, 64, %s46, [#allocation8]
    $region9: #{forward.1} parent=1 // pred_fallthru
      _
    // Predicated region
    $region10: #{forward.1} parent=1 // pred_check
      _
    $region11: #{forward.1} parent=1 // pred_check_branch
      %50 = sbr.rel (0) target = $region13
    $region12: #{forward.1} parent=1 // pred_region
      _
    $region13: #{forward.1} parent=1 // pred_fallthru
      _
    // Predicated region
    $region14: #{forward.1} parent=1 // pred_check
      _
    $region15: #{forward.1} parent=1 // pred_check_branch
      %52 = sbr.rel (0) target = $region17
    $region16: #{forward.1} parent=1 // pred_region
      %s54 = ssub.s32 256, 256
      %55 = vsyncadd [#allocation8], %s54
      %s56 = sshll.u32 [#allocation9], 4
      %s57 = int_to_ptr.vmem [resolvable:$true] %s56
      %62 = dma.hbm_to_vmem [thread:$0]  %s3, 256, %s57, [#allocation8], 64, 64, 4
    $region17: #{forward.1} parent=1 // pred_fallthru
      _
    // Predicated region
    $region18: #{forward.1} parent=1 // pred_check
      _
    $region19: #{forward.1} parent=1 // pred_check_branch
      %64 = sbr.rel (0) target = $region21
    $region20: #{forward.1} parent=1 // pred_region
      _
    $region21: #{forward.1} parent=1 // pred_fallthru
      _
    // Predicated region
    $region22: #{forward.1} parent=1 // pred_check
      _
    $region23: #{forward.1} parent=1 // pred_check_branch
      %66 = sbr.rel (0) target = $region25
    $region24: #{forward.1} parent=1 // pred_region
      %s68 = ssub.s32 512, 512
      %69 = vsyncadd [#allocation11], %s68
      %s70 = sshll.u32 [#allocation10], 4
      %s71 = int_to_ptr.vmem [resolvable:$true] %s70
      %76 = dma.hbm_to_vmem [thread:$0]  %s5, 512, %s71, [#allocation11], 64, 64, 4
    $region25: #{forward.1} parent=1 // pred_fallthru
      _
    // Predicated region
    $region26: #{forward.1} parent=1 // pred_check
      _
    $region27: #{forward.1} parent=1 // pred_check_branch
      %78 = sbr.rel (0) target = $region29
    $region28: #{forward.1} parent=1 // pred_region
      _
    $region29: #{forward.1} parent=1 // pred_fallthru
      _
    // Predicated region
    $region30: #{forward.1} parent=1 // pred_check
      _
    $region31: #{forward.1} parent=1 // pred_check_branch
      %80 = sbr.rel (0) target = $region33
    $region32: #{forward.1} parent=1 // pred_region
      %s82 = ssub.s32 2048, 2048
      %83 = vsyncadd [#allocation11], %s82
      %s84 = sshll.u32 [#allocation12], 4
      %s85 = int_to_ptr.vmem [resolvable:$true] %s84
      %90 = dma.hbm_to_vmem [thread:$0]  %s7, 2048, %s85, [#allocation11], 64, 64, 4
    $region33: #{forward.1} parent=1 // pred_fallthru
      _
    // Predicated region
    $region34: #{forward.1} parent=1 // pred_check
      _
    $region35: #{forward.1} parent=1 // pred_check_branch
      %92 = sbr.rel (0) target = $region37
    $region36: #{forward.1} parent=1 // pred_region
      _
    $region37: #{forward.1} parent=1 // pred_fallthru
      _
    // Predicated region
    $region38: #{forward.1} parent=1 // pred_check
      _
    $region39: #{forward.1} parent=1 // pred_check_branch
      %94 = sbr.rel (0) target = $region41
    $region40: #{forward.1} parent=1 // pred_region
      %s96 = ssub.s32 4096, 4096
      %97 = vsyncadd [#allocation14], %s96
      %s98 = sshll.u32 [#allocation13], 4
      %s99 = int_to_ptr.vmem [resolvable:$true] %s98
      %104 = dma.hbm_to_vmem [thread:$0]  %s9, 4096, %s99, [#allocation14], 64, 64, 4
    $region41: #{forward.1} parent=1 // pred_fallthru
      _
    // Predicated region
    $region42: #{forward.1} parent=1 // pred_check
      _
    $region43: #{forward.1} parent=1 // pred_check_branch
      %106 = sbr.rel (0) target = $region45
    $region44: #{forward.1} parent=1 // pred_region
      _
    $region45: #{forward.1} parent=1 // pred_fallthru
      _
    // Predicated region
    $region46: #{forward.1} parent=1 // pred_check
      _
    $region47: #{forward.1} parent=1 // pred_check_branch
      %108 = sbr.rel (0) target = $region49
    $region48: #{forward.1} parent=1 // pred_region
      %s110 = ssub.s32 4096, 4096
      %111 = vsyncadd [#allocation14], %s110
      %s112 = sshll.u32 [#allocation15], 4
      %s113 = int_to_ptr.vmem [resolvable:$true] %s112
      %118 = dma.hbm_to_vmem [thread:$0]  %s11, 4096, %s113, [#allocation14], 64, 64, 4
    $region49: #{forward.1} parent=1 // pred_fallthru
      _
    // Predicated region
    $region50: #{forward.1} parent=1 // pred_check
      _
    $region51: #{forward.1} parent=1 // pred_check_branch
      %120 = sbr.rel (0) target = $region53
    $region52: #{forward.1} parent=1 // pred_region
      _
    $region53: #{forward.1} parent=1 // pred_fallthru
      _
    // Predicated region
    $region54: #{forward.1} parent=1 // pred_check
      _
    $region55: #{forward.1} parent=1 // pred_check_branch
      %122 = sbr.rel (0) target = $region57
    $region56: #{forward.1} parent=1 // pred_region
      %s124 = ssub.s32 4096, 4096
      %125 = vsyncadd [#allocation17], %s124
      %s126 = sshll.u32 [#allocation16], 4
      %s127 = int_to_ptr.vmem [resolvable:$true] %s126
      %132 = dma.hbm_to_vmem [thread:$0]  %s13, 4096, %s127, [#allocation17], 64, 64, 4
    $region57: #{forward.1} parent=1 // pred_fallthru
      _
    // Predicated region
    $region58: #{forward.1} parent=1 // pred_check
      _
    $region59: #{forward.1} parent=1 // pred_check_branch
      %134 = sbr.rel (0) target = $region61
    $region60: #{forward.1} parent=1 // pred_region
      _
    $region61: #{forward.1} parent=1 // pred_fallthru
      _
    // Predicated region
    $region62: #{forward.1} parent=1 // pred_check
      _
    $region63: #{forward.1} parent=1 // pred_check_branch
      %136 = sbr.rel (0) target = $region65
    $region64: #{forward.1} parent=1 // pred_region
      %s138 = ssub.s32 4096, 4096
      %139 = vsyncadd [#allocation17], %s138
      %s140 = sshll.u32 [#allocation18], 4
      %s141 = int_to_ptr.vmem [resolvable:$true] %s140
      %146 = dma.hbm_to_vmem [thread:$0]  %s15, 4096, %s141, [#allocation17], 64, 64, 4
    $region65: #{forward.1} parent=1 // pred_fallthru
      _
    // Predicated region
    $region66: #{forward.1} parent=1 // pred_check
      _
    $region67: #{forward.1} parent=1 // pred_check_branch
      %148 = sbr.rel (0) target = $region69
    $region68: #{forward.1} parent=1 // pred_region
      _
    $region69: #{forward.1} parent=1 // pred_fallthru
      _
    // Predicated region
    $region70: #{forward.1} parent=1 // pred_check
      _
    $region71: #{forward.1} parent=1 // pred_check_branch
      %150 = sbr.rel (0) target = $region73
    $region72: #{forward.1} parent=1 // pred_region
      %s152 = ssub.s32 3072, 3072
      %153 = vsyncadd [#allocation20], %s152
      %s154 = sshll.u32 [#allocation19], 4
      %s155 = int_to_ptr.vmem [resolvable:$true] %s154
      %160 = dma.hbm_to_vmem [thread:$0]  %s17, 3072, %s155, [#allocation20], 64, 64, 4
    $region73: #{forward.1} parent=1 // pred_fallthru
      _
    // Predicated region
    $region74: #{forward.1} parent=1 // pred_check
      _
    $region75: #{forward.1} parent=1 // pred_check_branch
      %162 = sbr.rel (0) target = $region77
    $region76: #{forward.1} parent=1 // pred_region
      %163 = dma.done [#allocation6], 32
    $region77: #{forward.1} parent=1 // pred_fallthru
      _
    // Predicated region
    $region78: #{forward.1} parent=1 // pred_check
      _
    $region79: #{forward.1} parent=1 // pred_check_branch
      %165 = sbr.rel (0) target = $region81
    $region80: #{forward.1} parent=1 // pred_region
      %166 = dma.done [#allocation8], 64
    $region81: #{forward.1} parent=1 // pred_fallthru
      _
    // Predicated region
    $region82: #{forward.1} parent=1 // pred_check
      _
    $region83: #{forward.1} parent=1 // pred_check_branch
      %168 = sbr.rel (0) target = $region85
    $region84: #{forward.1} parent=1 // pred_region
      %169 = dma.done [#allocation8], 256
    $region85: #{forward.1} parent=1 // pred_fallthru
      _
    // Predicated region
    $region86: #{forward.1} parent=1 // pred_check
      _
    $region87: #{forward.1} parent=1 // pred_check_branch
      %171 = sbr.rel (0) target = $region89
    $region88: #{forward.1} parent=1 // pred_region
      %172 = dma.done [#allocation11], 512
    $region89: #{forward.1} parent=1 // pred_fallthru
      _
    // Predicated region
    $region90: #{forward.1} parent=1 // pred_check
      _
    $region91: #{forward.1} parent=1 // pred_check_branch
      %174 = sbr.rel (0) target = $region93
    $region92: #{forward.1} parent=1 // pred_region
      %175 = dma.done [#allocation11], 2048
    $region93: #{forward.1} parent=1 // pred_fallthru
      _
    // Predicated region
    $region94: #{forward.1} parent=1 // pred_check
      _
    $region95: #{forward.1} parent=1 // pred_check_branch
      %177 = sbr.rel (0) target = $region97
    $region96: #{forward.1} parent=1 // pred_region
      %178 = dma.done [#allocation14], 4096
    $region97: #{forward.1} parent=1 // pred_fallthru
      _
    // Predicated region
    $region98: #{forward.1} parent=1 // pred_check
      _
    $region99: #{forward.1} parent=1 // pred_check_branch
      %180 = sbr.rel (0) target = $region101
    $region100: #{forward.1} parent=1 // pred_region
      %181 = dma.done [#allocation14], 4096
    $region101: #{forward.1} parent=1 // pred_fallthru
      _
    // Predicated region
    $region102: #{forward.1} parent=1 // pred_check
      _
    $region103: #{forward.1} parent=1 // pred_check_branch
      %183 = sbr.rel (0) target = $region105
    $region104: #{forward.1} parent=1 // pred_region
      %184 = dma.done [#allocation17], 4096
    $region105: #{forward.1} parent=1 // pred_fallthru
      _
    // Predicated region
    $region106: #{forward.1} parent=1 // pred_check
      _
    $region107: #{forward.1} parent=1 // pred_check_branch
      %186 = sbr.rel (0) target = $region109
    $region108: #{forward.1} parent=1 // pred_region
      %187 = dma.done [#allocation17], 4096
    $region109: #{forward.1} parent=1 // pred_fallthru
      _
    // Predicated region
    $region110: #{forward.1} parent=1 // pred_check
      _
    $region111: #{forward.1} parent=1 // pred_check_branch
      %189 = sbr.rel (0) target = $region113
    $region112: #{forward.1} parent=1 // pred_region
      %190 = dma.done [#allocation20], 3072
    $region113: #{forward.1} parent=1 // pred_fallthru
      _
    %v192 = vld [vmem:[#allocation5] sm:$0x3]
    %v193 = vpack.c.bf16 %v192, %v192
    %v194 = vld [vmem:[#allocation7] sm:$0xf]
    %v195 = vld [vmem:[%s2] sm:$0x1]
    %v197 = vlaneseq
    %v198 = vshrl.u32 %v197, 7
    %v199 = vsub.s32 0, %v198
    %v200 = vrot.slane %v195, %v199
    %vm202 = vcmask 64512
    %v204 = vsel %vm202, %v193, 0
    %vm206 = vcmask 1043456
    %v208 = vsel %vm206, %v194, 0
    %210 = vmatprep.subr.bf16.mxu0 0
    %211 = vmatpush1.bf16.msra.mxu0 0
    %212 = vmatprep.subr.bf16.mxu0 0
    %213 = vmatpush1.bf16.msra.mxu0 0
    %214 = vmatprep.subr.bf16.mxu0 0
    %215 = vmatpush1.bf16.msra.mxu0 0
    %216 = vmatprep.subr.bf16.mxu0 0
    %217 = vmatpush1.bf16.msra.mxu0 0
    %218 = vmatprep.subr.bf16.mxu0 0
    %219 = vmatpush1.bf16.msra.mxu0 0
    %220 = vmatprep.subr.bf16.mxu0 0
    %221 = vmatpush1.bf16.msra.mxu0 0
    %222 = vmatprep.subr.bf16.mxu0 0
    %223 = vmatpush1.bf16.msra.mxu0 0
    %224 = vmatprep.subr.bf16.mxu0 0
    %225 = vmatpush1.bf16.msra.mxu0 %v208
    %226 = vmatprep.subr.bf16.mxu0 0
    %227 = vmatpush2.bf16.msra.mxu0 0
    %228 = vmatprep.subr.bf16.mxu0 0
    %229 = vmatpush2.bf16.msra.mxu0 0
    %230 = vmatprep.subr.bf16.mxu0 0
    %231 = vmatpush2.bf16.msra.mxu0 0
    %232 = vmatprep.subr.bf16.mxu0 0
    %233 = vmatpush2.bf16.msra.mxu0 0
    %234 = vmatprep.subr.bf16.mxu0 0
    %235 = vmatpush2.bf16.msra.mxu0 0
    %236 = vmatprep.subr.bf16.mxu0 0
    %237 = vmatpush2.bf16.msra.mxu0 0
    %238 = vmatprep.subr.bf16.mxu0 0
    %239 = vmatpush2.bf16.msra.mxu0 0
    %240 = vmatprep.subr.bf16.mxu0 0
    %241 = vmatpush2.bf16.msra.mxu0 0
    %242 = vmatprep.mubr.bf16.mxu0 0
    %243 = vmatmul.mubr.bf16.gmra.mxu0 %v204
    %v244 = vpop.f32.mrf.mxu0
    %v245 = vadd.f32 %v200, %v244
    %v246 = vpop.f32.mrf.mxu0
    %v247 = vpop.f32.mrf.mxu0
    %v248 = vpop.f32.mrf.mxu0
    %249 = vdwg.mxu0
    %v250 = vmul.f32 %v245, 0.5
    %v251 = vmul.f32 %v245, 0.044715
    %v252 = vmul.f32 %v251, %v245
    %v253 = vmul.f32 %v252, %v245
    %v254 = vadd.f32 %v245, %v253
    %v255 = vmul.f32 %v254, 0.7978846
    %v256 = vtanh.pop %v255
    %v257 = vadd.f32 %v256, 1.0
    %v258 = vmul.f32 %v250, %v257
    %v259 = vpack.c.bf16 %v258, %v258
    %v260 = vld [vmem:[#allocation9] sm:$0xf]
    %v261 = vld [vmem:[#allocation9 + $0x4] sm:$0xf]
    %v262 = vld [vmem:[#allocation9 + $0x8] sm:$0xf]
    %v263 = vld [vmem:[#allocation9 + $0xc] sm:$0xf]
    %v264 = vld [vmem:[%s4] sm:$0x1]
    %v266 = vlaneseq
    %v267 = vshrl.u32 %v266, 7
    %v268 = vsub.s32 0, %v267
    %v269 = vrot.slane %v264, %v268
    %v275 = vunpack.c.l.b16 %v260
    %v276 = vunpack.c.l.b16 %v261
    %v277 = vunpack.c.l.b16 %v262
    %v278 = vunpack.c.l.b16 %v263
    %v279 = vpack.c.b16 %v276, %v275
    %v280 = vpack.c.b16 %v278, %v277
    %vm283 = vcmask 261120
    %v285 = vsel %vm283, %v259, 0
    %287 = vmatprep.subr.bf16.mxu0 0
    %288 = vmatpush1.bf16.msra.mxu0 0
    %289 = vmatprep.subr.bf16.mxu0 0
    %290 = vmatpush1.bf16.msra.mxu0 0
    %291 = vmatprep.subr.bf16.mxu0 0
    %292 = vmatpush1.bf16.msra.mxu0 0
    %293 = vmatprep.subr.bf16.mxu0 0
    %294 = vmatpush1.bf16.msra.mxu0 0
    %295 = vmatprep.subr.bf16.mxu0 0
    %296 = vmatpush1.bf16.msra.mxu0 0
    %297 = vmatprep.subr.bf16.mxu0 0
    %298 = vmatpush1.bf16.msra.mxu0 0
    %299 = vmatprep.subr.bf16.mxu0 0
    %300 = vmatpush1.bf16.msra.mxu0 %v280
    %301 = vmatprep.subr.bf16.mxu0 0
    %302 = vmatpush1.bf16.msra.mxu0 %v279
    %303 = vmatprep.subr.bf16.mxu0 0
    %304 = vmatpush2.bf16.msra.mxu0 0
    %305 = vmatprep.subr.bf16.mxu0 0
    %306 = vmatpush2.bf16.msra.mxu0 0
    %307 = vmatprep.subr.bf16.mxu0 0
    %308 = vmatpush2.bf16.msra.mxu0 0
    %309 = vmatprep.subr.bf16.mxu0 0
    %310 = vmatpush2.bf16.msra.mxu0 0
    %311 = vmatprep.subr.bf16.mxu0 0
    %312 = vmatpush2.bf16.msra.mxu0 0
    %313 = vmatprep.subr.bf16.mxu0 0
    %314 = vmatpush2.bf16.msra.mxu0 0
    %315 = vmatprep.subr.bf16.mxu0 0
    %316 = vmatpush2.bf16.msra.mxu0 0
    %317 = vmatprep.subr.bf16.mxu0 0
    %318 = vmatpush2.bf16.msra.mxu0 0
    %319 = vmatprep.mubr.bf16.mxu0 0
    %320 = vmatmul.mubr.bf16.gmra.mxu0 %v285
    %v321 = vpop.f32.mrf.mxu0
    %v322 = vadd.f32 %v269, %v321
    %v323 = vpop.f32.mrf.mxu0
    %v324 = vpop.f32.mrf.mxu0
    %v325 = vpop.f32.mrf.mxu0
    %326 = vdwg.mxu0
    %v327 = vmul.f32 %v322, 0.5
    %v328 = vmul.f32 %v322, 0.044715
    %v329 = vmul.f32 %v328, %v322
    %v330 = vmul.f32 %v329, %v322
    %v331 = vadd.f32 %v322, %v330
    %v332 = vmul.f32 %v331, 0.7978846
    %v333 = vtanh.pop %v332
    %v334 = vadd.f32 %v333, 1.0
    %v335 = vmul.f32 %v327, %v334
    %v336 = vpack.c.bf16 %v335, %v335
    %v337 = vld [vmem:[#allocation10] sm:$0xf]
    %v338 = vld [vmem:[#allocation10 + $0x4] sm:$0xf]
    %v339 = vld [vmem:[#allocation10 + $0x8] sm:$0xf]
    %v340 = vld [vmem:[#allocation10 + $0xc] sm:$0xf]
    %v341 = vld [vmem:[#allocation10 + $0x10] sm:$0xf]
    %v342 = vld [vmem:[#allocation10 + $0x14] sm:$0xf]
    %v343 = vld [vmem:[#allocation10 + $0x18] sm:$0xf]
    %v344 = vld [vmem:[#allocation10 + $0x1c] sm:$0xf]
    %v345 = vld [vmem:[%s6] sm:$0x1]
    %v347 = vlaneseq
    %v348 = vshrl.u32 %v347, 7
    %v349 = vsub.s32 0, %v348
    %v350 = vrot.slane %v345, %v349
    %v360 = vunpack.c.l.b16 %v337
    %v361 = vunpack.c.l.b16 %v338
    %v362 = vunpack.c.l.b16 %v339
    %v363 = vunpack.c.l.b16 %v340
    %v364 = vunpack.c.l.b16 %v341
    %v365 = vunpack.c.l.b16 %v342
    %v366 = vunpack.c.l.b16 %v343
    %v367 = vunpack.c.l.b16 %v344
    %v368 = vpack.c.b16 %v361, %v360
    %v369 = vpack.c.b16 %v363, %v362
    %v370 = vpack.c.b16 %v365, %v364
    %v371 = vpack.c.b16 %v367, %v366
    %vm376 = vcmask 523264
    %v378 = vsel %vm376, %v336, 0
    %380 = vmatprep.subr.bf16.mxu0 0
    %381 = vmatpush1.bf16.msra.mxu0 0
    %382 = vmatprep.subr.bf16.mxu0 0
    %383 = vmatpush1.bf16.msra.mxu0 0
    %384 = vmatprep.subr.bf16.mxu0 0
    %385 = vmatpush1.bf16.msra.mxu0 0
    %386 = vmatprep.subr.bf16.mxu0 0
    %387 = vmatpush1.bf16.msra.mxu0 0
    %388 = vmatprep.subr.bf16.mxu0 0
    %389 = vmatpush1.bf16.msra.mxu0 %v371
    %390 = vmatprep.subr.bf16.mxu0 0
    %391 = vmatpush1.bf16.msra.mxu0 %v370
    %392 = vmatprep.subr.bf16.mxu0 0
    %393 = vmatpush1.bf16.msra.mxu0 %v369
    %394 = vmatprep.subr.bf16.mxu0 0
    %395 = vmatpush1.bf16.msra.mxu0 %v368
    %396 = vmatprep.subr.bf16.mxu0 0
    %397 = vmatpush2.bf16.msra.mxu0 0
    %398 = vmatprep.subr.bf16.mxu0 0
    %399 = vmatpush2.bf16.msra.mxu0 0
    %400 = vmatprep.subr.bf16.mxu0 0
    %401 = vmatpush2.bf16.msra.mxu0 0
    %402 = vmatprep.subr.bf16.mxu0 0
    %403 = vmatpush2.bf16.msra.mxu0 0
    %404 = vmatprep.subr.bf16.mxu0 0
    %405 = vmatpush2.bf16.msra.mxu0 0
    %406 = vmatprep.subr.bf16.mxu0 0
    %407 = vmatpush2.bf16.msra.mxu0 0
    %408 = vmatprep.subr.bf16.mxu0 0
    %409 = vmatpush2.bf16.msra.mxu0 0
    %410 = vmatprep.subr.bf16.mxu0 0
    %411 = vmatpush2.bf16.msra.mxu0 0
    %412 = vmatprep.mubr.bf16.mxu0 0
    %413 = vmatmul.mubr.bf16.gmra.mxu0 %v378
    %v414 = vpop.f32.mrf.mxu0
    %v415 = vadd.f32 %v350, %v414
    %v416 = vpop.f32.mrf.mxu0
    %v417 = vpop.f32.mrf.mxu0
    %v418 = vpop.f32.mrf.mxu0
    %419 = vdwg.mxu0
    %v420 = vmul.f32 %v415, 0.5
    %v421 = vmul.f32 %v415, 0.044715
    %v422 = vmul.f32 %v421, %v415
    %v423 = vmul.f32 %v422, %v415
    %v424 = vadd.f32 %v415, %v423
    %v425 = vmul.f32 %v424, 0.7978846
    %v426 = vtanh.pop %v425
    %v427 = vadd.f32 %v426, 1.0
    %v428 = vmul.f32 %v420, %v427
    %vm429 = vcmask 516096
    %430 = vst.msk [vmem:[#allocation2 + $0x8] sm:$0x1] %vm429, %v428
    %432 = vrot.lane.b32.xlu0 %v428, 64
    %v433 = vpop.permute.xlu0 %432
    %435 = vst.msk [vmem:[#allocation2 + $0x9] sm:$0x1] %vm429, %v433
    %vm436 = vcmask 517121
    %437 = vst.msk [vmem:[#allocation2 + $0x9] sm:$0x2] %vm436, %v428
    %438 = vst.msk [vmem:[#allocation2 + $0xa] sm:$0x2] %vm436, %v433
    %v439 = vld [vmem:[#allocation2 + $0x8] sm:$0xf]
    %v440 = vlaneseq
    %v441 = vshrl.u32 %v440, 7
    %vm442 = vcmp.lt.s32.totalorder %v441, 0
    %v443 = vsub.s32 0, %v441
    %v444 = vsel %vm442, %v443, %v441
    %v445 = vshrl.u32 %v444, 1
    %v446 = vand.u32 %v444, 1
    %v447 = vsub.s32 0, %v446
    %v448 = vsel %vm442, %v447, %v446
    %vm449 = vcmp.ne.s32.totalorder %v448, 0
    %vm450 = vcmp.lt.s32.totalorder %v448, 0
    %vm451 = vmand %vm450, %vm449
    %v452 = vadd.s32 %v448, 2
    %v453 = vsel %vm451, %v452, %v448
    %v454 = vadd.s32 %v453, 4294967295
    %vm455 = vcmp.ge.s32.totalorder %v454, 0
    %vm456 = vcmp.lt.s32.totalorder %v454, 2
    %vm457 = vmand %vm455, %vm456
    %v458 = vld [vmem:[#allocation2 + $0x7] sm:$0xf]
    %v459 = vsel %vm457, %v458, 0.0
    %v460 = vadd.s32 %v453, 1
    %vm461 = vcmp.ge.s32.totalorder %v460, 0
    %vm462 = vcmp.lt.s32.totalorder %v460, 2
    %vm463 = vmand %vm461, %vm462
    %v464 = vld [vmem:[#allocation2 + $0x9] sm:$0xf]
    %v465 = vsel %vm463, %v464, 0.0
    %v466 = vpack.c.bf16 %v439, %v439
    %v467 = vpack.c.bf16 %v459, %v459
    %v468 = vpack.c.bf16 %v465, %v465
    %v469 = vld [vmem:[#allocation12] sm:$0xf]
    %v470 = vld [vmem:[#allocation12 + $0x4] sm:$0xf]
    %v471 = vld [vmem:[#allocation12 + $0x8] sm:$0xf]
    %v472 = vld [vmem:[#allocation12 + $0xc] sm:$0xf]
    %v473 = vld [vmem:[#allocation12 + $0x10] sm:$0xf]
    %v474 = vld [vmem:[#allocation12 + $0x14] sm:$0xf]
    %v475 = vld [vmem:[#allocation12 + $0x18] sm:$0xf]
    %v476 = vld [vmem:[#allocation12 + $0x1c] sm:$0xf]
    %v477 = vld [vmem:[#allocation12 + $0x20] sm:$0xf]
    %v478 = vld [vmem:[#allocation12 + $0x24] sm:$0xf]
    %v479 = vld [vmem:[#allocation12 + $0x28] sm:$0xf]
    %v480 = vld [vmem:[#allocation12 + $0x2c] sm:$0xf]
    %v481 = vld [vmem:[#allocation12 + $0x30] sm:$0xf]
    %v482 = vld [vmem:[#allocation12 + $0x34] sm:$0xf]
    %v483 = vld [vmem:[#allocation12 + $0x38] sm:$0xf]
    %v484 = vld [vmem:[#allocation12 + $0x3c] sm:$0xf]
    %v485 = vld [vmem:[#allocation12 + $0x40] sm:$0xf]
    %v486 = vld [vmem:[#allocation12 + $0x44] sm:$0xf]
    %v487 = vld [vmem:[#allocation12 + $0x48] sm:$0xf]
    %v488 = vld [vmem:[#allocation12 + $0x4c] sm:$0xf]
    %v489 = vld [vmem:[#allocation12 + $0x50] sm:$0xf]
    %v490 = vld [vmem:[#allocation12 + $0x54] sm:$0xf]
    %v491 = vld [vmem:[#allocation12 + $0x58] sm:$0xf]
    %v492 = vld [vmem:[#allocation12 + $0x5c] sm:$0xf]
    %v493 = vld [vmem:[#allocation12 + $0x60] sm:$0xf]
    %v494 = vld [vmem:[#allocation12 + $0x64] sm:$0xf]
    %v495 = vld [vmem:[#allocation12 + $0x68] sm:$0xf]
    %v496 = vld [vmem:[#allocation12 + $0x6c] sm:$0xf]
    %v497 = vld [vmem:[#allocation12 + $0x70] sm:$0xf]
    %v498 = vld [vmem:[#allocation12 + $0x74] sm:$0xf]
    %v499 = vld [vmem:[#allocation12 + $0x78] sm:$0xf]
    %v500 = vld [vmem:[#allocation12 + $0x7c] sm:$0xf]
    %v501 = vld [vmem:[%s8] sm:$0x1]
    %v510 = vunpack.c.l.b16 %v477
    %v511 = vunpack.c.l.b16 %v478
    %v512 = vunpack.c.l.b16 %v479
    %v513 = vunpack.c.l.b16 %v480
    %v514 = vunpack.c.l.b16 %v481
    %v515 = vunpack.c.l.b16 %v482
    %v516 = vunpack.c.l.b16 %v483
    %v517 = vunpack.c.l.b16 %v484
    %v518 = vpack.c.b16 %v511, %v510
    %v519 = vpack.c.b16 %v513, %v512
    %v520 = vpack.c.b16 %v515, %v514
    %v521 = vpack.c.b16 %v517, %v516
    %v527 = vsel %vm376, %v466, 0
    %529 = vmatprep.subr.bf16.mxu0 0
    %530 = vmatpush1.bf16.msra.mxu0 0
    %531 = vmatprep.subr.bf16.mxu0 0
    %532 = vmatpush1.bf16.msra.mxu0 0
    %533 = vmatprep.subr.bf16.mxu0 0
    %534 = vmatpush1.bf16.msra.mxu0 0
    %535 = vmatprep.subr.bf16.mxu0 0
    %536 = vmatpush1.bf16.msra.mxu0 0
    %537 = vmatprep.subr.bf16.mxu0 0
    %538 = vmatpush1.bf16.msra.mxu0 %v521
    %539 = vmatprep.subr.bf16.mxu0 0
    %540 = vmatpush1.bf16.msra.mxu0 %v520
    %541 = vmatprep.subr.bf16.mxu0 0
    %542 = vmatpush1.bf16.msra.mxu0 %v519
    %543 = vmatprep.subr.bf16.mxu0 0
    %544 = vmatpush1.bf16.msra.mxu0 %v518
    %545 = vmatprep.subr.bf16.mxu0 0
    %546 = vmatpush2.bf16.msra.mxu0 0
    %547 = vmatprep.subr.bf16.mxu0 0
    %548 = vmatpush2.bf16.msra.mxu0 0
    %549 = vmatprep.subr.bf16.mxu0 0
    %550 = vmatpush2.bf16.msra.mxu0 0
    %551 = vmatprep.subr.bf16.mxu0 0
    %552 = vmatpush2.bf16.msra.mxu0 0
    %553 = vmatprep.subr.bf16.mxu0 0
    %554 = vmatpush2.bf16.msra.mxu0 0
    %555 = vmatprep.subr.bf16.mxu0 0
    %556 = vmatpush2.bf16.msra.mxu0 0
    %557 = vmatprep.subr.bf16.mxu0 0
    %558 = vmatpush2.bf16.msra.mxu0 0
    %559 = vmatprep.subr.bf16.mxu0 0
    %560 = vmatpush2.bf16.msra.mxu0 0
    %561 = vmatprep.mubr.bf16.mxu0 0
    %562 = vmatmul.mubr.bf16.gmra.mxu0 %v527
    %v563 = vpop.f32.mrf.mxu0
    %v564 = vadd.f32 0.0, %v563
    %v565 = vpop.f32.mrf.mxu0
    %v566 = vpop.f32.mrf.mxu0
    %v567 = vpop.f32.mrf.mxu0
    %568 = vdwg.mxu0
    %v577 = vunpack.c.l.b16 %v469
    %v578 = vunpack.c.l.b16 %v470
    %v579 = vunpack.c.l.b16 %v471
    %v580 = vunpack.c.l.b16 %v472
    %v581 = vunpack.c.l.b16 %v473
    %v582 = vunpack.c.l.b16 %v474
    %v583 = vunpack.c.l.b16 %v475
    %v584 = vunpack.c.l.b16 %v476
    %v585 = vpack.c.b16 %v578, %v577
    %v586 = vpack.c.b16 %v580, %v579
    %v587 = vpack.c.b16 %v582, %v581
    %v588 = vpack.c.b16 %v584, %v583
    %v594 = vsel %vm376, %v467, 0
    %596 = vmatprep.subr.bf16.mxu0 0
    %597 = vmatpush1.bf16.msra.mxu0 0
    %598 = vmatprep.subr.bf16.mxu0 0
    %599 = vmatpush1.bf16.msra.mxu0 0
    %600 = vmatprep.subr.bf16.mxu0 0
    %601 = vmatpush1.bf16.msra.mxu0 0
    %602 = vmatprep.subr.bf16.mxu0 0
    %603 = vmatpush1.bf16.msra.mxu0 0
    %604 = vmatprep.subr.bf16.mxu0 0
    %605 = vmatpush1.bf16.msra.mxu0 %v588
    %606 = vmatprep.subr.bf16.mxu0 0
    %607 = vmatpush1.bf16.msra.mxu0 %v587
    %608 = vmatprep.subr.bf16.mxu0 0
    %609 = vmatpush1.bf16.msra.mxu0 %v586
    %610 = vmatprep.subr.bf16.mxu0 0
    %611 = vmatpush1.bf16.msra.mxu0 %v585
    %612 = vmatprep.subr.bf16.mxu0 0
    %613 = vmatpush2.bf16.msra.mxu0 0
    %614 = vmatprep.subr.bf16.mxu0 0
    %615 = vmatpush2.bf16.msra.mxu0 0
    %616 = vmatprep.subr.bf16.mxu0 0
    %617 = vmatpush2.bf16.msra.mxu0 0
    %618 = vmatprep.subr.bf16.mxu0 0
    %619 = vmatpush2.bf16.msra.mxu0 0
    %620 = vmatprep.subr.bf16.mxu0 0
    %621 = vmatpush2.bf16.msra.mxu0 0
    %622 = vmatprep.subr.bf16.mxu0 0
    %623 = vmatpush2.bf16.msra.mxu0 0
    %624 = vmatprep.subr.bf16.mxu0 0
    %625 = vmatpush2.bf16.msra.mxu0 0
    %626 = vmatprep.subr.bf16.mxu0 0
    %627 = vmatpush2.bf16.msra.mxu0 0
    %628 = vmatprep.mubr.bf16.mxu0 0
    %629 = vmatmul.mubr.bf16.gmra.mxu0 %v594
    %v630 = vpop.f32.mrf.mxu0
    %v631 = vadd.f32 %v564, %v630
    %v632 = vpop.f32.mrf.mxu0
    %v633 = vpop.f32.mrf.mxu0
    %v634 = vpop.f32.mrf.mxu0
    %635 = vdwg.mxu0
    %v644 = vunpack.c.l.b16 %v493
    %v645 = vunpack.c.l.b16 %v494
    %v646 = vunpack.c.l.b16 %v495
    %v647 = vunpack.c.l.b16 %v496
    %v648 = vunpack.c.l.b16 %v497
    %v649 = vunpack.c.l.b16 %v498
    %v650 = vunpack.c.l.b16 %v499
    %v651 = vunpack.c.l.b16 %v500
    %v652 = vpack.c.b16 %v645, %v644
    %v653 = vpack.c.b16 %v647, %v646
    %v654 = vpack.c.b16 %v649, %v648
    %v655 = vpack.c.b16 %v651, %v650
    %v661 = vsel %vm376, %v468, 0
    %663 = vmatprep.subr.bf16.mxu0 0
    %664 = vmatpush1.bf16.msra.mxu0 0
    %665 = vmatprep.subr.bf16.mxu0 0
    %666 = vmatpush1.bf16.msra.mxu0 0
    %667 = vmatprep.subr.bf16.mxu0 0
    %668 = vmatpush1.bf16.msra.mxu0 0
    %669 = vmatprep.subr.bf16.mxu0 0
    %670 = vmatpush1.bf16.msra.mxu0 0
    %671 = vmatprep.subr.bf16.mxu0 0
    %672 = vmatpush1.bf16.msra.mxu0 %v655
    %673 = vmatprep.subr.bf16.mxu0 0
    %674 = vmatpush1.bf16.msra.mxu0 %v654
    %675 = vmatprep.subr.bf16.mxu0 0
    %676 = vmatpush1.bf16.msra.mxu0 %v653
    %677 = vmatprep.subr.bf16.mxu0 0
    %678 = vmatpush1.bf16.msra.mxu0 %v652
    %679 = vmatprep.subr.bf16.mxu0 0
    %680 = vmatpush2.bf16.msra.mxu0 0
    %681 = vmatprep.subr.bf16.mxu0 0
    %682 = vmatpush2.bf16.msra.mxu0 0
    %683 = vmatprep.subr.bf16.mxu0 0
    %684 = vmatpush2.bf16.msra.mxu0 0
    %685 = vmatprep.subr.bf16.mxu0 0
    %686 = vmatpush2.bf16.msra.mxu0 0
    %687 = vmatprep.subr.bf16.mxu0 0
    %688 = vmatpush2.bf16.msra.mxu0 0
    %689 = vmatprep.subr.bf16.mxu0 0
    %690 = vmatpush2.bf16.msra.mxu0 0
    %691 = vmatprep.subr.bf16.mxu0 0
    %692 = vmatpush2.bf16.msra.mxu0 0
    %693 = vmatprep.subr.bf16.mxu0 0
    %694 = vmatpush2.bf16.msra.mxu0 0
    %695 = vmatprep.mubr.bf16.mxu0 0
    %696 = vmatmul.mubr.bf16.gmra.mxu0 %v661
    %v697 = vpop.f32.mrf.mxu0
    %v698 = vadd.f32 0.0, %v697
    %v699 = vpop.f32.mrf.mxu0
    %v700 = vpop.f32.mrf.mxu0
    %v701 = vpop.f32.mrf.mxu0
    %702 = vdwg.mxu0
    %v711 = vunpack.c.l.b16 %v485
    %v712 = vunpack.c.l.b16 %v486
    %v713 = vunpack.c.l.b16 %v487
    %v714 = vunpack.c.l.b16 %v488
    %v715 = vunpack.c.l.b16 %v489
    %v716 = vunpack.c.l.b16 %v490
    %v717 = vunpack.c.l.b16 %v491
    %v718 = vunpack.c.l.b16 %v492
    %v719 = vpack.c.b16 %v712, %v711
    %v720 = vpack.c.b16 %v714, %v713
    %v721 = vpack.c.b16 %v716, %v715
    %v722 = vpack.c.b16 %v718, %v717
    %727 = vmatprep.subr.bf16.mxu0 0
    %728 = vmatpush1.bf16.msra.mxu0 0
    %729 = vmatprep.subr.bf16.mxu0 0
    %730 = vmatpush1.bf16.msra.mxu0 0
    %731 = vmatprep.subr.bf16.mxu0 0
    %732 = vmatpush1.bf16.msra.mxu0 0
    %733 = vmatprep.subr.bf16.mxu0 0
    %734 = vmatpush1.bf16.msra.mxu0 0
    %735 = vmatprep.subr.bf16.mxu0 0
    %736 = vmatpush1.bf16.msra.mxu0 %v722
    %737 = vmatprep.subr.bf16.mxu0 0
    %738 = vmatpush1.bf16.msra.mxu0 %v721
    %739 = vmatprep.subr.bf16.mxu0 0
    %740 = vmatpush1.bf16.msra.mxu0 %v720
    %741 = vmatprep.subr.bf16.mxu0 0
    %742 = vmatpush1.bf16.msra.mxu0 %v719
    %743 = vmatprep.subr.bf16.mxu0 0
    %744 = vmatpush2.bf16.msra.mxu0 0
    %745 = vmatprep.subr.bf16.mxu0 0
    %746 = vmatpush2.bf16.msra.mxu0 0
    %747 = vmatprep.subr.bf16.mxu0 0
    %748 = vmatpush2.bf16.msra.mxu0 0
    %749 = vmatprep.subr.bf16.mxu0 0
    %750 = vmatpush2.bf16.msra.mxu0 0
    %751 = vmatprep.subr.bf16.mxu0 0
    %752 = vmatpush2.bf16.msra.mxu0 0
    %753 = vmatprep.subr.bf16.mxu0 0
    %754 = vmatpush2.bf16.msra.mxu0 0
    %755 = vmatprep.subr.bf16.mxu0 0
    %756 = vmatpush2.bf16.msra.mxu0 0
    %757 = vmatprep.subr.bf16.mxu0 0
    %758 = vmatpush2.bf16.msra.mxu0 0
    %759 = vmatprep.mubr.bf16.mxu0 0
    %760 = vmatmul.mubr.bf16.gmra.mxu0 %v527
    %v761 = vpop.f32.mrf.mxu0
    %v762 = vadd.f32 %v698, %v761
    %v763 = vpop.f32.mrf.mxu0
    %v764 = vpop.f32.mrf.mxu0
    %v765 = vpop.f32.mrf.mxu0
    %766 = vdwg.mxu0
    %v768 = vlaneseq
    %v769 = vshrl.u32 %v768, 7
    %v770 = vsub.s32 0, %v769
    %v771 = vrot.slane %v501, %v770
    %v773 = vadd.f32 %v631, %v771
    %v774 = vmul.f32 %v773, 0.5
    %v775 = vmul.f32 %v773, 0.044715
    %v776 = vmul.f32 %v775, %v773
    %v777 = vmul.f32 %v776, %v773
    %v778 = vadd.f32 %v773, %v777
    %v779 = vmul.f32 %v778, 0.7978846
    %v780 = vtanh.pop %v779
    %v781 = vadd.f32 %v780, 1.0
    %v782 = vmul.f32 %v774, %v781
    %v783 = vadd.f32 %v762, %v771
    %v784 = vmul.f32 %v783, 0.5
    %v785 = vmul.f32 %v783, 0.044715
    %v786 = vmul.f32 %v785, %v783
    %v787 = vmul.f32 %v786, %v783
    %v788 = vadd.f32 %v783, %v787
    %v789 = vmul.f32 %v788, 0.7978846
    %v790 = vtanh.pop %v789
    %v791 = vadd.f32 %v790, 1.0
    %v792 = vmul.f32 %v784, %v791
    %793 = vst [vmem:[#allocation3] sm:$0xf] %v782
    %794 = vst [vmem:[#allocation4] sm:$0xf] %v792
    %v795 = vld [vmem:[#allocation3] sm:$0x1]
    %796 = vst [vmem:[#allocation2 + $0x8] sm:$0x1] %v795
    %v797 = vld [vmem:[#allocation4] sm:$0x1]
    %798 = vst [vmem:[#allocation2 + $0x9] sm:$0x1] %v797
    %v799 = vld [vmem:[#allocation3 + $0x1] sm:$0x1]
    %800 = vst [vmem:[#allocation2 + $0xa] sm:$0x1] %v799
    %v801 = vld [vmem:[#allocation4 + $0x1] sm:$0x1]
    %802 = vst [vmem:[#allocation2 + $0xb] sm:$0x1] %v801
    %v803 = vld [vmem:[#allocation3 + $0x2] sm:$0x1]
    %804 = vst [vmem:[#allocation2 + $0xc] sm:$0x1] %v803
    %v805 = vld [vmem:[#allocation4 + $0x2] sm:$0x1]
    %806 = vst [vmem:[#allocation2 + $0xd] sm:$0x1] %v805
    %v807 = vld [vmem:[#allocation3 + $0x3] sm:$0x1]
    %808 = vst [vmem:[#allocation2 + $0xe] sm:$0x1] %v807
    %v809 = vld [vmem:[#allocation4 + $0x3] sm:$0x1]
    %810 = vst [vmem:[#allocation2 + $0xf] sm:$0x1] %v809
    %v811 = vld [vmem:[#allocation2 + $0x8] sm:$0xff]
    %vm812 = vcmp.lt.s32.totalorder %v441, 0
    %v813 = vsub.s32 0, %v441
    %v814 = vsel %vm812, %v813, %v441
    %v815 = vshrl.u32 %v814, 2
    %v816 = vand.u32 %v814, 3
    %v817 = vsub.s32 0, %v816
    %v818 = vsel %vm812, %v817, %v816
    %vm819 = vcmp.ne.s32.totalorder %v818, 0
    %vm820 = vcmp.lt.s32.totalorder %v818, 0
    %vm821 = vmand %vm820, %vm819
    %v822 = vadd.s32 %v818, 4
    %v823 = vsel %vm821, %v822, %v818
    %v824 = vadd.s32 %v823, 4294967295
    %vm825 = vcmp.ge.s32.totalorder %v824, 0
    %vm826 = vcmp.lt.s32.totalorder %v824, 4
    %vm827 = vmand %vm825, %vm826
    %v828 = vld [vmem:[#allocation2 + $0x7] sm:$0xff]
    %v829 = vsel %vm827, %v828, 0.0
    %v830 = vadd.s32 %v823, 1
    %vm831 = vcmp.ge.s32.totalorder %v830, 0
    %vm832 = vcmp.lt.s32.totalorder %v830, 4
    %vm833 = vmand %vm831, %vm832
    %v834 = vld [vmem:[#allocation2 + $0x9] sm:$0xff]
    %v835 = vsel %vm833, %v834, 0.0
    %v836 = vpack.c.bf16 %v811, %v811
    %v837 = vpack.c.bf16 %v829, %v829
    %v838 = vpack.c.bf16 %v835, %v835
    %v839 = vld [vmem:[#allocation13] sm:$0xf]
    %v840 = vld [vmem:[#allocation13 + $0x4] sm:$0xf]
    %v841 = vld [vmem:[#allocation13 + $0x8] sm:$0xf]
    %v842 = vld [vmem:[#allocation13 + $0xc] sm:$0xf]
    %v843 = vld [vmem:[#allocation13 + $0x10] sm:$0xf]
    %v844 = vld [vmem:[#allocation13 + $0x14] sm:$0xf]
    %v845 = vld [vmem:[#allocation13 + $0x18] sm:$0xf]
    %v846 = vld [vmem:[#allocation13 + $0x1c] sm:$0xf]
    %v847 = vld [vmem:[#allocation13 + $0x20] sm:$0xf]
    %v848 = vld [vmem:[#allocation13 + $0x24] sm:$0xf]
    %v849 = vld [vmem:[#allocation13 + $0x28] sm:$0xf]
    %v850 = vld [vmem:[#allocation13 + $0x2c] sm:$0xf]
    %v851 = vld [vmem:[#allocation13 + $0x30] sm:$0xf]
    %v852 = vld [vmem:[#allocation13 + $0x34] sm:$0xf]
    %v853 = vld [vmem:[#allocation13 + $0x38] sm:$0xf]
    %v854 = vld [vmem:[#allocation13 + $0x3c] sm:$0xf]
    %v855 = vld [vmem:[#allocation13 + $0x40] sm:$0xf]
    %v856 = vld [vmem:[#allocation13 + $0x44] sm:$0xf]
    %v857 = vld [vmem:[#allocation13 + $0x48] sm:$0xf]
    %v858 = vld [vmem:[#allocation13 + $0x4c] sm:$0xf]
    %v859 = vld [vmem:[#allocation13 + $0x50] sm:$0xf]
    %v860 = vld [vmem:[#allocation13 + $0x54] sm:$0xf]
    %v861 = vld [vmem:[#allocation13 + $0x58] sm:$0xf]
    %v862 = vld [vmem:[#allocation13 + $0x5c] sm:$0xf]
    %v863 = vld [vmem:[#allocation13 + $0x60] sm:$0xf]
    %v864 = vld [vmem:[#allocation13 + $0x64] sm:$0xf]
    %v865 = vld [vmem:[#allocation13 + $0x68] sm:$0xf]
    %v866 = vld [vmem:[#allocation13 + $0x6c] sm:$0xf]
    %v867 = vld [vmem:[#allocation13 + $0x70] sm:$0xf]
    %v868 = vld [vmem:[#allocation13 + $0x74] sm:$0xf]
    %v869 = vld [vmem:[#allocation13 + $0x78] sm:$0xf]
    %v870 = vld [vmem:[#allocation13 + $0x7c] sm:$0xf]
    %v871 = vld [vmem:[#allocation13 + $0x80] sm:$0xf]
    %v872 = vld [vmem:[#allocation13 + $0x84] sm:$0xf]
    %v873 = vld [vmem:[#allocation13 + $0x88] sm:$0xf]
    %v874 = vld [vmem:[#allocation13 + $0x8c] sm:$0xf]
    %v875 = vld [vmem:[#allocation13 + $0x90] sm:$0xf]
    %v876 = vld [vmem:[#allocation13 + $0x94] sm:$0xf]
    %v877 = vld [vmem:[#allocation13 + $0x98] sm:$0xf]
    %v878 = vld [vmem:[#allocation13 + $0x9c] sm:$0xf]
    %v879 = vld [vmem:[#allocation13 + $0xa0] sm:$0xf]
    %v880 = vld [vmem:[#allocation13 + $0xa4] sm:$0xf]
    %v881 = vld [vmem:[#allocation13 + $0xa8] sm:$0xf]
    %v882 = vld [vmem:[#allocation13 + $0xac] sm:$0xf]
    %v883 = vld [vmem:[#allocation13 + $0xb0] sm:$0xf]
    %v884 = vld [vmem:[#allocation13 + $0xb4] sm:$0xf]
    %v885 = vld [vmem:[#allocation13 + $0xb8] sm:$0xf]
    %v886 = vld [vmem:[#allocation13 + $0xbc] sm:$0xf]
    %v887 = vld [vmem:[#allocation13 + $0xc0] sm:$0xf]
    %v888 = vld [vmem:[#allocation13 + $0xc4] sm:$0xf]
    %v889 = vld [vmem:[#allocation13 + $0xc8] sm:$0xf]
    %v890 = vld [vmem:[#allocation13 + $0xcc] sm:$0xf]
    %v891 = vld [vmem:[#allocation13 + $0xd0] sm:$0xf]
    %v892 = vld [vmem:[#allocation13 + $0xd4] sm:$0xf]
    %v893 = vld [vmem:[#allocation13 + $0xd8] sm:$0xf]
    %v894 = vld [vmem:[#allocation13 + $0xdc] sm:$0xf]
    %v895 = vld [vmem:[#allocation13 + $0xe0] sm:$0xf]
    %v896 = vld [vmem:[#allocation13 + $0xe4] sm:$0xf]
    %v897 = vld [vmem:[#allocation13 + $0xe8] sm:$0xf]
    %v898 = vld [vmem:[#allocation13 + $0xec] sm:$0xf]
    %v899 = vld [vmem:[#allocation13 + $0xf0] sm:$0xf]
    %v900 = vld [vmem:[#allocation13 + $0xf4] sm:$0xf]
    %v901 = vld [vmem:[#allocation13 + $0xf8] sm:$0xf]
    %v902 = vld [vmem:[#allocation13 + $0xfc] sm:$0xf]
    %v903 = vld [vmem:[%s10] sm:$0x1]
    %v920 = vunpack.c.l.b16 %v855
    %v921 = vunpack.c.l.b16 %v856
    %v922 = vunpack.c.l.b16 %v857
    %v923 = vunpack.c.l.b16 %v858
    %v924 = vunpack.c.l.b16 %v859
    %v925 = vunpack.c.l.b16 %v860
    %v926 = vunpack.c.l.b16 %v861
    %v927 = vunpack.c.l.b16 %v862
    %v928 = vunpack.c.l.b16 %v863
    %v929 = vunpack.c.l.b16 %v864
    %v930 = vunpack.c.l.b16 %v865
    %v931 = vunpack.c.l.b16 %v866
    %v932 = vunpack.c.l.b16 %v867
    %v933 = vunpack.c.l.b16 %v868
    %v934 = vunpack.c.l.b16 %v869
    %v935 = vunpack.c.l.b16 %v870
    %v936 = vpack.c.b16 %v921, %v920
    %v937 = vpack.c.b16 %v923, %v922
    %v938 = vpack.c.b16 %v925, %v924
    %v939 = vpack.c.b16 %v927, %v926
    %v940 = vpack.c.b16 %v929, %v928
    %v941 = vpack.c.b16 %v931, %v930
    %v942 = vpack.c.b16 %v933, %v932
    %v943 = vpack.c.b16 %v935, %v934
    %952 = vmatprep.subr.bf16.mxu0 0
    %953 = vmatpush1.bf16.msra.mxu0 %v943
    %954 = vmatprep.subr.bf16.mxu0 0
    %955 = vmatpush1.bf16.msra.mxu0 %v942
    %956 = vmatprep.subr.bf16.mxu0 0
    %957 = vmatpush1.bf16.msra.mxu0 %v941
    %958 = vmatprep.subr.bf16.mxu0 0
    %959 = vmatpush1.bf16.msra.mxu0 %v940
    %960 = vmatprep.subr.bf16.mxu0 0
    %961 = vmatpush1.bf16.msra.mxu0 %v939
    %962 = vmatprep.subr.bf16.mxu0 0
    %963 = vmatpush1.bf16.msra.mxu0 %v938
    %964 = vmatprep.subr.bf16.mxu0 0
    %965 = vmatpush1.bf16.msra.mxu0 %v937
    %966 = vmatprep.subr.bf16.mxu0 0
    %967 = vmatpush1.bf16.msra.mxu0 %v936
    %968 = vmatprep.subr.bf16.mxu0 0
    %969 = vmatpush2.bf16.msra.mxu0 0
    %970 = vmatprep.subr.bf16.mxu0 0
    %971 = vmatpush2.bf16.msra.mxu0 0
    %972 = vmatprep.subr.bf16.mxu0 0
    %973 = vmatpush2.bf16.msra.mxu0 0
    %974 = vmatprep.subr.bf16.mxu0 0
    %975 = vmatpush2.bf16.msra.mxu0 0
    %976 = vmatprep.subr.bf16.mxu0 0
    %977 = vmatpush2.bf16.msra.mxu0 0
    %978 = vmatprep.subr.bf16.mxu0 0
    %979 = vmatpush2.bf16.msra.mxu0 0
    %980 = vmatprep.subr.bf16.mxu0 0
    %981 = vmatpush2.bf16.msra.mxu0 0
    %982 = vmatprep.subr.bf16.mxu0 0
    %983 = vmatpush2.bf16.msra.mxu0 0
    %984 = vmatprep.mubr.bf16.mxu0 0
    %985 = vmatmul.mubr.bf16.gmra.mxu0 %v836
    %v986 = vpop.f32.mrf.mxu0
    %v987 = vadd.f32 0.0, %v986
    %v988 = vpop.f32.mrf.mxu0
    %v989 = vpop.f32.mrf.mxu0
    %v990 = vpop.f32.mrf.mxu0
    %991 = vdwg.mxu0
    %v1008 = vunpack.c.l.b16 %v839
    %v1009 = vunpack.c.l.b16 %v840
    %v1010 = vunpack.c.l.b16 %v841
    %v1011 = vunpack.c.l.b16 %v842
    %v1012 = vunpack.c.l.b16 %v843
    %v1013 = vunpack.c.l.b16 %v844
    %v1014 = vunpack.c.l.b16 %v845
    %v1015 = vunpack.c.l.b16 %v846
    %v1016 = vunpack.c.l.b16 %v847
    %v1017 = vunpack.c.l.b16 %v848
    %v1018 = vunpack.c.l.b16 %v849
    %v1019 = vunpack.c.l.b16 %v850
    %v1020 = vunpack.c.l.b16 %v851
    %v1021 = vunpack.c.l.b16 %v852
    %v1022 = vunpack.c.l.b16 %v853
    %v1023 = vunpack.c.l.b16 %v854
    %v1024 = vpack.c.b16 %v1009, %v1008
    %v1025 = vpack.c.b16 %v1011, %v1010
    %v1026 = vpack.c.b16 %v1013, %v1012
    %v1027 = vpack.c.b16 %v1015, %v1014
    %v1028 = vpack.c.b16 %v1017, %v1016
    %v1029 = vpack.c.b16 %v1019, %v1018
    %v1030 = vpack.c.b16 %v1021, %v1020
    %v1031 = vpack.c.b16 %v1023, %v1022
    %1040 = vmatprep.subr.bf16.mxu0 0
    %1041 = vmatpush1.bf16.msra.mxu0 %v1031
    %1042 = vmatprep.subr.bf16.mxu0 0
    %1043 = vmatpush1.bf16.msra.mxu0 %v1030
    %1044 = vmatprep.subr.bf16.mxu0 0
    %1045 = vmatpush1.bf16.msra.mxu0 %v1029
    %1046 = vmatprep.subr.bf16.mxu0 0
    %1047 = vmatpush1.bf16.msra.mxu0 %v1028
    %1048 = vmatprep.subr.bf16.mxu0 0
    %1049 = vmatpush1.bf16.msra.mxu0 %v1027
    %1050 = vmatprep.subr.bf16.mxu0 0
    %1051 = vmatpush1.bf16.msra.mxu0 %v1026
    %1052 = vmatprep.subr.bf16.mxu0 0
    %1053 = vmatpush1.bf16.msra.mxu0 %v1025
    %1054 = vmatprep.subr.bf16.mxu0 0
    %1055 = vmatpush1.bf16.msra.mxu0 %v1024
    %1056 = vmatprep.subr.bf16.mxu0 0
    %1057 = vmatpush2.bf16.msra.mxu0 0
    %1058 = vmatprep.subr.bf16.mxu0 0
    %1059 = vmatpush2.bf16.msra.mxu0 0
    %1060 = vmatprep.subr.bf16.mxu0 0
    %1061 = vmatpush2.bf16.msra.mxu0 0
    %1062 = vmatprep.subr.bf16.mxu0 0
    %1063 = vmatpush2.bf16.msra.mxu0 0
    %1064 = vmatprep.subr.bf16.mxu0 0
    %1065 = vmatpush2.bf16.msra.mxu0 0
    %1066 = vmatprep.subr.bf16.mxu0 0
    %1067 = vmatpush2.bf16.msra.mxu0 0
    %1068 = vmatprep.subr.bf16.mxu0 0
    %1069 = vmatpush2.bf16.msra.mxu0 0
    %1070 = vmatprep.subr.bf16.mxu0 0
    %1071 = vmatpush2.bf16.msra.mxu0 0
    %1072 = vmatprep.mubr.bf16.mxu0 0
    %1073 = vmatmul.mubr.bf16.gmra.mxu0 %v837
    %v1074 = vpop.f32.mrf.mxu0
    %v1075 = vadd.f32 %v987, %v1074
    %v1076 = vpop.f32.mrf.mxu0
    %v1077 = vpop.f32.mrf.mxu0
    %v1078 = vpop.f32.mrf.mxu0
    %1079 = vdwg.mxu0
    %v1096 = vunpack.c.l.b16 %v887
    %v1097 = vunpack.c.l.b16 %v888
    %v1098 = vunpack.c.l.b16 %v889
    %v1099 = vunpack.c.l.b16 %v890
    %v1100 = vunpack.c.l.b16 %v891
    %v1101 = vunpack.c.l.b16 %v892
    %v1102 = vunpack.c.l.b16 %v893
    %v1103 = vunpack.c.l.b16 %v894
    %v1104 = vunpack.c.l.b16 %v895
    %v1105 = vunpack.c.l.b16 %v896
    %v1106 = vunpack.c.l.b16 %v897
    %v1107 = vunpack.c.l.b16 %v898
    %v1108 = vunpack.c.l.b16 %v899
    %v1109 = vunpack.c.l.b16 %v900
    %v1110 = vunpack.c.l.b16 %v901
    %v1111 = vunpack.c.l.b16 %v902
    %v1112 = vpack.c.b16 %v1097, %v1096
    %v1113 = vpack.c.b16 %v1099, %v1098
    %v1114 = vpack.c.b16 %v1101, %v1100
    %v1115 = vpack.c.b16 %v1103, %v1102
    %v1116 = vpack.c.b16 %v1105, %v1104
    %v1117 = vpack.c.b16 %v1107, %v1106
    %v1118 = vpack.c.b16 %v1109, %v1108
    %v1119 = vpack.c.b16 %v1111, %v1110
    %1128 = vmatprep.subr.bf16.mxu0 0
    %1129 = vmatpush1.bf16.msra.mxu0 %v1119
    %1130 = vmatprep.subr.bf16.mxu0 0
    %1131 = vmatpush1.bf16.msra.mxu0 %v1118
    %1132 = vmatprep.subr.bf16.mxu0 0
    %1133 = vmatpush1.bf16.msra.mxu0 %v1117
    %1134 = vmatprep.subr.bf16.mxu0 0
    %1135 = vmatpush1.bf16.msra.mxu0 %v1116
    %1136 = vmatprep.subr.bf16.mxu0 0
    %1137 = vmatpush1.bf16.msra.mxu0 %v1115
    %1138 = vmatprep.subr.bf16.mxu0 0
    %1139 = vmatpush1.bf16.msra.mxu0 %v1114
    %1140 = vmatprep.subr.bf16.mxu0 0
    %1141 = vmatpush1.bf16.msra.mxu0 %v1113
    %1142 = vmatprep.subr.bf16.mxu0 0
    %1143 = vmatpush1.bf16.msra.mxu0 %v1112
    %1144 = vmatprep.subr.bf16.mxu0 0
    %1145 = vmatpush2.bf16.msra.mxu0 0
    %1146 = vmatprep.subr.bf16.mxu0 0
    %1147 = vmatpush2.bf16.msra.mxu0 0
    %1148 = vmatprep.subr.bf16.mxu0 0
    %1149 = vmatpush2.bf16.msra.mxu0 0
    %1150 = vmatprep.subr.bf16.mxu0 0
    %1151 = vmatpush2.bf16.msra.mxu0 0
    %1152 = vmatprep.subr.bf16.mxu0 0
    %1153 = vmatpush2.bf16.msra.mxu0 0
    %1154 = vmatprep.subr.bf16.mxu0 0
    %1155 = vmatpush2.bf16.msra.mxu0 0
    %1156 = vmatprep.subr.bf16.mxu0 0
    %1157 = vmatpush2.bf16.msra.mxu0 0
    %1158 = vmatprep.subr.bf16.mxu0 0
    %1159 = vmatpush2.bf16.msra.mxu0 0
    %1160 = vmatprep.mubr.bf16.mxu0 0
    %1161 = vmatmul.mubr.bf16.gmra.mxu0 %v838
    %v1162 = vpop.f32.mrf.mxu0
    %v1163 = vadd.f32 0.0, %v1162
    %v1164 = vpop.f32.mrf.mxu0
    %v1165 = vpop.f32.mrf.mxu0
    %v1166 = vpop.f32.mrf.mxu0
    %1167 = vdwg.mxu0
    %v1184 = vunpack.c.l.b16 %v871
    %v1185 = vunpack.c.l.b16 %v872
    %v1186 = vunpack.c.l.b16 %v873
    %v1187 = vunpack.c.l.b16 %v874
    %v1188 = vunpack.c.l.b16 %v875
    %v1189 = vunpack.c.l.b16 %v876
    %v1190 = vunpack.c.l.b16 %v877
    %v1191 = vunpack.c.l.b16 %v878
    %v1192 = vunpack.c.l.b16 %v879
    %v1193 = vunpack.c.l.b16 %v880
    %v1194 = vunpack.c.l.b16 %v881
    %v1195 = vunpack.c.l.b16 %v882
    %v1196 = vunpack.c.l.b16 %v883
    %v1197 = vunpack.c.l.b16 %v884
    %v1198 = vunpack.c.l.b16 %v885
    %v1199 = vunpack.c.l.b16 %v886
    %v1200 = vpack.c.b16 %v1185, %v1184
    %v1201 = vpack.c.b16 %v1187, %v1186
    %v1202 = vpack.c.b16 %v1189, %v1188
    %v1203 = vpack.c.b16 %v1191, %v1190
    %v1204 = vpack.c.b16 %v1193, %v1192
    %v1205 = vpack.c.b16 %v1195, %v1194
    %v1206 = vpack.c.b16 %v1197, %v1196
    %v1207 = vpack.c.b16 %v1199, %v1198
    %1216 = vmatprep.subr.bf16.mxu0 0
    %1217 = vmatpush1.bf16.msra.mxu0 %v1207
    %1218 = vmatprep.subr.bf16.mxu0 0
    %1219 = vmatpush1.bf16.msra.mxu0 %v1206
    %1220 = vmatprep.subr.bf16.mxu0 0
    %1221 = vmatpush1.bf16.msra.mxu0 %v1205
    %1222 = vmatprep.subr.bf16.mxu0 0
    %1223 = vmatpush1.bf16.msra.mxu0 %v1204
    %1224 = vmatprep.subr.bf16.mxu0 0
    %1225 = vmatpush1.bf16.msra.mxu0 %v1203
    %1226 = vmatprep.subr.bf16.mxu0 0
    %1227 = vmatpush1.bf16.msra.mxu0 %v1202
    %1228 = vmatprep.subr.bf16.mxu0 0
    %1229 = vmatpush1.bf16.msra.mxu0 %v1201
    %1230 = vmatprep.subr.bf16.mxu0 0
    %1231 = vmatpush1.bf16.msra.mxu0 %v1200
    %1232 = vmatprep.subr.bf16.mxu0 0
    %1233 = vmatpush2.bf16.msra.mxu0 0
    %1234 = vmatprep.subr.bf16.mxu0 0
    %1235 = vmatpush2.bf16.msra.mxu0 0
    %1236 = vmatprep.subr.bf16.mxu0 0
    %1237 = vmatpush2.bf16.msra.mxu0 0
    %1238 = vmatprep.subr.bf16.mxu0 0
    %1239 = vmatpush2.bf16.msra.mxu0 0
    %1240 = vmatprep.subr.bf16.mxu0 0
    %1241 = vmatpush2.bf16.msra.mxu0 0
    %1242 = vmatprep.subr.bf16.mxu0 0
    %1243 = vmatpush2.bf16.msra.mxu0 0
    %1244 = vmatprep.subr.bf16.mxu0 0
    %1245 = vmatpush2.bf16.msra.mxu0 0
    %1246 = vmatprep.subr.bf16.mxu0 0
    %1247 = vmatpush2.bf16.msra.mxu0 0
    %1248 = vmatprep.mubr.bf16.mxu0 0
    %1249 = vmatmul.mubr.bf16.gmra.mxu0 %v836
    %v1250 = vpop.f32.mrf.mxu0
    %v1251 = vadd.f32 %v1163, %v1250
    %v1252 = vpop.f32.mrf.mxu0
    %v1253 = vpop.f32.mrf.mxu0
    %v1254 = vpop.f32.mrf.mxu0
    %1255 = vdwg.mxu0
    %v1257 = vlaneseq
    %v1258 = vshrl.u32 %v1257, 7
    %v1259 = vsub.s32 0, %v1258
    %v1260 = vrot.slane %v903, %v1259
    %v1262 = vadd.f32 %v1075, %v1260
    %v1263 = vmul.f32 %v1262, 0.5
    %v1264 = vmul.f32 %v1262, 0.044715
    %v1265 = vmul.f32 %v1264, %v1262
    %v1266 = vmul.f32 %v1265, %v1262
    %v1267 = vadd.f32 %v1262, %v1266
    %v1268 = vmul.f32 %v1267, 0.7978846
    %v1269 = vtanh.pop %v1268
    %v1270 = vadd.f32 %v1269, 1.0
    %v1271 = vmul.f32 %v1263, %v1270
    %v1272 = vadd.f32 %v1251, %v1260
    %v1273 = vmul.f32 %v1272, 0.5
    %v1274 = vmul.f32 %v1272, 0.044715
    %v1275 = vmul.f32 %v1274, %v1272
    %v1276 = vmul.f32 %v1275, %v1272
    %v1277 = vadd.f32 %v1272, %v1276
    %v1278 = vmul.f32 %v1277, 0.7978846
    %v1279 = vtanh.pop %v1278
    %v1280 = vadd.f32 %v1279, 1.0
    %v1281 = vmul.f32 %v1273, %v1280
    %1282 = vst [vmem:[#allocation3] sm:$0xff] %v1271
    %1283 = vst [vmem:[#allocation4] sm:$0xff] %v1281
    %v1284 = vld [vmem:[#allocation3] sm:$0x1]
    %1285 = vst [vmem:[#allocation2 + $0x8] sm:$0x1] %v1284
    %v1286 = vld [vmem:[#allocation4] sm:$0x1]
    %1287 = vst [vmem:[#allocation2 + $0x9] sm:$0x1] %v1286
    %v1288 = vld [vmem:[#allocation3 + $0x1] sm:$0x1]
    %1289 = vst [vmem:[#allocation2 + $0xa] sm:$0x1] %v1288
    %v1290 = vld [vmem:[#allocation4 + $0x1] sm:$0x1]
    %1291 = vst [vmem:[#allocation2 + $0xb] sm:$0x1] %v1290
    %v1292 = vld [vmem:[#allocation3 + $0x2] sm:$0x1]
    %1293 = vst [vmem:[#allocation2 + $0xc] sm:$0x1] %v1292
    %v1294 = vld [vmem:[#allocation4 + $0x2] sm:$0x1]
    %1295 = vst [vmem:[#allocation2 + $0xd] sm:$0x1] %v1294
    %v1296 = vld [vmem:[#allocation3 + $0x3] sm:$0x1]
    %1297 = vst [vmem:[#allocation2 + $0xe] sm:$0x1] %v1296
    %v1298 = vld [vmem:[#allocation4 + $0x3] sm:$0x1]
    %1299 = vst [vmem:[#allocation2 + $0xf] sm:$0x1] %v1298
    %v1300 = vld [vmem:[#allocation3 + $0x4] sm:$0x1]
    %1301 = vst [vmem:[#allocation2 + $0x10] sm:$0x1] %v1300
    %v1302 = vld [vmem:[#allocation4 + $0x4] sm:$0x1]
    %1303 = vst [vmem:[#allocation2 + $0x11] sm:$0x1] %v1302
    %v1304 = vld [vmem:[#allocation3 + $0x5] sm:$0x1]
    %1305 = vst [vmem:[#allocation2 + $0x12] sm:$0x1] %v1304
    %v1306 = vld [vmem:[#allocation4 + $0x5] sm:$0x1]
    %1307 = vst [vmem:[#allocation2 + $0x13] sm:$0x1] %v1306
    %v1308 = vld [vmem:[#allocation3 + $0x6] sm:$0x1]
    %1309 = vst [vmem:[#allocation2 + $0x14] sm:$0x1] %v1308
    %v1310 = vld [vmem:[#allocation4 + $0x6] sm:$0x1]
    %1311 = vst [vmem:[#allocation2 + $0x15] sm:$0x1] %v1310
    %v1312 = vld [vmem:[#allocation3 + $0x7] sm:$0x1]
    %1313 = vst [vmem:[#allocation2 + $0x16] sm:$0x1] %v1312
    %v1314 = vld [vmem:[#allocation4 + $0x7] sm:$0x1]
    %1315 = vst [vmem:[#allocation2 + $0x17] sm:$0x1] %v1314
    %v1316 = vld [vmem:[#allocation2 + $0x8] sm:$0xff]
    %v1317 = vld [vmem:[#allocation2 + $0x10] sm:$0xff]
    %v1318 = vadd.s32 %v441, 8
    %vm1319 = vcmp.lt.s32.totalorder %v441, 0
    %v1320 = vsub.s32 0, %v441
    %v1321 = vsel %vm1319, %v1320, %v441
    %v1322 = vshrl.u32 %v1321, 3
    %v1323 = vand.u32 %v1321, 7
    %v1324 = vsub.s32 0, %v1323
    %v1325 = vsel %vm1319, %v1324, %v1323
    %vm1326 = vcmp.lt.s32.totalorder %v1318, 0
    %v1327 = vsub.s32 0, %v1318
    %v1328 = vsel %vm1326, %v1327, %v1318
    %v1329 = vshrl.u32 %v1328, 3
    %v1330 = vand.u32 %v1328, 7
    %v1331 = vsub.s32 0, %v1330
    %v1332 = vsel %vm1326, %v1331, %v1330
    %vm1333 = vcmp.ne.s32.totalorder %v1325, 0
    %vm1334 = vcmp.ne.s32.totalorder %v1332, 0
    %vm1335 = vcmp.lt.s32.totalorder %v1325, 0
    %vm1336 = vcmp.lt.s32.totalorder %v1332, 0
    %vm1337 = vmand %vm1335, %vm1333
    %vm1338 = vmand %vm1336, %vm1334
    %v1339 = vadd.s32 %v1325, 8
    %v1340 = vadd.s32 %v1332, 8
    %v1341 = vsel %vm1337, %v1339, %v1325
    %v1342 = vsel %vm1338, %v1340, %v1332
    %v1343 = vadd.s32 %v1341, 4294967295
    %v1344 = vadd.s32 %v1342, 4294967295
    %vm1345 = vcmp.ge.s32.totalorder %v1343, 0
    %vm1346 = vcmp.ge.s32.totalorder %v1344, 0
    %vm1347 = vcmp.lt.s32.totalorder %v1343, 8
    %vm1348 = vcmp.lt.s32.totalorder %v1344, 8
    %vm1349 = vmand %vm1345, %vm1347
    %vm1350 = vmand %vm1346, %vm1348
    %v1351 = vld [vmem:[#allocation2 + $0x7] sm:$0xff]
    %v1352 = vld [vmem:[#allocation2 + $0xf] sm:$0xff]
    %v1353 = vsel %vm1349, %v1351, 0.0
    %v1354 = vsel %vm1350, %v1352, 0.0
    %v1355 = vadd.s32 %v1341, 1
    %v1356 = vadd.s32 %v1342, 1
    %vm1357 = vcmp.ge.s32.totalorder %v1355, 0
    %vm1358 = vcmp.ge.s32.totalorder %v1356, 0
    %vm1359 = vcmp.lt.s32.totalorder %v1355, 8
    %vm1360 = vcmp.lt.s32.totalorder %v1356, 8
    %vm1361 = vmand %vm1357, %vm1359
    %vm1362 = vmand %vm1358, %vm1360
    %v1363 = vld [vmem:[#allocation2 + $0x9] sm:$0xff]
    %v1364 = vld [vmem:[#allocation2 + $0x11] sm:$0xff]
    %v1365 = vsel %vm1361, %v1363, 0.0
    %v1366 = vsel %vm1362, %v1364, 0.0
    %v1367 = vpack.c.bf16 %v1317, %v1316
    %v1368 = vpack.c.bf16 %v1354, %v1353
    %v1369 = vpack.c.bf16 %v1366, %v1365
    %v1370 = vld [vmem:[#allocation15] sm:$0xf]
    %v1371 = vld [vmem:[#allocation15 + $0x4] sm:$0xf]
    %v1372 = vld [vmem:[#allocation15 + $0x8] sm:$0xf]
    %v1373 = vld [vmem:[#allocation15 + $0xc] sm:$0xf]
    %v1374 = vld [vmem:[#allocation15 + $0x10] sm:$0xf]
    %v1375 = vld [vmem:[#allocation15 + $0x14] sm:$0xf]
    %v1376 = vld [vmem:[#allocation15 + $0x18] sm:$0xf]
    %v1377 = vld [vmem:[#allocation15 + $0x1c] sm:$0xf]
    %v1378 = vld [vmem:[#allocation15 + $0x20] sm:$0xf]
    %v1379 = vld [vmem:[#allocation15 + $0x24] sm:$0xf]
    %v1380 = vld [vmem:[#allocation15 + $0x28] sm:$0xf]
    %v1381 = vld [vmem:[#allocation15 + $0x2c] sm:$0xf]
    %v1382 = vld [vmem:[#allocation15 + $0x30] sm:$0xf]
    %v1383 = vld [vmem:[#allocation15 + $0x34] sm:$0xf]
    %v1384 = vld [vmem:[#allocation15 + $0x38] sm:$0xf]
    %v1385 = vld [vmem:[#allocation15 + $0x3c] sm:$0xf]
    %v1386 = vld [vmem:[#allocation15 + $0x40] sm:$0xf]
    %v1387 = vld [vmem:[#allocation15 + $0x44] sm:$0xf]
    %v1388 = vld [vmem:[#allocation15 + $0x48] sm:$0xf]
    %v1389 = vld [vmem:[#allocation15 + $0x4c] sm:$0xf]
    %v1390 = vld [vmem:[#allocation15 + $0x50] sm:$0xf]
    %v1391 = vld [vmem:[#allocation15 + $0x54] sm:$0xf]
    %v1392 = vld [vmem:[#allocation15 + $0x58] sm:$0xf]
    %v1393 = vld [vmem:[#allocation15 + $0x5c] sm:$0xf]
    %v1394 = vld [vmem:[#allocation15 + $0x60] sm:$0xf]
    %v1395 = vld [vmem:[#allocation15 + $0x64] sm:$0xf]
    %v1396 = vld [vmem:[#allocation15 + $0x68] sm:$0xf]
    %v1397 = vld [vmem:[#allocation15 + $0x6c] sm:$0xf]
    %v1398 = vld [vmem:[#allocation15 + $0x70] sm:$0xf]
    %v1399 = vld [vmem:[#allocation15 + $0x74] sm:$0xf]
    %v1400 = vld [vmem:[#allocation15 + $0x78] sm:$0xf]
    %v1401 = vld [vmem:[#allocation15 + $0x7c] sm:$0xf]
    %v1402 = vld [vmem:[#allocation15 + $0x80] sm:$0xf]
    %v1403 = vld [vmem:[#allocation15 + $0x84] sm:$0xf]
    %v1404 = vld [vmem:[#allocation15 + $0x88] sm:$0xf]
    %v1405 = vld [vmem:[#allocation15 + $0x8c] sm:$0xf]
    %v1406 = vld [vmem:[#allocation15 + $0x90] sm:$0xf]
    %v1407 = vld [vmem:[#allocation15 + $0x94] sm:$0xf]
    %v1408 = vld [vmem:[#allocation15 + $0x98] sm:$0xf]
    %v1409 = vld [vmem:[#allocation15 + $0x9c] sm:$0xf]
    %v1410 = vld [vmem:[#allocation15 + $0xa0] sm:$0xf]
    %v1411 = vld [vmem:[#allocation15 + $0xa4] sm:$0xf]
    %v1412 = vld [vmem:[#allocation15 + $0xa8] sm:$0xf]
    %v1413 = vld [vmem:[#allocation15 + $0xac] sm:$0xf]
    %v1414 = vld [vmem:[#allocation15 + $0xb0] sm:$0xf]
    %v1415 = vld [vmem:[#allocation15 + $0xb4] sm:$0xf]
    %v1416 = vld [vmem:[#allocation15 + $0xb8] sm:$0xf]
    %v1417 = vld [vmem:[#allocation15 + $0xbc] sm:$0xf]
    %v1418 = vld [vmem:[#allocation15 + $0xc0] sm:$0xf]
    %v1419 = vld [vmem:[#allocation15 + $0xc4] sm:$0xf]
    %v1420 = vld [vmem:[#allocation15 + $0xc8] sm:$0xf]
    %v1421 = vld [vmem:[#allocation15 + $0xcc] sm:$0xf]
    %v1422 = vld [vmem:[#allocation15 + $0xd0] sm:$0xf]
    %v1423 = vld [vmem:[#allocation15 + $0xd4] sm:$0xf]
    %v1424 = vld [vmem:[#allocation15 + $0xd8] sm:$0xf]
    %v1425 = vld [vmem:[#allocation15 + $0xdc] sm:$0xf]
    %v1426 = vld [vmem:[#allocation15 + $0xe0] sm:$0xf]
    %v1427 = vld [vmem:[#allocation15 + $0xe4] sm:$0xf]
    %v1428 = vld [vmem:[#allocation15 + $0xe8] sm:$0xf]
    %v1429 = vld [vmem:[#allocation15 + $0xec] sm:$0xf]
    %v1430 = vld [vmem:[#allocation15 + $0xf0] sm:$0xf]
    %v1431 = vld [vmem:[#allocation15 + $0xf4] sm:$0xf]
    %v1432 = vld [vmem:[#allocation15 + $0xf8] sm:$0xf]
    %v1433 = vld [vmem:[#allocation15 + $0xfc] sm:$0xf]
    %v1434 = vld [vmem:[%s12] sm:$0x1]
    %v1451 = vunpack.c.l.b16 %v1386
    %v1452 = vunpack.c.l.b16 %v1387
    %v1453 = vunpack.c.l.b16 %v1388
    %v1454 = vunpack.c.l.b16 %v1389
    %v1455 = vunpack.c.l.b16 %v1390
    %v1456 = vunpack.c.l.b16 %v1391
    %v1457 = vunpack.c.l.b16 %v1392
    %v1458 = vunpack.c.l.b16 %v1393
    %v1459 = vunpack.c.l.b16 %v1394
    %v1460 = vunpack.c.l.b16 %v1395
    %v1461 = vunpack.c.l.b16 %v1396
    %v1462 = vunpack.c.l.b16 %v1397
    %v1463 = vunpack.c.l.b16 %v1398
    %v1464 = vunpack.c.l.b16 %v1399
    %v1465 = vunpack.c.l.b16 %v1400
    %v1466 = vunpack.c.l.b16 %v1401
    %v1467 = vpack.c.b16 %v1452, %v1451
    %v1468 = vpack.c.b16 %v1454, %v1453
    %v1469 = vpack.c.b16 %v1456, %v1455
    %v1470 = vpack.c.b16 %v1458, %v1457
    %v1471 = vpack.c.b16 %v1460, %v1459
    %v1472 = vpack.c.b16 %v1462, %v1461
    %v1473 = vpack.c.b16 %v1464, %v1463
    %v1474 = vpack.c.b16 %v1466, %v1465
    %1483 = vmatprep.subr.bf16.mxu0 0
    %1484 = vmatpush1.bf16.msra.mxu0 %v1474
    %1485 = vmatprep.subr.bf16.mxu0 0
    %1486 = vmatpush1.bf16.msra.mxu0 %v1473
    %1487 = vmatprep.subr.bf16.mxu0 0
    %1488 = vmatpush1.bf16.msra.mxu0 %v1472
    %1489 = vmatprep.subr.bf16.mxu0 0
    %1490 = vmatpush1.bf16.msra.mxu0 %v1471
    %1491 = vmatprep.subr.bf16.mxu0 0
    %1492 = vmatpush1.bf16.msra.mxu0 %v1470
    %1493 = vmatprep.subr.bf16.mxu0 0
    %1494 = vmatpush1.bf16.msra.mxu0 %v1469
    %1495 = vmatprep.subr.bf16.mxu0 0
    %1496 = vmatpush1.bf16.msra.mxu0 %v1468
    %1497 = vmatprep.subr.bf16.mxu0 0
    %1498 = vmatpush1.bf16.msra.mxu0 %v1467
    %1499 = vmatprep.subr.bf16.mxu0 0
    %1500 = vmatpush2.bf16.msra.mxu0 0
    %1501 = vmatprep.subr.bf16.mxu0 0
    %1502 = vmatpush2.bf16.msra.mxu0 0
    %1503 = vmatprep.subr.bf16.mxu0 0
    %1504 = vmatpush2.bf16.msra.mxu0 0
    %1505 = vmatprep.subr.bf16.mxu0 0
    %1506 = vmatpush2.bf16.msra.mxu0 0
    %1507 = vmatprep.subr.bf16.mxu0 0
    %1508 = vmatpush2.bf16.msra.mxu0 0
    %1509 = vmatprep.subr.bf16.mxu0 0
    %1510 = vmatpush2.bf16.msra.mxu0 0
    %1511 = vmatprep.subr.bf16.mxu0 0
    %1512 = vmatpush2.bf16.msra.mxu0 0
    %1513 = vmatprep.subr.bf16.mxu0 0
    %1514 = vmatpush2.bf16.msra.mxu0 0
    %1515 = vmatprep.mubr.bf16.mxu0 0
    %1516 = vmatmul.mubr.bf16.gmra.mxu0 %v1367
    %v1517 = vpop.f32.mrf.mxu0
    %v1518 = vadd.f32 0.0, %v1517
    %v1519 = vpop.f32.mrf.mxu0
    %v1520 = vpop.f32.mrf.mxu0
    %v1521 = vadd.f32 0.0, %v1520
    %v1522 = vpop.f32.mrf.mxu0
    %1523 = vdwg.mxu0
    %v1540 = vunpack.c.l.b16 %v1370
    %v1541 = vunpack.c.l.b16 %v1371
    %v1542 = vunpack.c.l.b16 %v1372
    %v1543 = vunpack.c.l.b16 %v1373
    %v1544 = vunpack.c.l.b16 %v1374
    %v1545 = vunpack.c.l.b16 %v1375
    %v1546 = vunpack.c.l.b16 %v1376
    %v1547 = vunpack.c.l.b16 %v1377
    %v1548 = vunpack.c.l.b16 %v1378
    %v1549 = vunpack.c.l.b16 %v1379
    %v1550 = vunpack.c.l.b16 %v1380
    %v1551 = vunpack.c.l.b16 %v1381
    %v1552 = vunpack.c.l.b16 %v1382
    %v1553 = vunpack.c.l.b16 %v1383
    %v1554 = vunpack.c.l.b16 %v1384
    %v1555 = vunpack.c.l.b16 %v1385
    %v1556 = vpack.c.b16 %v1541, %v1540
    %v1557 = vpack.c.b16 %v1543, %v1542
    %v1558 = vpack.c.b16 %v1545, %v1544
    %v1559 = vpack.c.b16 %v1547, %v1546
    %v1560 = vpack.c.b16 %v1549, %v1548
    %v1561 = vpack.c.b16 %v1551, %v1550
    %v1562 = vpack.c.b16 %v1553, %v1552
    %v1563 = vpack.c.b16 %v1555, %v1554
    %1572 = vmatprep.subr.bf16.mxu0 0
    %1573 = vmatpush1.bf16.msra.mxu0 %v1563
    %1574 = vmatprep.subr.bf16.mxu0 0
    %1575 = vmatpush1.bf16.msra.mxu0 %v1562
    %1576 = vmatprep.subr.bf16.mxu0 0
    %1577 = vmatpush1.bf16.msra.mxu0 %v1561
    %1578 = vmatprep.subr.bf16.mxu0 0
    %1579 = vmatpush1.bf16.msra.mxu0 %v1560
    %1580 = vmatprep.subr.bf16.mxu0 0
    %1581 = vmatpush1.bf16.msra.mxu0 %v1559
    %1582 = vmatprep.subr.bf16.mxu0 0
    %1583 = vmatpush1.bf16.msra.mxu0 %v1558
    %1584 = vmatprep.subr.bf16.mxu0 0
    %1585 = vmatpush1.bf16.msra.mxu0 %v1557
    %1586 = vmatprep.subr.bf16.mxu0 0
    %1587 = vmatpush1.bf16.msra.mxu0 %v1556
    %1588 = vmatprep.subr.bf16.mxu0 0
    %1589 = vmatpush2.bf16.msra.mxu0 0
    %1590 = vmatprep.subr.bf16.mxu0 0
    %1591 = vmatpush2.bf16.msra.mxu0 0
    %1592 = vmatprep.subr.bf16.mxu0 0
    %1593 = vmatpush2.bf16.msra.mxu0 0
    %1594 = vmatprep.subr.bf16.mxu0 0
    %1595 = vmatpush2.bf16.msra.mxu0 0
    %1596 = vmatprep.subr.bf16.mxu0 0
    %1597 = vmatpush2.bf16.msra.mxu0 0
    %1598 = vmatprep.subr.bf16.mxu0 0
    %1599 = vmatpush2.bf16.msra.mxu0 0
    %1600 = vmatprep.subr.bf16.mxu0 0
    %1601 = vmatpush2.bf16.msra.mxu0 0
    %1602 = vmatprep.subr.bf16.mxu0 0
    %1603 = vmatpush2.bf16.msra.mxu0 0
    %1604 = vmatprep.mubr.bf16.mxu0 0
    %1605 = vmatmul.mubr.bf16.gmra.mxu0 %v1368
    %v1606 = vpop.f32.mrf.mxu0
    %v1607 = vadd.f32 %v1518, %v1606
    %v1608 = vpop.f32.mrf.mxu0
    %v1609 = vpop.f32.mrf.mxu0
    %v1610 = vadd.f32 %v1521, %v1609
    %v1611 = vpop.f32.mrf.mxu0
    %1612 = vdwg.mxu0
    %v1629 = vunpack.c.l.b16 %v1418
    %v1630 = vunpack.c.l.b16 %v1419
    %v1631 = vunpack.c.l.b16 %v1420
    %v1632 = vunpack.c.l.b16 %v1421
    %v1633 = vunpack.c.l.b16 %v1422
    %v1634 = vunpack.c.l.b16 %v1423
    %v1635 = vunpack.c.l.b16 %v1424
    %v1636 = vunpack.c.l.b16 %v1425
    %v1637 = vunpack.c.l.b16 %v1426
    %v1638 = vunpack.c.l.b16 %v1427
    %v1639 = vunpack.c.l.b16 %v1428
    %v1640 = vunpack.c.l.b16 %v1429
    %v1641 = vunpack.c.l.b16 %v1430
    %v1642 = vunpack.c.l.b16 %v1431
    %v1643 = vunpack.c.l.b16 %v1432
    %v1644 = vunpack.c.l.b16 %v1433
    %v1645 = vpack.c.b16 %v1630, %v1629
    %v1646 = vpack.c.b16 %v1632, %v1631
    %v1647 = vpack.c.b16 %v1634, %v1633
    %v1648 = vpack.c.b16 %v1636, %v1635
    %v1649 = vpack.c.b16 %v1638, %v1637
    %v1650 = vpack.c.b16 %v1640, %v1639
    %v1651 = vpack.c.b16 %v1642, %v1641
    %v1652 = vpack.c.b16 %v1644, %v1643
    %1661 = vmatprep.subr.bf16.mxu0 0
    %1662 = vmatpush1.bf16.msra.mxu0 %v1652
    %1663 = vmatprep.subr.bf16.mxu0 0
    %1664 = vmatpush1.bf16.msra.mxu0 %v1651
    %1665 = vmatprep.subr.bf16.mxu0 0
    %1666 = vmatpush1.bf16.msra.mxu0 %v1650
    %1667 = vmatprep.subr.bf16.mxu0 0
    %1668 = vmatpush1.bf16.msra.mxu0 %v1649
    %1669 = vmatprep.subr.bf16.mxu0 0
    %1670 = vmatpush1.bf16.msra.mxu0 %v1648
    %1671 = vmatprep.subr.bf16.mxu0 0
    %1672 = vmatpush1.bf16.msra.mxu0 %v1647
    %1673 = vmatprep.subr.bf16.mxu0 0
    %1674 = vmatpush1.bf16.msra.mxu0 %v1646
    %1675 = vmatprep.subr.bf16.mxu0 0
    %1676 = vmatpush1.bf16.msra.mxu0 %v1645
    %1677 = vmatprep.subr.bf16.mxu0 0
    %1678 = vmatpush2.bf16.msra.mxu0 0
    %1679 = vmatprep.subr.bf16.mxu0 0
    %1680 = vmatpush2.bf16.msra.mxu0 0
    %1681 = vmatprep.subr.bf16.mxu0 0
    %1682 = vmatpush2.bf16.msra.mxu0 0
    %1683 = vmatprep.subr.bf16.mxu0 0
    %1684 = vmatpush2.bf16.msra.mxu0 0
    %1685 = vmatprep.subr.bf16.mxu0 0
    %1686 = vmatpush2.bf16.msra.mxu0 0
    %1687 = vmatprep.subr.bf16.mxu0 0
    %1688 = vmatpush2.bf16.msra.mxu0 0
    %1689 = vmatprep.subr.bf16.mxu0 0
    %1690 = vmatpush2.bf16.msra.mxu0 0
    %1691 = vmatprep.subr.bf16.mxu0 0
    %1692 = vmatpush2.bf16.msra.mxu0 0
    %1693 = vmatprep.mubr.bf16.mxu0 0
    %1694 = vmatmul.mubr.bf16.gmra.mxu0 %v1369
    %v1695 = vpop.f32.mrf.mxu0
    %v1696 = vadd.f32 0.0, %v1695
    %v1697 = vpop.f32.mrf.mxu0
    %v1698 = vpop.f32.mrf.mxu0
    %v1699 = vadd.f32 0.0, %v1698
    %v1700 = vpop.f32.mrf.mxu0
    %1701 = vdwg.mxu0
    %v1718 = vunpack.c.l.b16 %v1402
    %v1719 = vunpack.c.l.b16 %v1403
    %v1720 = vunpack.c.l.b16 %v1404
    %v1721 = vunpack.c.l.b16 %v1405
    %v1722 = vunpack.c.l.b16 %v1406
    %v1723 = vunpack.c.l.b16 %v1407
    %v1724 = vunpack.c.l.b16 %v1408
    %v1725 = vunpack.c.l.b16 %v1409
    %v1726 = vunpack.c.l.b16 %v1410
    %v1727 = vunpack.c.l.b16 %v1411
    %v1728 = vunpack.c.l.b16 %v1412
    %v1729 = vunpack.c.l.b16 %v1413
    %v1730 = vunpack.c.l.b16 %v1414
    %v1731 = vunpack.c.l.b16 %v1415
    %v1732 = vunpack.c.l.b16 %v1416
    %v1733 = vunpack.c.l.b16 %v1417
    %v1734 = vpack.c.b16 %v1719, %v1718
    %v1735 = vpack.c.b16 %v1721, %v1720
    %v1736 = vpack.c.b16 %v1723, %v1722
    %v1737 = vpack.c.b16 %v1725, %v1724
    %v1738 = vpack.c.b16 %v1727, %v1726
    %v1739 = vpack.c.b16 %v1729, %v1728
    %v1740 = vpack.c.b16 %v1731, %v1730
    %v1741 = vpack.c.b16 %v1733, %v1732
    %1750 = vmatprep.subr.bf16.mxu0 0
    %1751 = vmatpush1.bf16.msra.mxu0 %v1741
    %1752 = vmatprep.subr.bf16.mxu0 0
    %1753 = vmatpush1.bf16.msra.mxu0 %v1740
    %1754 = vmatprep.subr.bf16.mxu0 0
    %1755 = vmatpush1.bf16.msra.mxu0 %v1739
    %1756 = vmatprep.subr.bf16.mxu0 0
    %1757 = vmatpush1.bf16.msra.mxu0 %v1738
    %1758 = vmatprep.subr.bf16.mxu0 0
    %1759 = vmatpush1.bf16.msra.mxu0 %v1737
    %1760 = vmatprep.subr.bf16.mxu0 0
    %1761 = vmatpush1.bf16.msra.mxu0 %v1736
    %1762 = vmatprep.subr.bf16.mxu0 0
    %1763 = vmatpush1.bf16.msra.mxu0 %v1735
    %1764 = vmatprep.subr.bf16.mxu0 0
    %1765 = vmatpush1.bf16.msra.mxu0 %v1734
    %1766 = vmatprep.subr.bf16.mxu0 0
    %1767 = vmatpush2.bf16.msra.mxu0 0
    %1768 = vmatprep.subr.bf16.mxu0 0
    %1769 = vmatpush2.bf16.msra.mxu0 0
    %1770 = vmatprep.subr.bf16.mxu0 0
    %1771 = vmatpush2.bf16.msra.mxu0 0
    %1772 = vmatprep.subr.bf16.mxu0 0
    %1773 = vmatpush2.bf16.msra.mxu0 0
    %1774 = vmatprep.subr.bf16.mxu0 0
    %1775 = vmatpush2.bf16.msra.mxu0 0
    %1776 = vmatprep.subr.bf16.mxu0 0
    %1777 = vmatpush2.bf16.msra.mxu0 0
    %1778 = vmatprep.subr.bf16.mxu0 0
    %1779 = vmatpush2.bf16.msra.mxu0 0
    %1780 = vmatprep.subr.bf16.mxu0 0
    %1781 = vmatpush2.bf16.msra.mxu0 0
    %1782 = vmatprep.mubr.bf16.mxu0 0
    %1783 = vmatmul.mubr.bf16.gmra.mxu0 %v1367
    %v1784 = vpop.f32.mrf.mxu0
    %v1785 = vadd.f32 %v1696, %v1784
    %v1786 = vpop.f32.mrf.mxu0
    %v1787 = vpop.f32.mrf.mxu0
    %v1788 = vadd.f32 %v1699, %v1787
    %v1789 = vpop.f32.mrf.mxu0
    %1790 = vdwg.mxu0
    %v1792 = vlaneseq
    %v1793 = vshrl.u32 %v1792, 7
    %v1794 = vsub.s32 0, %v1793
    %v1795 = vrot.slane %v1434, %v1794
    %v1797 = vadd.f32 %v1607, %v1795
    %v1798 = vadd.f32 %v1610, %v1795
    %v1799 = vmul.f32 %v1797, 0.5
    %v1800 = vmul.f32 %v1798, 0.5
    %v1801 = vmul.f32 %v1797, 0.044715
    %v1802 = vmul.f32 %v1798, 0.044715
    %v1803 = vmul.f32 %v1801, %v1797
    %v1804 = vmul.f32 %v1802, %v1798
    %v1805 = vmul.f32 %v1803, %v1797
    %v1806 = vmul.f32 %v1804, %v1798
    %v1807 = vadd.f32 %v1797, %v1805
    %v1808 = vadd.f32 %v1798, %v1806
    %v1809 = vmul.f32 %v1807, 0.7978846
    %v1810 = vmul.f32 %v1808, 0.7978846
    %v1811 = vtanh.pop %v1809
    %v1812 = vtanh.pop %v1810
    %v1813 = vadd.f32 %v1811, 1.0
    %v1814 = vadd.f32 %v1812, 1.0
    %v1815 = vmul.f32 %v1799, %v1813
    %v1816 = vmul.f32 %v1800, %v1814
    %v1817 = vadd.f32 %v1785, %v1795
    %v1818 = vadd.f32 %v1788, %v1795
    %v1819 = vmul.f32 %v1817, 0.5
    %v1820 = vmul.f32 %v1818, 0.5
    %v1821 = vmul.f32 %v1817, 0.044715
    %v1822 = vmul.f32 %v1818, 0.044715
    %v1823 = vmul.f32 %v1821, %v1817
    %v1824 = vmul.f32 %v1822, %v1818
    %v1825 = vmul.f32 %v1823, %v1817
    %v1826 = vmul.f32 %v1824, %v1818
    %v1827 = vadd.f32 %v1817, %v1825
    %v1828 = vadd.f32 %v1818, %v1826
    %v1829 = vmul.f32 %v1827, 0.7978846
    %v1830 = vmul.f32 %v1828, 0.7978846
    %v1831 = vtanh.pop %v1829
    %v1832 = vtanh.pop %v1830
    %v1833 = vadd.f32 %v1831, 1.0
    %v1834 = vadd.f32 %v1832, 1.0
    %v1835 = vmul.f32 %v1819, %v1833
    %v1836 = vmul.f32 %v1820, %v1834
    %1837 = vst [vmem:[#allocation3] sm:$0xff] %v1815
    %1838 = vst [vmem:[#allocation3 + $0x8] sm:$0xff] %v1816
    %1839 = vst [vmem:[#allocation4] sm:$0xff] %v1835
    %1840 = vst [vmem:[#allocation4 + $0x8] sm:$0xff] %v1836
    %v1841 = vld [vmem:[#allocation3] sm:$0x1]
    %1842 = vst [vmem:[#allocation2 + $0x8] sm:$0x1] %v1841
    %v1843 = vld [vmem:[#allocation4] sm:$0x1]
    %1844 = vst [vmem:[#allocation2 + $0x9] sm:$0x1] %v1843
    %v1845 = vld [vmem:[#allocation3 + $0x1] sm:$0x1]
    %1846 = vst [vmem:[#allocation2 + $0xa] sm:$0x1] %v1845
    %v1847 = vld [vmem:[#allocation4 + $0x1] sm:$0x1]
    %1848 = vst [vmem:[#allocation2 + $0xb] sm:$0x1] %v1847
    %v1849 = vld [vmem:[#allocation3 + $0x2] sm:$0x1]
    %1850 = vst [vmem:[#allocation2 + $0xc] sm:$0x1] %v1849
    %v1851 = vld [vmem:[#allocation4 + $0x2] sm:$0x1]
    %1852 = vst [vmem:[#allocation2 + $0xd] sm:$0x1] %v1851
    %v1853 = vld [vmem:[#allocation3 + $0x3] sm:$0x1]
    %1854 = vst [vmem:[#allocation2 + $0xe] sm:$0x1] %v1853
    %v1855 = vld [vmem:[#allocation4 + $0x3] sm:$0x1]
    %1856 = vst [vmem:[#allocation2 + $0xf] sm:$0x1] %v1855
    %v1857 = vld [vmem:[#allocation3 + $0x4] sm:$0x1]
    %1858 = vst [vmem:[#allocation2 + $0x10] sm:$0x1] %v1857
    %v1859 = vld [vmem:[#allocation4 + $0x4] sm:$0x1]
    %1860 = vst [vmem:[#allocation2 + $0x11] sm:$0x1] %v1859
    %v1861 = vld [vmem:[#allocation3 + $0x5] sm:$0x1]
    %1862 = vst [vmem:[#allocation2 + $0x12] sm:$0x1] %v1861
    %v1863 = vld [vmem:[#allocation4 + $0x5] sm:$0x1]
    %1864 = vst [vmem:[#allocation2 + $0x13] sm:$0x1] %v1863
    %v1865 = vld [vmem:[#allocation3 + $0x6] sm:$0x1]
    %1866 = vst [vmem:[#allocation2 + $0x14] sm:$0x1] %v1865
    %v1867 = vld [vmem:[#allocation4 + $0x6] sm:$0x1]
    %1868 = vst [vmem:[#allocation2 + $0x15] sm:$0x1] %v1867
    %v1869 = vld [vmem:[#allocation3 + $0x7] sm:$0x1]
    %1870 = vst [vmem:[#allocation2 + $0x16] sm:$0x1] %v1869
    %v1871 = vld [vmem:[#allocation4 + $0x7] sm:$0x1]
    %1872 = vst [vmem:[#allocation2 + $0x17] sm:$0x1] %v1871
    %v1873 = vld [vmem:[#allocation3 + $0x8] sm:$0x1]
    %1874 = vst [vmem:[#allocation2 + $0x18] sm:$0x1] %v1873
    %v1875 = vld [vmem:[#allocation4 + $0x8] sm:$0x1]
    %1876 = vst [vmem:[#allocation2 + $0x19] sm:$0x1] %v1875
    %v1877 = vld [vmem:[#allocation3 + $0x9] sm:$0x1]
    %1878 = vst [vmem:[#allocation2 + $0x1a] sm:$0x1] %v1877
    %v1879 = vld [vmem:[#allocation4 + $0x9] sm:$0x1]
    %1880 = vst [vmem:[#allocation2 + $0x1b] sm:$0x1] %v1879
    %v1881 = vld [vmem:[#allocation3 + $0xa] sm:$0x1]
    %1882 = vst [vmem:[#allocation2 + $0x1c] sm:$0x1] %v1881
    %v1883 = vld [vmem:[#allocation4 + $0xa] sm:$0x1]
    %1884 = vst [vmem:[#allocation2 + $0x1d] sm:$0x1] %v1883
    %v1885 = vld [vmem:[#allocation3 + $0xb] sm:$0x1]
    %1886 = vst [vmem:[#allocation2 + $0x1e] sm:$0x1] %v1885
    %v1887 = vld [vmem:[#allocation4 + $0xb] sm:$0x1]
    %1888 = vst [vmem:[#allocation2 + $0x1f] sm:$0x1] %v1887
    %v1889 = vld [vmem:[#allocation3 + $0xc] sm:$0x1]
    %1890 = vst [vmem:[#allocation2 + $0x20] sm:$0x1] %v1889
    %v1891 = vld [vmem:[#allocation4 + $0xc] sm:$0x1]
    %1892 = vst [vmem:[#allocation2 + $0x21] sm:$0x1] %v1891
    %v1893 = vld [vmem:[#allocation3 + $0xd] sm:$0x1]
    %1894 = vst [vmem:[#allocation2 + $0x22] sm:$0x1] %v1893
    %v1895 = vld [vmem:[#allocation4 + $0xd] sm:$0x1]
    %1896 = vst [vmem:[#allocation2 + $0x23] sm:$0x1] %v1895
    %v1897 = vld [vmem:[#allocation3 + $0xe] sm:$0x1]
    %1898 = vst [vmem:[#allocation2 + $0x24] sm:$0x1] %v1897
    %v1899 = vld [vmem:[#allocation4 + $0xe] sm:$0x1]
    %1900 = vst [vmem:[#allocation2 + $0x25] sm:$0x1] %v1899
    %v1901 = vld [vmem:[#allocation3 + $0xf] sm:$0x1]
    %1902 = vst [vmem:[#allocation2 + $0x26] sm:$0x1] %v1901
    %v1903 = vld [vmem:[#allocation4 + $0xf] sm:$0x1]
    %1904 = vst [vmem:[#allocation2 + $0x27] sm:$0x1] %v1903
    %v1905 = vld [vmem:[#allocation2 + $0x8] sm:$0xff]
    %v1906 = vld [vmem:[#allocation2 + $0x10] sm:$0xff]
    %v1907 = vld [vmem:[#allocation2 + $0x18] sm:$0xff]
    %v1908 = vld [vmem:[#allocation2 + $0x20] sm:$0xff]
    %v1909 = vadd.s32 %v441, 16
    %v1910 = vadd.s32 %v441, 24
    %vm1911 = vcmp.lt.s32.totalorder %v441, 0
    %v1912 = vsub.s32 0, %v441
    %v1913 = vsel %vm1911, %v1912, %v441
    %v1914 = vshrl.u32 %v1913, 4
    %v1915 = vand.u32 %v1913, 15
    %v1916 = vsub.s32 0, %v1915
    %v1917 = vsel %vm1911, %v1916, %v1915
    %vm1918 = vcmp.lt.s32.totalorder %v1318, 0
    %v1919 = vsub.s32 0, %v1318
    %v1920 = vsel %vm1918, %v1919, %v1318
    %v1921 = vshrl.u32 %v1920, 4
    %v1922 = vand.u32 %v1920, 15
    %v1923 = vsub.s32 0, %v1922
    %v1924 = vsel %vm1918, %v1923, %v1922
    %vm1925 = vcmp.lt.s32.totalorder %v1909, 0
    %v1926 = vsub.s32 0, %v1909
    %v1927 = vsel %vm1925, %v1926, %v1909
    %v1928 = vshrl.u32 %v1927, 4
    %v1929 = vand.u32 %v1927, 15
    %v1930 = vsub.s32 0, %v1929
    %v1931 = vsel %vm1925, %v1930, %v1929
    %vm1932 = vcmp.lt.s32.totalorder %v1910, 0
    %v1933 = vsub.s32 0, %v1910
    %v1934 = vsel %vm1932, %v1933, %v1910
    %v1935 = vshrl.u32 %v1934, 4
    %v1936 = vand.u32 %v1934, 15
    %v1937 = vsub.s32 0, %v1936
    %v1938 = vsel %vm1932, %v1937, %v1936
    %vm1939 = vcmp.ne.s32.totalorder %v1917, 0
    %vm1940 = vcmp.ne.s32.totalorder %v1924, 0
    %vm1941 = vcmp.ne.s32.totalorder %v1931, 0
    %vm1942 = vcmp.ne.s32.totalorder %v1938, 0
    %vm1943 = vcmp.lt.s32.totalorder %v1917, 0
    %vm1944 = vcmp.lt.s32.totalorder %v1924, 0
    %vm1945 = vcmp.lt.s32.totalorder %v1931, 0
    %vm1946 = vcmp.lt.s32.totalorder %v1938, 0
    %vm1947 = vmand %vm1943, %vm1939
    %vm1948 = vmand %vm1944, %vm1940
    %vm1949 = vmand %vm1945, %vm1941
    %vm1950 = vmand %vm1946, %vm1942
    %v1951 = vadd.s32 %v1917, 16
    %v1952 = vadd.s32 %v1924, 16
    %v1953 = vadd.s32 %v1931, 16
    %v1954 = vadd.s32 %v1938, 16
    %v1955 = vsel %vm1947, %v1951, %v1917
    %v1956 = vsel %vm1948, %v1952, %v1924
    %v1957 = vsel %vm1949, %v1953, %v1931
    %v1958 = vsel %vm1950, %v1954, %v1938
    %v1959 = vadd.s32 %v1955, 4294967295
    %v1960 = vadd.s32 %v1956, 4294967295
    %v1961 = vadd.s32 %v1957, 4294967295
    %v1962 = vadd.s32 %v1958, 4294967295
    %vm1963 = vcmp.ge.s32.totalorder %v1959, 0
    %vm1964 = vcmp.ge.s32.totalorder %v1960, 0
    %vm1965 = vcmp.ge.s32.totalorder %v1961, 0
    %vm1966 = vcmp.ge.s32.totalorder %v1962, 0
    %vm1967 = vcmp.lt.s32.totalorder %v1959, 16
    %vm1968 = vcmp.lt.s32.totalorder %v1960, 16
    %vm1969 = vcmp.lt.s32.totalorder %v1961, 16
    %vm1970 = vcmp.lt.s32.totalorder %v1962, 16
    %vm1971 = vmand %vm1963, %vm1967
    %vm1972 = vmand %vm1964, %vm1968
    %vm1973 = vmand %vm1965, %vm1969
    %vm1974 = vmand %vm1966, %vm1970
    %v1975 = vld [vmem:[#allocation2 + $0x7] sm:$0xff]
    %v1976 = vld [vmem:[#allocation2 + $0xf] sm:$0xff]
    %v1977 = vld [vmem:[#allocation2 + $0x17] sm:$0xff]
    %v1978 = vld [vmem:[#allocation2 + $0x1f] sm:$0xff]
    %v1979 = vsel %vm1971, %v1975, 0.0
    %v1980 = vsel %vm1972, %v1976, 0.0
    %v1981 = vsel %vm1973, %v1977, 0.0
    %v1982 = vsel %vm1974, %v1978, 0.0
    %v1983 = vadd.s32 %v1955, 1
    %v1984 = vadd.s32 %v1956, 1
    %v1985 = vadd.s32 %v1957, 1
    %v1986 = vadd.s32 %v1958, 1
    %vm1987 = vcmp.ge.s32.totalorder %v1983, 0
    %vm1988 = vcmp.ge.s32.totalorder %v1984, 0
    %vm1989 = vcmp.ge.s32.totalorder %v1985, 0
    %vm1990 = vcmp.ge.s32.totalorder %v1986, 0
    %vm1991 = vcmp.lt.s32.totalorder %v1983, 16
    %vm1992 = vcmp.lt.s32.totalorder %v1984, 16
    %vm1993 = vcmp.lt.s32.totalorder %v1985, 16
    %vm1994 = vcmp.lt.s32.totalorder %v1986, 16
    %vm1995 = vmand %vm1987, %vm1991
    %vm1996 = vmand %vm1988, %vm1992
    %vm1997 = vmand %vm1989, %vm1993
    %vm1998 = vmand %vm1990, %vm1994
    %v1999 = vld [vmem:[#allocation2 + $0x9] sm:$0xff]
    %v2000 = vld [vmem:[#allocation2 + $0x11] sm:$0xff]
    %v2001 = vld [vmem:[#allocation2 + $0x19] sm:$0xff]
    %v2002 = vld [vmem:[#allocation2 + $0x21] sm:$0xff]
    %v2003 = vsel %vm1995, %v1999, 0.0
    %v2004 = vsel %vm1996, %v2000, 0.0
    %v2005 = vsel %vm1997, %v2001, 0.0
    %v2006 = vsel %vm1998, %v2002, 0.0
    %v2007 = vpack.c.bf16 %v1906, %v1905
    %v2008 = vpack.c.bf16 %v1908, %v1907
    %v2009 = vpack.c.bf16 %v1980, %v1979
    %v2010 = vpack.c.bf16 %v1982, %v1981
    %v2011 = vpack.c.bf16 %v2004, %v2003
    %v2012 = vpack.c.bf16 %v2006, %v2005
    %v2013 = vld [vmem:[#allocation16] sm:$0xf]
    %v2014 = vld [vmem:[#allocation16 + $0x4] sm:$0xf]
    %v2015 = vld [vmem:[#allocation16 + $0x8] sm:$0xf]
    %v2016 = vld [vmem:[#allocation16 + $0xc] sm:$0xf]
    %v2017 = vld [vmem:[#allocation16 + $0x10] sm:$0xf]
    %v2018 = vld [vmem:[#allocation16 + $0x14] sm:$0xf]
    %v2019 = vld [vmem:[#allocation16 + $0x18] sm:$0xf]
    %v2020 = vld [vmem:[#allocation16 + $0x1c] sm:$0xf]
    %v2021 = vld [vmem:[#allocation16 + $0x20] sm:$0xf]
    %v2022 = vld [vmem:[#allocation16 + $0x24] sm:$0xf]
    %v2023 = vld [vmem:[#allocation16 + $0x28] sm:$0xf]
    %v2024 = vld [vmem:[#allocation16 + $0x2c] sm:$0xf]
    %v2025 = vld [vmem:[#allocation16 + $0x30] sm:$0xf]
    %v2026 = vld [vmem:[#allocation16 + $0x34] sm:$0xf]
    %v2027 = vld [vmem:[#allocation16 + $0x38] sm:$0xf]
    %v2028 = vld [vmem:[#allocation16 + $0x3c] sm:$0xf]
    %v2029 = vld [vmem:[#allocation16 + $0x40] sm:$0xf]
    %v2030 = vld [vmem:[#allocation16 + $0x44] sm:$0xf]
    %v2031 = vld [vmem:[#allocation16 + $0x48] sm:$0xf]
    %v2032 = vld [vmem:[#allocation16 + $0x4c] sm:$0xf]
    %v2033 = vld [vmem:[#allocation16 + $0x50] sm:$0xf]
    %v2034 = vld [vmem:[#allocation16 + $0x54] sm:$0xf]
    %v2035 = vld [vmem:[#allocation16 + $0x58] sm:$0xf]
    %v2036 = vld [vmem:[#allocation16 + $0x5c] sm:$0xf]
    %v2037 = vld [vmem:[#allocation16 + $0x60] sm:$0xf]
    %v2038 = vld [vmem:[#allocation16 + $0x64] sm:$0xf]
    %v2039 = vld [vmem:[#allocation16 + $0x68] sm:$0xf]
    %v2040 = vld [vmem:[#allocation16 + $0x6c] sm:$0xf]
    %v2041 = vld [vmem:[#allocation16 + $0x70] sm:$0xf]
    %v2042 = vld [vmem:[#allocation16 + $0x74] sm:$0xf]
    %v2043 = vld [vmem:[#allocation16 + $0x78] sm:$0xf]
    %v2044 = vld [vmem:[#allocation16 + $0x7c] sm:$0xf]
    %v2045 = vld [vmem:[#allocation16 + $0x80] sm:$0xf]
    %v2046 = vld [vmem:[#allocation16 + $0x84] sm:$0xf]
    %v2047 = vld [vmem:[#allocation16 + $0x88] sm:$0xf]
    %v2048 = vld [vmem:[#allocation16 + $0x8c] sm:$0xf]
    %v2049 = vld [vmem:[#allocation16 + $0x90] sm:$0xf]
    %v2050 = vld [vmem:[#allocation16 + $0x94] sm:$0xf]
    %v2051 = vld [vmem:[#allocation16 + $0x98] sm:$0xf]
    %v2052 = vld [vmem:[#allocation16 + $0x9c] sm:$0xf]
    %v2053 = vld [vmem:[#allocation16 + $0xa0] sm:$0xf]
    %v2054 = vld [vmem:[#allocation16 + $0xa4] sm:$0xf]
    %v2055 = vld [vmem:[#allocation16 + $0xa8] sm:$0xf]
    %v2056 = vld [vmem:[#allocation16 + $0xac] sm:$0xf]
    %v2057 = vld [vmem:[#allocation16 + $0xb0] sm:$0xf]
    %v2058 = vld [vmem:[#allocation16 + $0xb4] sm:$0xf]
    %v2059 = vld [vmem:[#allocation16 + $0xb8] sm:$0xf]
    %v2060 = vld [vmem:[#allocation16 + $0xbc] sm:$0xf]
    %v2061 = vld [vmem:[#allocation16 + $0xc0] sm:$0xf]
    %v2062 = vld [vmem:[#allocation16 + $0xc4] sm:$0xf]
    %v2063 = vld [vmem:[#allocation16 + $0xc8] sm:$0xf]
    %v2064 = vld [vmem:[#allocation16 + $0xcc] sm:$0xf]
    %v2065 = vld [vmem:[#allocation16 + $0xd0] sm:$0xf]
    %v2066 = vld [vmem:[#allocation16 + $0xd4] sm:$0xf]
    %v2067 = vld [vmem:[#allocation16 + $0xd8] sm:$0xf]
    %v2068 = vld [vmem:[#allocation16 + $0xdc] sm:$0xf]
    %v2069 = vld [vmem:[#allocation16 + $0xe0] sm:$0xf]
    %v2070 = vld [vmem:[#allocation16 + $0xe4] sm:$0xf]
    %v2071 = vld [vmem:[#allocation16 + $0xe8] sm:$0xf]
    %v2072 = vld [vmem:[#allocation16 + $0xec] sm:$0xf]
    %v2073 = vld [vmem:[#allocation16 + $0xf0] sm:$0xf]
    %v2074 = vld [vmem:[#allocation16 + $0xf4] sm:$0xf]
    %v2075 = vld [vmem:[#allocation16 + $0xf8] sm:$0xf]
    %v2076 = vld [vmem:[#allocation16 + $0xfc] sm:$0xf]
    %v2077 = vld [vmem:[%s14] sm:$0x1]
    %v2094 = vunpack.c.l.b16 %v2029
    %v2095 = vunpack.c.l.b16 %v2030
    %v2096 = vunpack.c.l.b16 %v2031
    %v2097 = vunpack.c.l.b16 %v2032
    %v2098 = vunpack.c.l.b16 %v2033
    %v2099 = vunpack.c.l.b16 %v2034
    %v2100 = vunpack.c.l.b16 %v2035
    %v2101 = vunpack.c.l.b16 %v2036
    %v2102 = vunpack.c.l.b16 %v2037
    %v2103 = vunpack.c.l.b16 %v2038
    %v2104 = vunpack.c.l.b16 %v2039
    %v2105 = vunpack.c.l.b16 %v2040
    %v2106 = vunpack.c.l.b16 %v2041
    %v2107 = vunpack.c.l.b16 %v2042
    %v2108 = vunpack.c.l.b16 %v2043
    %v2109 = vunpack.c.l.b16 %v2044
    %v2110 = vpack.c.b16 %v2095, %v2094
    %v2111 = vpack.c.b16 %v2097, %v2096
    %v2112 = vpack.c.b16 %v2099, %v2098
    %v2113 = vpack.c.b16 %v2101, %v2100
    %v2114 = vpack.c.b16 %v2103, %v2102
    %v2115 = vpack.c.b16 %v2105, %v2104
    %v2116 = vpack.c.b16 %v2107, %v2106
    %v2117 = vpack.c.b16 %v2109, %v2108
    %2126 = vmatprep.subr.bf16.mxu0 0
    %2127 = vmatpush1.bf16.msra.mxu0 %v2117
    %2128 = vmatprep.subr.bf16.mxu0 0
    %2129 = vmatpush1.bf16.msra.mxu0 %v2116
    %2130 = vmatprep.subr.bf16.mxu0 0
    %2131 = vmatpush1.bf16.msra.mxu0 %v2115
    %2132 = vmatprep.subr.bf16.mxu0 0
    %2133 = vmatpush1.bf16.msra.mxu0 %v2114
    %2134 = vmatprep.subr.bf16.mxu0 0
    %2135 = vmatpush1.bf16.msra.mxu0 %v2113
    %2136 = vmatprep.subr.bf16.mxu0 0
    %2137 = vmatpush1.bf16.msra.mxu0 %v2112
    %2138 = vmatprep.subr.bf16.mxu0 0
    %2139 = vmatpush1.bf16.msra.mxu0 %v2111
    %2140 = vmatprep.subr.bf16.mxu0 0
    %2141 = vmatpush1.bf16.msra.mxu0 %v2110
    %2142 = vmatprep.subr.bf16.mxu0 0
    %2143 = vmatpush2.bf16.msra.mxu0 0
    %2144 = vmatprep.subr.bf16.mxu0 0
    %2145 = vmatpush2.bf16.msra.mxu0 0
    %2146 = vmatprep.subr.bf16.mxu0 0
    %2147 = vmatpush2.bf16.msra.mxu0 0
    %2148 = vmatprep.subr.bf16.mxu0 0
    %2149 = vmatpush2.bf16.msra.mxu0 0
    %2150 = vmatprep.subr.bf16.mxu0 0
    %2151 = vmatpush2.bf16.msra.mxu0 0
    %2152 = vmatprep.subr.bf16.mxu0 0
    %2153 = vmatpush2.bf16.msra.mxu0 0
    %2154 = vmatprep.subr.bf16.mxu0 0
    %2155 = vmatpush2.bf16.msra.mxu0 0
    %2156 = vmatprep.subr.bf16.mxu0 0
    %2157 = vmatpush2.bf16.msra.mxu0 0
    %2158 = vmatprep.mubr.bf16.mxu0 0
    %2159 = vmatmul.mubr.bf16.gmra.mxu0 %v2007
    %v2160 = vpop.f32.mrf.mxu0
    %v2161 = vadd.f32 0.0, %v2160
    %v2162 = vpop.f32.mrf.mxu0
    %v2163 = vpop.f32.mrf.mxu0
    %v2164 = vadd.f32 0.0, %v2163
    %v2165 = vpop.f32.mrf.mxu0
    %2166 = vmatprep.mubr.bf16.mxu0 0
    %2167 = vmatmul.mubr.bf16.gmra.mxu0 %v2008
    %v2168 = vpop.f32.mrf.mxu0
    %v2169 = vadd.f32 0.0, %v2168
    %v2170 = vpop.f32.mrf.mxu0
    %v2171 = vpop.f32.mrf.mxu0
    %v2172 = vadd.f32 0.0, %v2171
    %v2173 = vpop.f32.mrf.mxu0
    %2174 = vdwg.mxu0
    %v2191 = vunpack.c.l.b16 %v2013
    %v2192 = vunpack.c.l.b16 %v2014
    %v2193 = vunpack.c.l.b16 %v2015
    %v2194 = vunpack.c.l.b16 %v2016
    %v2195 = vunpack.c.l.b16 %v2017
    %v2196 = vunpack.c.l.b16 %v2018
    %v2197 = vunpack.c.l.b16 %v2019
    %v2198 = vunpack.c.l.b16 %v2020
    %v2199 = vunpack.c.l.b16 %v2021
    %v2200 = vunpack.c.l.b16 %v2022
    %v2201 = vunpack.c.l.b16 %v2023
    %v2202 = vunpack.c.l.b16 %v2024
    %v2203 = vunpack.c.l.b16 %v2025
    %v2204 = vunpack.c.l.b16 %v2026
    %v2205 = vunpack.c.l.b16 %v2027
    %v2206 = vunpack.c.l.b16 %v2028
    %v2207 = vpack.c.b16 %v2192, %v2191
    %v2208 = vpack.c.b16 %v2194, %v2193
    %v2209 = vpack.c.b16 %v2196, %v2195
    %v2210 = vpack.c.b16 %v2198, %v2197
    %v2211 = vpack.c.b16 %v2200, %v2199
    %v2212 = vpack.c.b16 %v2202, %v2201
    %v2213 = vpack.c.b16 %v2204, %v2203
    %v2214 = vpack.c.b16 %v2206, %v2205
    %2223 = vmatprep.subr.bf16.mxu0 0
    %2224 = vmatpush1.bf16.msra.mxu0 %v2214
    %2225 = vmatprep.subr.bf16.mxu0 0
    %2226 = vmatpush1.bf16.msra.mxu0 %v2213
    %2227 = vmatprep.subr.bf16.mxu0 0
    %2228 = vmatpush1.bf16.msra.mxu0 %v2212
    %2229 = vmatprep.subr.bf16.mxu0 0
    %2230 = vmatpush1.bf16.msra.mxu0 %v2211
    %2231 = vmatprep.subr.bf16.mxu0 0
    %2232 = vmatpush1.bf16.msra.mxu0 %v2210
    %2233 = vmatprep.subr.bf16.mxu0 0
    %2234 = vmatpush1.bf16.msra.mxu0 %v2209
    %2235 = vmatprep.subr.bf16.mxu0 0
    %2236 = vmatpush1.bf16.msra.mxu0 %v2208
    %2237 = vmatprep.subr.bf16.mxu0 0
    %2238 = vmatpush1.bf16.msra.mxu0 %v2207
    %2239 = vmatprep.subr.bf16.mxu0 0
    %2240 = vmatpush2.bf16.msra.mxu0 0
    %2241 = vmatprep.subr.bf16.mxu0 0
    %2242 = vmatpush2.bf16.msra.mxu0 0
    %2243 = vmatprep.subr.bf16.mxu0 0
    %2244 = vmatpush2.bf16.msra.mxu0 0
    %2245 = vmatprep.subr.bf16.mxu0 0
    %2246 = vmatpush2.bf16.msra.mxu0 0
    %2247 = vmatprep.subr.bf16.mxu0 0
    %2248 = vmatpush2.bf16.msra.mxu0 0
    %2249 = vmatprep.subr.bf16.mxu0 0
    %2250 = vmatpush2.bf16.msra.mxu0 0
    %2251 = vmatprep.subr.bf16.mxu0 0
    %2252 = vmatpush2.bf16.msra.mxu0 0
    %2253 = vmatprep.subr.bf16.mxu0 0
    %2254 = vmatpush2.bf16.msra.mxu0 0
    %2255 = vmatprep.mubr.bf16.mxu0 0
    %2256 = vmatmul.mubr.bf16.gmra.mxu0 %v2009
    %v2257 = vpop.f32.mrf.mxu0
    %v2258 = vadd.f32 %v2161, %v2257
    %v2259 = vpop.f32.mrf.mxu0
    %v2260 = vpop.f32.mrf.mxu0
    %v2261 = vadd.f32 %v2164, %v2260
    %v2262 = vpop.f32.mrf.mxu0
    %2263 = vmatprep.mubr.bf16.mxu0 0
    %2264 = vmatmul.mubr.bf16.gmra.mxu0 %v2010
    %v2265 = vpop.f32.mrf.mxu0
    %v2266 = vadd.f32 %v2169, %v2265
    %v2267 = vpop.f32.mrf.mxu0
    %v2268 = vpop.f32.mrf.mxu0
    %v2269 = vadd.f32 %v2172, %v2268
    %v2270 = vpop.f32.mrf.mxu0
    %2271 = vdwg.mxu0
    %v2288 = vunpack.c.l.b16 %v2061
    %v2289 = vunpack.c.l.b16 %v2062
    %v2290 = vunpack.c.l.b16 %v2063
    %v2291 = vunpack.c.l.b16 %v2064
    %v2292 = vunpack.c.l.b16 %v2065
    %v2293 = vunpack.c.l.b16 %v2066
    %v2294 = vunpack.c.l.b16 %v2067
    %v2295 = vunpack.c.l.b16 %v2068
    %v2296 = vunpack.c.l.b16 %v2069
    %v2297 = vunpack.c.l.b16 %v2070
    %v2298 = vunpack.c.l.b16 %v2071
    %v2299 = vunpack.c.l.b16 %v2072
    %v2300 = vunpack.c.l.b16 %v2073
    %v2301 = vunpack.c.l.b16 %v2074
    %v2302 = vunpack.c.l.b16 %v2075
    %v2303 = vunpack.c.l.b16 %v2076
    %v2304 = vpack.c.b16 %v2289, %v2288
    %v2305 = vpack.c.b16 %v2291, %v2290
    %v2306 = vpack.c.b16 %v2293, %v2292
    %v2307 = vpack.c.b16 %v2295, %v2294
    %v2308 = vpack.c.b16 %v2297, %v2296
    %v2309 = vpack.c.b16 %v2299, %v2298
    %v2310 = vpack.c.b16 %v2301, %v2300
    %v2311 = vpack.c.b16 %v2303, %v2302
    %2320 = vmatprep.subr.bf16.mxu0 0
    %2321 = vmatpush1.bf16.msra.mxu0 %v2311
    %2322 = vmatprep.subr.bf16.mxu0 0
    %2323 = vmatpush1.bf16.msra.mxu0 %v2310
    %2324 = vmatprep.subr.bf16.mxu0 0
    %2325 = vmatpush1.bf16.msra.mxu0 %v2309
    %2326 = vmatprep.subr.bf16.mxu0 0
    %2327 = vmatpush1.bf16.msra.mxu0 %v2308
    %2328 = vmatprep.subr.bf16.mxu0 0
    %2329 = vmatpush1.bf16.msra.mxu0 %v2307
    %2330 = vmatprep.subr.bf16.mxu0 0
    %2331 = vmatpush1.bf16.msra.mxu0 %v2306
    %2332 = vmatprep.subr.bf16.mxu0 0
    %2333 = vmatpush1.bf16.msra.mxu0 %v2305
    %2334 = vmatprep.subr.bf16.mxu0 0
    %2335 = vmatpush1.bf16.msra.mxu0 %v2304
    %2336 = vmatprep.subr.bf16.mxu0 0
    %2337 = vmatpush2.bf16.msra.mxu0 0
    %2338 = vmatprep.subr.bf16.mxu0 0
    %2339 = vmatpush2.bf16.msra.mxu0 0
    %2340 = vmatprep.subr.bf16.mxu0 0
    %2341 = vmatpush2.bf16.msra.mxu0 0
    %2342 = vmatprep.subr.bf16.mxu0 0
    %2343 = vmatpush2.bf16.msra.mxu0 0
    %2344 = vmatprep.subr.bf16.mxu0 0
    %2345 = vmatpush2.bf16.msra.mxu0 0
    %2346 = vmatprep.subr.bf16.mxu0 0
    %2347 = vmatpush2.bf16.msra.mxu0 0
    %2348 = vmatprep.subr.bf16.mxu0 0
    %2349 = vmatpush2.bf16.msra.mxu0 0
    %2350 = vmatprep.subr.bf16.mxu0 0
    %2351 = vmatpush2.bf16.msra.mxu0 0
    %2352 = vmatprep.mubr.bf16.mxu0 0
    %2353 = vmatmul.mubr.bf16.gmra.mxu0 %v2011
    %v2354 = vpop.f32.mrf.mxu0
    %v2355 = vadd.f32 0.0, %v2354
    %v2356 = vpop.f32.mrf.mxu0
    %v2357 = vpop.f32.mrf.mxu0
    %v2358 = vadd.f32 0.0, %v2357
    %v2359 = vpop.f32.mrf.mxu0
    %2360 = vmatprep.mubr.bf16.mxu0 0
    %2361 = vmatmul.mubr.bf16.gmra.mxu0 %v2012
    %v2362 = vpop.f32.mrf.mxu0
    %v2363 = vadd.f32 0.0, %v2362
    %v2364 = vpop.f32.mrf.mxu0
    %v2365 = vpop.f32.mrf.mxu0
    %v2366 = vadd.f32 0.0, %v2365
    %v2367 = vpop.f32.mrf.mxu0
    %2368 = vdwg.mxu0
    %v2385 = vunpack.c.l.b16 %v2045
    %v2386 = vunpack.c.l.b16 %v2046
    %v2387 = vunpack.c.l.b16 %v2047
    %v2388 = vunpack.c.l.b16 %v2048
    %v2389 = vunpack.c.l.b16 %v2049
    %v2390 = vunpack.c.l.b16 %v2050
    %v2391 = vunpack.c.l.b16 %v2051
    %v2392 = vunpack.c.l.b16 %v2052
    %v2393 = vunpack.c.l.b16 %v2053
    %v2394 = vunpack.c.l.b16 %v2054
    %v2395 = vunpack.c.l.b16 %v2055
    %v2396 = vunpack.c.l.b16 %v2056
    %v2397 = vunpack.c.l.b16 %v2057
    %v2398 = vunpack.c.l.b16 %v2058
    %v2399 = vunpack.c.l.b16 %v2059
    %v2400 = vunpack.c.l.b16 %v2060
    %v2401 = vpack.c.b16 %v2386, %v2385
    %v2402 = vpack.c.b16 %v2388, %v2387
    %v2403 = vpack.c.b16 %v2390, %v2389
    %v2404 = vpack.c.b16 %v2392, %v2391
    %v2405 = vpack.c.b16 %v2394, %v2393
    %v2406 = vpack.c.b16 %v2396, %v2395
    %v2407 = vpack.c.b16 %v2398, %v2397
    %v2408 = vpack.c.b16 %v2400, %v2399
    %2417 = vmatprep.subr.bf16.mxu0 0
    %2418 = vmatpush1.bf16.msra.mxu0 %v2408
    %2419 = vmatprep.subr.bf16.mxu0 0
    %2420 = vmatpush1.bf16.msra.mxu0 %v2407
    %2421 = vmatprep.subr.bf16.mxu0 0
    %2422 = vmatpush1.bf16.msra.mxu0 %v2406
    %2423 = vmatprep.subr.bf16.mxu0 0
    %2424 = vmatpush1.bf16.msra.mxu0 %v2405
    %2425 = vmatprep.subr.bf16.mxu0 0
    %2426 = vmatpush1.bf16.msra.mxu0 %v2404
    %2427 = vmatprep.subr.bf16.mxu0 0
    %2428 = vmatpush1.bf16.msra.mxu0 %v2403
    %2429 = vmatprep.subr.bf16.mxu0 0
    %2430 = vmatpush1.bf16.msra.mxu0 %v2402
    %2431 = vmatprep.subr.bf16.mxu0 0
    %2432 = vmatpush1.bf16.msra.mxu0 %v2401
    %2433 = vmatprep.subr.bf16.mxu0 0
    %2434 = vmatpush2.bf16.msra.mxu0 0
    %2435 = vmatprep.subr.bf16.mxu0 0
    %2436 = vmatpush2.bf16.msra.mxu0 0
    %2437 = vmatprep.subr.bf16.mxu0 0
    %2438 = vmatpush2.bf16.msra.mxu0 0
    %2439 = vmatprep.subr.bf16.mxu0 0
    %2440 = vmatpush2.bf16.msra.mxu0 0
    %2441 = vmatprep.subr.bf16.mxu0 0
    %2442 = vmatpush2.bf16.msra.mxu0 0
    %2443 = vmatprep.subr.bf16.mxu0 0
    %2444 = vmatpush2.bf16.msra.mxu0 0
    %2445 = vmatprep.subr.bf16.mxu0 0
    %2446 = vmatpush2.bf16.msra.mxu0 0
    %2447 = vmatprep.subr.bf16.mxu0 0
    %2448 = vmatpush2.bf16.msra.mxu0 0
    %2449 = vmatprep.mubr.bf16.mxu0 0
    %2450 = vmatmul.mubr.bf16.gmra.mxu0 %v2007
    %v2451 = vpop.f32.mrf.mxu0
    %v2452 = vadd.f32 %v2355, %v2451
    %v2453 = vpop.f32.mrf.mxu0
    %v2454 = vpop.f32.mrf.mxu0
    %v2455 = vadd.f32 %v2358, %v2454
    %v2456 = vpop.f32.mrf.mxu0
    %2457 = vmatprep.mubr.bf16.mxu0 0
    %2458 = vmatmul.mubr.bf16.gmra.mxu0 %v2008
    %v2459 = vpop.f32.mrf.mxu0
    %v2460 = vadd.f32 %v2363, %v2459
    %v2461 = vpop.f32.mrf.mxu0
    %v2462 = vpop.f32.mrf.mxu0
    %v2463 = vadd.f32 %v2366, %v2462
    %v2464 = vpop.f32.mrf.mxu0
    %2465 = vdwg.mxu0
    %v2467 = vlaneseq
    %v2468 = vshrl.u32 %v2467, 7
    %v2469 = vsub.s32 0, %v2468
    %v2470 = vrot.slane %v2077, %v2469
    %v2472 = vadd.f32 %v2258, %v2470
    %v2473 = vadd.f32 %v2261, %v2470
    %v2474 = vadd.f32 %v2266, %v2470
    %v2475 = vadd.f32 %v2269, %v2470
    %v2476 = vmul.f32 %v2472, 0.5
    %v2477 = vmul.f32 %v2473, 0.5
    %v2478 = vmul.f32 %v2474, 0.5
    %v2479 = vmul.f32 %v2475, 0.5
    %v2480 = vmul.f32 %v2472, 0.044715
    %v2481 = vmul.f32 %v2473, 0.044715
    %v2482 = vmul.f32 %v2474, 0.044715
    %v2483 = vmul.f32 %v2475, 0.044715
    %v2484 = vmul.f32 %v2480, %v2472
    %v2485 = vmul.f32 %v2481, %v2473
    %v2486 = vmul.f32 %v2482, %v2474
    %v2487 = vmul.f32 %v2483, %v2475
    %v2488 = vmul.f32 %v2484, %v2472
    %v2489 = vmul.f32 %v2485, %v2473
    %v2490 = vmul.f32 %v2486, %v2474
    %v2491 = vmul.f32 %v2487, %v2475
    %v2492 = vadd.f32 %v2472, %v2488
    %v2493 = vadd.f32 %v2473, %v2489
    %v2494 = vadd.f32 %v2474, %v2490
    %v2495 = vadd.f32 %v2475, %v2491
    %v2496 = vmul.f32 %v2492, 0.7978846
    %v2497 = vmul.f32 %v2493, 0.7978846
    %v2498 = vmul.f32 %v2494, 0.7978846
    %v2499 = vmul.f32 %v2495, 0.7978846
    %v2500 = vtanh.pop %v2496
    %v2501 = vtanh.pop %v2497
    %v2502 = vtanh.pop %v2498
    %v2503 = vtanh.pop %v2499
    %v2504 = vadd.f32 %v2500, 1.0
    %v2505 = vadd.f32 %v2501, 1.0
    %v2506 = vadd.f32 %v2502, 1.0
    %v2507 = vadd.f32 %v2503, 1.0
    %v2508 = vmul.f32 %v2476, %v2504
    %v2509 = vmul.f32 %v2477, %v2505
    %v2510 = vmul.f32 %v2478, %v2506
    %v2511 = vmul.f32 %v2479, %v2507
    %v2512 = vadd.f32 %v2452, %v2470
    %v2513 = vadd.f32 %v2455, %v2470
    %v2514 = vadd.f32 %v2460, %v2470
    %v2515 = vadd.f32 %v2463, %v2470
    %v2516 = vmul.f32 %v2512, 0.5
    %v2517 = vmul.f32 %v2513, 0.5
    %v2518 = vmul.f32 %v2514, 0.5
    %v2519 = vmul.f32 %v2515, 0.5
    %v2520 = vmul.f32 %v2512, 0.044715
    %v2521 = vmul.f32 %v2513, 0.044715
    %v2522 = vmul.f32 %v2514, 0.044715
    %v2523 = vmul.f32 %v2515, 0.044715
    %v2524 = vmul.f32 %v2520, %v2512
    %v2525 = vmul.f32 %v2521, %v2513
    %v2526 = vmul.f32 %v2522, %v2514
    %v2527 = vmul.f32 %v2523, %v2515
    %v2528 = vmul.f32 %v2524, %v2512
    %v2529 = vmul.f32 %v2525, %v2513
    %v2530 = vmul.f32 %v2526, %v2514
    %v2531 = vmul.f32 %v2527, %v2515
    %v2532 = vadd.f32 %v2512, %v2528
    %v2533 = vadd.f32 %v2513, %v2529
    %v2534 = vadd.f32 %v2514, %v2530
    %v2535 = vadd.f32 %v2515, %v2531
    %v2536 = vmul.f32 %v2532, 0.7978846
    %v2537 = vmul.f32 %v2533, 0.7978846
    %v2538 = vmul.f32 %v2534, 0.7978846
    %v2539 = vmul.f32 %v2535, 0.7978846
    %v2540 = vtanh.pop %v2536
    %v2541 = vtanh.pop %v2537
    %v2542 = vtanh.pop %v2538
    %v2543 = vtanh.pop %v2539
    %v2544 = vadd.f32 %v2540, 1.0
    %v2545 = vadd.f32 %v2541, 1.0
    %v2546 = vadd.f32 %v2542, 1.0
    %v2547 = vadd.f32 %v2543, 1.0
    %v2548 = vmul.f32 %v2516, %v2544
    %v2549 = vmul.f32 %v2517, %v2545
    %v2550 = vmul.f32 %v2518, %v2546
    %v2551 = vmul.f32 %v2519, %v2547
    %2552 = vst [vmem:[#allocation3] sm:$0xff] %v2508
    %2553 = vst [vmem:[#allocation3 + $0x8] sm:$0xff] %v2509
    %2554 = vst [vmem:[#allocation3 + $0x10] sm:$0xff] %v2510
    %2555 = vst [vmem:[#allocation3 + $0x18] sm:$0xff] %v2511
    %2556 = vst [vmem:[#allocation4] sm:$0xff] %v2548
    %2557 = vst [vmem:[#allocation4 + $0x8] sm:$0xff] %v2549
    %2558 = vst [vmem:[#allocation4 + $0x10] sm:$0xff] %v2550
    %2559 = vst [vmem:[#allocation4 + $0x18] sm:$0xff] %v2551
    %v2560 = vld [vmem:[#allocation3] sm:$0x1]
    %2561 = vst [vmem:[#allocation2 + $0x8] sm:$0x1] %v2560
    %v2562 = vld [vmem:[#allocation4] sm:$0x1]
    %2563 = vst [vmem:[#allocation2 + $0x9] sm:$0x1] %v2562
    %v2564 = vld [vmem:[#allocation3 + $0x1] sm:$0x1]
    %2565 = vst [vmem:[#allocation2 + $0xa] sm:$0x1] %v2564
    %v2566 = vld [vmem:[#allocation4 + $0x1] sm:$0x1]
    %2567 = vst [vmem:[#allocation2 + $0xb] sm:$0x1] %v2566
    %v2568 = vld [vmem:[#allocation3 + $0x2] sm:$0x1]
    %2569 = vst [vmem:[#allocation2 + $0xc] sm:$0x1] %v2568
    %v2570 = vld [vmem:[#allocation4 + $0x2] sm:$0x1]
    %2571 = vst [vmem:[#allocation2 + $0xd] sm:$0x1] %v2570
    %v2572 = vld [vmem:[#allocation3 + $0x3] sm:$0x1]
    %2573 = vst [vmem:[#allocation2 + $0xe] sm:$0x1] %v2572
    %v2574 = vld [vmem:[#allocation4 + $0x3] sm:$0x1]
    %2575 = vst [vmem:[#allocation2 + $0xf] sm:$0x1] %v2574
    %v2576 = vld [vmem:[#allocation3 + $0x4] sm:$0x1]
    %2577 = vst [vmem:[#allocation2 + $0x10] sm:$0x1] %v2576
    %v2578 = vld [vmem:[#allocation4 + $0x4] sm:$0x1]
    %2579 = vst [vmem:[#allocation2 + $0x11] sm:$0x1] %v2578
    %v2580 = vld [vmem:[#allocation3 + $0x5] sm:$0x1]
    %2581 = vst [vmem:[#allocation2 + $0x12] sm:$0x1] %v2580
    %v2582 = vld [vmem:[#allocation4 + $0x5] sm:$0x1]
    %2583 = vst [vmem:[#allocation2 + $0x13] sm:$0x1] %v2582
    %v2584 = vld [vmem:[#allocation3 + $0x6] sm:$0x1]
    %2585 = vst [vmem:[#allocation2 + $0x14] sm:$0x1] %v2584
    %v2586 = vld [vmem:[#allocation4 + $0x6] sm:$0x1]
    %2587 = vst [vmem:[#allocation2 + $0x15] sm:$0x1] %v2586
    %v2588 = vld [vmem:[#allocation3 + $0x7] sm:$0x1]
    %2589 = vst [vmem:[#allocation2 + $0x16] sm:$0x1] %v2588
    %v2590 = vld [vmem:[#allocation4 + $0x7] sm:$0x1]
    %2591 = vst [vmem:[#allocation2 + $0x17] sm:$0x1] %v2590
    %v2592 = vld [vmem:[#allocation3 + $0x8] sm:$0x1]
    %2593 = vst [vmem:[#allocation2 + $0x18] sm:$0x1] %v2592
    %v2594 = vld [vmem:[#allocation4 + $0x8] sm:$0x1]
    %2595 = vst [vmem:[#allocation2 + $0x19] sm:$0x1] %v2594
    %v2596 = vld [vmem:[#allocation3 + $0x9] sm:$0x1]
    %2597 = vst [vmem:[#allocation2 + $0x1a] sm:$0x1] %v2596
    %v2598 = vld [vmem:[#allocation4 + $0x9] sm:$0x1]
    %2599 = vst [vmem:[#allocation2 + $0x1b] sm:$0x1] %v2598
    %v2600 = vld [vmem:[#allocation3 + $0xa] sm:$0x1]
    %2601 = vst [vmem:[#allocation2 + $0x1c] sm:$0x1] %v2600
    %v2602 = vld [vmem:[#allocation4 + $0xa] sm:$0x1]
    %2603 = vst [vmem:[#allocation2 + $0x1d] sm:$0x1] %v2602
    %v2604 = vld [vmem:[#allocation3 + $0xb] sm:$0x1]
    %2605 = vst [vmem:[#allocation2 + $0x1e] sm:$0x1] %v2604
    %v2606 = vld [vmem:[#allocation4 + $0xb] sm:$0x1]
    %2607 = vst [vmem:[#allocation2 + $0x1f] sm:$0x1] %v2606
    %v2608 = vld [vmem:[#allocation3 + $0xc] sm:$0x1]
    %2609 = vst [vmem:[#allocation2 + $0x20] sm:$0x1] %v2608
    %v2610 = vld [vmem:[#allocation4 + $0xc] sm:$0x1]
    %2611 = vst [vmem:[#allocation2 + $0x21] sm:$0x1] %v2610
    %v2612 = vld [vmem:[#allocation3 + $0xd] sm:$0x1]
    %2613 = vst [vmem:[#allocation2 + $0x22] sm:$0x1] %v2612
    %v2614 = vld [vmem:[#allocation4 + $0xd] sm:$0x1]
    %2615 = vst [vmem:[#allocation2 + $0x23] sm:$0x1] %v2614
    %v2616 = vld [vmem:[#allocation3 + $0xe] sm:$0x1]
    %2617 = vst [vmem:[#allocation2 + $0x24] sm:$0x1] %v2616
    %v2618 = vld [vmem:[#allocation4 + $0xe] sm:$0x1]
    %2619 = vst [vmem:[#allocation2 + $0x25] sm:$0x1] %v2618
    %v2620 = vld [vmem:[#allocation3 + $0xf] sm:$0x1]
    %2621 = vst [vmem:[#allocation2 + $0x26] sm:$0x1] %v2620
    %v2622 = vld [vmem:[#allocation4 + $0xf] sm:$0x1]
    %2623 = vst [vmem:[#allocation2 + $0x27] sm:$0x1] %v2622
    %v2624 = vld [vmem:[#allocation3 + $0x10] sm:$0x1]
    %2625 = vst [vmem:[#allocation2 + $0x28] sm:$0x1] %v2624
    %v2626 = vld [vmem:[#allocation4 + $0x10] sm:$0x1]
    %2627 = vst [vmem:[#allocation2 + $0x29] sm:$0x1] %v2626
    %v2628 = vld [vmem:[#allocation3 + $0x11] sm:$0x1]
    %2629 = vst [vmem:[#allocation2 + $0x2a] sm:$0x1] %v2628
    %v2630 = vld [vmem:[#allocation4 + $0x11] sm:$0x1]
    %2631 = vst [vmem:[#allocation2 + $0x2b] sm:$0x1] %v2630
    %v2632 = vld [vmem:[#allocation3 + $0x12] sm:$0x1]
    %2633 = vst [vmem:[#allocation2 + $0x2c] sm:$0x1] %v2632
    %v2634 = vld [vmem:[#allocation4 + $0x12] sm:$0x1]
    %2635 = vst [vmem:[#allocation2 + $0x2d] sm:$0x1] %v2634
    %v2636 = vld [vmem:[#allocation3 + $0x13] sm:$0x1]
    %2637 = vst [vmem:[#allocation2 + $0x2e] sm:$0x1] %v2636
    %v2638 = vld [vmem:[#allocation4 + $0x13] sm:$0x1]
    %2639 = vst [vmem:[#allocation2 + $0x2f] sm:$0x1] %v2638
    %v2640 = vld [vmem:[#allocation3 + $0x14] sm:$0x1]
    %2641 = vst [vmem:[#allocation2 + $0x30] sm:$0x1] %v2640
    %v2642 = vld [vmem:[#allocation4 + $0x14] sm:$0x1]
    %2643 = vst [vmem:[#allocation2 + $0x31] sm:$0x1] %v2642
    %v2644 = vld [vmem:[#allocation3 + $0x15] sm:$0x1]
    %2645 = vst [vmem:[#allocation2 + $0x32] sm:$0x1] %v2644
    %v2646 = vld [vmem:[#allocation4 + $0x15] sm:$0x1]
    %2647 = vst [vmem:[#allocation2 + $0x33] sm:$0x1] %v2646
    %v2648 = vld [vmem:[#allocation3 + $0x16] sm:$0x1]
    %2649 = vst [vmem:[#allocation2 + $0x34] sm:$0x1] %v2648
    %v2650 = vld [vmem:[#allocation4 + $0x16] sm:$0x1]
    %2651 = vst [vmem:[#allocation2 + $0x35] sm:$0x1] %v2650
    %v2652 = vld [vmem:[#allocation3 + $0x17] sm:$0x1]
    %2653 = vst [vmem:[#allocation2 + $0x36] sm:$0x1] %v2652
    %v2654 = vld [vmem:[#allocation4 + $0x17] sm:$0x1]
    %2655 = vst [vmem:[#allocation2 + $0x37] sm:$0x1] %v2654
    %v2656 = vld [vmem:[#allocation3 + $0x18] sm:$0x1]
    %2657 = vst [vmem:[#allocation2 + $0x38] sm:$0x1] %v2656
    %v2658 = vld [vmem:[#allocation4 + $0x18] sm:$0x1]
    %2659 = vst [vmem:[#allocation2 + $0x39] sm:$0x1] %v2658
    %v2660 = vld [vmem:[#allocation3 + $0x19] sm:$0x1]
    %2661 = vst [vmem:[#allocation2 + $0x3a] sm:$0x1] %v2660
    %v2662 = vld [vmem:[#allocation4 + $0x19] sm:$0x1]
    %2663 = vst [vmem:[#allocation2 + $0x3b] sm:$0x1] %v2662
    %v2664 = vld [vmem:[#allocation3 + $0x1a] sm:$0x1]
    %2665 = vst [vmem:[#allocation2 + $0x3c] sm:$0x1] %v2664
    %v2666 = vld [vmem:[#allocation4 + $0x1a] sm:$0x1]
    %2667 = vst [vmem:[#allocation2 + $0x3d] sm:$0x1] %v2666
    %v2668 = vld [vmem:[#allocation3 + $0x1b] sm:$0x1]
    %2669 = vst [vmem:[#allocation2 + $0x3e] sm:$0x1] %v2668
    %v2670 = vld [vmem:[#allocation4 + $0x1b] sm:$0x1]
    %2671 = vst [vmem:[#allocation2 + $0x3f] sm:$0x1] %v2670
    %v2672 = vld [vmem:[#allocation3 + $0x1c] sm:$0x1]
    %2673 = vst [vmem:[#allocation2 + $0x40] sm:$0x1] %v2672
    %v2674 = vld [vmem:[#allocation4 + $0x1c] sm:$0x1]
    %2675 = vst [vmem:[#allocation2 + $0x41] sm:$0x1] %v2674
    %v2676 = vld [vmem:[#allocation3 + $0x1d] sm:$0x1]
    %2677 = vst [vmem:[#allocation2 + $0x42] sm:$0x1] %v2676
    %v2678 = vld [vmem:[#allocation4 + $0x1d] sm:$0x1]
    %2679 = vst [vmem:[#allocation2 + $0x43] sm:$0x1] %v2678
    %v2680 = vld [vmem:[#allocation3 + $0x1e] sm:$0x1]
    %2681 = vst [vmem:[#allocation2 + $0x44] sm:$0x1] %v2680
    %v2682 = vld [vmem:[#allocation4 + $0x1e] sm:$0x1]
    %2683 = vst [vmem:[#allocation2 + $0x45] sm:$0x1] %v2682
    %v2684 = vld [vmem:[#allocation3 + $0x1f] sm:$0x1]
    %2685 = vst [vmem:[#allocation2 + $0x46] sm:$0x1] %v2684
    %v2686 = vld [vmem:[#allocation4 + $0x1f] sm:$0x1]
    %2687 = vst [vmem:[#allocation2 + $0x47] sm:$0x1] %v2686
    %v2688 = vld [vmem:[#allocation2 + $0x8] sm:$0xff]
    %v2689 = vld [vmem:[#allocation2 + $0x10] sm:$0xff]
    %v2690 = vld [vmem:[#allocation2 + $0x18] sm:$0xff]
    %v2691 = vld [vmem:[#allocation2 + $0x20] sm:$0xff]
    %v2692 = vld [vmem:[#allocation2 + $0x28] sm:$0xff]
    %v2693 = vld [vmem:[#allocation2 + $0x30] sm:$0xff]
    %v2694 = vld [vmem:[#allocation2 + $0x38] sm:$0xff]
    %v2695 = vld [vmem:[#allocation2 + $0x40] sm:$0xff]
    %v2696 = vadd.s32 %v441, 32
    %v2697 = vadd.s32 %v441, 40
    %v2698 = vadd.s32 %v441, 48
    %v2699 = vadd.s32 %v441, 56
    %vm2700 = vcmp.lt.s32.totalorder %v441, 0
    %v2701 = vsub.s32 0, %v441
    %v2702 = vsel %vm2700, %v2701, %v441
    %v2703 = vshrl.u32 %v2702, 5
    %v2704 = vand.u32 %v2702, 31
    %v2705 = vsub.s32 0, %v2704
    %v2706 = vsel %vm2700, %v2705, %v2704
    %vm2707 = vcmp.lt.s32.totalorder %v1318, 0
    %v2708 = vsub.s32 0, %v1318
    %v2709 = vsel %vm2707, %v2708, %v1318
    %v2710 = vshrl.u32 %v2709, 5
    %v2711 = vand.u32 %v2709, 31
    %v2712 = vsub.s32 0, %v2711
    %v2713 = vsel %vm2707, %v2712, %v2711
    %vm2714 = vcmp.lt.s32.totalorder %v1909, 0
    %v2715 = vsub.s32 0, %v1909
    %v2716 = vsel %vm2714, %v2715, %v1909
    %v2717 = vshrl.u32 %v2716, 5
    %v2718 = vand.u32 %v2716, 31
    %v2719 = vsub.s32 0, %v2718
    %v2720 = vsel %vm2714, %v2719, %v2718
    %vm2721 = vcmp.lt.s32.totalorder %v1910, 0
    %v2722 = vsub.s32 0, %v1910
    %v2723 = vsel %vm2721, %v2722, %v1910
    %v2724 = vshrl.u32 %v2723, 5
    %v2725 = vand.u32 %v2723, 31
    %v2726 = vsub.s32 0, %v2725
    %v2727 = vsel %vm2721, %v2726, %v2725
    %vm2728 = vcmp.lt.s32.totalorder %v2696, 0
    %v2729 = vsub.s32 0, %v2696
    %v2730 = vsel %vm2728, %v2729, %v2696
    %v2731 = vshrl.u32 %v2730, 5
    %v2732 = vand.u32 %v2730, 31
    %v2733 = vsub.s32 0, %v2732
    %v2734 = vsel %vm2728, %v2733, %v2732
    %vm2735 = vcmp.lt.s32.totalorder %v2697, 0
    %v2736 = vsub.s32 0, %v2697
    %v2737 = vsel %vm2735, %v2736, %v2697
    %v2738 = vshrl.u32 %v2737, 5
    %v2739 = vand.u32 %v2737, 31
    %v2740 = vsub.s32 0, %v2739
    %v2741 = vsel %vm2735, %v2740, %v2739
    %vm2742 = vcmp.lt.s32.totalorder %v2698, 0
    %v2743 = vsub.s32 0, %v2698
    %v2744 = vsel %vm2742, %v2743, %v2698
    %v2745 = vshrl.u32 %v2744, 5
    %v2746 = vand.u32 %v2744, 31
    %v2747 = vsub.s32 0, %v2746
    %v2748 = vsel %vm2742, %v2747, %v2746
    %vm2749 = vcmp.lt.s32.totalorder %v2699, 0
    %v2750 = vsub.s32 0, %v2699
    %v2751 = vsel %vm2749, %v2750, %v2699
    %v2752 = vshrl.u32 %v2751, 5
    %v2753 = vand.u32 %v2751, 31
    %v2754 = vsub.s32 0, %v2753
    %v2755 = vsel %vm2749, %v2754, %v2753
    %vm2756 = vcmp.ne.s32.totalorder %v2706, 0
    %vm2757 = vcmp.ne.s32.totalorder %v2713, 0
    %vm2758 = vcmp.ne.s32.totalorder %v2720, 0
    %vm2759 = vcmp.ne.s32.totalorder %v2727, 0
    %vm2760 = vcmp.ne.s32.totalorder %v2734, 0
    %vm2761 = vcmp.ne.s32.totalorder %v2741, 0
    %vm2762 = vcmp.ne.s32.totalorder %v2748, 0
    %vm2763 = vcmp.ne.s32.totalorder %v2755, 0
    %vm2764 = vcmp.lt.s32.totalorder %v2706, 0
    %vm2765 = vcmp.lt.s32.totalorder %v2713, 0
    %vm2766 = vcmp.lt.s32.totalorder %v2720, 0
    %vm2767 = vcmp.lt.s32.totalorder %v2727, 0
    %vm2768 = vcmp.lt.s32.totalorder %v2734, 0
    %vm2769 = vcmp.lt.s32.totalorder %v2741, 0
    %vm2770 = vcmp.lt.s32.totalorder %v2748, 0
    %vm2771 = vcmp.lt.s32.totalorder %v2755, 0
    %vm2772 = vmand %vm2764, %vm2756
    %vm2773 = vmand %vm2765, %vm2757
    %vm2774 = vmand %vm2766, %vm2758
    %vm2775 = vmand %vm2767, %vm2759
    %vm2776 = vmand %vm2768, %vm2760
    %vm2777 = vmand %vm2769, %vm2761
    %vm2778 = vmand %vm2770, %vm2762
    %vm2779 = vmand %vm2771, %vm2763
    %v2780 = vadd.s32 %v2706, 32
    %v2781 = vadd.s32 %v2713, 32
    %v2782 = vadd.s32 %v2720, 32
    %v2783 = vadd.s32 %v2727, 32
    %v2784 = vadd.s32 %v2734, 32
    %v2785 = vadd.s32 %v2741, 32
    %v2786 = vadd.s32 %v2748, 32
    %v2787 = vadd.s32 %v2755, 32
    %v2788 = vsel %vm2772, %v2780, %v2706
    %v2789 = vsel %vm2773, %v2781, %v2713
    %v2790 = vsel %vm2774, %v2782, %v2720
    %v2791 = vsel %vm2775, %v2783, %v2727
    %v2792 = vsel %vm2776, %v2784, %v2734
    %v2793 = vsel %vm2777, %v2785, %v2741
    %v2794 = vsel %vm2778, %v2786, %v2748
    %v2795 = vsel %vm2779, %v2787, %v2755
    %v2796 = vadd.s32 %v2788, 4294967295
    %v2797 = vadd.s32 %v2789, 4294967295
    %v2798 = vadd.s32 %v2790, 4294967295
    %v2799 = vadd.s32 %v2791, 4294967295
    %v2800 = vadd.s32 %v2792, 4294967295
    %v2801 = vadd.s32 %v2793, 4294967295
    %v2802 = vadd.s32 %v2794, 4294967295
    %v2803 = vadd.s32 %v2795, 4294967295
    %vm2804 = vcmp.ge.s32.totalorder %v2796, 0
    %vm2805 = vcmp.ge.s32.totalorder %v2797, 0
    %vm2806 = vcmp.ge.s32.totalorder %v2798, 0
    %vm2807 = vcmp.ge.s32.totalorder %v2799, 0
    %vm2808 = vcmp.ge.s32.totalorder %v2800, 0
    %vm2809 = vcmp.ge.s32.totalorder %v2801, 0
    %vm2810 = vcmp.ge.s32.totalorder %v2802, 0
    %vm2811 = vcmp.ge.s32.totalorder %v2803, 0
    %vm2812 = vcmp.lt.s32.totalorder %v2796, 32
    %vm2813 = vcmp.lt.s32.totalorder %v2797, 32
    %vm2814 = vcmp.lt.s32.totalorder %v2798, 32
    %vm2815 = vcmp.lt.s32.totalorder %v2799, 32
    %vm2816 = vcmp.lt.s32.totalorder %v2800, 32
    %vm2817 = vcmp.lt.s32.totalorder %v2801, 32
    %vm2818 = vcmp.lt.s32.totalorder %v2802, 32
    %vm2819 = vcmp.lt.s32.totalorder %v2803, 32
    %vm2820 = vmand %vm2804, %vm2812
    %vm2821 = vmand %vm2805, %vm2813
    %vm2822 = vmand %vm2806, %vm2814
    %vm2823 = vmand %vm2807, %vm2815
    %vm2824 = vmand %vm2808, %vm2816
    %vm2825 = vmand %vm2809, %vm2817
    %vm2826 = vmand %vm2810, %vm2818
    %vm2827 = vmand %vm2811, %vm2819
    %v2828 = vld [vmem:[#allocation2 + $0x7] sm:$0xff]
    %v2829 = vld [vmem:[#allocation2 + $0xf] sm:$0xff]
    %v2830 = vld [vmem:[#allocation2 + $0x17] sm:$0xff]
    %v2831 = vld [vmem:[#allocation2 + $0x1f] sm:$0xff]
    %v2832 = vld [vmem:[#allocation2 + $0x27] sm:$0xff]
    %v2833 = vld [vmem:[#allocation2 + $0x2f] sm:$0xff]
    %v2834 = vld [vmem:[#allocation2 + $0x37] sm:$0xff]
    %v2835 = vld [vmem:[#allocation2 + $0x3f] sm:$0xff]
    %v2836 = vsel %vm2820, %v2828, 0.0
    %v2837 = vsel %vm2821, %v2829, 0.0
    %v2838 = vsel %vm2822, %v2830, 0.0
    %v2839 = vsel %vm2823, %v2831, 0.0
    %v2840 = vsel %vm2824, %v2832, 0.0
    %v2841 = vsel %vm2825, %v2833, 0.0
    %v2842 = vsel %vm2826, %v2834, 0.0
    %v2843 = vsel %vm2827, %v2835, 0.0
    %v2844 = vadd.s32 %v2788, 1
    %v2845 = vadd.s32 %v2789, 1
    %v2846 = vadd.s32 %v2790, 1
    %v2847 = vadd.s32 %v2791, 1
    %v2848 = vadd.s32 %v2792, 1
    %v2849 = vadd.s32 %v2793, 1
    %v2850 = vadd.s32 %v2794, 1
    %v2851 = vadd.s32 %v2795, 1
    %vm2852 = vcmp.ge.s32.totalorder %v2844, 0
    %vm2853 = vcmp.ge.s32.totalorder %v2845, 0
    %vm2854 = vcmp.ge.s32.totalorder %v2846, 0
    %vm2855 = vcmp.ge.s32.totalorder %v2847, 0
    %vm2856 = vcmp.ge.s32.totalorder %v2848, 0
    %vm2857 = vcmp.ge.s32.totalorder %v2849, 0
    %vm2858 = vcmp.ge.s32.totalorder %v2850, 0
    %vm2859 = vcmp.ge.s32.totalorder %v2851, 0
    %vm2860 = vcmp.lt.s32.totalorder %v2844, 32
    %vm2861 = vcmp.lt.s32.totalorder %v2845, 32
    %vm2862 = vcmp.lt.s32.totalorder %v2846, 32
    %vm2863 = vcmp.lt.s32.totalorder %v2847, 32
    %vm2864 = vcmp.lt.s32.totalorder %v2848, 32
    %vm2865 = vcmp.lt.s32.totalorder %v2849, 32
    %vm2866 = vcmp.lt.s32.totalorder %v2850, 32
    %vm2867 = vcmp.lt.s32.totalorder %v2851, 32
    %vm2868 = vmand %vm2852, %vm2860
    %vm2869 = vmand %vm2853, %vm2861
    %vm2870 = vmand %vm2854, %vm2862
    %vm2871 = vmand %vm2855, %vm2863
    %vm2872 = vmand %vm2856, %vm2864
    %vm2873 = vmand %vm2857, %vm2865
    %vm2874 = vmand %vm2858, %vm2866
    %vm2875 = vmand %vm2859, %vm2867
    %v2876 = vld [vmem:[#allocation2 + $0x9] sm:$0xff]
    %v2877 = vld [vmem:[#allocation2 + $0x11] sm:$0xff]
    %v2878 = vld [vmem:[#allocation2 + $0x19] sm:$0xff]
    %v2879 = vld [vmem:[#allocation2 + $0x21] sm:$0xff]
    %v2880 = vld [vmem:[#allocation2 + $0x29] sm:$0xff]
    %v2881 = vld [vmem:[#allocation2 + $0x31] sm:$0xff]
    %v2882 = vld [vmem:[#allocation2 + $0x39] sm:$0xff]
    %v2883 = vld [vmem:[#allocation2 + $0x41] sm:$0xff]
    %v2884 = vsel %vm2868, %v2876, 0.0
    %v2885 = vsel %vm2869, %v2877, 0.0
    %v2886 = vsel %vm2870, %v2878, 0.0
    %v2887 = vsel %vm2871, %v2879, 0.0
    %v2888 = vsel %vm2872, %v2880, 0.0
    %v2889 = vsel %vm2873, %v2881, 0.0
    %v2890 = vsel %vm2874, %v2882, 0.0
    %v2891 = vsel %vm2875, %v2883, 0.0
    %v2892 = vpack.c.bf16 %v2689, %v2688
    %v2893 = vpack.c.bf16 %v2691, %v2690
    %v2894 = vpack.c.bf16 %v2693, %v2692
    %v2895 = vpack.c.bf16 %v2695, %v2694
    %v2896 = vpack.c.bf16 %v2837, %v2836
    %v2897 = vpack.c.bf16 %v2839, %v2838
    %v2898 = vpack.c.bf16 %v2841, %v2840
    %v2899 = vpack.c.bf16 %v2843, %v2842
    %v2900 = vpack.c.bf16 %v2885, %v2884
    %v2901 = vpack.c.bf16 %v2887, %v2886
    %v2902 = vpack.c.bf16 %v2889, %v2888
    %v2903 = vpack.c.bf16 %v2891, %v2890
    %v2904 = vld [vmem:[#allocation18] sm:$0xf]
    %v2905 = vld [vmem:[#allocation18 + $0x4] sm:$0xf]
    %v2906 = vld [vmem:[#allocation18 + $0x8] sm:$0xf]
    %v2907 = vld [vmem:[#allocation18 + $0xc] sm:$0xf]
    %v2908 = vld [vmem:[#allocation18 + $0x10] sm:$0xf]
    %v2909 = vld [vmem:[#allocation18 + $0x14] sm:$0xf]
    %v2910 = vld [vmem:[#allocation18 + $0x18] sm:$0xf]
    %v2911 = vld [vmem:[#allocation18 + $0x1c] sm:$0xf]
    %v2912 = vld [vmem:[#allocation18 + $0x20] sm:$0xf]
    %v2913 = vld [vmem:[#allocation18 + $0x24] sm:$0xf]
    %v2914 = vld [vmem:[#allocation18 + $0x28] sm:$0xf]
    %v2915 = vld [vmem:[#allocation18 + $0x2c] sm:$0xf]
    %v2916 = vld [vmem:[#allocation18 + $0x30] sm:$0xf]
    %v2917 = vld [vmem:[#allocation18 + $0x34] sm:$0xf]
    %v2918 = vld [vmem:[#allocation18 + $0x38] sm:$0xf]
    %v2919 = vld [vmem:[#allocation18 + $0x3c] sm:$0xf]
    %v2920 = vld [vmem:[#allocation18 + $0x40] sm:$0xf]
    %v2921 = vld [vmem:[#allocation18 + $0x44] sm:$0xf]
    %v2922 = vld [vmem:[#allocation18 + $0x48] sm:$0xf]
    %v2923 = vld [vmem:[#allocation18 + $0x4c] sm:$0xf]
    %v2924 = vld [vmem:[#allocation18 + $0x50] sm:$0xf]
    %v2925 = vld [vmem:[#allocation18 + $0x54] sm:$0xf]
    %v2926 = vld [vmem:[#allocation18 + $0x58] sm:$0xf]
    %v2927 = vld [vmem:[#allocation18 + $0x5c] sm:$0xf]
    %v2928 = vld [vmem:[#allocation18 + $0x60] sm:$0xf]
    %v2929 = vld [vmem:[#allocation18 + $0x64] sm:$0xf]
    %v2930 = vld [vmem:[#allocation18 + $0x68] sm:$0xf]
    %v2931 = vld [vmem:[#allocation18 + $0x6c] sm:$0xf]
    %v2932 = vld [vmem:[#allocation18 + $0x70] sm:$0xf]
    %v2933 = vld [vmem:[#allocation18 + $0x74] sm:$0xf]
    %v2934 = vld [vmem:[#allocation18 + $0x78] sm:$0xf]
    %v2935 = vld [vmem:[#allocation18 + $0x7c] sm:$0xf]
    %v2936 = vld [vmem:[#allocation18 + $0x80] sm:$0xf]
    %v2937 = vld [vmem:[#allocation18 + $0x84] sm:$0xf]
    %v2938 = vld [vmem:[#allocation18 + $0x88] sm:$0xf]
    %v2939 = vld [vmem:[#allocation18 + $0x8c] sm:$0xf]
    %v2940 = vld [vmem:[#allocation18 + $0x90] sm:$0xf]
    %v2941 = vld [vmem:[#allocation18 + $0x94] sm:$0xf]
    %v2942 = vld [vmem:[#allocation18 + $0x98] sm:$0xf]
    %v2943 = vld [vmem:[#allocation18 + $0x9c] sm:$0xf]
    %v2944 = vld [vmem:[#allocation18 + $0xa0] sm:$0xf]
    %v2945 = vld [vmem:[#allocation18 + $0xa4] sm:$0xf]
    %v2946 = vld [vmem:[#allocation18 + $0xa8] sm:$0xf]
    %v2947 = vld [vmem:[#allocation18 + $0xac] sm:$0xf]
    %v2948 = vld [vmem:[#allocation18 + $0xb0] sm:$0xf]
    %v2949 = vld [vmem:[#allocation18 + $0xb4] sm:$0xf]
    %v2950 = vld [vmem:[#allocation18 + $0xb8] sm:$0xf]
    %v2951 = vld [vmem:[#allocation18 + $0xbc] sm:$0xf]
    %v2952 = vld [vmem:[#allocation18 + $0xc0] sm:$0xf]
    %v2953 = vld [vmem:[#allocation18 + $0xc4] sm:$0xf]
    %v2954 = vld [vmem:[#allocation18 + $0xc8] sm:$0xf]
    %v2955 = vld [vmem:[#allocation18 + $0xcc] sm:$0xf]
    %v2956 = vld [vmem:[#allocation18 + $0xd0] sm:$0xf]
    %v2957 = vld [vmem:[#allocation18 + $0xd4] sm:$0xf]
    %v2958 = vld [vmem:[#allocation18 + $0xd8] sm:$0xf]
    %v2959 = vld [vmem:[#allocation18 + $0xdc] sm:$0xf]
    %v2960 = vld [vmem:[#allocation18 + $0xe0] sm:$0xf]
    %v2961 = vld [vmem:[#allocation18 + $0xe4] sm:$0xf]
    %v2962 = vld [vmem:[#allocation18 + $0xe8] sm:$0xf]
    %v2963 = vld [vmem:[#allocation18 + $0xec] sm:$0xf]
    %v2964 = vld [vmem:[#allocation18 + $0xf0] sm:$0xf]
    %v2965 = vld [vmem:[#allocation18 + $0xf4] sm:$0xf]
    %v2966 = vld [vmem:[#allocation18 + $0xf8] sm:$0xf]
    %v2967 = vld [vmem:[#allocation18 + $0xfc] sm:$0xf]
    %v2968 = vld [vmem:[%s16] sm:$0x1]
    %v2985 = vunpack.c.l.b16 %v2920
    %v2986 = vunpack.c.l.b16 %v2921
    %v2987 = vunpack.c.l.b16 %v2922
    %v2988 = vunpack.c.l.b16 %v2923
    %v2989 = vunpack.c.l.b16 %v2924
    %v2990 = vunpack.c.l.b16 %v2925
    %v2991 = vunpack.c.l.b16 %v2926
    %v2992 = vunpack.c.l.b16 %v2927
    %v2993 = vunpack.c.l.b16 %v2928
    %v2994 = vunpack.c.l.b16 %v2929
    %v2995 = vunpack.c.l.b16 %v2930
    %v2996 = vunpack.c.l.b16 %v2931
    %v2997 = vunpack.c.l.b16 %v2932
    %v2998 = vunpack.c.l.b16 %v2933
    %v2999 = vunpack.c.l.b16 %v2934
    %v3000 = vunpack.c.l.b16 %v2935
    %v3001 = vpack.c.b16 %v2986, %v2985
    %v3002 = vpack.c.b16 %v2988, %v2987
    %v3003 = vpack.c.b16 %v2990, %v2989
    %v3004 = vpack.c.b16 %v2992, %v2991
    %v3005 = vpack.c.b16 %v2994, %v2993
    %v3006 = vpack.c.b16 %v2996, %v2995
    %v3007 = vpack.c.b16 %v2998, %v2997
    %v3008 = vpack.c.b16 %v3000, %v2999
    %3017 = vmatprep.subr.bf16.mxu0 0
    %3018 = vmatpush1.bf16.msra.mxu0 %v3008
    %3019 = vmatprep.subr.bf16.mxu0 0
    %3020 = vmatpush1.bf16.msra.mxu0 %v3007
    %3021 = vmatprep.subr.bf16.mxu0 0
    %3022 = vmatpush1.bf16.msra.mxu0 %v3006
    %3023 = vmatprep.subr.bf16.mxu0 0
    %3024 = vmatpush1.bf16.msra.mxu0 %v3005
    %3025 = vmatprep.subr.bf16.mxu0 0
    %3026 = vmatpush1.bf16.msra.mxu0 %v3004
    %3027 = vmatprep.subr.bf16.mxu0 0
    %3028 = vmatpush1.bf16.msra.mxu0 %v3003
    %3029 = vmatprep.subr.bf16.mxu0 0
    %3030 = vmatpush1.bf16.msra.mxu0 %v3002
    %3031 = vmatprep.subr.bf16.mxu0 0
    %3032 = vmatpush1.bf16.msra.mxu0 %v3001
    %3033 = vmatprep.subr.bf16.mxu0 0
    %3034 = vmatpush2.bf16.msra.mxu0 0
    %3035 = vmatprep.subr.bf16.mxu0 0
    %3036 = vmatpush2.bf16.msra.mxu0 0
    %3037 = vmatprep.subr.bf16.mxu0 0
    %3038 = vmatpush2.bf16.msra.mxu0 0
    %3039 = vmatprep.subr.bf16.mxu0 0
    %3040 = vmatpush2.bf16.msra.mxu0 0
    %3041 = vmatprep.subr.bf16.mxu0 0
    %3042 = vmatpush2.bf16.msra.mxu0 0
    %3043 = vmatprep.subr.bf16.mxu0 0
    %3044 = vmatpush2.bf16.msra.mxu0 0
    %3045 = vmatprep.subr.bf16.mxu0 0
    %3046 = vmatpush2.bf16.msra.mxu0 0
    %3047 = vmatprep.subr.bf16.mxu0 0
    %3048 = vmatpush2.bf16.msra.mxu0 0
    %3049 = vmatprep.mubr.bf16.mxu0 0
    %3050 = vmatmul.mubr.bf16.gmra.mxu0 %v2892
    %v3051 = vpop.f32.mrf.mxu0
    %v3052 = vadd.f32 0.0, %v3051
    %v3053 = vpop.f32.mrf.mxu0
    %v3054 = vpop.f32.mrf.mxu0
    %v3055 = vadd.f32 0.0, %v3054
    %v3056 = vpop.f32.mrf.mxu0
    %3057 = vmatprep.mubr.bf16.mxu0 0
    %3058 = vmatmul.mubr.bf16.gmra.mxu0 %v2893
    %v3059 = vpop.f32.mrf.mxu0
    %v3060 = vadd.f32 0.0, %v3059
    %v3061 = vpop.f32.mrf.mxu0
    %v3062 = vpop.f32.mrf.mxu0
    %v3063 = vadd.f32 0.0, %v3062
    %v3064 = vpop.f32.mrf.mxu0
    %3065 = vmatprep.mubr.bf16.mxu0 0
    %3066 = vmatmul.mubr.bf16.gmra.mxu0 %v2894
    %v3067 = vpop.f32.mrf.mxu0
    %v3068 = vadd.f32 0.0, %v3067
    %v3069 = vpop.f32.mrf.mxu0
    %v3070 = vpop.f32.mrf.mxu0
    %v3071 = vadd.f32 0.0, %v3070
    %v3072 = vpop.f32.mrf.mxu0
    %3073 = vmatprep.mubr.bf16.mxu0 0
    %3074 = vmatmul.mubr.bf16.gmra.mxu0 %v2895
    %v3075 = vpop.f32.mrf.mxu0
    %v3076 = vadd.f32 0.0, %v3075
    %v3077 = vpop.f32.mrf.mxu0
    %v3078 = vpop.f32.mrf.mxu0
    %v3079 = vadd.f32 0.0, %v3078
    %v3080 = vpop.f32.mrf.mxu0
    %3081 = vdwg.mxu0
    %v3098 = vunpack.c.l.b16 %v2904
    %v3099 = vunpack.c.l.b16 %v2905
    %v3100 = vunpack.c.l.b16 %v2906
    %v3101 = vunpack.c.l.b16 %v2907
    %v3102 = vunpack.c.l.b16 %v2908
    %v3103 = vunpack.c.l.b16 %v2909
    %v3104 = vunpack.c.l.b16 %v2910
    %v3105 = vunpack.c.l.b16 %v2911
    %v3106 = vunpack.c.l.b16 %v2912
    %v3107 = vunpack.c.l.b16 %v2913
    %v3108 = vunpack.c.l.b16 %v2914
    %v3109 = vunpack.c.l.b16 %v2915
    %v3110 = vunpack.c.l.b16 %v2916
    %v3111 = vunpack.c.l.b16 %v2917
    %v3112 = vunpack.c.l.b16 %v2918
    %v3113 = vunpack.c.l.b16 %v2919
    %v3114 = vpack.c.b16 %v3099, %v3098
    %v3115 = vpack.c.b16 %v3101, %v3100
    %v3116 = vpack.c.b16 %v3103, %v3102
    %v3117 = vpack.c.b16 %v3105, %v3104
    %v3118 = vpack.c.b16 %v3107, %v3106
    %v3119 = vpack.c.b16 %v3109, %v3108
    %v3120 = vpack.c.b16 %v3111, %v3110
    %v3121 = vpack.c.b16 %v3113, %v3112
    %3130 = vmatprep.subr.bf16.mxu0 0
    %3131 = vmatpush1.bf16.msra.mxu0 %v3121
    %3132 = vmatprep.subr.bf16.mxu0 0
    %3133 = vmatpush1.bf16.msra.mxu0 %v3120
    %3134 = vmatprep.subr.bf16.mxu0 0
    %3135 = vmatpush1.bf16.msra.mxu0 %v3119
    %3136 = vmatprep.subr.bf16.mxu0 0
    %3137 = vmatpush1.bf16.msra.mxu0 %v3118
    %3138 = vmatprep.subr.bf16.mxu0 0
    %3139 = vmatpush1.bf16.msra.mxu0 %v3117
    %3140 = vmatprep.subr.bf16.mxu0 0
    %3141 = vmatpush1.bf16.msra.mxu0 %v3116
    %3142 = vmatprep.subr.bf16.mxu0 0
    %3143 = vmatpush1.bf16.msra.mxu0 %v3115
    %3144 = vmatprep.subr.bf16.mxu0 0
    %3145 = vmatpush1.bf16.msra.mxu0 %v3114
    %3146 = vmatprep.subr.bf16.mxu0 0
    %3147 = vmatpush2.bf16.msra.mxu0 0
    %3148 = vmatprep.subr.bf16.mxu0 0
    %3149 = vmatpush2.bf16.msra.mxu0 0
    %3150 = vmatprep.subr.bf16.mxu0 0
    %3151 = vmatpush2.bf16.msra.mxu0 0
    %3152 = vmatprep.subr.bf16.mxu0 0
    %3153 = vmatpush2.bf16.msra.mxu0 0
    %3154 = vmatprep.subr.bf16.mxu0 0
    %3155 = vmatpush2.bf16.msra.mxu0 0
    %3156 = vmatprep.subr.bf16.mxu0 0
    %3157 = vmatpush2.bf16.msra.mxu0 0
    %3158 = vmatprep.subr.bf16.mxu0 0
    %3159 = vmatpush2.bf16.msra.mxu0 0
    %3160 = vmatprep.subr.bf16.mxu0 0
    %3161 = vmatpush2.bf16.msra.mxu0 0
    %3162 = vmatprep.mubr.bf16.mxu0 0
    %3163 = vmatmul.mubr.bf16.gmra.mxu0 %v2896
    %v3164 = vpop.f32.mrf.mxu0
    %v3165 = vadd.f32 %v3052, %v3164
    %v3166 = vpop.f32.mrf.mxu0
    %v3167 = vpop.f32.mrf.mxu0
    %v3168 = vadd.f32 %v3055, %v3167
    %v3169 = vpop.f32.mrf.mxu0
    %3170 = vmatprep.mubr.bf16.mxu0 0
    %3171 = vmatmul.mubr.bf16.gmra.mxu0 %v2897
    %v3172 = vpop.f32.mrf.mxu0
    %v3173 = vadd.f32 %v3060, %v3172
    %v3174 = vpop.f32.mrf.mxu0
    %v3175 = vpop.f32.mrf.mxu0
    %v3176 = vadd.f32 %v3063, %v3175
    %v3177 = vpop.f32.mrf.mxu0
    %3178 = vmatprep.mubr.bf16.mxu0 0
    %3179 = vmatmul.mubr.bf16.gmra.mxu0 %v2898
    %v3180 = vpop.f32.mrf.mxu0
    %v3181 = vadd.f32 %v3068, %v3180
    %v3182 = vpop.f32.mrf.mxu0
    %v3183 = vpop.f32.mrf.mxu0
    %v3184 = vadd.f32 %v3071, %v3183
    %v3185 = vpop.f32.mrf.mxu0
    %3186 = vmatprep.mubr.bf16.mxu0 0
    %3187 = vmatmul.mubr.bf16.gmra.mxu0 %v2899
    %v3188 = vpop.f32.mrf.mxu0
    %v3189 = vadd.f32 %v3076, %v3188
    %v3190 = vpop.f32.mrf.mxu0
    %v3191 = vpop.f32.mrf.mxu0
    %v3192 = vadd.f32 %v3079, %v3191
    %v3193 = vpop.f32.mrf.mxu0
    %3194 = vdwg.mxu0
    %v3211 = vunpack.c.l.b16 %v2952
    %v3212 = vunpack.c.l.b16 %v2953
    %v3213 = vunpack.c.l.b16 %v2954
    %v3214 = vunpack.c.l.b16 %v2955
    %v3215 = vunpack.c.l.b16 %v2956
    %v3216 = vunpack.c.l.b16 %v2957
    %v3217 = vunpack.c.l.b16 %v2958
    %v3218 = vunpack.c.l.b16 %v2959
    %v3219 = vunpack.c.l.b16 %v2960
    %v3220 = vunpack.c.l.b16 %v2961
    %v3221 = vunpack.c.l.b16 %v2962
    %v3222 = vunpack.c.l.b16 %v2963
    %v3223 = vunpack.c.l.b16 %v2964
    %v3224 = vunpack.c.l.b16 %v2965
    %v3225 = vunpack.c.l.b16 %v2966
    %v3226 = vunpack.c.l.b16 %v2967
    %v3227 = vpack.c.b16 %v3212, %v3211
    %v3228 = vpack.c.b16 %v3214, %v3213
    %v3229 = vpack.c.b16 %v3216, %v3215
    %v3230 = vpack.c.b16 %v3218, %v3217
    %v3231 = vpack.c.b16 %v3220, %v3219
    %v3232 = vpack.c.b16 %v3222, %v3221
    %v3233 = vpack.c.b16 %v3224, %v3223
    %v3234 = vpack.c.b16 %v3226, %v3225
    %3243 = vmatprep.subr.bf16.mxu0 0
    %3244 = vmatpush1.bf16.msra.mxu0 %v3234
    %3245 = vmatprep.subr.bf16.mxu0 0
    %3246 = vmatpush1.bf16.msra.mxu0 %v3233
    %3247 = vmatprep.subr.bf16.mxu0 0
    %3248 = vmatpush1.bf16.msra.mxu0 %v3232
    %3249 = vmatprep.subr.bf16.mxu0 0
    %3250 = vmatpush1.bf16.msra.mxu0 %v3231
    %3251 = vmatprep.subr.bf16.mxu0 0
    %3252 = vmatpush1.bf16.msra.mxu0 %v3230
    %3253 = vmatprep.subr.bf16.mxu0 0
    %3254 = vmatpush1.bf16.msra.mxu0 %v3229
    %3255 = vmatprep.subr.bf16.mxu0 0
    %3256 = vmatpush1.bf16.msra.mxu0 %v3228
    %3257 = vmatprep.subr.bf16.mxu0 0
    %3258 = vmatpush1.bf16.msra.mxu0 %v3227
    %3259 = vmatprep.subr.bf16.mxu0 0
    %3260 = vmatpush2.bf16.msra.mxu0 0
    %3261 = vmatprep.subr.bf16.mxu0 0
    %3262 = vmatpush2.bf16.msra.mxu0 0
    %3263 = vmatprep.subr.bf16.mxu0 0
    %3264 = vmatpush2.bf16.msra.mxu0 0
    %3265 = vmatprep.subr.bf16.mxu0 0
    %3266 = vmatpush2.bf16.msra.mxu0 0
    %3267 = vmatprep.subr.bf16.mxu0 0
    %3268 = vmatpush2.bf16.msra.mxu0 0
    %3269 = vmatprep.subr.bf16.mxu0 0
    %3270 = vmatpush2.bf16.msra.mxu0 0
    %3271 = vmatprep.subr.bf16.mxu0 0
    %3272 = vmatpush2.bf16.msra.mxu0 0
    %3273 = vmatprep.subr.bf16.mxu0 0
    %3274 = vmatpush2.bf16.msra.mxu0 0
    %3275 = vmatprep.mubr.bf16.mxu0 0
    %3276 = vmatmul.mubr.bf16.gmra.mxu0 %v2900
    %v3277 = vpop.f32.mrf.mxu0
    %v3278 = vadd.f32 0.0, %v3277
    %v3279 = vpop.f32.mrf.mxu0
    %v3280 = vpop.f32.mrf.mxu0
    %v3281 = vadd.f32 0.0, %v3280
    %v3282 = vpop.f32.mrf.mxu0
    %3283 = vmatprep.mubr.bf16.mxu0 0
    %3284 = vmatmul.mubr.bf16.gmra.mxu0 %v2901
    %v3285 = vpop.f32.mrf.mxu0
    %v3286 = vadd.f32 0.0, %v3285
    %v3287 = vpop.f32.mrf.mxu0
    %v3288 = vpop.f32.mrf.mxu0
    %v3289 = vadd.f32 0.0, %v3288
    %v3290 = vpop.f32.mrf.mxu0
    %3291 = vmatprep.mubr.bf16.mxu0 0
    %3292 = vmatmul.mubr.bf16.gmra.mxu0 %v2902
    %v3293 = vpop.f32.mrf.mxu0
    %v3294 = vadd.f32 0.0, %v3293
    %v3295 = vpop.f32.mrf.mxu0
    %v3296 = vpop.f32.mrf.mxu0
    %v3297 = vadd.f32 0.0, %v3296
    %v3298 = vpop.f32.mrf.mxu0
    %3299 = vmatprep.mubr.bf16.mxu0 0
    %3300 = vmatmul.mubr.bf16.gmra.mxu0 %v2903
    %v3301 = vpop.f32.mrf.mxu0
    %v3302 = vadd.f32 0.0, %v3301
    %v3303 = vpop.f32.mrf.mxu0
    %v3304 = vpop.f32.mrf.mxu0
    %v3305 = vadd.f32 0.0, %v3304
    %v3306 = vpop.f32.mrf.mxu0
    %3307 = vdwg.mxu0
    %v3324 = vunpack.c.l.b16 %v2936
    %v3325 = vunpack.c.l.b16 %v2937
    %v3326 = vunpack.c.l.b16 %v2938
    %v3327 = vunpack.c.l.b16 %v2939
    %v3328 = vunpack.c.l.b16 %v2940
    %v3329 = vunpack.c.l.b16 %v2941
    %v3330 = vunpack.c.l.b16 %v2942
    %v3331 = vunpack.c.l.b16 %v2943
    %v3332 = vunpack.c.l.b16 %v2944
    %v3333 = vunpack.c.l.b16 %v2945
    %v3334 = vunpack.c.l.b16 %v2946
    %v3335 = vunpack.c.l.b16 %v2947
    %v3336 = vunpack.c.l.b16 %v2948
    %v3337 = vunpack.c.l.b16 %v2949
    %v3338 = vunpack.c.l.b16 %v2950
    %v3339 = vunpack.c.l.b16 %v2951
    %v3340 = vpack.c.b16 %v3325, %v3324
    %v3341 = vpack.c.b16 %v3327, %v3326
    %v3342 = vpack.c.b16 %v3329, %v3328
    %v3343 = vpack.c.b16 %v3331, %v3330
    %v3344 = vpack.c.b16 %v3333, %v3332
    %v3345 = vpack.c.b16 %v3335, %v3334
    %v3346 = vpack.c.b16 %v3337, %v3336
    %v3347 = vpack.c.b16 %v3339, %v3338
    %3356 = vmatprep.subr.bf16.mxu0 0
    %3357 = vmatpush1.bf16.msra.mxu0 %v3347
    %3358 = vmatprep.subr.bf16.mxu0 0
    %3359 = vmatpush1.bf16.msra.mxu0 %v3346
    %3360 = vmatprep.subr.bf16.mxu0 0
    %3361 = vmatpush1.bf16.msra.mxu0 %v3345
    %3362 = vmatprep.subr.bf16.mxu0 0
    %3363 = vmatpush1.bf16.msra.mxu0 %v3344
    %3364 = vmatprep.subr.bf16.mxu0 0
    %3365 = vmatpush1.bf16.msra.mxu0 %v3343
    %3366 = vmatprep.subr.bf16.mxu0 0
    %3367 = vmatpush1.bf16.msra.mxu0 %v3342
    %3368 = vmatprep.subr.bf16.mxu0 0
    %3369 = vmatpush1.bf16.msra.mxu0 %v3341
    %3370 = vmatprep.subr.bf16.mxu0 0
    %3371 = vmatpush1.bf16.msra.mxu0 %v3340
    %3372 = vmatprep.subr.bf16.mxu0 0
    %3373 = vmatpush2.bf16.msra.mxu0 0
    %3374 = vmatprep.subr.bf16.mxu0 0
    %3375 = vmatpush2.bf16.msra.mxu0 0
    %3376 = vmatprep.subr.bf16.mxu0 0
    %3377 = vmatpush2.bf16.msra.mxu0 0
    %3378 = vmatprep.subr.bf16.mxu0 0
    %3379 = vmatpush2.bf16.msra.mxu0 0
    %3380 = vmatprep.subr.bf16.mxu0 0
    %3381 = vmatpush2.bf16.msra.mxu0 0
    %3382 = vmatprep.subr.bf16.mxu0 0
    %3383 = vmatpush2.bf16.msra.mxu0 0
    %3384 = vmatprep.subr.bf16.mxu0 0
    %3385 = vmatpush2.bf16.msra.mxu0 0
    %3386 = vmatprep.subr.bf16.mxu0 0
    %3387 = vmatpush2.bf16.msra.mxu0 0
    %3388 = vmatprep.mubr.bf16.mxu0 0
    %3389 = vmatmul.mubr.bf16.gmra.mxu0 %v2892
    %v3390 = vpop.f32.mrf.mxu0
    %v3391 = vadd.f32 %v3278, %v3390
    %v3392 = vpop.f32.mrf.mxu0
    %v3393 = vpop.f32.mrf.mxu0
    %v3394 = vadd.f32 %v3281, %v3393
    %v3395 = vpop.f32.mrf.mxu0
    %3396 = vmatprep.mubr.bf16.mxu0 0
    %3397 = vmatmul.mubr.bf16.gmra.mxu0 %v2893
    %v3398 = vpop.f32.mrf.mxu0
    %v3399 = vadd.f32 %v3286, %v3398
    %v3400 = vpop.f32.mrf.mxu0
    %v3401 = vpop.f32.mrf.mxu0
    %v3402 = vadd.f32 %v3289, %v3401
    %v3403 = vpop.f32.mrf.mxu0
    %3404 = vmatprep.mubr.bf16.mxu0 0
    %3405 = vmatmul.mubr.bf16.gmra.mxu0 %v2894
    %v3406 = vpop.f32.mrf.mxu0
    %v3407 = vadd.f32 %v3294, %v3406
    %v3408 = vpop.f32.mrf.mxu0
    %v3409 = vpop.f32.mrf.mxu0
    %v3410 = vadd.f32 %v3297, %v3409
    %v3411 = vpop.f32.mrf.mxu0
    %3412 = vmatprep.mubr.bf16.mxu0 0
    %3413 = vmatmul.mubr.bf16.gmra.mxu0 %v2895
    %v3414 = vpop.f32.mrf.mxu0
    %v3415 = vadd.f32 %v3302, %v3414
    %v3416 = vpop.f32.mrf.mxu0
    %v3417 = vpop.f32.mrf.mxu0
    %v3418 = vadd.f32 %v3305, %v3417
    %v3419 = vpop.f32.mrf.mxu0
    %3420 = vdwg.mxu0
    %v3422 = vlaneseq
    %v3423 = vshrl.u32 %v3422, 7
    %v3424 = vsub.s32 0, %v3423
    %v3425 = vrot.slane %v2968, %v3424
    %v3427 = vadd.f32 %v3165, %v3425
    %v3428 = vadd.f32 %v3168, %v3425
    %v3429 = vadd.f32 %v3173, %v3425
    %v3430 = vadd.f32 %v3176, %v3425
    %v3431 = vadd.f32 %v3181, %v3425
    %v3432 = vadd.f32 %v3184, %v3425
    %v3433 = vadd.f32 %v3189, %v3425
    %v3434 = vadd.f32 %v3192, %v3425
    %v3435 = vmul.f32 %v3427, 0.5
    %v3436 = vmul.f32 %v3428, 0.5
    %v3437 = vmul.f32 %v3429, 0.5
    %v3438 = vmul.f32 %v3430, 0.5
    %v3439 = vmul.f32 %v3431, 0.5
    %v3440 = vmul.f32 %v3432, 0.5
    %v3441 = vmul.f32 %v3433, 0.5
    %v3442 = vmul.f32 %v3434, 0.5
    %v3443 = vmul.f32 %v3427, 0.044715
    %v3444 = vmul.f32 %v3428, 0.044715
    %v3445 = vmul.f32 %v3429, 0.044715
    %v3446 = vmul.f32 %v3430, 0.044715
    %v3447 = vmul.f32 %v3431, 0.044715
    %v3448 = vmul.f32 %v3432, 0.044715
    %v3449 = vmul.f32 %v3433, 0.044715
    %v3450 = vmul.f32 %v3434, 0.044715
    %v3451 = vmul.f32 %v3443, %v3427
    %v3452 = vmul.f32 %v3444, %v3428
    %v3453 = vmul.f32 %v3445, %v3429
    %v3454 = vmul.f32 %v3446, %v3430
    %v3455 = vmul.f32 %v3447, %v3431
    %v3456 = vmul.f32 %v3448, %v3432
    %v3457 = vmul.f32 %v3449, %v3433
    %v3458 = vmul.f32 %v3450, %v3434
    %v3459 = vmul.f32 %v3451, %v3427
    %v3460 = vmul.f32 %v3452, %v3428
    %v3461 = vmul.f32 %v3453, %v3429
    %v3462 = vmul.f32 %v3454, %v3430
    %v3463 = vmul.f32 %v3455, %v3431
    %v3464 = vmul.f32 %v3456, %v3432
    %v3465 = vmul.f32 %v3457, %v3433
    %v3466 = vmul.f32 %v3458, %v3434
    %v3467 = vadd.f32 %v3427, %v3459
    %v3468 = vadd.f32 %v3428, %v3460
    %v3469 = vadd.f32 %v3429, %v3461
    %v3470 = vadd.f32 %v3430, %v3462
    %v3471 = vadd.f32 %v3431, %v3463
    %v3472 = vadd.f32 %v3432, %v3464
    %v3473 = vadd.f32 %v3433, %v3465
    %v3474 = vadd.f32 %v3434, %v3466
    %v3475 = vmul.f32 %v3467, 0.7978846
    %v3476 = vmul.f32 %v3468, 0.7978846
    %v3477 = vmul.f32 %v3469, 0.7978846
    %v3478 = vmul.f32 %v3470, 0.7978846
    %v3479 = vmul.f32 %v3471, 0.7978846
    %v3480 = vmul.f32 %v3472, 0.7978846
    %v3481 = vmul.f32 %v3473, 0.7978846
    %v3482 = vmul.f32 %v3474, 0.7978846
    %v3483 = vtanh.pop %v3475
    %v3484 = vtanh.pop %v3476
    %v3485 = vtanh.pop %v3477
    %v3486 = vtanh.pop %v3478
    %v3487 = vtanh.pop %v3479
    %v3488 = vtanh.pop %v3480
    %v3489 = vtanh.pop %v3481
    %v3490 = vtanh.pop %v3482
    %v3491 = vadd.f32 %v3483, 1.0
    %v3492 = vadd.f32 %v3484, 1.0
    %v3493 = vadd.f32 %v3485, 1.0
    %v3494 = vadd.f32 %v3486, 1.0
    %v3495 = vadd.f32 %v3487, 1.0
    %v3496 = vadd.f32 %v3488, 1.0
    %v3497 = vadd.f32 %v3489, 1.0
    %v3498 = vadd.f32 %v3490, 1.0
    %v3499 = vmul.f32 %v3435, %v3491
    %v3500 = vmul.f32 %v3436, %v3492
    %v3501 = vmul.f32 %v3437, %v3493
    %v3502 = vmul.f32 %v3438, %v3494
    %v3503 = vmul.f32 %v3439, %v3495
    %v3504 = vmul.f32 %v3440, %v3496
    %v3505 = vmul.f32 %v3441, %v3497
    %v3506 = vmul.f32 %v3442, %v3498
    %v3507 = vadd.f32 %v3391, %v3425
    %v3508 = vadd.f32 %v3394, %v3425
    %v3509 = vadd.f32 %v3399, %v3425
    %v3510 = vadd.f32 %v3402, %v3425
    %v3511 = vadd.f32 %v3407, %v3425
    %v3512 = vadd.f32 %v3410, %v3425
    %v3513 = vadd.f32 %v3415, %v3425
    %v3514 = vadd.f32 %v3418, %v3425
    %v3515 = vmul.f32 %v3507, 0.5
    %v3516 = vmul.f32 %v3508, 0.5
    %v3517 = vmul.f32 %v3509, 0.5
    %v3518 = vmul.f32 %v3510, 0.5
    %v3519 = vmul.f32 %v3511, 0.5
    %v3520 = vmul.f32 %v3512, 0.5
    %v3521 = vmul.f32 %v3513, 0.5
    %v3522 = vmul.f32 %v3514, 0.5
    %v3523 = vmul.f32 %v3507, 0.044715
    %v3524 = vmul.f32 %v3508, 0.044715
    %v3525 = vmul.f32 %v3509, 0.044715
    %v3526 = vmul.f32 %v3510, 0.044715
    %v3527 = vmul.f32 %v3511, 0.044715
    %v3528 = vmul.f32 %v3512, 0.044715
    %v3529 = vmul.f32 %v3513, 0.044715
    %v3530 = vmul.f32 %v3514, 0.044715
    %v3531 = vmul.f32 %v3523, %v3507
    %v3532 = vmul.f32 %v3524, %v3508
    %v3533 = vmul.f32 %v3525, %v3509
    %v3534 = vmul.f32 %v3526, %v3510
    %v3535 = vmul.f32 %v3527, %v3511
    %v3536 = vmul.f32 %v3528, %v3512
    %v3537 = vmul.f32 %v3529, %v3513
    %v3538 = vmul.f32 %v3530, %v3514
    %v3539 = vmul.f32 %v3531, %v3507
    %v3540 = vmul.f32 %v3532, %v3508
    %v3541 = vmul.f32 %v3533, %v3509
    %v3542 = vmul.f32 %v3534, %v3510
    %v3543 = vmul.f32 %v3535, %v3511
    %v3544 = vmul.f32 %v3536, %v3512
    %v3545 = vmul.f32 %v3537, %v3513
    %v3546 = vmul.f32 %v3538, %v3514
    %v3547 = vadd.f32 %v3507, %v3539
    %v3548 = vadd.f32 %v3508, %v3540
    %v3549 = vadd.f32 %v3509, %v3541
    %v3550 = vadd.f32 %v3510, %v3542
    %v3551 = vadd.f32 %v3511, %v3543
    %v3552 = vadd.f32 %v3512, %v3544
    %v3553 = vadd.f32 %v3513, %v3545
    %v3554 = vadd.f32 %v3514, %v3546
    %v3555 = vmul.f32 %v3547, 0.7978846
    %v3556 = vmul.f32 %v3548, 0.7978846
    %v3557 = vmul.f32 %v3549, 0.7978846
    %v3558 = vmul.f32 %v3550, 0.7978846
    %v3559 = vmul.f32 %v3551, 0.7978846
    %v3560 = vmul.f32 %v3552, 0.7978846
    %v3561 = vmul.f32 %v3553, 0.7978846
    %v3562 = vmul.f32 %v3554, 0.7978846
    %v3563 = vtanh.pop %v3555
    %v3564 = vtanh.pop %v3556
    %v3565 = vtanh.pop %v3557
    %v3566 = vtanh.pop %v3558
    %v3567 = vtanh.pop %v3559
    %v3568 = vtanh.pop %v3560
    %v3569 = vtanh.pop %v3561
    %v3570 = vtanh.pop %v3562
    %v3571 = vadd.f32 %v3563, 1.0
    %v3572 = vadd.f32 %v3564, 1.0
    %v3573 = vadd.f32 %v3565, 1.0
    %v3574 = vadd.f32 %v3566, 1.0
    %v3575 = vadd.f32 %v3567, 1.0
    %v3576 = vadd.f32 %v3568, 1.0
    %v3577 = vadd.f32 %v3569, 1.0
    %v3578 = vadd.f32 %v3570, 1.0
    %v3579 = vmul.f32 %v3515, %v3571
    %v3580 = vmul.f32 %v3516, %v3572
    %v3581 = vmul.f32 %v3517, %v3573
    %v3582 = vmul.f32 %v3518, %v3574
    %v3583 = vmul.f32 %v3519, %v3575
    %v3584 = vmul.f32 %v3520, %v3576
    %v3585 = vmul.f32 %v3521, %v3577
    %v3586 = vmul.f32 %v3522, %v3578
    %3587 = vst [vmem:[#allocation3] sm:$0xff] %v3499
    %3588 = vst [vmem:[#allocation3 + $0x8] sm:$0xff] %v3500
    %3589 = vst [vmem:[#allocation3 + $0x10] sm:$0xff] %v3501
    %3590 = vst [vmem:[#allocation3 + $0x18] sm:$0xff] %v3502
    %3591 = vst [vmem:[#allocation3 + $0x20] sm:$0xff] %v3503
    %3592 = vst [vmem:[#allocation3 + $0x28] sm:$0xff] %v3504
    %3593 = vst [vmem:[#allocation3 + $0x30] sm:$0xff] %v3505
    %3594 = vst [vmem:[#allocation3 + $0x38] sm:$0xff] %v3506
    %3595 = vst [vmem:[#allocation4] sm:$0xff] %v3579
    %3596 = vst [vmem:[#allocation4 + $0x8] sm:$0xff] %v3580
    %3597 = vst [vmem:[#allocation4 + $0x10] sm:$0xff] %v3581
    %3598 = vst [vmem:[#allocation4 + $0x18] sm:$0xff] %v3582
    %3599 = vst [vmem:[#allocation4 + $0x20] sm:$0xff] %v3583
    %3600 = vst [vmem:[#allocation4 + $0x28] sm:$0xff] %v3584
    %3601 = vst [vmem:[#allocation4 + $0x30] sm:$0xff] %v3585
    %3602 = vst [vmem:[#allocation4 + $0x38] sm:$0xff] %v3586
    %v3603 = vld [vmem:[#allocation3] sm:$0x1]
    %3604 = vst [vmem:[#allocation2 + $0x8] sm:$0x1] %v3603
    %v3605 = vld [vmem:[#allocation4] sm:$0x1]
    %3606 = vst [vmem:[#allocation2 + $0x9] sm:$0x1] %v3605
    %v3607 = vld [vmem:[#allocation3 + $0x1] sm:$0x1]
    %3608 = vst [vmem:[#allocation2 + $0xa] sm:$0x1] %v3607
    %v3609 = vld [vmem:[#allocation4 + $0x1] sm:$0x1]
    %3610 = vst [vmem:[#allocation2 + $0xb] sm:$0x1] %v3609
    %v3611 = vld [vmem:[#allocation3 + $0x2] sm:$0x1]
    %3612 = vst [vmem:[#allocation2 + $0xc] sm:$0x1] %v3611
    %v3613 = vld [vmem:[#allocation4 + $0x2] sm:$0x1]
    %3614 = vst [vmem:[#allocation2 + $0xd] sm:$0x1] %v3613
    %v3615 = vld [vmem:[#allocation3 + $0x3] sm:$0x1]
    %3616 = vst [vmem:[#allocation2 + $0xe] sm:$0x1] %v3615
    %v3617 = vld [vmem:[#allocation4 + $0x3] sm:$0x1]
    %3618 = vst [vmem:[#allocation2 + $0xf] sm:$0x1] %v3617
    %v3619 = vld [vmem:[#allocation3 + $0x4] sm:$0x1]
    %3620 = vst [vmem:[#allocation2 + $0x10] sm:$0x1] %v3619
    %v3621 = vld [vmem:[#allocation4 + $0x4] sm:$0x1]
    %3622 = vst [vmem:[#allocation2 + $0x11] sm:$0x1] %v3621
    %v3623 = vld [vmem:[#allocation3 + $0x5] sm:$0x1]
    %3624 = vst [vmem:[#allocation2 + $0x12] sm:$0x1] %v3623
    %v3625 = vld [vmem:[#allocation4 + $0x5] sm:$0x1]
    %3626 = vst [vmem:[#allocation2 + $0x13] sm:$0x1] %v3625
    %v3627 = vld [vmem:[#allocation3 + $0x6] sm:$0x1]
    %3628 = vst [vmem:[#allocation2 + $0x14] sm:$0x1] %v3627
    %v3629 = vld [vmem:[#allocation4 + $0x6] sm:$0x1]
    %3630 = vst [vmem:[#allocation2 + $0x15] sm:$0x1] %v3629
    %v3631 = vld [vmem:[#allocation3 + $0x7] sm:$0x1]
    %3632 = vst [vmem:[#allocation2 + $0x16] sm:$0x1] %v3631
    %v3633 = vld [vmem:[#allocation4 + $0x7] sm:$0x1]
    %3634 = vst [vmem:[#allocation2 + $0x17] sm:$0x1] %v3633
    %v3635 = vld [vmem:[#allocation3 + $0x8] sm:$0x1]
    %3636 = vst [vmem:[#allocation2 + $0x18] sm:$0x1] %v3635
    %v3637 = vld [vmem:[#allocation4 + $0x8] sm:$0x1]
    %3638 = vst [vmem:[#allocation2 + $0x19] sm:$0x1] %v3637
    %v3639 = vld [vmem:[#allocation3 + $0x9] sm:$0x1]
    %3640 = vst [vmem:[#allocation2 + $0x1a] sm:$0x1] %v3639
    %v3641 = vld [vmem:[#allocation4 + $0x9] sm:$0x1]
    %3642 = vst [vmem:[#allocation2 + $0x1b] sm:$0x1] %v3641
    %v3643 = vld [vmem:[#allocation3 + $0xa] sm:$0x1]
    %3644 = vst [vmem:[#allocation2 + $0x1c] sm:$0x1] %v3643
    %v3645 = vld [vmem:[#allocation4 + $0xa] sm:$0x1]
    %3646 = vst [vmem:[#allocation2 + $0x1d] sm:$0x1] %v3645
    %v3647 = vld [vmem:[#allocation3 + $0xb] sm:$0x1]
    %3648 = vst [vmem:[#allocation2 + $0x1e] sm:$0x1] %v3647
    %v3649 = vld [vmem:[#allocation4 + $0xb] sm:$0x1]
    %3650 = vst [vmem:[#allocation2 + $0x1f] sm:$0x1] %v3649
    %v3651 = vld [vmem:[#allocation3 + $0xc] sm:$0x1]
    %3652 = vst [vmem:[#allocation2 + $0x20] sm:$0x1] %v3651
    %v3653 = vld [vmem:[#allocation4 + $0xc] sm:$0x1]
    %3654 = vst [vmem:[#allocation2 + $0x21] sm:$0x1] %v3653
    %v3655 = vld [vmem:[#allocation3 + $0xd] sm:$0x1]
    %3656 = vst [vmem:[#allocation2 + $0x22] sm:$0x1] %v3655
    %v3657 = vld [vmem:[#allocation4 + $0xd] sm:$0x1]
    %3658 = vst [vmem:[#allocation2 + $0x23] sm:$0x1] %v3657
    %v3659 = vld [vmem:[#allocation3 + $0xe] sm:$0x1]
    %3660 = vst [vmem:[#allocation2 + $0x24] sm:$0x1] %v3659
    %v3661 = vld [vmem:[#allocation4 + $0xe] sm:$0x1]
    %3662 = vst [vmem:[#allocation2 + $0x25] sm:$0x1] %v3661
    %v3663 = vld [vmem:[#allocation3 + $0xf] sm:$0x1]
    %3664 = vst [vmem:[#allocation2 + $0x26] sm:$0x1] %v3663
    %v3665 = vld [vmem:[#allocation4 + $0xf] sm:$0x1]
    %3666 = vst [vmem:[#allocation2 + $0x27] sm:$0x1] %v3665
    %v3667 = vld [vmem:[#allocation3 + $0x10] sm:$0x1]
    %3668 = vst [vmem:[#allocation2 + $0x28] sm:$0x1] %v3667
    %v3669 = vld [vmem:[#allocation4 + $0x10] sm:$0x1]
    %3670 = vst [vmem:[#allocation2 + $0x29] sm:$0x1] %v3669
    %v3671 = vld [vmem:[#allocation3 + $0x11] sm:$0x1]
    %3672 = vst [vmem:[#allocation2 + $0x2a] sm:$0x1] %v3671
    %v3673 = vld [vmem:[#allocation4 + $0x11] sm:$0x1]
    %3674 = vst [vmem:[#allocation2 + $0x2b] sm:$0x1] %v3673
    %v3675 = vld [vmem:[#allocation3 + $0x12] sm:$0x1]
    %3676 = vst [vmem:[#allocation2 + $0x2c] sm:$0x1] %v3675
    %v3677 = vld [vmem:[#allocation4 + $0x12] sm:$0x1]
    %3678 = vst [vmem:[#allocation2 + $0x2d] sm:$0x1] %v3677
    %v3679 = vld [vmem:[#allocation3 + $0x13] sm:$0x1]
    %3680 = vst [vmem:[#allocation2 + $0x2e] sm:$0x1] %v3679
    %v3681 = vld [vmem:[#allocation4 + $0x13] sm:$0x1]
    %3682 = vst [vmem:[#allocation2 + $0x2f] sm:$0x1] %v3681
    %v3683 = vld [vmem:[#allocation3 + $0x14] sm:$0x1]
    %3684 = vst [vmem:[#allocation2 + $0x30] sm:$0x1] %v3683
    %v3685 = vld [vmem:[#allocation4 + $0x14] sm:$0x1]
    %3686 = vst [vmem:[#allocation2 + $0x31] sm:$0x1] %v3685
    %v3687 = vld [vmem:[#allocation3 + $0x15] sm:$0x1]
    %3688 = vst [vmem:[#allocation2 + $0x32] sm:$0x1] %v3687
    %v3689 = vld [vmem:[#allocation4 + $0x15] sm:$0x1]
    %3690 = vst [vmem:[#allocation2 + $0x33] sm:$0x1] %v3689
    %v3691 = vld [vmem:[#allocation3 + $0x16] sm:$0x1]
    %3692 = vst [vmem:[#allocation2 + $0x34] sm:$0x1] %v3691
    %v3693 = vld [vmem:[#allocation4 + $0x16] sm:$0x1]
    %3694 = vst [vmem:[#allocation2 + $0x35] sm:$0x1] %v3693
    %v3695 = vld [vmem:[#allocation3 + $0x17] sm:$0x1]
    %3696 = vst [vmem:[#allocation2 + $0x36] sm:$0x1] %v3695
    %v3697 = vld [vmem:[#allocation4 + $0x17] sm:$0x1]
    %3698 = vst [vmem:[#allocation2 + $0x37] sm:$0x1] %v3697
    %v3699 = vld [vmem:[#allocation3 + $0x18] sm:$0x1]
    %3700 = vst [vmem:[#allocation2 + $0x38] sm:$0x1] %v3699
    %v3701 = vld [vmem:[#allocation4 + $0x18] sm:$0x1]
    %3702 = vst [vmem:[#allocation2 + $0x39] sm:$0x1] %v3701
    %v3703 = vld [vmem:[#allocation3 + $0x19] sm:$0x1]
    %3704 = vst [vmem:[#allocation2 + $0x3a] sm:$0x1] %v3703
    %v3705 = vld [vmem:[#allocation4 + $0x19] sm:$0x1]
    %3706 = vst [vmem:[#allocation2 + $0x3b] sm:$0x1] %v3705
    %v3707 = vld [vmem:[#allocation3 + $0x1a] sm:$0x1]
    %3708 = vst [vmem:[#allocation2 + $0x3c] sm:$0x1] %v3707
    %v3709 = vld [vmem:[#allocation4 + $0x1a] sm:$0x1]
    %3710 = vst [vmem:[#allocation2 + $0x3d] sm:$0x1] %v3709
    %v3711 = vld [vmem:[#allocation3 + $0x1b] sm:$0x1]
    %3712 = vst [vmem:[#allocation2 + $0x3e] sm:$0x1] %v3711
    %v3713 = vld [vmem:[#allocation4 + $0x1b] sm:$0x1]
    %3714 = vst [vmem:[#allocation2 + $0x3f] sm:$0x1] %v3713
    %v3715 = vld [vmem:[#allocation3 + $0x1c] sm:$0x1]
    %3716 = vst [vmem:[#allocation2 + $0x40] sm:$0x1] %v3715
    %v3717 = vld [vmem:[#allocation4 + $0x1c] sm:$0x1]
    %3718 = vst [vmem:[#allocation2 + $0x41] sm:$0x1] %v3717
    %v3719 = vld [vmem:[#allocation3 + $0x1d] sm:$0x1]
    %3720 = vst [vmem:[#allocation2 + $0x42] sm:$0x1] %v3719
    %v3721 = vld [vmem:[#allocation4 + $0x1d] sm:$0x1]
    %3722 = vst [vmem:[#allocation2 + $0x43] sm:$0x1] %v3721
    %v3723 = vld [vmem:[#allocation3 + $0x1e] sm:$0x1]
    %3724 = vst [vmem:[#allocation2 + $0x44] sm:$0x1] %v3723
    %v3725 = vld [vmem:[#allocation4 + $0x1e] sm:$0x1]
    %3726 = vst [vmem:[#allocation2 + $0x45] sm:$0x1] %v3725
    %v3727 = vld [vmem:[#allocation3 + $0x1f] sm:$0x1]
    %3728 = vst [vmem:[#allocation2 + $0x46] sm:$0x1] %v3727
    %v3729 = vld [vmem:[#allocation4 + $0x1f] sm:$0x1]
    %3730 = vst [vmem:[#allocation2 + $0x47] sm:$0x1] %v3729
    %v3731 = vld [vmem:[#allocation3 + $0x20] sm:$0x1]
    %3732 = vst [vmem:[#allocation2 + $0x48] sm:$0x1] %v3731
    %v3733 = vld [vmem:[#allocation4 + $0x20] sm:$0x1]
    %3734 = vst [vmem:[#allocation2 + $0x49] sm:$0x1] %v3733
    %v3735 = vld [vmem:[#allocation3 + $0x21] sm:$0x1]
    %3736 = vst [vmem:[#allocation2 + $0x4a] sm:$0x1] %v3735
    %v3737 = vld [vmem:[#allocation4 + $0x21] sm:$0x1]
    %3738 = vst [vmem:[#allocation2 + $0x4b] sm:$0x1] %v3737
    %v3739 = vld [vmem:[#allocation3 + $0x22] sm:$0x1]
    %3740 = vst [vmem:[#allocation2 + $0x4c] sm:$0x1] %v3739
    %v3741 = vld [vmem:[#allocation4 + $0x22] sm:$0x1]
    %3742 = vst [vmem:[#allocation2 + $0x4d] sm:$0x1] %v3741
    %v3743 = vld [vmem:[#allocation3 + $0x23] sm:$0x1]
    %3744 = vst [vmem:[#allocation2 + $0x4e] sm:$0x1] %v3743
    %v3745 = vld [vmem:[#allocation4 + $0x23] sm:$0x1]
    %3746 = vst [vmem:[#allocation2 + $0x4f] sm:$0x1] %v3745
    %v3747 = vld [vmem:[#allocation3 + $0x24] sm:$0x1]
    %3748 = vst [vmem:[#allocation2 + $0x50] sm:$0x1] %v3747
    %v3749 = vld [vmem:[#allocation4 + $0x24] sm:$0x1]
    %3750 = vst [vmem:[#allocation2 + $0x51] sm:$0x1] %v3749
    %v3751 = vld [vmem:[#allocation3 + $0x25] sm:$0x1]
    %3752 = vst [vmem:[#allocation2 + $0x52] sm:$0x1] %v3751
    %v3753 = vld [vmem:[#allocation4 + $0x25] sm:$0x1]
    %3754 = vst [vmem:[#allocation2 + $0x53] sm:$0x1] %v3753
    %v3755 = vld [vmem:[#allocation3 + $0x26] sm:$0x1]
    %3756 = vst [vmem:[#allocation2 + $0x54] sm:$0x1] %v3755
    %v3757 = vld [vmem:[#allocation4 + $0x26] sm:$0x1]
    %3758 = vst [vmem:[#allocation2 + $0x55] sm:$0x1] %v3757
    %v3759 = vld [vmem:[#allocation3 + $0x27] sm:$0x1]
    %3760 = vst [vmem:[#allocation2 + $0x56] sm:$0x1] %v3759
    %v3761 = vld [vmem:[#allocation4 + $0x27] sm:$0x1]
    %3762 = vst [vmem:[#allocation2 + $0x57] sm:$0x1] %v3761
    %v3763 = vld [vmem:[#allocation3 + $0x28] sm:$0x1]
    %3764 = vst [vmem:[#allocation2 + $0x58] sm:$0x1] %v3763
    %v3765 = vld [vmem:[#allocation4 + $0x28] sm:$0x1]
    %3766 = vst [vmem:[#allocation2 + $0x59] sm:$0x1] %v3765
    %v3767 = vld [vmem:[#allocation3 + $0x29] sm:$0x1]
    %3768 = vst [vmem:[#allocation2 + $0x5a] sm:$0x1] %v3767
    %v3769 = vld [vmem:[#allocation4 + $0x29] sm:$0x1]
    %3770 = vst [vmem:[#allocation2 + $0x5b] sm:$0x1] %v3769
    %v3771 = vld [vmem:[#allocation3 + $0x2a] sm:$0x1]
    %3772 = vst [vmem:[#allocation2 + $0x5c] sm:$0x1] %v3771
    %v3773 = vld [vmem:[#allocation4 + $0x2a] sm:$0x1]
    %3774 = vst [vmem:[#allocation2 + $0x5d] sm:$0x1] %v3773
    %v3775 = vld [vmem:[#allocation3 + $0x2b] sm:$0x1]
    %3776 = vst [vmem:[#allocation2 + $0x5e] sm:$0x1] %v3775
    %v3777 = vld [vmem:[#allocation4 + $0x2b] sm:$0x1]
    %3778 = vst [vmem:[#allocation2 + $0x5f] sm:$0x1] %v3777
    %v3779 = vld [vmem:[#allocation3 + $0x2c] sm:$0x1]
    %3780 = vst [vmem:[#allocation2 + $0x60] sm:$0x1] %v3779
    %v3781 = vld [vmem:[#allocation4 + $0x2c] sm:$0x1]
    %3782 = vst [vmem:[#allocation2 + $0x61] sm:$0x1] %v3781
    %v3783 = vld [vmem:[#allocation3 + $0x2d] sm:$0x1]
    %3784 = vst [vmem:[#allocation2 + $0x62] sm:$0x1] %v3783
    %v3785 = vld [vmem:[#allocation4 + $0x2d] sm:$0x1]
    %3786 = vst [vmem:[#allocation2 + $0x63] sm:$0x1] %v3785
    %v3787 = vld [vmem:[#allocation3 + $0x2e] sm:$0x1]
    %3788 = vst [vmem:[#allocation2 + $0x64] sm:$0x1] %v3787
    %v3789 = vld [vmem:[#allocation4 + $0x2e] sm:$0x1]
    %3790 = vst [vmem:[#allocation2 + $0x65] sm:$0x1] %v3789
    %v3791 = vld [vmem:[#allocation3 + $0x2f] sm:$0x1]
    %3792 = vst [vmem:[#allocation2 + $0x66] sm:$0x1] %v3791
    %v3793 = vld [vmem:[#allocation4 + $0x2f] sm:$0x1]
    %3794 = vst [vmem:[#allocation2 + $0x67] sm:$0x1] %v3793
    %v3795 = vld [vmem:[#allocation3 + $0x30] sm:$0x1]
    %3796 = vst [vmem:[#allocation2 + $0x68] sm:$0x1] %v3795
    %v3797 = vld [vmem:[#allocation4 + $0x30] sm:$0x1]
    %3798 = vst [vmem:[#allocation2 + $0x69] sm:$0x1] %v3797
    %v3799 = vld [vmem:[#allocation3 + $0x31] sm:$0x1]
    %3800 = vst [vmem:[#allocation2 + $0x6a] sm:$0x1] %v3799
    %v3801 = vld [vmem:[#allocation4 + $0x31] sm:$0x1]
    %3802 = vst [vmem:[#allocation2 + $0x6b] sm:$0x1] %v3801
    %v3803 = vld [vmem:[#allocation3 + $0x32] sm:$0x1]
    %3804 = vst [vmem:[#allocation2 + $0x6c] sm:$0x1] %v3803
    %v3805 = vld [vmem:[#allocation4 + $0x32] sm:$0x1]
    %3806 = vst [vmem:[#allocation2 + $0x6d] sm:$0x1] %v3805
    %v3807 = vld [vmem:[#allocation3 + $0x33] sm:$0x1]
    %3808 = vst [vmem:[#allocation2 + $0x6e] sm:$0x1] %v3807
    %v3809 = vld [vmem:[#allocation4 + $0x33] sm:$0x1]
    %3810 = vst [vmem:[#allocation2 + $0x6f] sm:$0x1] %v3809
    %v3811 = vld [vmem:[#allocation3 + $0x34] sm:$0x1]
    %3812 = vst [vmem:[#allocation2 + $0x70] sm:$0x1] %v3811
    %v3813 = vld [vmem:[#allocation4 + $0x34] sm:$0x1]
    %3814 = vst [vmem:[#allocation2 + $0x71] sm:$0x1] %v3813
    %v3815 = vld [vmem:[#allocation3 + $0x35] sm:$0x1]
    %3816 = vst [vmem:[#allocation2 + $0x72] sm:$0x1] %v3815
    %v3817 = vld [vmem:[#allocation4 + $0x35] sm:$0x1]
    %3818 = vst [vmem:[#allocation2 + $0x73] sm:$0x1] %v3817
    %v3819 = vld [vmem:[#allocation3 + $0x36] sm:$0x1]
    %3820 = vst [vmem:[#allocation2 + $0x74] sm:$0x1] %v3819
    %v3821 = vld [vmem:[#allocation4 + $0x36] sm:$0x1]
    %3822 = vst [vmem:[#allocation2 + $0x75] sm:$0x1] %v3821
    %v3823 = vld [vmem:[#allocation3 + $0x37] sm:$0x1]
    %3824 = vst [vmem:[#allocation2 + $0x76] sm:$0x1] %v3823
    %v3825 = vld [vmem:[#allocation4 + $0x37] sm:$0x1]
    %3826 = vst [vmem:[#allocation2 + $0x77] sm:$0x1] %v3825
    %v3827 = vld [vmem:[#allocation3 + $0x38] sm:$0x1]
    %3828 = vst [vmem:[#allocation2 + $0x78] sm:$0x1] %v3827
    %v3829 = vld [vmem:[#allocation4 + $0x38] sm:$0x1]
    %3830 = vst [vmem:[#allocation2 + $0x79] sm:$0x1] %v3829
    %v3831 = vld [vmem:[#allocation3 + $0x39] sm:$0x1]
    %3832 = vst [vmem:[#allocation2 + $0x7a] sm:$0x1] %v3831
    %v3833 = vld [vmem:[#allocation4 + $0x39] sm:$0x1]
    %3834 = vst [vmem:[#allocation2 + $0x7b] sm:$0x1] %v3833
    %v3835 = vld [vmem:[#allocation3 + $0x3a] sm:$0x1]
    %3836 = vst [vmem:[#allocation2 + $0x7c] sm:$0x1] %v3835
    %v3837 = vld [vmem:[#allocation4 + $0x3a] sm:$0x1]
    %3838 = vst [vmem:[#allocation2 + $0x7d] sm:$0x1] %v3837
    %v3839 = vld [vmem:[#allocation3 + $0x3b] sm:$0x1]
    %3840 = vst [vmem:[#allocation2 + $0x7e] sm:$0x1] %v3839
    %v3841 = vld [vmem:[#allocation4 + $0x3b] sm:$0x1]
    %3842 = vst [vmem:[#allocation2 + $0x7f] sm:$0x1] %v3841
    %v3843 = vld [vmem:[#allocation3 + $0x3c] sm:$0x1]
    %3844 = vst [vmem:[#allocation2 + $0x80] sm:$0x1] %v3843
    %v3845 = vld [vmem:[#allocation4 + $0x3c] sm:$0x1]
    %3846 = vst [vmem:[#allocation2 + $0x81] sm:$0x1] %v3845
    %v3847 = vld [vmem:[#allocation3 + $0x3d] sm:$0x1]
    %3848 = vst [vmem:[#allocation2 + $0x82] sm:$0x1] %v3847
    %v3849 = vld [vmem:[#allocation4 + $0x3d] sm:$0x1]
    %3850 = vst [vmem:[#allocation2 + $0x83] sm:$0x1] %v3849
    %v3851 = vld [vmem:[#allocation3 + $0x3e] sm:$0x1]
    %3852 = vst [vmem:[#allocation2 + $0x84] sm:$0x1] %v3851
    %v3853 = vld [vmem:[#allocation4 + $0x3e] sm:$0x1]
    %3854 = vst [vmem:[#allocation2 + $0x85] sm:$0x1] %v3853
    %v3855 = vld [vmem:[#allocation3 + $0x3f] sm:$0x1]
    %3856 = vst [vmem:[#allocation2 + $0x86] sm:$0x1] %v3855
    %v3857 = vld [vmem:[#allocation4 + $0x3f] sm:$0x1]
    %3858 = vst [vmem:[#allocation2 + $0x87] sm:$0x1] %v3857
    %v3859 = vld [vmem:[#allocation2 + $0x8] sm:$0xff]
    %v3860 = vld [vmem:[#allocation2 + $0x10] sm:$0xff]
    %v3861 = vld [vmem:[#allocation2 + $0x18] sm:$0xff]
    %v3862 = vld [vmem:[#allocation2 + $0x20] sm:$0xff]
    %v3863 = vld [vmem:[#allocation2 + $0x28] sm:$0xff]
    %v3864 = vld [vmem:[#allocation2 + $0x30] sm:$0xff]
    %v3865 = vld [vmem:[#allocation2 + $0x38] sm:$0xff]
    %v3866 = vld [vmem:[#allocation2 + $0x40] sm:$0xff]
    %v3867 = vld [vmem:[#allocation2 + $0x48] sm:$0xff]
    %v3868 = vld [vmem:[#allocation2 + $0x50] sm:$0xff]
    %v3869 = vld [vmem:[#allocation2 + $0x58] sm:$0xff]
    %v3870 = vld [vmem:[#allocation2 + $0x60] sm:$0xff]
    %v3871 = vld [vmem:[#allocation2 + $0x68] sm:$0xff]
    %v3872 = vld [vmem:[#allocation2 + $0x70] sm:$0xff]
    %v3873 = vld [vmem:[#allocation2 + $0x78] sm:$0xff]
    %v3874 = vld [vmem:[#allocation2 + $0x80] sm:$0xff]
    %v3875 = vadd.s32 %v441, 64
    %v3876 = vadd.s32 %v441, 72
    %v3877 = vadd.s32 %v441, 80
    %v3878 = vadd.s32 %v441, 88
    %v3879 = vadd.s32 %v441, 96
    %v3880 = vadd.s32 %v441, 104
    %v3881 = vadd.s32 %v441, 112
    %v3882 = vadd.s32 %v441, 120
    %vm3883 = vcmp.lt.s32.totalorder %v441, 0
    %v3884 = vsub.s32 0, %v441
    %v3885 = vsel %vm3883, %v3884, %v441
    %v3886 = vshrl.u32 %v3885, 6
    %v3887 = vand.u32 %v3885, 63
    %v3888 = vsub.s32 0, %v3887
    %v3889 = vsel %vm3883, %v3888, %v3887
    %vm3890 = vcmp.lt.s32.totalorder %v1318, 0
    %v3891 = vsub.s32 0, %v1318
    %v3892 = vsel %vm3890, %v3891, %v1318
    %v3893 = vshrl.u32 %v3892, 6
    %v3894 = vand.u32 %v3892, 63
    %v3895 = vsub.s32 0, %v3894
    %v3896 = vsel %vm3890, %v3895, %v3894
    %vm3897 = vcmp.lt.s32.totalorder %v1909, 0
    %v3898 = vsub.s32 0, %v1909
    %v3899 = vsel %vm3897, %v3898, %v1909
    %v3900 = vshrl.u32 %v3899, 6
    %v3901 = vand.u32 %v3899, 63
    %v3902 = vsub.s32 0, %v3901
    %v3903 = vsel %vm3897, %v3902, %v3901
    %vm3904 = vcmp.lt.s32.totalorder %v1910, 0
    %v3905 = vsub.s32 0, %v1910
    %v3906 = vsel %vm3904, %v3905, %v1910
    %v3907 = vshrl.u32 %v3906, 6
    %v3908 = vand.u32 %v3906, 63
    %v3909 = vsub.s32 0, %v3908
    %v3910 = vsel %vm3904, %v3909, %v3908
    %vm3911 = vcmp.lt.s32.totalorder %v2696, 0
    %v3912 = vsub.s32 0, %v2696
    %v3913 = vsel %vm3911, %v3912, %v2696
    %v3914 = vshrl.u32 %v3913, 6
    %v3915 = vand.u32 %v3913, 63
    %v3916 = vsub.s32 0, %v3915
    %v3917 = vsel %vm3911, %v3916, %v3915
    %vm3918 = vcmp.lt.s32.totalorder %v2697, 0
    %v3919 = vsub.s32 0, %v2697
    %v3920 = vsel %vm3918, %v3919, %v2697
    %v3921 = vshrl.u32 %v3920, 6
    %v3922 = vand.u32 %v3920, 63
    %v3923 = vsub.s32 0, %v3922
    %v3924 = vsel %vm3918, %v3923, %v3922
    %vm3925 = vcmp.lt.s32.totalorder %v2698, 0
    %v3926 = vsub.s32 0, %v2698
    %v3927 = vsel %vm3925, %v3926, %v2698
    %v3928 = vshrl.u32 %v3927, 6
    %v3929 = vand.u32 %v3927, 63
    %v3930 = vsub.s32 0, %v3929
    %v3931 = vsel %vm3925, %v3930, %v3929
    %vm3932 = vcmp.lt.s32.totalorder %v2699, 0
    %v3933 = vsub.s32 0, %v2699
    %v3934 = vsel %vm3932, %v3933, %v2699
    %v3935 = vshrl.u32 %v3934, 6
    %v3936 = vand.u32 %v3934, 63
    %v3937 = vsub.s32 0, %v3936
    %v3938 = vsel %vm3932, %v3937, %v3936
    %vm3939 = vcmp.lt.s32.totalorder %v3875, 0
    %v3940 = vsub.s32 0, %v3875
    %v3941 = vsel %vm3939, %v3940, %v3875
    %v3942 = vshrl.u32 %v3941, 6
    %v3943 = vand.u32 %v3941, 63
    %v3944 = vsub.s32 0, %v3943
    %v3945 = vsel %vm3939, %v3944, %v3943
    %vm3946 = vcmp.lt.s32.totalorder %v3876, 0
    %v3947 = vsub.s32 0, %v3876
    %v3948 = vsel %vm3946, %v3947, %v3876
    %v3949 = vshrl.u32 %v3948, 6
    %v3950 = vand.u32 %v3948, 63
    %v3951 = vsub.s32 0, %v3950
    %v3952 = vsel %vm3946, %v3951, %v3950
    %vm3953 = vcmp.lt.s32.totalorder %v3877, 0
    %v3954 = vsub.s32 0, %v3877
    %v3955 = vsel %vm3953, %v3954, %v3877
    %v3956 = vshrl.u32 %v3955, 6
    %v3957 = vand.u32 %v3955, 63
    %v3958 = vsub.s32 0, %v3957
    %v3959 = vsel %vm3953, %v3958, %v3957
    %vm3960 = vcmp.lt.s32.totalorder %v3878, 0
    %v3961 = vsub.s32 0, %v3878
    %v3962 = vsel %vm3960, %v3961, %v3878
    %v3963 = vshrl.u32 %v3962, 6
    %v3964 = vand.u32 %v3962, 63
    %v3965 = vsub.s32 0, %v3964
    %v3966 = vsel %vm3960, %v3965, %v3964
    %vm3967 = vcmp.lt.s32.totalorder %v3879, 0
    %v3968 = vsub.s32 0, %v3879
    %v3969 = vsel %vm3967, %v3968, %v3879
    %v3970 = vshrl.u32 %v3969, 6
    %v3971 = vand.u32 %v3969, 63
    %v3972 = vsub.s32 0, %v3971
    %v3973 = vsel %vm3967, %v3972, %v3971
    %vm3974 = vcmp.lt.s32.totalorder %v3880, 0
    %v3975 = vsub.s32 0, %v3880
    %v3976 = vsel %vm3974, %v3975, %v3880
    %v3977 = vshrl.u32 %v3976, 6
    %v3978 = vand.u32 %v3976, 63
    %v3979 = vsub.s32 0, %v3978
    %v3980 = vsel %vm3974, %v3979, %v3978
    %vm3981 = vcmp.lt.s32.totalorder %v3881, 0
    %v3982 = vsub.s32 0, %v3881
    %v3983 = vsel %vm3981, %v3982, %v3881
    %v3984 = vshrl.u32 %v3983, 6
    %v3985 = vand.u32 %v3983, 63
    %v3986 = vsub.s32 0, %v3985
    %v3987 = vsel %vm3981, %v3986, %v3985
    %vm3988 = vcmp.lt.s32.totalorder %v3882, 0
    %v3989 = vsub.s32 0, %v3882
    %v3990 = vsel %vm3988, %v3989, %v3882
    %v3991 = vshrl.u32 %v3990, 6
    %v3992 = vand.u32 %v3990, 63
    %v3993 = vsub.s32 0, %v3992
    %v3994 = vsel %vm3988, %v3993, %v3992
    %vm3995 = vcmp.ne.s32.totalorder %v3889, 0
    %vm3996 = vcmp.ne.s32.totalorder %v3896, 0
    %vm3997 = vcmp.ne.s32.totalorder %v3903, 0
    %vm3998 = vcmp.ne.s32.totalorder %v3910, 0
    %vm3999 = vcmp.ne.s32.totalorder %v3917, 0
    %vm4000 = vcmp.ne.s32.totalorder %v3924, 0
    %vm4001 = vcmp.ne.s32.totalorder %v3931, 0
    %vm4002 = vcmp.ne.s32.totalorder %v3938, 0
    %vm4003 = vcmp.ne.s32.totalorder %v3945, 0
    %vm4004 = vcmp.ne.s32.totalorder %v3952, 0
    %vm4005 = vcmp.ne.s32.totalorder %v3959, 0
    %vm4006 = vcmp.ne.s32.totalorder %v3966, 0
    %vm4007 = vcmp.ne.s32.totalorder %v3973, 0
    %vm4008 = vcmp.ne.s32.totalorder %v3980, 0
    %vm4009 = vcmp.ne.s32.totalorder %v3987, 0
    %vm4010 = vcmp.ne.s32.totalorder %v3994, 0
    %vm4011 = vcmp.lt.s32.totalorder %v3889, 0
    %vm4012 = vcmp.lt.s32.totalorder %v3896, 0
    %vm4013 = vcmp.lt.s32.totalorder %v3903, 0
    %vm4014 = vcmp.lt.s32.totalorder %v3910, 0
    %vm4015 = vcmp.lt.s32.totalorder %v3917, 0
    %vm4016 = vcmp.lt.s32.totalorder %v3924, 0
    %vm4017 = vcmp.lt.s32.totalorder %v3931, 0
    %vm4018 = vcmp.lt.s32.totalorder %v3938, 0
    %vm4019 = vcmp.lt.s32.totalorder %v3945, 0
    %vm4020 = vcmp.lt.s32.totalorder %v3952, 0
    %vm4021 = vcmp.lt.s32.totalorder %v3959, 0
    %vm4022 = vcmp.lt.s32.totalorder %v3966, 0
    %vm4023 = vcmp.lt.s32.totalorder %v3973, 0
    %vm4024 = vcmp.lt.s32.totalorder %v3980, 0
    %vm4025 = vcmp.lt.s32.totalorder %v3987, 0
    %vm4026 = vcmp.lt.s32.totalorder %v3994, 0
    %vm4027 = vmand %vm4011, %vm3995
    %vm4028 = vmand %vm4012, %vm3996
    %vm4029 = vmand %vm4013, %vm3997
    %vm4030 = vmand %vm4014, %vm3998
    %vm4031 = vmand %vm4015, %vm3999
    %vm4032 = vmand %vm4016, %vm4000
    %vm4033 = vmand %vm4017, %vm4001
    %vm4034 = vmand %vm4018, %vm4002
    %vm4035 = vmand %vm4019, %vm4003
    %vm4036 = vmand %vm4020, %vm4004
    %vm4037 = vmand %vm4021, %vm4005
    %vm4038 = vmand %vm4022, %vm4006
    %vm4039 = vmand %vm4023, %vm4007
    %vm4040 = vmand %vm4024, %vm4008
    %vm4041 = vmand %vm4025, %vm4009
    %vm4042 = vmand %vm4026, %vm4010
    %v4043 = vadd.s32 %v3889, 64
    %v4044 = vadd.s32 %v3896, 64
    %v4045 = vadd.s32 %v3903, 64
    %v4046 = vadd.s32 %v3910, 64
    %v4047 = vadd.s32 %v3917, 64
    %v4048 = vadd.s32 %v3924, 64
    %v4049 = vadd.s32 %v3931, 64
    %v4050 = vadd.s32 %v3938, 64
    %v4051 = vadd.s32 %v3945, 64
    %v4052 = vadd.s32 %v3952, 64
    %v4053 = vadd.s32 %v3959, 64
    %v4054 = vadd.s32 %v3966, 64
    %v4055 = vadd.s32 %v3973, 64
    %v4056 = vadd.s32 %v3980, 64
    %v4057 = vadd.s32 %v3987, 64
    %v4058 = vadd.s32 %v3994, 64
    %v4059 = vsel %vm4027, %v4043, %v3889
    %v4060 = vsel %vm4028, %v4044, %v3896
    %v4061 = vsel %vm4029, %v4045, %v3903
    %v4062 = vsel %vm4030, %v4046, %v3910
    %v4063 = vsel %vm4031, %v4047, %v3917
    %v4064 = vsel %vm4032, %v4048, %v3924
    %v4065 = vsel %vm4033, %v4049, %v3931
    %v4066 = vsel %vm4034, %v4050, %v3938
    %v4067 = vsel %vm4035, %v4051, %v3945
    %v4068 = vsel %vm4036, %v4052, %v3952
    %v4069 = vsel %vm4037, %v4053, %v3959
    %v4070 = vsel %vm4038, %v4054, %v3966
    %v4071 = vsel %vm4039, %v4055, %v3973
    %v4072 = vsel %vm4040, %v4056, %v3980
    %v4073 = vsel %vm4041, %v4057, %v3987
    %v4074 = vsel %vm4042, %v4058, %v3994
    %v4075 = vadd.s32 %v4059, 4294967295
    %v4076 = vadd.s32 %v4060, 4294967295
    %v4077 = vadd.s32 %v4061, 4294967295
    %v4078 = vadd.s32 %v4062, 4294967295
    %v4079 = vadd.s32 %v4063, 4294967295
    %v4080 = vadd.s32 %v4064, 4294967295
    %v4081 = vadd.s32 %v4065, 4294967295
    %v4082 = vadd.s32 %v4066, 4294967295
    %v4083 = vadd.s32 %v4067, 4294967295
    %v4084 = vadd.s32 %v4068, 4294967295
    %v4085 = vadd.s32 %v4069, 4294967295
    %v4086 = vadd.s32 %v4070, 4294967295
    %v4087 = vadd.s32 %v4071, 4294967295
    %v4088 = vadd.s32 %v4072, 4294967295
    %v4089 = vadd.s32 %v4073, 4294967295
    %v4090 = vadd.s32 %v4074, 4294967295
    %vm4091 = vcmp.ge.s32.totalorder %v4075, 0
    %vm4092 = vcmp.ge.s32.totalorder %v4076, 0
    %vm4093 = vcmp.ge.s32.totalorder %v4077, 0
    %vm4094 = vcmp.ge.s32.totalorder %v4078, 0
    %vm4095 = vcmp.ge.s32.totalorder %v4079, 0
    %vm4096 = vcmp.ge.s32.totalorder %v4080, 0
    %vm4097 = vcmp.ge.s32.totalorder %v4081, 0
    %vm4098 = vcmp.ge.s32.totalorder %v4082, 0
    %vm4099 = vcmp.ge.s32.totalorder %v4083, 0
    %vm4100 = vcmp.ge.s32.totalorder %v4084, 0
    %vm4101 = vcmp.ge.s32.totalorder %v4085, 0
    %vm4102 = vcmp.ge.s32.totalorder %v4086, 0
    %vm4103 = vcmp.ge.s32.totalorder %v4087, 0
    %vm4104 = vcmp.ge.s32.totalorder %v4088, 0
    %vm4105 = vcmp.ge.s32.totalorder %v4089, 0
    %vm4106 = vcmp.ge.s32.totalorder %v4090, 0
    %vm4107 = vcmp.lt.s32.totalorder %v4075, 64
    %vm4108 = vcmp.lt.s32.totalorder %v4076, 64
    %vm4109 = vcmp.lt.s32.totalorder %v4077, 64
    %vm4110 = vcmp.lt.s32.totalorder %v4078, 64
    %vm4111 = vcmp.lt.s32.totalorder %v4079, 64
    %vm4112 = vcmp.lt.s32.totalorder %v4080, 64
    %vm4113 = vcmp.lt.s32.totalorder %v4081, 64
    %vm4114 = vcmp.lt.s32.totalorder %v4082, 64
    %vm4115 = vcmp.lt.s32.totalorder %v4083, 64
    %vm4116 = vcmp.lt.s32.totalorder %v4084, 64
    %vm4117 = vcmp.lt.s32.totalorder %v4085, 64
    %vm4118 = vcmp.lt.s32.totalorder %v4086, 64
    %vm4119 = vcmp.lt.s32.totalorder %v4087, 64
    %vm4120 = vcmp.lt.s32.totalorder %v4088, 64
    %vm4121 = vcmp.lt.s32.totalorder %v4089, 64
    %vm4122 = vcmp.lt.s32.totalorder %v4090, 64
    %vm4123 = vmand %vm4091, %vm4107
    %vm4124 = vmand %vm4092, %vm4108
    %vm4125 = vmand %vm4093, %vm4109
    %vm4126 = vmand %vm4094, %vm4110
    %vm4127 = vmand %vm4095, %vm4111
    %vm4128 = vmand %vm4096, %vm4112
    %vm4129 = vmand %vm4097, %vm4113
    %vm4130 = vmand %vm4098, %vm4114
    %vm4131 = vmand %vm4099, %vm4115
    %vm4132 = vmand %vm4100, %vm4116
    %vm4133 = vmand %vm4101, %vm4117
    %vm4134 = vmand %vm4102, %vm4118
    %vm4135 = vmand %vm4103, %vm4119
    %vm4136 = vmand %vm4104, %vm4120
    %vm4137 = vmand %vm4105, %vm4121
    %vm4138 = vmand %vm4106, %vm4122
    %v4139 = vld [vmem:[#allocation2 + $0x7] sm:$0xff]
    %v4140 = vld [vmem:[#allocation2 + $0xf] sm:$0xff]
    %v4141 = vld [vmem:[#allocation2 + $0x17] sm:$0xff]
    %v4142 = vld [vmem:[#allocation2 + $0x1f] sm:$0xff]
    %v4143 = vld [vmem:[#allocation2 + $0x27] sm:$0xff]
    %v4144 = vld [vmem:[#allocation2 + $0x2f] sm:$0xff]
    %v4145 = vld [vmem:[#allocation2 + $0x37] sm:$0xff]
    %v4146 = vld [vmem:[#allocation2 + $0x3f] sm:$0xff]
    %v4147 = vld [vmem:[#allocation2 + $0x47] sm:$0xff]
    %v4148 = vld [vmem:[#allocation2 + $0x4f] sm:$0xff]
    %v4149 = vld [vmem:[#allocation2 + $0x57] sm:$0xff]
    %v4150 = vld [vmem:[#allocation2 + $0x5f] sm:$0xff]
    %v4151 = vld [vmem:[#allocation2 + $0x67] sm:$0xff]
    %v4152 = vld [vmem:[#allocation2 + $0x6f] sm:$0xff]
    %v4153 = vld [vmem:[#allocation2 + $0x77] sm:$0xff]
    %v4154 = vld [vmem:[#allocation2 + $0x7f] sm:$0xff]
    %v4155 = vsel %vm4123, %v4139, 0.0
    %v4156 = vsel %vm4124, %v4140, 0.0
    %v4157 = vsel %vm4125, %v4141, 0.0
    %v4158 = vsel %vm4126, %v4142, 0.0
    %v4159 = vsel %vm4127, %v4143, 0.0
    %v4160 = vsel %vm4128, %v4144, 0.0
    %v4161 = vsel %vm4129, %v4145, 0.0
    %v4162 = vsel %vm4130, %v4146, 0.0
    %v4163 = vsel %vm4131, %v4147, 0.0
    %v4164 = vsel %vm4132, %v4148, 0.0
    %v4165 = vsel %vm4133, %v4149, 0.0
    %v4166 = vsel %vm4134, %v4150, 0.0
    %v4167 = vsel %vm4135, %v4151, 0.0
    %v4168 = vsel %vm4136, %v4152, 0.0
    %v4169 = vsel %vm4137, %v4153, 0.0
    %v4170 = vsel %vm4138, %v4154, 0.0
    %v4171 = vadd.s32 %v4059, 1
    %v4172 = vadd.s32 %v4060, 1
    %v4173 = vadd.s32 %v4061, 1
    %v4174 = vadd.s32 %v4062, 1
    %v4175 = vadd.s32 %v4063, 1
    %v4176 = vadd.s32 %v4064, 1
    %v4177 = vadd.s32 %v4065, 1
    %v4178 = vadd.s32 %v4066, 1
    %v4179 = vadd.s32 %v4067, 1
    %v4180 = vadd.s32 %v4068, 1
    %v4181 = vadd.s32 %v4069, 1
    %v4182 = vadd.s32 %v4070, 1
    %v4183 = vadd.s32 %v4071, 1
    %v4184 = vadd.s32 %v4072, 1
    %v4185 = vadd.s32 %v4073, 1
    %v4186 = vadd.s32 %v4074, 1
    %vm4187 = vcmp.ge.s32.totalorder %v4171, 0
    %vm4188 = vcmp.ge.s32.totalorder %v4172, 0
    %vm4189 = vcmp.ge.s32.totalorder %v4173, 0
    %vm4190 = vcmp.ge.s32.totalorder %v4174, 0
    %vm4191 = vcmp.ge.s32.totalorder %v4175, 0
    %vm4192 = vcmp.ge.s32.totalorder %v4176, 0
    %vm4193 = vcmp.ge.s32.totalorder %v4177, 0
    %vm4194 = vcmp.ge.s32.totalorder %v4178, 0
    %vm4195 = vcmp.ge.s32.totalorder %v4179, 0
    %vm4196 = vcmp.ge.s32.totalorder %v4180, 0
    %vm4197 = vcmp.ge.s32.totalorder %v4181, 0
    %vm4198 = vcmp.ge.s32.totalorder %v4182, 0
    %vm4199 = vcmp.ge.s32.totalorder %v4183, 0
    %vm4200 = vcmp.ge.s32.totalorder %v4184, 0
    %vm4201 = vcmp.ge.s32.totalorder %v4185, 0
    %vm4202 = vcmp.ge.s32.totalorder %v4186, 0
    %vm4203 = vcmp.lt.s32.totalorder %v4171, 64
    %vm4204 = vcmp.lt.s32.totalorder %v4172, 64
    %vm4205 = vcmp.lt.s32.totalorder %v4173, 64
    %vm4206 = vcmp.lt.s32.totalorder %v4174, 64
    %vm4207 = vcmp.lt.s32.totalorder %v4175, 64
    %vm4208 = vcmp.lt.s32.totalorder %v4176, 64
    %vm4209 = vcmp.lt.s32.totalorder %v4177, 64
    %vm4210 = vcmp.lt.s32.totalorder %v4178, 64
    %vm4211 = vcmp.lt.s32.totalorder %v4179, 64
    %vm4212 = vcmp.lt.s32.totalorder %v4180, 64
    %vm4213 = vcmp.lt.s32.totalorder %v4181, 64
    %vm4214 = vcmp.lt.s32.totalorder %v4182, 64
    %vm4215 = vcmp.lt.s32.totalorder %v4183, 64
    %vm4216 = vcmp.lt.s32.totalorder %v4184, 64
    %vm4217 = vcmp.lt.s32.totalorder %v4185, 64
    %vm4218 = vcmp.lt.s32.totalorder %v4186, 64
    %vm4219 = vmand %vm4187, %vm4203
    %vm4220 = vmand %vm4188, %vm4204
    %vm4221 = vmand %vm4189, %vm4205
    %vm4222 = vmand %vm4190, %vm4206
    %vm4223 = vmand %vm4191, %vm4207
    %vm4224 = vmand %vm4192, %vm4208
    %vm4225 = vmand %vm4193, %vm4209
    %vm4226 = vmand %vm4194, %vm4210
    %vm4227 = vmand %vm4195, %vm4211
    %vm4228 = vmand %vm4196, %vm4212
    %vm4229 = vmand %vm4197, %vm4213
    %vm4230 = vmand %vm4198, %vm4214
    %vm4231 = vmand %vm4199, %vm4215
    %vm4232 = vmand %vm4200, %vm4216
    %vm4233 = vmand %vm4201, %vm4217
    %vm4234 = vmand %vm4202, %vm4218
    %v4235 = vld [vmem:[#allocation2 + $0x9] sm:$0xff]
    %v4236 = vld [vmem:[#allocation2 + $0x11] sm:$0xff]
    %v4237 = vld [vmem:[#allocation2 + $0x19] sm:$0xff]
    %v4238 = vld [vmem:[#allocation2 + $0x21] sm:$0xff]
    %v4239 = vld [vmem:[#allocation2 + $0x29] sm:$0xff]
    %v4240 = vld [vmem:[#allocation2 + $0x31] sm:$0xff]
    %v4241 = vld [vmem:[#allocation2 + $0x39] sm:$0xff]
    %v4242 = vld [vmem:[#allocation2 + $0x41] sm:$0xff]
    %v4243 = vld [vmem:[#allocation2 + $0x49] sm:$0xff]
    %v4244 = vld [vmem:[#allocation2 + $0x51] sm:$0xff]
    %v4245 = vld [vmem:[#allocation2 + $0x59] sm:$0xff]
    %v4246 = vld [vmem:[#allocation2 + $0x61] sm:$0xff]
    %v4247 = vld [vmem:[#allocation2 + $0x69] sm:$0xff]
    %v4248 = vld [vmem:[#allocation2 + $0x71] sm:$0xff]
    %v4249 = vld [vmem:[#allocation2 + $0x79] sm:$0xff]
    %v4250 = vld [vmem:[#allocation2 + $0x81] sm:$0xff]
    %v4251 = vsel %vm4219, %v4235, 0.0
    %v4252 = vsel %vm4220, %v4236, 0.0
    %v4253 = vsel %vm4221, %v4237, 0.0
    %v4254 = vsel %vm4222, %v4238, 0.0
    %v4255 = vsel %vm4223, %v4239, 0.0
    %v4256 = vsel %vm4224, %v4240, 0.0
    %v4257 = vsel %vm4225, %v4241, 0.0
    %v4258 = vsel %vm4226, %v4242, 0.0
    %v4259 = vsel %vm4227, %v4243, 0.0
    %v4260 = vsel %vm4228, %v4244, 0.0
    %v4261 = vsel %vm4229, %v4245, 0.0
    %v4262 = vsel %vm4230, %v4246, 0.0
    %v4263 = vsel %vm4231, %v4247, 0.0
    %v4264 = vsel %vm4232, %v4248, 0.0
    %v4265 = vsel %vm4233, %v4249, 0.0
    %v4266 = vsel %vm4234, %v4250, 0.0
    %v4267 = vpack.c.bf16 %v3860, %v3859
    %v4268 = vpack.c.bf16 %v3862, %v3861
    %v4269 = vpack.c.bf16 %v3864, %v3863
    %v4270 = vpack.c.bf16 %v3866, %v3865
    %v4271 = vpack.c.bf16 %v3868, %v3867
    %v4272 = vpack.c.bf16 %v3870, %v3869
    %v4273 = vpack.c.bf16 %v3872, %v3871
    %v4274 = vpack.c.bf16 %v3874, %v3873
    %v4275 = vpack.c.bf16 %v4156, %v4155
    %v4276 = vpack.c.bf16 %v4158, %v4157
    %v4277 = vpack.c.bf16 %v4160, %v4159
    %v4278 = vpack.c.bf16 %v4162, %v4161
    %v4279 = vpack.c.bf16 %v4164, %v4163
    %v4280 = vpack.c.bf16 %v4166, %v4165
    %v4281 = vpack.c.bf16 %v4168, %v4167
    %v4282 = vpack.c.bf16 %v4170, %v4169
    %v4283 = vpack.c.bf16 %v4252, %v4251
    %v4284 = vpack.c.bf16 %v4254, %v4253
    %v4285 = vpack.c.bf16 %v4256, %v4255
    %v4286 = vpack.c.bf16 %v4258, %v4257
    %v4287 = vpack.c.bf16 %v4260, %v4259
    %v4288 = vpack.c.bf16 %v4262, %v4261
    %v4289 = vpack.c.bf16 %v4264, %v4263
    %v4290 = vpack.c.bf16 %v4266, %v4265
    %v4291 = vld [vmem:[#allocation19] sm:$0xf]
    %v4292 = vld [vmem:[#allocation19 + $0x4] sm:$0xf]
    %v4293 = vld [vmem:[#allocation19 + $0x8] sm:$0xf]
    %v4294 = vld [vmem:[#allocation19 + $0xc] sm:$0xf]
    %v4295 = vld [vmem:[#allocation19 + $0x10] sm:$0xf]
    %v4296 = vld [vmem:[#allocation19 + $0x14] sm:$0xf]
    %v4297 = vld [vmem:[#allocation19 + $0x18] sm:$0xf]
    %v4298 = vld [vmem:[#allocation19 + $0x1c] sm:$0xf]
    %v4299 = vld [vmem:[#allocation19 + $0x20] sm:$0xf]
    %v4300 = vld [vmem:[#allocation19 + $0x24] sm:$0xf]
    %v4301 = vld [vmem:[#allocation19 + $0x28] sm:$0xf]
    %v4302 = vld [vmem:[#allocation19 + $0x2c] sm:$0xf]
    %v4303 = vld [vmem:[#allocation19 + $0x30] sm:$0xf]
    %v4304 = vld [vmem:[#allocation19 + $0x34] sm:$0xf]
    %v4305 = vld [vmem:[#allocation19 + $0x38] sm:$0xf]
    %v4306 = vld [vmem:[#allocation19 + $0x3c] sm:$0xf]
    %v4307 = vld [vmem:[#allocation19 + $0x40] sm:$0xf]
    %v4308 = vld [vmem:[#allocation19 + $0x44] sm:$0xf]
    %v4309 = vld [vmem:[#allocation19 + $0x48] sm:$0xf]
    %v4310 = vld [vmem:[#allocation19 + $0x4c] sm:$0xf]
    %v4311 = vld [vmem:[#allocation19 + $0x50] sm:$0xf]
    %v4312 = vld [vmem:[#allocation19 + $0x54] sm:$0xf]
    %v4313 = vld [vmem:[#allocation19 + $0x58] sm:$0xf]
    %v4314 = vld [vmem:[#allocation19 + $0x5c] sm:$0xf]
    %v4315 = vld [vmem:[#allocation19 + $0x60] sm:$0xf]
    %v4316 = vld [vmem:[#allocation19 + $0x64] sm:$0xf]
    %v4317 = vld [vmem:[#allocation19 + $0x68] sm:$0xf]
    %v4318 = vld [vmem:[#allocation19 + $0x6c] sm:$0xf]
    %v4319 = vld [vmem:[#allocation19 + $0x70] sm:$0xf]
    %v4320 = vld [vmem:[#allocation19 + $0x74] sm:$0xf]
    %v4321 = vld [vmem:[#allocation19 + $0x78] sm:$0xf]
    %v4322 = vld [vmem:[#allocation19 + $0x7c] sm:$0xf]
    %v4323 = vld [vmem:[#allocation19 + $0x80] sm:$0xf]
    %v4324 = vld [vmem:[#allocation19 + $0x84] sm:$0xf]
    %v4325 = vld [vmem:[#allocation19 + $0x88] sm:$0xf]
    %v4326 = vld [vmem:[#allocation19 + $0x8c] sm:$0xf]
    %v4327 = vld [vmem:[#allocation19 + $0x90] sm:$0xf]
    %v4328 = vld [vmem:[#allocation19 + $0x94] sm:$0xf]
    %v4329 = vld [vmem:[#allocation19 + $0x98] sm:$0xf]
    %v4330 = vld [vmem:[#allocation19 + $0x9c] sm:$0xf]
    %v4331 = vld [vmem:[#allocation19 + $0xa0] sm:$0xf]
    %v4332 = vld [vmem:[#allocation19 + $0xa4] sm:$0xf]
    %v4333 = vld [vmem:[#allocation19 + $0xa8] sm:$0xf]
    %v4334 = vld [vmem:[#allocation19 + $0xac] sm:$0xf]
    %v4335 = vld [vmem:[#allocation19 + $0xb0] sm:$0xf]
    %v4336 = vld [vmem:[#allocation19 + $0xb4] sm:$0xf]
    %v4337 = vld [vmem:[#allocation19 + $0xb8] sm:$0xf]
    %v4338 = vld [vmem:[#allocation19 + $0xbc] sm:$0xf]
    %v4355 = vunpack.c.l.b16 %v4307
    %v4356 = vunpack.c.l.b16 %v4308
    %v4357 = vunpack.c.l.b16 %v4309
    %v4358 = vunpack.c.l.b16 %v4310
    %v4359 = vunpack.c.l.b16 %v4311
    %v4360 = vunpack.c.l.b16 %v4312
    %v4361 = vunpack.c.l.b16 %v4313
    %v4362 = vunpack.c.l.b16 %v4314
    %v4363 = vunpack.c.l.b16 %v4315
    %v4364 = vunpack.c.l.b16 %v4316
    %v4365 = vunpack.c.l.b16 %v4317
    %v4366 = vunpack.c.l.b16 %v4318
    %v4367 = vunpack.c.l.b16 %v4319
    %v4368 = vunpack.c.l.b16 %v4320
    %v4369 = vunpack.c.l.b16 %v4321
    %v4370 = vunpack.c.l.b16 %v4322
    %v4371 = vpack.c.b16 %v4356, %v4355
    %v4372 = vpack.c.b16 %v4358, %v4357
    %v4373 = vpack.c.b16 %v4360, %v4359
    %v4374 = vpack.c.b16 %v4362, %v4361
    %v4375 = vpack.c.b16 %v4364, %v4363
    %v4376 = vpack.c.b16 %v4366, %v4365
    %v4377 = vpack.c.b16 %v4368, %v4367
    %v4378 = vpack.c.b16 %v4370, %v4369
    %4387 = vmatprep.subr.bf16.mxu0 0
    %4388 = vmatpush1.bf16.msra.mxu0 %v4378
    %4389 = vmatprep.subr.bf16.mxu0 0
    %4390 = vmatpush1.bf16.msra.mxu0 %v4377
    %4391 = vmatprep.subr.bf16.mxu0 0
    %4392 = vmatpush1.bf16.msra.mxu0 %v4376
    %4393 = vmatprep.subr.bf16.mxu0 0
    %4394 = vmatpush1.bf16.msra.mxu0 %v4375
    %4395 = vmatprep.subr.bf16.mxu0 0
    %4396 = vmatpush1.bf16.msra.mxu0 %v4374
    %4397 = vmatprep.subr.bf16.mxu0 0
    %4398 = vmatpush1.bf16.msra.mxu0 %v4373
    %4399 = vmatprep.subr.bf16.mxu0 0
    %4400 = vmatpush1.bf16.msra.mxu0 %v4372
    %4401 = vmatprep.subr.bf16.mxu0 0
    %4402 = vmatpush1.bf16.msra.mxu0 %v4371
    %4403 = vmatprep.subr.bf16.mxu0 0
    %4404 = vmatpush2.bf16.msra.mxu0 0
    %4405 = vmatprep.subr.bf16.mxu0 0
    %4406 = vmatpush2.bf16.msra.mxu0 0
    %4407 = vmatprep.subr.bf16.mxu0 0
    %4408 = vmatpush2.bf16.msra.mxu0 0
    %4409 = vmatprep.subr.bf16.mxu0 0
    %4410 = vmatpush2.bf16.msra.mxu0 0
    %4411 = vmatprep.subr.bf16.mxu0 0
    %4412 = vmatpush2.bf16.msra.mxu0 0
    %4413 = vmatprep.subr.bf16.mxu0 0
    %4414 = vmatpush2.bf16.msra.mxu0 0
    %4415 = vmatprep.subr.bf16.mxu0 0
    %4416 = vmatpush2.bf16.msra.mxu0 0
    %4417 = vmatprep.subr.bf16.mxu0 0
    %4418 = vmatpush2.bf16.msra.mxu0 0
    %4419 = vmatprep.mubr.bf16.mxu0 0
    %4420 = vmatmul.mubr.bf16.gmra.mxu0 %v4267
    %v4421 = vpop.f32.mrf.mxu0
    %v4422 = vadd.f32 0.0, %v4421
    %v4423 = vpop.f32.mrf.mxu0
    %v4424 = vpop.f32.mrf.mxu0
    %v4425 = vadd.f32 0.0, %v4424
    %v4426 = vpop.f32.mrf.mxu0
    %4427 = vmatprep.mubr.bf16.mxu0 0
    %4428 = vmatmul.mubr.bf16.gmra.mxu0 %v4268
    %v4429 = vpop.f32.mrf.mxu0
    %v4430 = vadd.f32 0.0, %v4429
    %v4431 = vpop.f32.mrf.mxu0
    %v4432 = vpop.f32.mrf.mxu0
    %v4433 = vadd.f32 0.0, %v4432
    %v4434 = vpop.f32.mrf.mxu0
    %4435 = vmatprep.mubr.bf16.mxu0 0
    %4436 = vmatmul.mubr.bf16.gmra.mxu0 %v4269
    %v4437 = vpop.f32.mrf.mxu0
    %v4438 = vadd.f32 0.0, %v4437
    %v4439 = vpop.f32.mrf.mxu0
    %v4440 = vpop.f32.mrf.mxu0
    %v4441 = vadd.f32 0.0, %v4440
    %v4442 = vpop.f32.mrf.mxu0
    %4443 = vmatprep.mubr.bf16.mxu0 0
    %4444 = vmatmul.mubr.bf16.gmra.mxu0 %v4270
    %v4445 = vpop.f32.mrf.mxu0
    %v4446 = vadd.f32 0.0, %v4445
    %v4447 = vpop.f32.mrf.mxu0
    %v4448 = vpop.f32.mrf.mxu0
    %v4449 = vadd.f32 0.0, %v4448
    %v4450 = vpop.f32.mrf.mxu0
    %4451 = vmatprep.mubr.bf16.mxu0 0
    %4452 = vmatmul.mubr.bf16.gmra.mxu0 %v4271
    %v4453 = vpop.f32.mrf.mxu0
    %v4454 = vadd.f32 0.0, %v4453
    %v4455 = vpop.f32.mrf.mxu0
    %v4456 = vpop.f32.mrf.mxu0
    %v4457 = vadd.f32 0.0, %v4456
    %v4458 = vpop.f32.mrf.mxu0
    %4459 = vmatprep.mubr.bf16.mxu0 0
    %4460 = vmatmul.mubr.bf16.gmra.mxu0 %v4272
    %v4461 = vpop.f32.mrf.mxu0
    %v4462 = vadd.f32 0.0, %v4461
    %v4463 = vpop.f32.mrf.mxu0
    %v4464 = vpop.f32.mrf.mxu0
    %v4465 = vadd.f32 0.0, %v4464
    %v4466 = vpop.f32.mrf.mxu0
    %4467 = vmatprep.mubr.bf16.mxu0 0
    %4468 = vmatmul.mubr.bf16.gmra.mxu0 %v4273
    %v4469 = vpop.f32.mrf.mxu0
    %v4470 = vadd.f32 0.0, %v4469
    %v4471 = vpop.f32.mrf.mxu0
    %v4472 = vpop.f32.mrf.mxu0
    %v4473 = vadd.f32 0.0, %v4472
    %v4474 = vpop.f32.mrf.mxu0
    %4475 = vmatprep.mubr.bf16.mxu0 0
    %4476 = vmatmul.mubr.bf16.gmra.mxu0 %v4274
    %v4477 = vpop.f32.mrf.mxu0
    %v4478 = vadd.f32 0.0, %v4477
    %v4479 = vpop.f32.mrf.mxu0
    %v4480 = vpop.f32.mrf.mxu0
    %v4481 = vadd.f32 0.0, %v4480
    %v4482 = vpop.f32.mrf.mxu0
    %4483 = vdwg.mxu0
    %v4500 = vunpack.c.l.b16 %v4291
    %v4501 = vunpack.c.l.b16 %v4292
    %v4502 = vunpack.c.l.b16 %v4293
    %v4503 = vunpack.c.l.b16 %v4294
    %v4504 = vunpack.c.l.b16 %v4295
    %v4505 = vunpack.c.l.b16 %v4296
    %v4506 = vunpack.c.l.b16 %v4297
    %v4507 = vunpack.c.l.b16 %v4298
    %v4508 = vunpack.c.l.b16 %v4299
    %v4509 = vunpack.c.l.b16 %v4300
    %v4510 = vunpack.c.l.b16 %v4301
    %v4511 = vunpack.c.l.b16 %v4302
    %v4512 = vunpack.c.l.b16 %v4303
    %v4513 = vunpack.c.l.b16 %v4304
    %v4514 = vunpack.c.l.b16 %v4305
    %v4515 = vunpack.c.l.b16 %v4306
    %v4516 = vpack.c.b16 %v4501, %v4500
    %v4517 = vpack.c.b16 %v4503, %v4502
    %v4518 = vpack.c.b16 %v4505, %v4504
    %v4519 = vpack.c.b16 %v4507, %v4506
    %v4520 = vpack.c.b16 %v4509, %v4508
    %v4521 = vpack.c.b16 %v4511, %v4510
    %v4522 = vpack.c.b16 %v4513, %v4512
    %v4523 = vpack.c.b16 %v4515, %v4514
    %4532 = vmatprep.subr.bf16.mxu0 0
    %4533 = vmatpush1.bf16.msra.mxu0 %v4523
    %4534 = vmatprep.subr.bf16.mxu0 0
    %4535 = vmatpush1.bf16.msra.mxu0 %v4522
    %4536 = vmatprep.subr.bf16.mxu0 0
    %4537 = vmatpush1.bf16.msra.mxu0 %v4521
    %4538 = vmatprep.subr.bf16.mxu0 0
    %4539 = vmatpush1.bf16.msra.mxu0 %v4520
    %4540 = vmatprep.subr.bf16.mxu0 0
    %4541 = vmatpush1.bf16.msra.mxu0 %v4519
    %4542 = vmatprep.subr.bf16.mxu0 0
    %4543 = vmatpush1.bf16.msra.mxu0 %v4518
    %4544 = vmatprep.subr.bf16.mxu0 0
    %4545 = vmatpush1.bf16.msra.mxu0 %v4517
    %4546 = vmatprep.subr.bf16.mxu0 0
    %4547 = vmatpush1.bf16.msra.mxu0 %v4516
    %4548 = vmatprep.subr.bf16.mxu0 0
    %4549 = vmatpush2.bf16.msra.mxu0 0
    %4550 = vmatprep.subr.bf16.mxu0 0
    %4551 = vmatpush2.bf16.msra.mxu0 0
    %4552 = vmatprep.subr.bf16.mxu0 0
    %4553 = vmatpush2.bf16.msra.mxu0 0
    %4554 = vmatprep.subr.bf16.mxu0 0
    %4555 = vmatpush2.bf16.msra.mxu0 0
    %4556 = vmatprep.subr.bf16.mxu0 0
    %4557 = vmatpush2.bf16.msra.mxu0 0
    %4558 = vmatprep.subr.bf16.mxu0 0
    %4559 = vmatpush2.bf16.msra.mxu0 0
    %4560 = vmatprep.subr.bf16.mxu0 0
    %4561 = vmatpush2.bf16.msra.mxu0 0
    %4562 = vmatprep.subr.bf16.mxu0 0
    %4563 = vmatpush2.bf16.msra.mxu0 0
    %4564 = vmatprep.mubr.bf16.mxu0 0
    %4565 = vmatmul.mubr.bf16.gmra.mxu0 %v4275
    %v4566 = vpop.f32.mrf.mxu0
    %v4567 = vadd.f32 %v4422, %v4566
    %v4568 = vpop.f32.mrf.mxu0
    %v4569 = vpop.f32.mrf.mxu0
    %v4570 = vadd.f32 %v4425, %v4569
    %v4571 = vpop.f32.mrf.mxu0
    %4572 = vmatprep.mubr.bf16.mxu0 0
    %4573 = vmatmul.mubr.bf16.gmra.mxu0 %v4276
    %v4574 = vpop.f32.mrf.mxu0
    %v4575 = vadd.f32 %v4430, %v4574
    %v4576 = vpop.f32.mrf.mxu0
    %v4577 = vpop.f32.mrf.mxu0
    %v4578 = vadd.f32 %v4433, %v4577
    %v4579 = vpop.f32.mrf.mxu0
    %4580 = vmatprep.mubr.bf16.mxu0 0
    %4581 = vmatmul.mubr.bf16.gmra.mxu0 %v4277
    %v4582 = vpop.f32.mrf.mxu0
    %v4583 = vadd.f32 %v4438, %v4582
    %v4584 = vpop.f32.mrf.mxu0
    %v4585 = vpop.f32.mrf.mxu0
    %v4586 = vadd.f32 %v4441, %v4585
    %v4587 = vpop.f32.mrf.mxu0
    %4588 = vmatprep.mubr.bf16.mxu0 0
    %4589 = vmatmul.mubr.bf16.gmra.mxu0 %v4278
    %v4590 = vpop.f32.mrf.mxu0
    %v4591 = vadd.f32 %v4446, %v4590
    %v4592 = vpop.f32.mrf.mxu0
    %v4593 = vpop.f32.mrf.mxu0
    %v4594 = vadd.f32 %v4449, %v4593
    %v4595 = vpop.f32.mrf.mxu0
    %4596 = vmatprep.mubr.bf16.mxu0 0
    %4597 = vmatmul.mubr.bf16.gmra.mxu0 %v4279
    %v4598 = vpop.f32.mrf.mxu0
    %v4599 = vadd.f32 %v4454, %v4598
    %v4600 = vpop.f32.mrf.mxu0
    %v4601 = vpop.f32.mrf.mxu0
    %v4602 = vadd.f32 %v4457, %v4601
    %v4603 = vpop.f32.mrf.mxu0
    %4604 = vmatprep.mubr.bf16.mxu0 0
    %4605 = vmatmul.mubr.bf16.gmra.mxu0 %v4280
    %v4606 = vpop.f32.mrf.mxu0
    %v4607 = vadd.f32 %v4462, %v4606
    %v4608 = vpop.f32.mrf.mxu0
    %v4609 = vpop.f32.mrf.mxu0
    %v4610 = vadd.f32 %v4465, %v4609
    %v4611 = vpop.f32.mrf.mxu0
    %4612 = vmatprep.mubr.bf16.mxu0 0
    %4613 = vmatmul.mubr.bf16.gmra.mxu0 %v4281
    %v4614 = vpop.f32.mrf.mxu0
    %v4615 = vadd.f32 %v4470, %v4614
    %v4616 = vpop.f32.mrf.mxu0
    %v4617 = vpop.f32.mrf.mxu0
    %v4618 = vadd.f32 %v4473, %v4617
    %v4619 = vpop.f32.mrf.mxu0
    %4620 = vmatprep.mubr.bf16.mxu0 0
    %4621 = vmatmul.mubr.bf16.gmra.mxu0 %v4282
    %v4622 = vpop.f32.mrf.mxu0
    %v4623 = vadd.f32 %v4478, %v4622
    %v4624 = vpop.f32.mrf.mxu0
    %v4625 = vpop.f32.mrf.mxu0
    %v4626 = vadd.f32 %v4481, %v4625
    %v4627 = vpop.f32.mrf.mxu0
    %4628 = vdwg.mxu0
    %v4645 = vunpack.c.l.b16 %v4323
    %v4646 = vunpack.c.l.b16 %v4324
    %v4647 = vunpack.c.l.b16 %v4325
    %v4648 = vunpack.c.l.b16 %v4326
    %v4649 = vunpack.c.l.b16 %v4327
    %v4650 = vunpack.c.l.b16 %v4328
    %v4651 = vunpack.c.l.b16 %v4329
    %v4652 = vunpack.c.l.b16 %v4330
    %v4653 = vunpack.c.l.b16 %v4331
    %v4654 = vunpack.c.l.b16 %v4332
    %v4655 = vunpack.c.l.b16 %v4333
    %v4656 = vunpack.c.l.b16 %v4334
    %v4657 = vunpack.c.l.b16 %v4335
    %v4658 = vunpack.c.l.b16 %v4336
    %v4659 = vunpack.c.l.b16 %v4337
    %v4660 = vunpack.c.l.b16 %v4338
    %v4661 = vpack.c.b16 %v4646, %v4645
    %v4662 = vpack.c.b16 %v4648, %v4647
    %v4663 = vpack.c.b16 %v4650, %v4649
    %v4664 = vpack.c.b16 %v4652, %v4651
    %v4665 = vpack.c.b16 %v4654, %v4653
    %v4666 = vpack.c.b16 %v4656, %v4655
    %v4667 = vpack.c.b16 %v4658, %v4657
    %v4668 = vpack.c.b16 %v4660, %v4659
    %4677 = vmatprep.subr.bf16.mxu0 0
    %4678 = vmatpush1.bf16.msra.mxu0 %v4668
    %4679 = vmatprep.subr.bf16.mxu0 0
    %4680 = vmatpush1.bf16.msra.mxu0 %v4667
    %4681 = vmatprep.subr.bf16.mxu0 0
    %4682 = vmatpush1.bf16.msra.mxu0 %v4666
    %4683 = vmatprep.subr.bf16.mxu0 0
    %4684 = vmatpush1.bf16.msra.mxu0 %v4665
    %4685 = vmatprep.subr.bf16.mxu0 0
    %4686 = vmatpush1.bf16.msra.mxu0 %v4664
    %4687 = vmatprep.subr.bf16.mxu0 0
    %4688 = vmatpush1.bf16.msra.mxu0 %v4663
    %4689 = vmatprep.subr.bf16.mxu0 0
    %4690 = vmatpush1.bf16.msra.mxu0 %v4662
    %4691 = vmatprep.subr.bf16.mxu0 0
    %4692 = vmatpush1.bf16.msra.mxu0 %v4661
    %4693 = vmatprep.subr.bf16.mxu0 0
    %4694 = vmatpush2.bf16.msra.mxu0 0
    %4695 = vmatprep.subr.bf16.mxu0 0
    %4696 = vmatpush2.bf16.msra.mxu0 0
    %4697 = vmatprep.subr.bf16.mxu0 0
    %4698 = vmatpush2.bf16.msra.mxu0 0
    %4699 = vmatprep.subr.bf16.mxu0 0
    %4700 = vmatpush2.bf16.msra.mxu0 0
    %4701 = vmatprep.subr.bf16.mxu0 0
    %4702 = vmatpush2.bf16.msra.mxu0 0
    %4703 = vmatprep.subr.bf16.mxu0 0
    %4704 = vmatpush2.bf16.msra.mxu0 0
    %4705 = vmatprep.subr.bf16.mxu0 0
    %4706 = vmatpush2.bf16.msra.mxu0 0
    %4707 = vmatprep.subr.bf16.mxu0 0
    %4708 = vmatpush2.bf16.msra.mxu0 0
    %4709 = vmatprep.mubr.bf16.mxu0 0
    %4710 = vmatmul.mubr.bf16.gmra.mxu0 %v4283
    %v4711 = vpop.f32.mrf.mxu0
    %v4712 = vadd.f32 0.0, %v4711
    %v4713 = vpop.f32.mrf.mxu0
    %v4714 = vpop.f32.mrf.mxu0
    %v4715 = vadd.f32 0.0, %v4714
    %v4716 = vpop.f32.mrf.mxu0
    %4717 = vmatprep.mubr.bf16.mxu0 0
    %4718 = vmatmul.mubr.bf16.gmra.mxu0 %v4284
    %v4719 = vpop.f32.mrf.mxu0
    %v4720 = vadd.f32 0.0, %v4719
    %v4721 = vpop.f32.mrf.mxu0
    %v4722 = vpop.f32.mrf.mxu0
    %v4723 = vadd.f32 0.0, %v4722
    %v4724 = vpop.f32.mrf.mxu0
    %4725 = vmatprep.mubr.bf16.mxu0 0
    %4726 = vmatmul.mubr.bf16.gmra.mxu0 %v4285
    %v4727 = vpop.f32.mrf.mxu0
    %v4728 = vadd.f32 0.0, %v4727
    %v4729 = vpop.f32.mrf.mxu0
    %v4730 = vpop.f32.mrf.mxu0
    %v4731 = vadd.f32 0.0, %v4730
    %v4732 = vpop.f32.mrf.mxu0
    %4733 = vmatprep.mubr.bf16.mxu0 0
    %4734 = vmatmul.mubr.bf16.gmra.mxu0 %v4286
    %v4735 = vpop.f32.mrf.mxu0
    %v4736 = vadd.f32 0.0, %v4735
    %v4737 = vpop.f32.mrf.mxu0
    %v4738 = vpop.f32.mrf.mxu0
    %v4739 = vadd.f32 0.0, %v4738
    %v4740 = vpop.f32.mrf.mxu0
    %4741 = vmatprep.mubr.bf16.mxu0 0
    %4742 = vmatmul.mubr.bf16.gmra.mxu0 %v4287
    %v4743 = vpop.f32.mrf.mxu0
    %v4744 = vadd.f32 0.0, %v4743
    %v4745 = vpop.f32.mrf.mxu0
    %v4746 = vpop.f32.mrf.mxu0
    %v4747 = vadd.f32 0.0, %v4746
    %v4748 = vpop.f32.mrf.mxu0
    %4749 = vmatprep.mubr.bf16.mxu0 0
    %4750 = vmatmul.mubr.bf16.gmra.mxu0 %v4288
    %v4751 = vpop.f32.mrf.mxu0
    %v4752 = vadd.f32 0.0, %v4751
    %v4753 = vpop.f32.mrf.mxu0
    %v4754 = vpop.f32.mrf.mxu0
    %v4755 = vadd.f32 0.0, %v4754
    %v4756 = vpop.f32.mrf.mxu0
    %4757 = vmatprep.mubr.bf16.mxu0 0
    %4758 = vmatmul.mubr.bf16.gmra.mxu0 %v4289
    %v4759 = vpop.f32.mrf.mxu0
    %v4760 = vadd.f32 0.0, %v4759
    %v4761 = vpop.f32.mrf.mxu0
    %v4762 = vpop.f32.mrf.mxu0
    %v4763 = vadd.f32 0.0, %v4762
    %v4764 = vpop.f32.mrf.mxu0
    %4765 = vmatprep.mubr.bf16.mxu0 0
    %4766 = vmatmul.mubr.bf16.gmra.mxu0 %v4290
    %v4767 = vpop.f32.mrf.mxu0
    %v4768 = vadd.f32 0.0, %v4767
    %v4769 = vpop.f32.mrf.mxu0
    %v4770 = vpop.f32.mrf.mxu0
    %v4771 = vadd.f32 0.0, %v4770
    %v4772 = vpop.f32.mrf.mxu0
    %4773 = vdwg.mxu0
    %v4774 = vadd.f32 %v4567, %v4712
    %v4775 = vadd.f32 %v4570, %v4715
    %v4776 = vadd.f32 %v4575, %v4720
    %v4777 = vadd.f32 %v4578, %v4723
    %v4778 = vadd.f32 %v4583, %v4728
    %v4779 = vadd.f32 %v4586, %v4731
    %v4780 = vadd.f32 %v4591, %v4736
    %v4781 = vadd.f32 %v4594, %v4739
    %v4782 = vadd.f32 %v4599, %v4744
    %v4783 = vadd.f32 %v4602, %v4747
    %v4784 = vadd.f32 %v4607, %v4752
    %v4785 = vadd.f32 %v4610, %v4755
    %v4786 = vadd.f32 %v4615, %v4760
    %v4787 = vadd.f32 %v4618, %v4763
    %v4788 = vadd.f32 %v4623, %v4768
    %v4789 = vadd.f32 %v4626, %v4771
    %4790 = vst [vmem:[%s18] sm:$0xff] %v4774
    %4791 = vst [vmem:[%s18 + $0x8] sm:$0xff] %v4775
    %4792 = vst [vmem:[%s18 + $0x10] sm:$0xff] %v4776
    %4793 = vst [vmem:[%s18 + $0x18] sm:$0xff] %v4777
    %4794 = vst [vmem:[%s18 + $0x20] sm:$0xff] %v4778
    %4795 = vst [vmem:[%s18 + $0x28] sm:$0xff] %v4779
    %4796 = vst [vmem:[%s18 + $0x30] sm:$0xff] %v4780
    %4797 = vst [vmem:[%s18 + $0x38] sm:$0xff] %v4781
    %4798 = vst [vmem:[%s18 + $0x40] sm:$0xff] %v4782
    %4799 = vst [vmem:[%s18 + $0x48] sm:$0xff] %v4783
    %4800 = vst [vmem:[%s18 + $0x50] sm:$0xff] %v4784
    %4801 = vst [vmem:[%s18 + $0x58] sm:$0xff] %v4785
    %4802 = vst [vmem:[%s18 + $0x60] sm:$0xff] %v4786
    %4803 = vst [vmem:[%s18 + $0x68] sm:$0xff] %v4787
    %4804 = vst [vmem:[%s18 + $0x70] sm:$0xff] %v4788
    %4805 = vst [vmem:[%s18 + $0x78] sm:$0xff] %v4789
    // Predicated region
    $region114: #{forward.1} parent=1 // pred_check
      _
    $region115: #{forward.1} parent=1 // pred_check_branch
      %4807 = sbr.rel (0) target = $region117
    $region116: #{forward.1} parent=1 // pred_region
      _
    $region117: #{forward.1} parent=1 // pred_fallthru
      _
    // Predicated region
    $region118: #{forward.1} parent=1 // pred_check
      _
    $region119: #{forward.1} parent=1 // pred_check_branch
      %4809 = sbr.rel (0) target = $region121
    $region120: #{forward.1} parent=1 // pred_region
      _
    $region121: #{forward.1} parent=1 // pred_fallthru
      _
    %4810 = vsyncpa [#allocation6], 1
    %4811 = vsyncpa [#allocation8], 1
    %4812 = vsyncpa [#allocation11], 1
    %4813 = vsyncpa [#allocation14], 1
    %4814 = vsyncpa [#allocation17], 1
    %4815 = vsyncpa [#allocation20], 1

</llo_original>
